<compile_context>
chip_gen: v7x
topology: tpu7x:2x2x1
jax: 0.10.0
libtpu: 0.0.40
codegen_flags: <defaults>
</compile_context>

<pallas_src>
import numpy as np
import jax
import jax.numpy as jnp
from jax import lax
from jax.experimental import pallas as pl
from jax.experimental.pallas import tpu as pltpu

# --- scaled-down config (consistent with the module: head_size = n_embd // n_head) ---
N_EMBD = 128
N_HEAD = 4
HEAD_SIZE = N_EMBD // N_HEAD
N_LAYER = 2
CONTEXT = 64
VOCAB = 65
VOCAB_PAD = 128          # lane-dense padded vocab for the kernel output
BATCH = 2
SEQ = CONTEXT            # T
NEG_INF = -1e30          # masked_fill(-inf) equivalent (exp underflows to exactly 0)


def _layernorm(x, g, b, eps=1e-5):
    mu = jnp.mean(x, axis=-1, keepdims=True)
    var = jnp.mean(jnp.square(x - mu), axis=-1, keepdims=True)
    return (x - mu) * lax.rsqrt(var + eps) * g + b


# ------------------------------ Pallas kernel ------------------------------

def gpt_forward_kernel(x_ref, ln1g_ref, ln1b_ref, wq_ref, wk_ref, wv_ref,
                       wproj_ref, bproj_ref, ln2g_ref, ln2b_ref,
                       w1_ref, b1_ref, w2_ref, b2_ref,
                       wh_ref, bh_ref, o_ref):
    x = x_ref[0]                                       # (T, C) f32, one batch element
    Tn = x.shape[0]
    bf16 = jnp.bfloat16

    row = lax.broadcasted_iota(jnp.int32, (Tn, Tn), 0)
    col = lax.broadcasted_iota(jnp.int32, (Tn, Tn), 1)
    causal = col <= row                                # tril mask, built once

    for l in range(N_LAYER):                           # unrolled: weights resident in VMEM
        # --- multi-head causal self-attention (pre-LN) ---
        hn = _layernorm(x, ln1g_ref[l], ln1b_ref[l])
        hn_b = hn.astype(bf16)
        sa = jnp.zeros((Tn, N_EMBD), jnp.float32)
        for h in range(N_HEAD):                        # per-head weights -> no lane slicing
            q = jnp.dot(hn_b, wq_ref[l, h], preferred_element_type=jnp.float32)  # scale folded in
            k = jnp.dot(hn_b, wk_ref[l, h], preferred_element_type=jnp.float32)
            v = jnp.dot(hn_b, wv_ref[l, h], preferred_element_type=jnp.float32)
            wei = lax.dot_general(q.astype(bf16), k.astype(bf16),
                                  (((1,), (1,)), ((), ())),
                                  preferred_element_type=jnp.float32)            # (T, T)
            wei = jnp.where(causal, wei, NEG_INF)
            wei = wei - jnp.max(wei, axis=-1, keepdims=True)
            p = jnp.exp(wei)
            p = p * pl.reciprocal(jnp.sum(p, axis=-1, keepdims=True), approx=True)
            out_h = jnp.dot(p.astype(bf16), v.astype(bf16),
                            preferred_element_type=jnp.float32)                  # (T, D)
            # accumulate projection per head instead of concat + single proj matmul
            sa = sa + jnp.dot(out_h.astype(bf16), wproj_ref[l, h],
                              preferred_element_type=jnp.float32)
        x = x + sa + bproj_ref[l]

        # --- feed forward ---
        h2 = _layernorm(x, ln2g_ref[l], ln2b_ref[l])
        ff = jnp.dot(h2.astype(bf16), w1_ref[l],
                     preferred_element_type=jnp.float32) + b1_ref[l]
        ff = jnp.maximum(ff, 0.0)
        ff = jnp.dot(ff.astype(bf16), w2_ref[l],
                     preferred_element_type=jnp.float32) + b2_ref[l]
        x = x + ff

    # --- lm_head (module's forward skips ln_f); vocab padded to 128 lanes ---
    logits = jnp.dot(x.astype(bf16), wh_ref[...],
                     preferred_element_type=jnp.float32) + bh_ref[...]
    o_ref[0] = logits


# ------------------------------ wrappers ------------------------------

def _w_spec(arr):
    zeros = (0,) * arr.ndim
    return pl.BlockSpec(arr.shape, lambda b, _z=zeros: _z)


def prepare_pallas_params(params):
    """Restack / pad / cast the natural per-layer parameters for the fused kernel."""
    C, H, D = N_EMBD, N_HEAD, HEAD_SIZE
    scale = float(C) ** (-0.5)                 # PyTorch uses C ** -0.5 with C = n_embd
    bf16 = jnp.bfloat16

    def stack(name):
        return jnp.stack([blk[name] for blk in params['blocks']])

    def per_head_in(w):                        # (L, C, C) -> (L, H, C, D) (column blocks)
        return w.reshape(N_LAYER, C, H, D).transpose(0, 2, 1, 3)

    def per_head_out(w):                       # (L, C, C) -> (L, H, D, C) (row blocks)
        return w.reshape(N_LAYER, H, D, C)

    w_head = jnp.zeros((C, VOCAB_PAD), jnp.float32).at[:, :VOCAB].set(params['w_head'])
    b_head = jnp.zeros((1, VOCAB_PAD), jnp.float32).at[:, :VOCAB].set(params['b_head'])

    return dict(
        tok_emb=params['tok_emb'], pos_emb=params['pos_emb'],
        ln1_g=stack('ln1_g'), ln1_b=stack('ln1_b'),
        wq=(per_head_in(stack('wq')) * scale).astype(bf16),   # attn scale folded into Q
        wk=per_head_in(stack('wk')).astype(bf16),
        wv=per_head_in(stack('wv')).astype(bf16),
        wproj=per_head_out(stack('wproj')).astype(bf16),
        bproj=stack('bproj'),
        ln2_g=stack('ln2_g'), ln2_b=stack('ln2_b'),
        w1=stack('w1').astype(bf16), b1=stack('b1'),
        w2=stack('w2').astype(bf16), b2=stack('b2'),
        w_head=w_head.astype(bf16), b_head=b_head,
    )


def forward_pallas(idx, prep):
    Bn, Tn = idx.shape
    # embedding gathers: plain JAX glue (nn.Embedding lookups)
    x = prep['tok_emb'][idx] + prep['pos_emb'][:Tn]
    w_order = [prep[k] for k in ('ln1_g', 'ln1_b', 'wq', 'wk', 'wv', 'wproj',
                                 'bproj', 'ln2_g', 'ln2_b', 'w1', 'b1', 'w2',
                                 'b2', 'w_head', 'b_head')]
    act_in = pl.BlockSpec((1, Tn, N_EMBD), lambda b: (b, 0, 0))
    act_out = pl.BlockSpec((1, Tn, VOCAB_PAD), lambda b: (b, 0, 0))
    logits = pl.pallas_call(
        gpt_forward_kernel,
        out_shape=jax.ShapeDtypeStruct((Bn, Tn, VOCAB_PAD), jnp.float32),
        grid_spec=pltpu.PrefetchScalarGridSpec(
            num_scalar_prefetch=0,
            grid=(Bn,),
            in_specs=[act_in] + [_w_spec(w) for w in w_order],
            out_specs=act_out),
        compiler_params=pltpu.CompilerParams(dimension_semantics=("parallel",)),
    )(x, *w_order)
    # targets=None path of the PyTorch forward -> loss is None; return logits.
    return logits[..., :VOCAB]


# ------------------------------ pure-JAX reference ------------------------------

def ref_forward(idx, params):
    Tn = idx.shape[1]
    x = params['tok_emb'][idx] + params['pos_emb'][:Tn]
    for blk in params['blocks']:
        h = _layernorm(x, blk['ln1_g'], blk['ln1_b'])
        q, k, v = h @ blk['wq'], h @ blk['wk'], h @ blk['wv']
        Bn, T, C = x.shape
        qh = q.reshape(Bn, T, N_HEAD, HEAD_SIZE).transpose(0, 2, 1, 3)
        kh = k.reshape(Bn, T, N_HEAD, HEAD_SIZE).transpose(0, 2, 1, 3)
        vh = v.reshape(Bn, T, N_HEAD, HEAD_SIZE).transpose(0, 2, 1, 3)
        wei = jnp.einsum('bhtd,bhsd->bhts', qh, kh) * (float(N_EMBD) ** -0.5)
        mask = jnp.tril(jnp.ones((T, T), bool))
        wei = jnp.where(mask, wei, NEG_INF)
        wei = jax.nn.softmax(wei, axis=-1)
        out = jnp.einsum('bhts,bhsd->bhtd', wei, vh)
        out = out.transpose(0, 2, 1, 3).reshape(Bn, T, C)
        x = x + out @ blk['wproj'] + blk['bproj']
        h2 = _layernorm(x, blk['ln2_g'], blk['ln2_b'])
        ff = jnp.maximum(h2 @ blk['w1'] + blk['b1'], 0.0) @ blk['w2'] + blk['b2']
        x = x + ff
    # module's forward applies lm_head directly (ln_f is defined but never used)
    return x @ params['w_head'] + params['b_head']


# ------------------------------ deterministic params ------------------------------

def init_params(key):
    def nrm(k, shape, scale=0.02):
        return scale * jax.random.normal(k, shape, jnp.float32)

    keys = jax.random.split(key, 4 + N_LAYER)
    params = {
        'tok_emb': nrm(keys[0], (VOCAB, N_EMBD)),
        'pos_emb': nrm(keys[1], (CONTEXT, N_EMBD)),
        'w_head': nrm(keys[2], (N_EMBD, VOCAB)),
        'b_head': nrm(keys[3], (1, VOCAB)),
        'blocks': [],
    }
    for l in range(N_LAYER):
        ks = jax.random.split(keys[4 + l], 8)
        params['blocks'].append({
            'ln1_g': jnp.ones((1, N_EMBD), jnp.float32),
            'ln1_b': jnp.zeros((1, N_EMBD), jnp.float32),
            'wq': nrm(ks[0], (N_EMBD, N_EMBD)),
            'wk': nrm(ks[1], (N_EMBD, N_EMBD)),
            'wv': nrm(ks[2], (N_EMBD, N_EMBD)),
            'wproj': nrm(ks[3], (N_EMBD, N_EMBD)),
            'bproj': nrm(ks[4], (1, N_EMBD)),
            'ln2_g': jnp.ones((1, N_EMBD), jnp.float32),
            'ln2_b': jnp.zeros((1, N_EMBD), jnp.float32),
            'w1': nrm(ks[5], (N_EMBD, 4 * N_EMBD)),
            'b1': nrm(ks[6], (1, 4 * N_EMBD)),
            'w2': nrm(ks[7], (4 * N_EMBD, N_EMBD)),
            'b2': jnp.zeros((1, N_EMBD), jnp.float32),
        })
    return params


if __name__ == "__main__":
    root = jax.random.PRNGKey(0)
    k_params, k_idx = jax.random.split(root)
    params = init_params(k_params)
    prep = prepare_pallas_params(params)
    idx = jax.random.randint(k_idx, (BATCH, SEQ), 0, VOCAB, dtype=jnp.int32)

    logits = jax.block_until_ready(forward_pallas(idx, prep))
    assert logits.shape == (BATCH, SEQ, VOCAB)

    ref = jax.block_until_ready(ref_forward(idx, params))
    np.testing.assert_allclose(np.asarray(logits), np.asarray(ref),
                               rtol=1e-2, atol=1e-2)
    print("KERNEL_OK")
</pallas_src>

<mosaic_0001>
module attributes {stable_mosaic.version = 11 : i64} {
  func.func @gpt_forward_kernel(%arg0: i32, %arg1: memref<1x64x128xf32, #tpu.memory_space<vmem>>, %arg2: memref<2x1x128xf32, #tpu.memory_space<vmem>>, %arg3: memref<2x1x128xf32, #tpu.memory_space<vmem>>, %arg4: memref<2x4x128x32xbf16, #tpu.memory_space<vmem>>, %arg5: memref<2x4x128x32xbf16, #tpu.memory_space<vmem>>, %arg6: memref<2x4x128x32xbf16, #tpu.memory_space<vmem>>, %arg7: memref<2x4x32x128xbf16, #tpu.memory_space<vmem>>, %arg8: memref<2x1x128xf32, #tpu.memory_space<vmem>>, %arg9: memref<2x1x128xf32, #tpu.memory_space<vmem>>, %arg10: memref<2x1x128xf32, #tpu.memory_space<vmem>>, %arg11: memref<2x128x512xbf16, #tpu.memory_space<vmem>>, %arg12: memref<2x1x512xf32, #tpu.memory_space<vmem>>, %arg13: memref<2x512x128xbf16, #tpu.memory_space<vmem>>, %arg14: memref<2x1x128xf32, #tpu.memory_space<vmem>>, %arg15: memref<128x128xbf16, #tpu.memory_space<vmem>>, %arg16: memref<1x128xf32, #tpu.memory_space<vmem>>, %arg17: memref<1x64x128xf32, #tpu.memory_space<vmem>>) attributes {dimension_semantics = [#tpu.dimension_semantics<parallel>], iteration_bounds = array<i64: 2>, scalar_prefetch = 0 : i64, scratch_operands = 0 : i64, tpu.core_type = #tpu.core_type<tc>, window_params = [{transform_indices = @transform_0, window_bounds = array<i64: 1, 64, 128>}, {pipeline_mode = #tpu.pipeline_mode<synchronous>, transform_indices = @transform_1, window_bounds = array<i64: 2, 1, 128>}, {pipeline_mode = #tpu.pipeline_mode<synchronous>, transform_indices = @transform_2, window_bounds = array<i64: 2, 1, 128>}, {pipeline_mode = #tpu.pipeline_mode<synchronous>, transform_indices = @transform_3, window_bounds = array<i64: 2, 4, 128, 32>}, {pipeline_mode = #tpu.pipeline_mode<synchronous>, transform_indices = @transform_4, window_bounds = array<i64: 2, 4, 128, 32>}, {pipeline_mode = #tpu.pipeline_mode<synchronous>, transform_indices = @transform_5, window_bounds = array<i64: 2, 4, 128, 32>}, {pipeline_mode = #tpu.pipeline_mode<synchronous>, transform_indices = @transform_6, window_bounds = array<i64: 2, 4, 32, 128>}, {pipeline_mode = #tpu.pipeline_mode<synchronous>, transform_indices = @transform_7, window_bounds = array<i64: 2, 1, 128>}, {pipeline_mode = #tpu.pipeline_mode<synchronous>, transform_indices = @transform_8, window_bounds = array<i64: 2, 1, 128>}, {pipeline_mode = #tpu.pipeline_mode<synchronous>, transform_indices = @transform_9, window_bounds = array<i64: 2, 1, 128>}, {pipeline_mode = #tpu.pipeline_mode<synchronous>, transform_indices = @transform_10, window_bounds = array<i64: 2, 128, 512>}, {pipeline_mode = #tpu.pipeline_mode<synchronous>, transform_indices = @transform_11, window_bounds = array<i64: 2, 1, 512>}, {pipeline_mode = #tpu.pipeline_mode<synchronous>, transform_indices = @transform_12, window_bounds = array<i64: 2, 512, 128>}, {pipeline_mode = #tpu.pipeline_mode<synchronous>, transform_indices = @transform_13, window_bounds = array<i64: 2, 1, 128>}, {pipeline_mode = #tpu.pipeline_mode<synchronous>, transform_indices = @transform_14, window_bounds = array<i64: 128, 128>}, {pipeline_mode = #tpu.pipeline_mode<synchronous>, transform_indices = @transform_15, window_bounds = array<i64: 1, 128>}, {transform_indices = @transform_16, window_bounds = array<i64: 1, 64, 128>}]} {
    %c0 = arith.constant 0 : index
    %c0_0 = arith.constant 0 : index
    %c0_1 = arith.constant 0 : index
    %0 = vector.load %arg1[%c0, %c0_0, %c0_1] : memref<1x64x128xf32, #tpu.memory_space<vmem>>, vector<1x64x128xf32>
    %1 = vector.shape_cast %0 : vector<1x64x128xf32> to vector<64x128xf32>
    %2 = tpu.iota {dimensions = array<i32: 0>} : vector<64x64xi32>
    %3 = tpu.iota {dimensions = array<i32: 1>} : vector<64x64xi32>
    %4 = arith.cmpi sle, %3, %2 : vector<64x64xi32>
    %c0_2 = arith.constant 0 : index
    %c0_3 = arith.constant 0 : index
    %c0_4 = arith.constant 0 : index
    %5 = vector.load %arg2[%c0_2, %c0_3, %c0_4] : memref<2x1x128xf32, #tpu.memory_space<vmem>>, vector<1x1x128xf32>
    %6 = vector.shape_cast %5 : vector<1x1x128xf32> to vector<1x128xf32>
    %c0_5 = arith.constant 0 : index
    %c0_6 = arith.constant 0 : index
    %c0_7 = arith.constant 0 : index
    %7 = vector.load %arg3[%c0_5, %c0_6, %c0_7] : memref<2x1x128xf32, #tpu.memory_space<vmem>>, vector<1x1x128xf32>
    %8 = vector.shape_cast %7 : vector<1x1x128xf32> to vector<1x128xf32>
    %cst = arith.constant dense<0.000000e+00> : vector<64xf32>
    %9 = vector.multi_reduction <add>, %1, %cst [1] : vector<64x128xf32> to vector<64xf32>
    %10 = vector.shape_cast %9 : vector<64xf32> to vector<64x1xf32>
    %cst_8 = arith.constant 1.280000e+02 : f32
    %11 = vector.broadcast %cst_8 : f32 to vector<64x1xf32>
    %12 = arith.divf %10, %11 : vector<64x1xf32>
    %13 = vector.broadcast %12 : vector<64x1xf32> to vector<64x128xf32>
    %14 = arith.subf %1, %13 : vector<64x128xf32>
    %15 = arith.mulf %14, %14 : vector<64x128xf32>
    %cst_9 = arith.constant dense<0.000000e+00> : vector<64xf32>
    %16 = vector.multi_reduction <add>, %15, %cst_9 [1] : vector<64x128xf32> to vector<64xf32>
    %17 = vector.shape_cast %16 : vector<64xf32> to vector<64x1xf32>
    %cst_10 = arith.constant 1.280000e+02 : f32
    %18 = vector.broadcast %cst_10 : f32 to vector<64x1xf32>
    %19 = arith.divf %17, %18 : vector<64x1xf32>
    %20 = vector.broadcast %12 : vector<64x1xf32> to vector<64x128xf32>
    %21 = arith.subf %1, %20 : vector<64x128xf32>
    %cst_11 = arith.constant 9.99999974E-6 : f32
    %22 = vector.broadcast %cst_11 : f32 to vector<64x1xf32>
    %23 = arith.addf %19, %22 : vector<64x1xf32>
    %24 = math.rsqrt %23 : vector<64x1xf32>
    %25 = vector.broadcast %24 : vector<64x1xf32> to vector<64x128xf32>
    %26 = arith.mulf %21, %25 : vector<64x128xf32>
    %27 = vector.broadcast %6 : vector<1x128xf32> to vector<64x128xf32>
    %28 = arith.mulf %26, %27 : vector<64x128xf32>
    %29 = vector.broadcast %8 : vector<1x128xf32> to vector<64x128xf32>
    %30 = arith.addf %28, %29 : vector<64x128xf32>
    %31 = arith.truncf %30 : vector<64x128xf32> to vector<64x128xbf16>
    %cst_12 = arith.constant 0.000000e+00 : f32
    %32 = vector.broadcast %cst_12 : f32 to vector<64x128xf32>
    %c0_13 = arith.constant 0 : index
    %c0_14 = arith.constant 0 : index
    %c0_15 = arith.constant 0 : index
    %c0_16 = arith.constant 0 : index
    %33 = vector.load %arg4[%c0_13, %c0_14, %c0_15, %c0_16] : memref<2x4x128x32xbf16, #tpu.memory_space<vmem>>, vector<1x1x128x32xbf16>
    %34 = vector.shape_cast %33 : vector<1x1x128x32xbf16> to vector<128x32xbf16>
    %cst_17 = arith.constant dense<0.000000e+00> : vector<64x32xf32>
    %35 = tpu.matmul %31, %34, %cst_17 {dimension_numbers = #tpu.dot_dimension_numbers<[1], [0], [0], [1], [0, 0, 1, 1], [], []>} : vector<64x128xbf16>, vector<128x32xbf16>, vector<64x32xf32> -> vector<64x32xf32>
    %c0_18 = arith.constant 0 : index
    %c0_19 = arith.constant 0 : index
    %c0_20 = arith.constant 0 : index
    %c0_21 = arith.constant 0 : index
    %36 = vector.load %arg5[%c0_18, %c0_19, %c0_20, %c0_21] : memref<2x4x128x32xbf16, #tpu.memory_space<vmem>>, vector<1x1x128x32xbf16>
    %37 = vector.shape_cast %36 : vector<1x1x128x32xbf16> to vector<128x32xbf16>
    %cst_22 = arith.constant dense<0.000000e+00> : vector<64x32xf32>
    %38 = tpu.matmul %31, %37, %cst_22 {dimension_numbers = #tpu.dot_dimension_numbers<[1], [0], [0], [1], [0, 0, 1, 1], [], []>} : vector<64x128xbf16>, vector<128x32xbf16>, vector<64x32xf32> -> vector<64x32xf32>
    %c0_23 = arith.constant 0 : index
    %c0_24 = arith.constant 0 : index
    %c0_25 = arith.constant 0 : index
    %c0_26 = arith.constant 0 : index
    %39 = vector.load %arg6[%c0_23, %c0_24, %c0_25, %c0_26] : memref<2x4x128x32xbf16, #tpu.memory_space<vmem>>, vector<1x1x128x32xbf16>
    %40 = vector.shape_cast %39 : vector<1x1x128x32xbf16> to vector<128x32xbf16>
    %cst_27 = arith.constant dense<0.000000e+00> : vector<64x32xf32>
    %41 = tpu.matmul %31, %40, %cst_27 {dimension_numbers = #tpu.dot_dimension_numbers<[1], [0], [0], [1], [0, 0, 1, 1], [], []>} : vector<64x128xbf16>, vector<128x32xbf16>, vector<64x32xf32> -> vector<64x32xf32>
    %42 = arith.truncf %35 : vector<64x32xf32> to vector<64x32xbf16>
    %43 = arith.truncf %38 : vector<64x32xf32> to vector<64x32xbf16>
    %cst_28 = arith.constant dense<0.000000e+00> : vector<64x64xf32>
    %44 = tpu.matmul %42, %43, %cst_28 {dimension_numbers = #tpu.dot_dimension_numbers<[1], [1], [0], [0], [0, 0, 1, 0], [], []>} : vector<64x32xbf16>, vector<64x32xbf16>, vector<64x64xf32> -> vector<64x64xf32>
    %cst_29 = arith.constant -1.000000e+30 : f32
    %45 = vector.broadcast %cst_29 : f32 to vector<64x64xf32>
    %46 = arith.select %4, %44, %45 : vector<64x64xi1>, vector<64x64xf32>
    %cst_30 = arith.constant dense<0xFF800000> : vector<64xf32>
    %47 = vector.multi_reduction <maximumf>, %46, %cst_30 [1] : vector<64x64xf32> to vector<64xf32>
    %48 = vector.shape_cast %47 : vector<64xf32> to vector<64x1xf32>
    %49 = vector.broadcast %48 : vector<64x1xf32> to vector<64x64xf32>
    %50 = arith.subf %46, %49 : vector<64x64xf32>
    %51 = math.exp %50 : vector<64x64xf32>
    %cst_31 = arith.constant dense<0.000000e+00> : vector<64xf32>
    %52 = vector.multi_reduction <add>, %51, %cst_31 [1] : vector<64x64xf32> to vector<64xf32>
    %53 = vector.shape_cast %52 : vector<64xf32> to vector<64x1xf32>
    %54 = tpu.reciprocal %53 {approx = true} : vector<64x1xf32> -> vector<64x1xf32>
    %55 = vector.broadcast %54 : vector<64x1xf32> to vector<64x64xf32>
    %56 = arith.mulf %51, %55 : vector<64x64xf32>
    %57 = arith.truncf %56 : vector<64x64xf32> to vector<64x64xbf16>
    %58 = arith.truncf %41 : vector<64x32xf32> to vector<64x32xbf16>
    %cst_32 = arith.constant dense<0.000000e+00> : vector<64x32xf32>
    %59 = tpu.matmul %57, %58, %cst_32 {dimension_numbers = #tpu.dot_dimension_numbers<[1], [0], [0], [1], [0, 0, 1, 1], [], []>} : vector<64x64xbf16>, vector<64x32xbf16>, vector<64x32xf32> -> vector<64x32xf32>
    %60 = arith.truncf %59 : vector<64x32xf32> to vector<64x32xbf16>
    %c0_33 = arith.constant 0 : index
    %c0_34 = arith.constant 0 : index
    %c0_35 = arith.constant 0 : index
    %c0_36 = arith.constant 0 : index
    %61 = vector.load %arg7[%c0_33, %c0_34, %c0_35, %c0_36] : memref<2x4x32x128xbf16, #tpu.memory_space<vmem>>, vector<1x1x32x128xbf16>
    %62 = vector.shape_cast %61 : vector<1x1x32x128xbf16> to vector<32x128xbf16>
    %cst_37 = arith.constant dense<0.000000e+00> : vector<64x128xf32>
    %63 = tpu.matmul %60, %62, %cst_37 {dimension_numbers = #tpu.dot_dimension_numbers<[1], [0], [0], [1], [0, 0, 1, 1], [], []>} : vector<64x32xbf16>, vector<32x128xbf16>, vector<64x128xf32> -> vector<64x128xf32>
    %64 = arith.addf %32, %63 : vector<64x128xf32>
    %c0_38 = arith.constant 0 : index
    %c1 = arith.constant 1 : index
    %c0_39 = arith.constant 0 : index
    %c0_40 = arith.constant 0 : index
    %65 = vector.load %arg4[%c0_38, %c1, %c0_39, %c0_40] : memref<2x4x128x32xbf16, #tpu.memory_space<vmem>>, vector<1x1x128x32xbf16>
    %66 = vector.shape_cast %65 : vector<1x1x128x32xbf16> to vector<128x32xbf16>
    %cst_41 = arith.constant dense<0.000000e+00> : vector<64x32xf32>
    %67 = tpu.matmul %31, %66, %cst_41 {dimension_numbers = #tpu.dot_dimension_numbers<[1], [0], [0], [1], [0, 0, 1, 1], [], []>} : vector<64x128xbf16>, vector<128x32xbf16>, vector<64x32xf32> -> vector<64x32xf32>
    %c0_42 = arith.constant 0 : index
    %c1_43 = arith.constant 1 : index
    %c0_44 = arith.constant 0 : index
    %c0_45 = arith.constant 0 : index
    %68 = vector.load %arg5[%c0_42, %c1_43, %c0_44, %c0_45] : memref<2x4x128x32xbf16, #tpu.memory_space<vmem>>, vector<1x1x128x32xbf16>
    %69 = vector.shape_cast %68 : vector<1x1x128x32xbf16> to vector<128x32xbf16>
    %cst_46 = arith.constant dense<0.000000e+00> : vector<64x32xf32>
    %70 = tpu.matmul %31, %69, %cst_46 {dimension_numbers = #tpu.dot_dimension_numbers<[1], [0], [0], [1], [0, 0, 1, 1], [], []>} : vector<64x128xbf16>, vector<128x32xbf16>, vector<64x32xf32> -> vector<64x32xf32>
    %c0_47 = arith.constant 0 : index
    %c1_48 = arith.constant 1 : index
    %c0_49 = arith.constant 0 : index
    %c0_50 = arith.constant 0 : index
    %71 = vector.load %arg6[%c0_47, %c1_48, %c0_49, %c0_50] : memref<2x4x128x32xbf16, #tpu.memory_space<vmem>>, vector<1x1x128x32xbf16>
    %72 = vector.shape_cast %71 : vector<1x1x128x32xbf16> to vector<128x32xbf16>
    %cst_51 = arith.constant dense<0.000000e+00> : vector<64x32xf32>
    %73 = tpu.matmul %31, %72, %cst_51 {dimension_numbers = #tpu.dot_dimension_numbers<[1], [0], [0], [1], [0, 0, 1, 1], [], []>} : vector<64x128xbf16>, vector<128x32xbf16>, vector<64x32xf32> -> vector<64x32xf32>
    %74 = arith.truncf %67 : vector<64x32xf32> to vector<64x32xbf16>
    %75 = arith.truncf %70 : vector<64x32xf32> to vector<64x32xbf16>
    %cst_52 = arith.constant dense<0.000000e+00> : vector<64x64xf32>
    %76 = tpu.matmul %74, %75, %cst_52 {dimension_numbers = #tpu.dot_dimension_numbers<[1], [1], [0], [0], [0, 0, 1, 0], [], []>} : vector<64x32xbf16>, vector<64x32xbf16>, vector<64x64xf32> -> vector<64x64xf32>
    %cst_53 = arith.constant -1.000000e+30 : f32
    %77 = vector.broadcast %cst_53 : f32 to vector<64x64xf32>
    %78 = arith.select %4, %76, %77 : vector<64x64xi1>, vector<64x64xf32>
    %cst_54 = arith.constant dense<0xFF800000> : vector<64xf32>
    %79 = vector.multi_reduction <maximumf>, %78, %cst_54 [1] : vector<64x64xf32> to vector<64xf32>
    %80 = vector.shape_cast %79 : vector<64xf32> to vector<64x1xf32>
    %81 = vector.broadcast %80 : vector<64x1xf32> to vector<64x64xf32>
    %82 = arith.subf %78, %81 : vector<64x64xf32>
    %83 = math.exp %82 : vector<64x64xf32>
    %cst_55 = arith.constant dense<0.000000e+00> : vector<64xf32>
    %84 = vector.multi_reduction <add>, %83, %cst_55 [1] : vector<64x64xf32> to vector<64xf32>
    %85 = vector.shape_cast %84 : vector<64xf32> to vector<64x1xf32>
    %86 = tpu.reciprocal %85 {approx = true} : vector<64x1xf32> -> vector<64x1xf32>
    %87 = vector.broadcast %86 : vector<64x1xf32> to vector<64x64xf32>
    %88 = arith.mulf %83, %87 : vector<64x64xf32>
    %89 = arith.truncf %88 : vector<64x64xf32> to vector<64x64xbf16>
    %90 = arith.truncf %73 : vector<64x32xf32> to vector<64x32xbf16>
    %cst_56 = arith.constant dense<0.000000e+00> : vector<64x32xf32>
    %91 = tpu.matmul %89, %90, %cst_56 {dimension_numbers = #tpu.dot_dimension_numbers<[1], [0], [0], [1], [0, 0, 1, 1], [], []>} : vector<64x64xbf16>, vector<64x32xbf16>, vector<64x32xf32> -> vector<64x32xf32>
    %92 = arith.truncf %91 : vector<64x32xf32> to vector<64x32xbf16>
    %c0_57 = arith.constant 0 : index
    %c1_58 = arith.constant 1 : index
    %c0_59 = arith.constant 0 : index
    %c0_60 = arith.constant 0 : index
    %93 = vector.load %arg7[%c0_57, %c1_58, %c0_59, %c0_60] : memref<2x4x32x128xbf16, #tpu.memory_space<vmem>>, vector<1x1x32x128xbf16>
    %94 = vector.shape_cast %93 : vector<1x1x32x128xbf16> to vector<32x128xbf16>
    %cst_61 = arith.constant dense<0.000000e+00> : vector<64x128xf32>
    %95 = tpu.matmul %92, %94, %cst_61 {dimension_numbers = #tpu.dot_dimension_numbers<[1], [0], [0], [1], [0, 0, 1, 1], [], []>} : vector<64x32xbf16>, vector<32x128xbf16>, vector<64x128xf32> -> vector<64x128xf32>
    %96 = arith.addf %64, %95 : vector<64x128xf32>
    %c0_62 = arith.constant 0 : index
    %c2 = arith.constant 2 : index
    %c0_63 = arith.constant 0 : index
    %c0_64 = arith.constant 0 : index
    %97 = vector.load %arg4[%c0_62, %c2, %c0_63, %c0_64] : memref<2x4x128x32xbf16, #tpu.memory_space<vmem>>, vector<1x1x128x32xbf16>
    %98 = vector.shape_cast %97 : vector<1x1x128x32xbf16> to vector<128x32xbf16>
    %cst_65 = arith.constant dense<0.000000e+00> : vector<64x32xf32>
    %99 = tpu.matmul %31, %98, %cst_65 {dimension_numbers = #tpu.dot_dimension_numbers<[1], [0], [0], [1], [0, 0, 1, 1], [], []>} : vector<64x128xbf16>, vector<128x32xbf16>, vector<64x32xf32> -> vector<64x32xf32>
    %c0_66 = arith.constant 0 : index
    %c2_67 = arith.constant 2 : index
    %c0_68 = arith.constant 0 : index
    %c0_69 = arith.constant 0 : index
    %100 = vector.load %arg5[%c0_66, %c2_67, %c0_68, %c0_69] : memref<2x4x128x32xbf16, #tpu.memory_space<vmem>>, vector<1x1x128x32xbf16>
    %101 = vector.shape_cast %100 : vector<1x1x128x32xbf16> to vector<128x32xbf16>
    %cst_70 = arith.constant dense<0.000000e+00> : vector<64x32xf32>
    %102 = tpu.matmul %31, %101, %cst_70 {dimension_numbers = #tpu.dot_dimension_numbers<[1], [0], [0], [1], [0, 0, 1, 1], [], []>} : vector<64x128xbf16>, vector<128x32xbf16>, vector<64x32xf32> -> vector<64x32xf32>
    %c0_71 = arith.constant 0 : index
    %c2_72 = arith.constant 2 : index
    %c0_73 = arith.constant 0 : index
    %c0_74 = arith.constant 0 : index
    %103 = vector.load %arg6[%c0_71, %c2_72, %c0_73, %c0_74] : memref<2x4x128x32xbf16, #tpu.memory_space<vmem>>, vector<1x1x128x32xbf16>
    %104 = vector.shape_cast %103 : vector<1x1x128x32xbf16> to vector<128x32xbf16>
    %cst_75 = arith.constant dense<0.000000e+00> : vector<64x32xf32>
    %105 = tpu.matmul %31, %104, %cst_75 {dimension_numbers = #tpu.dot_dimension_numbers<[1], [0], [0], [1], [0, 0, 1, 1], [], []>} : vector<64x128xbf16>, vector<128x32xbf16>, vector<64x32xf32> -> vector<64x32xf32>
    %106 = arith.truncf %99 : vector<64x32xf32> to vector<64x32xbf16>
    %107 = arith.truncf %102 : vector<64x32xf32> to vector<64x32xbf16>
    %cst_76 = arith.constant dense<0.000000e+00> : vector<64x64xf32>
    %108 = tpu.matmul %106, %107, %cst_76 {dimension_numbers = #tpu.dot_dimension_numbers<[1], [1], [0], [0], [0, 0, 1, 0], [], []>} : vector<64x32xbf16>, vector<64x32xbf16>, vector<64x64xf32> -> vector<64x64xf32>
    %cst_77 = arith.constant -1.000000e+30 : f32
    %109 = vector.broadcast %cst_77 : f32 to vector<64x64xf32>
    %110 = arith.select %4, %108, %109 : vector<64x64xi1>, vector<64x64xf32>
    %cst_78 = arith.constant dense<0xFF800000> : vector<64xf32>
    %111 = vector.multi_reduction <maximumf>, %110, %cst_78 [1] : vector<64x64xf32> to vector<64xf32>
    %112 = vector.shape_cast %111 : vector<64xf32> to vector<64x1xf32>
    %113 = vector.broadcast %112 : vector<64x1xf32> to vector<64x64xf32>
    %114 = arith.subf %110, %113 : vector<64x64xf32>
    %115 = math.exp %114 : vector<64x64xf32>
    %cst_79 = arith.constant dense<0.000000e+00> : vector<64xf32>
    %116 = vector.multi_reduction <add>, %115, %cst_79 [1] : vector<64x64xf32> to vector<64xf32>
    %117 = vector.shape_cast %116 : vector<64xf32> to vector<64x1xf32>
    %118 = tpu.reciprocal %117 {approx = true} : vector<64x1xf32> -> vector<64x1xf32>
    %119 = vector.broadcast %118 : vector<64x1xf32> to vector<64x64xf32>
    %120 = arith.mulf %115, %119 : vector<64x64xf32>
    %121 = arith.truncf %120 : vector<64x64xf32> to vector<64x64xbf16>
    %122 = arith.truncf %105 : vector<64x32xf32> to vector<64x32xbf16>
    %cst_80 = arith.constant dense<0.000000e+00> : vector<64x32xf32>
    %123 = tpu.matmul %121, %122, %cst_80 {dimension_numbers = #tpu.dot_dimension_numbers<[1], [0], [0], [1], [0, 0, 1, 1], [], []>} : vector<64x64xbf16>, vector<64x32xbf16>, vector<64x32xf32> -> vector<64x32xf32>
    %124 = arith.truncf %123 : vector<64x32xf32> to vector<64x32xbf16>
    %c0_81 = arith.constant 0 : index
    %c2_82 = arith.constant 2 : index
    %c0_83 = arith.constant 0 : index
    %c0_84 = arith.constant 0 : index
    %125 = vector.load %arg7[%c0_81, %c2_82, %c0_83, %c0_84] : memref<2x4x32x128xbf16, #tpu.memory_space<vmem>>, vector<1x1x32x128xbf16>
    %126 = vector.shape_cast %125 : vector<1x1x32x128xbf16> to vector<32x128xbf16>
    %cst_85 = arith.constant dense<0.000000e+00> : vector<64x128xf32>
    %127 = tpu.matmul %124, %126, %cst_85 {dimension_numbers = #tpu.dot_dimension_numbers<[1], [0], [0], [1], [0, 0, 1, 1], [], []>} : vector<64x32xbf16>, vector<32x128xbf16>, vector<64x128xf32> -> vector<64x128xf32>
    %128 = arith.addf %96, %127 : vector<64x128xf32>
    %c0_86 = arith.constant 0 : index
    %c3 = arith.constant 3 : index
    %c0_87 = arith.constant 0 : index
    %c0_88 = arith.constant 0 : index
    %129 = vector.load %arg4[%c0_86, %c3, %c0_87, %c0_88] : memref<2x4x128x32xbf16, #tpu.memory_space<vmem>>, vector<1x1x128x32xbf16>
    %130 = vector.shape_cast %129 : vector<1x1x128x32xbf16> to vector<128x32xbf16>
    %cst_89 = arith.constant dense<0.000000e+00> : vector<64x32xf32>
    %131 = tpu.matmul %31, %130, %cst_89 {dimension_numbers = #tpu.dot_dimension_numbers<[1], [0], [0], [1], [0, 0, 1, 1], [], []>} : vector<64x128xbf16>, vector<128x32xbf16>, vector<64x32xf32> -> vector<64x32xf32>
    %c0_90 = arith.constant 0 : index
    %c3_91 = arith.constant 3 : index
    %c0_92 = arith.constant 0 : index
    %c0_93 = arith.constant 0 : index
    %132 = vector.load %arg5[%c0_90, %c3_91, %c0_92, %c0_93] : memref<2x4x128x32xbf16, #tpu.memory_space<vmem>>, vector<1x1x128x32xbf16>
    %133 = vector.shape_cast %132 : vector<1x1x128x32xbf16> to vector<128x32xbf16>
    %cst_94 = arith.constant dense<0.000000e+00> : vector<64x32xf32>
    %134 = tpu.matmul %31, %133, %cst_94 {dimension_numbers = #tpu.dot_dimension_numbers<[1], [0], [0], [1], [0, 0, 1, 1], [], []>} : vector<64x128xbf16>, vector<128x32xbf16>, vector<64x32xf32> -> vector<64x32xf32>
    %c0_95 = arith.constant 0 : index
    %c3_96 = arith.constant 3 : index
    %c0_97 = arith.constant 0 : index
    %c0_98 = arith.constant 0 : index
    %135 = vector.load %arg6[%c0_95, %c3_96, %c0_97, %c0_98] : memref<2x4x128x32xbf16, #tpu.memory_space<vmem>>, vector<1x1x128x32xbf16>
    %136 = vector.shape_cast %135 : vector<1x1x128x32xbf16> to vector<128x32xbf16>
    %cst_99 = arith.constant dense<0.000000e+00> : vector<64x32xf32>
    %137 = tpu.matmul %31, %136, %cst_99 {dimension_numbers = #tpu.dot_dimension_numbers<[1], [0], [0], [1], [0, 0, 1, 1], [], []>} : vector<64x128xbf16>, vector<128x32xbf16>, vector<64x32xf32> -> vector<64x32xf32>
    %138 = arith.truncf %131 : vector<64x32xf32> to vector<64x32xbf16>
    %139 = arith.truncf %134 : vector<64x32xf32> to vector<64x32xbf16>
    %cst_100 = arith.constant dense<0.000000e+00> : vector<64x64xf32>
    %140 = tpu.matmul %138, %139, %cst_100 {dimension_numbers = #tpu.dot_dimension_numbers<[1], [1], [0], [0], [0, 0, 1, 0], [], []>} : vector<64x32xbf16>, vector<64x32xbf16>, vector<64x64xf32> -> vector<64x64xf32>
    %cst_101 = arith.constant -1.000000e+30 : f32
    %141 = vector.broadcast %cst_101 : f32 to vector<64x64xf32>
    %142 = arith.select %4, %140, %141 : vector<64x64xi1>, vector<64x64xf32>
    %cst_102 = arith.constant dense<0xFF800000> : vector<64xf32>
    %143 = vector.multi_reduction <maximumf>, %142, %cst_102 [1] : vector<64x64xf32> to vector<64xf32>
    %144 = vector.shape_cast %143 : vector<64xf32> to vector<64x1xf32>
    %145 = vector.broadcast %144 : vector<64x1xf32> to vector<64x64xf32>
    %146 = arith.subf %142, %145 : vector<64x64xf32>
    %147 = math.exp %146 : vector<64x64xf32>
    %cst_103 = arith.constant dense<0.000000e+00> : vector<64xf32>
    %148 = vector.multi_reduction <add>, %147, %cst_103 [1] : vector<64x64xf32> to vector<64xf32>
    %149 = vector.shape_cast %148 : vector<64xf32> to vector<64x1xf32>
    %150 = tpu.reciprocal %149 {approx = true} : vector<64x1xf32> -> vector<64x1xf32>
    %151 = vector.broadcast %150 : vector<64x1xf32> to vector<64x64xf32>
    %152 = arith.mulf %147, %151 : vector<64x64xf32>
    %153 = arith.truncf %152 : vector<64x64xf32> to vector<64x64xbf16>
    %154 = arith.truncf %137 : vector<64x32xf32> to vector<64x32xbf16>
    %cst_104 = arith.constant dense<0.000000e+00> : vector<64x32xf32>
    %155 = tpu.matmul %153, %154, %cst_104 {dimension_numbers = #tpu.dot_dimension_numbers<[1], [0], [0], [1], [0, 0, 1, 1], [], []>} : vector<64x64xbf16>, vector<64x32xbf16>, vector<64x32xf32> -> vector<64x32xf32>
    %156 = arith.truncf %155 : vector<64x32xf32> to vector<64x32xbf16>
    %c0_105 = arith.constant 0 : index
    %c3_106 = arith.constant 3 : index
    %c0_107 = arith.constant 0 : index
    %c0_108 = arith.constant 0 : index
    %157 = vector.load %arg7[%c0_105, %c3_106, %c0_107, %c0_108] : memref<2x4x32x128xbf16, #tpu.memory_space<vmem>>, vector<1x1x32x128xbf16>
    %158 = vector.shape_cast %157 : vector<1x1x32x128xbf16> to vector<32x128xbf16>
    %cst_109 = arith.constant dense<0.000000e+00> : vector<64x128xf32>
    %159 = tpu.matmul %156, %158, %cst_109 {dimension_numbers = #tpu.dot_dimension_numbers<[1], [0], [0], [1], [0, 0, 1, 1], [], []>} : vector<64x32xbf16>, vector<32x128xbf16>, vector<64x128xf32> -> vector<64x128xf32>
    %160 = arith.addf %128, %159 : vector<64x128xf32>
    %161 = arith.addf %1, %160 : vector<64x128xf32>
    %c0_110 = arith.constant 0 : index
    %c0_111 = arith.constant 0 : index
    %c0_112 = arith.constant 0 : index
    %162 = vector.load %arg8[%c0_110, %c0_111, %c0_112] : memref<2x1x128xf32, #tpu.memory_space<vmem>>, vector<1x1x128xf32>
    %163 = vector.shape_cast %162 : vector<1x1x128xf32> to vector<1x128xf32>
    %164 = vector.broadcast %163 : vector<1x128xf32> to vector<64x128xf32>
    %165 = arith.addf %161, %164 : vector<64x128xf32>
    %c0_113 = arith.constant 0 : index
    %c0_114 = arith.constant 0 : index
    %c0_115 = arith.constant 0 : index
    %166 = vector.load %arg9[%c0_113, %c0_114, %c0_115] : memref<2x1x128xf32, #tpu.memory_space<vmem>>, vector<1x1x128xf32>
    %167 = vector.shape_cast %166 : vector<1x1x128xf32> to vector<1x128xf32>
    %c0_116 = arith.constant 0 : index
    %c0_117 = arith.constant 0 : index
    %c0_118 = arith.constant 0 : index
    %168 = vector.load %arg10[%c0_116, %c0_117, %c0_118] : memref<2x1x128xf32, #tpu.memory_space<vmem>>, vector<1x1x128xf32>
    %169 = vector.shape_cast %168 : vector<1x1x128xf32> to vector<1x128xf32>
    %cst_119 = arith.constant dense<0.000000e+00> : vector<64xf32>
    %170 = vector.multi_reduction <add>, %165, %cst_119 [1] : vector<64x128xf32> to vector<64xf32>
    %171 = vector.shape_cast %170 : vector<64xf32> to vector<64x1xf32>
    %cst_120 = arith.constant 1.280000e+02 : f32
    %172 = vector.broadcast %cst_120 : f32 to vector<64x1xf32>
    %173 = arith.divf %171, %172 : vector<64x1xf32>
    %174 = vector.broadcast %173 : vector<64x1xf32> to vector<64x128xf32>
    %175 = arith.subf %165, %174 : vector<64x128xf32>
    %176 = arith.mulf %175, %175 : vector<64x128xf32>
    %cst_121 = arith.constant dense<0.000000e+00> : vector<64xf32>
    %177 = vector.multi_reduction <add>, %176, %cst_121 [1] : vector<64x128xf32> to vector<64xf32>
    %178 = vector.shape_cast %177 : vector<64xf32> to vector<64x1xf32>
    %cst_122 = arith.constant 1.280000e+02 : f32
    %179 = vector.broadcast %cst_122 : f32 to vector<64x1xf32>
    %180 = arith.divf %178, %179 : vector<64x1xf32>
    %181 = vector.broadcast %173 : vector<64x1xf32> to vector<64x128xf32>
    %182 = arith.subf %165, %181 : vector<64x128xf32>
    %cst_123 = arith.constant 9.99999974E-6 : f32
    %183 = vector.broadcast %cst_123 : f32 to vector<64x1xf32>
    %184 = arith.addf %180, %183 : vector<64x1xf32>
    %185 = math.rsqrt %184 : vector<64x1xf32>
    %186 = vector.broadcast %185 : vector<64x1xf32> to vector<64x128xf32>
    %187 = arith.mulf %182, %186 : vector<64x128xf32>
    %188 = vector.broadcast %167 : vector<1x128xf32> to vector<64x128xf32>
    %189 = arith.mulf %187, %188 : vector<64x128xf32>
    %190 = vector.broadcast %169 : vector<1x128xf32> to vector<64x128xf32>
    %191 = arith.addf %189, %190 : vector<64x128xf32>
    %192 = arith.truncf %191 : vector<64x128xf32> to vector<64x128xbf16>
    %c0_124 = arith.constant 0 : index
    %c0_125 = arith.constant 0 : index
    %c0_126 = arith.constant 0 : index
    %193 = vector.load %arg11[%c0_124, %c0_125, %c0_126] : memref<2x128x512xbf16, #tpu.memory_space<vmem>>, vector<1x128x512xbf16>
    %194 = vector.shape_cast %193 : vector<1x128x512xbf16> to vector<128x512xbf16>
    %cst_127 = arith.constant dense<0.000000e+00> : vector<64x512xf32>
    %195 = tpu.matmul %192, %194, %cst_127 {dimension_numbers = #tpu.dot_dimension_numbers<[1], [0], [0], [1], [0, 0, 1, 1], [], []>} : vector<64x128xbf16>, vector<128x512xbf16>, vector<64x512xf32> -> vector<64x512xf32>
    %c0_128 = arith.constant 0 : index
    %c0_129 = arith.constant 0 : index
    %c0_130 = arith.constant 0 : index
    %196 = vector.load %arg12[%c0_128, %c0_129, %c0_130] : memref<2x1x512xf32, #tpu.memory_space<vmem>>, vector<1x1x512xf32>
    %197 = vector.shape_cast %196 : vector<1x1x512xf32> to vector<1x512xf32>
    %198 = vector.broadcast %197 : vector<1x512xf32> to vector<64x512xf32>
    %199 = arith.addf %195, %198 : vector<64x512xf32>
    %cst_131 = arith.constant 0.000000e+00 : f32
    %200 = vector.broadcast %cst_131 : f32 to vector<64x512xf32>
    %201 = arith.maximumf %199, %200 : vector<64x512xf32>
    %202 = arith.truncf %201 : vector<64x512xf32> to vector<64x512xbf16>
    %c0_132 = arith.constant 0 : index
    %c0_133 = arith.constant 0 : index
    %c0_134 = arith.constant 0 : index
    %203 = vector.load %arg13[%c0_132, %c0_133, %c0_134] : memref<2x512x128xbf16, #tpu.memory_space<vmem>>, vector<1x512x128xbf16>
    %204 = vector.shape_cast %203 : vector<1x512x128xbf16> to vector<512x128xbf16>
    %cst_135 = arith.constant dense<0.000000e+00> : vector<64x128xf32>
    %205 = tpu.matmul %202, %204, %cst_135 {dimension_numbers = #tpu.dot_dimension_numbers<[1], [0], [0], [1], [0, 0, 1, 1], [], []>} : vector<64x512xbf16>, vector<512x128xbf16>, vector<64x128xf32> -> vector<64x128xf32>
    %c0_136 = arith.constant 0 : index
    %c0_137 = arith.constant 0 : index
    %c0_138 = arith.constant 0 : index
    %206 = vector.load %arg14[%c0_136, %c0_137, %c0_138] : memref<2x1x128xf32, #tpu.memory_space<vmem>>, vector<1x1x128xf32>
    %207 = vector.shape_cast %206 : vector<1x1x128xf32> to vector<1x128xf32>
    %208 = vector.broadcast %207 : vector<1x128xf32> to vector<64x128xf32>
    %209 = arith.addf %205, %208 : vector<64x128xf32>
    %210 = arith.addf %165, %209 : vector<64x128xf32>
    %c1_139 = arith.constant 1 : index
    %c0_140 = arith.constant 0 : index
    %c0_141 = arith.constant 0 : index
    %211 = vector.load %arg2[%c1_139, %c0_140, %c0_141] : memref<2x1x128xf32, #tpu.memory_space<vmem>>, vector<1x1x128xf32>
    %212 = vector.shape_cast %211 : vector<1x1x128xf32> to vector<1x128xf32>
    %c1_142 = arith.constant 1 : index
    %c0_143 = arith.constant 0 : index
    %c0_144 = arith.constant 0 : index
    %213 = vector.load %arg3[%c1_142, %c0_143, %c0_144] : memref<2x1x128xf32, #tpu.memory_space<vmem>>, vector<1x1x128xf32>
    %214 = vector.shape_cast %213 : vector<1x1x128xf32> to vector<1x128xf32>
    %cst_145 = arith.constant dense<0.000000e+00> : vector<64xf32>
    %215 = vector.multi_reduction <add>, %210, %cst_145 [1] : vector<64x128xf32> to vector<64xf32>
    %216 = vector.shape_cast %215 : vector<64xf32> to vector<64x1xf32>
    %cst_146 = arith.constant 1.280000e+02 : f32
    %217 = vector.broadcast %cst_146 : f32 to vector<64x1xf32>
    %218 = arith.divf %216, %217 : vector<64x1xf32>
    %219 = vector.broadcast %218 : vector<64x1xf32> to vector<64x128xf32>
    %220 = arith.subf %210, %219 : vector<64x128xf32>
    %221 = arith.mulf %220, %220 : vector<64x128xf32>
    %cst_147 = arith.constant dense<0.000000e+00> : vector<64xf32>
    %222 = vector.multi_reduction <add>, %221, %cst_147 [1] : vector<64x128xf32> to vector<64xf32>
    %223 = vector.shape_cast %222 : vector<64xf32> to vector<64x1xf32>
    %cst_148 = arith.constant 1.280000e+02 : f32
    %224 = vector.broadcast %cst_148 : f32 to vector<64x1xf32>
    %225 = arith.divf %223, %224 : vector<64x1xf32>
    %226 = vector.broadcast %218 : vector<64x1xf32> to vector<64x128xf32>
    %227 = arith.subf %210, %226 : vector<64x128xf32>
    %cst_149 = arith.constant 9.99999974E-6 : f32
    %228 = vector.broadcast %cst_149 : f32 to vector<64x1xf32>
    %229 = arith.addf %225, %228 : vector<64x1xf32>
    %230 = math.rsqrt %229 : vector<64x1xf32>
    %231 = vector.broadcast %230 : vector<64x1xf32> to vector<64x128xf32>
    %232 = arith.mulf %227, %231 : vector<64x128xf32>
    %233 = vector.broadcast %212 : vector<1x128xf32> to vector<64x128xf32>
    %234 = arith.mulf %232, %233 : vector<64x128xf32>
    %235 = vector.broadcast %214 : vector<1x128xf32> to vector<64x128xf32>
    %236 = arith.addf %234, %235 : vector<64x128xf32>
    %237 = arith.truncf %236 : vector<64x128xf32> to vector<64x128xbf16>
    %cst_150 = arith.constant 0.000000e+00 : f32
    %238 = vector.broadcast %cst_150 : f32 to vector<64x128xf32>
    %c1_151 = arith.constant 1 : index
    %c0_152 = arith.constant 0 : index
    %c0_153 = arith.constant 0 : index
    %c0_154 = arith.constant 0 : index
    %239 = vector.load %arg4[%c1_151, %c0_152, %c0_153, %c0_154] : memref<2x4x128x32xbf16, #tpu.memory_space<vmem>>, vector<1x1x128x32xbf16>
    %240 = vector.shape_cast %239 : vector<1x1x128x32xbf16> to vector<128x32xbf16>
    %cst_155 = arith.constant dense<0.000000e+00> : vector<64x32xf32>
    %241 = tpu.matmul %237, %240, %cst_155 {dimension_numbers = #tpu.dot_dimension_numbers<[1], [0], [0], [1], [0, 0, 1, 1], [], []>} : vector<64x128xbf16>, vector<128x32xbf16>, vector<64x32xf32> -> vector<64x32xf32>
    %c1_156 = arith.constant 1 : index
    %c0_157 = arith.constant 0 : index
    %c0_158 = arith.constant 0 : index
    %c0_159 = arith.constant 0 : index
    %242 = vector.load %arg5[%c1_156, %c0_157, %c0_158, %c0_159] : memref<2x4x128x32xbf16, #tpu.memory_space<vmem>>, vector<1x1x128x32xbf16>
    %243 = vector.shape_cast %242 : vector<1x1x128x32xbf16> to vector<128x32xbf16>
    %cst_160 = arith.constant dense<0.000000e+00> : vector<64x32xf32>
    %244 = tpu.matmul %237, %243, %cst_160 {dimension_numbers = #tpu.dot_dimension_numbers<[1], [0], [0], [1], [0, 0, 1, 1], [], []>} : vector<64x128xbf16>, vector<128x32xbf16>, vector<64x32xf32> -> vector<64x32xf32>
    %c1_161 = arith.constant 1 : index
    %c0_162 = arith.constant 0 : index
    %c0_163 = arith.constant 0 : index
    %c0_164 = arith.constant 0 : index
    %245 = vector.load %arg6[%c1_161, %c0_162, %c0_163, %c0_164] : memref<2x4x128x32xbf16, #tpu.memory_space<vmem>>, vector<1x1x128x32xbf16>
    %246 = vector.shape_cast %245 : vector<1x1x128x32xbf16> to vector<128x32xbf16>
    %cst_165 = arith.constant dense<0.000000e+00> : vector<64x32xf32>
    %247 = tpu.matmul %237, %246, %cst_165 {dimension_numbers = #tpu.dot_dimension_numbers<[1], [0], [0], [1], [0, 0, 1, 1], [], []>} : vector<64x128xbf16>, vector<128x32xbf16>, vector<64x32xf32> -> vector<64x32xf32>
    %248 = arith.truncf %241 : vector<64x32xf32> to vector<64x32xbf16>
    %249 = arith.truncf %244 : vector<64x32xf32> to vector<64x32xbf16>
    %cst_166 = arith.constant dense<0.000000e+00> : vector<64x64xf32>
    %250 = tpu.matmul %248, %249, %cst_166 {dimension_numbers = #tpu.dot_dimension_numbers<[1], [1], [0], [0], [0, 0, 1, 0], [], []>} : vector<64x32xbf16>, vector<64x32xbf16>, vector<64x64xf32> -> vector<64x64xf32>
    %cst_167 = arith.constant -1.000000e+30 : f32
    %251 = vector.broadcast %cst_167 : f32 to vector<64x64xf32>
    %252 = arith.select %4, %250, %251 : vector<64x64xi1>, vector<64x64xf32>
    %cst_168 = arith.constant dense<0xFF800000> : vector<64xf32>
    %253 = vector.multi_reduction <maximumf>, %252, %cst_168 [1] : vector<64x64xf32> to vector<64xf32>
    %254 = vector.shape_cast %253 : vector<64xf32> to vector<64x1xf32>
    %255 = vector.broadcast %254 : vector<64x1xf32> to vector<64x64xf32>
    %256 = arith.subf %252, %255 : vector<64x64xf32>
    %257 = math.exp %256 : vector<64x64xf32>
    %cst_169 = arith.constant dense<0.000000e+00> : vector<64xf32>
    %258 = vector.multi_reduction <add>, %257, %cst_169 [1] : vector<64x64xf32> to vector<64xf32>
    %259 = vector.shape_cast %258 : vector<64xf32> to vector<64x1xf32>
    %260 = tpu.reciprocal %259 {approx = true} : vector<64x1xf32> -> vector<64x1xf32>
    %261 = vector.broadcast %260 : vector<64x1xf32> to vector<64x64xf32>
    %262 = arith.mulf %257, %261 : vector<64x64xf32>
    %263 = arith.truncf %262 : vector<64x64xf32> to vector<64x64xbf16>
    %264 = arith.truncf %247 : vector<64x32xf32> to vector<64x32xbf16>
    %cst_170 = arith.constant dense<0.000000e+00> : vector<64x32xf32>
    %265 = tpu.matmul %263, %264, %cst_170 {dimension_numbers = #tpu.dot_dimension_numbers<[1], [0], [0], [1], [0, 0, 1, 1], [], []>} : vector<64x64xbf16>, vector<64x32xbf16>, vector<64x32xf32> -> vector<64x32xf32>
    %266 = arith.truncf %265 : vector<64x32xf32> to vector<64x32xbf16>
    %c1_171 = arith.constant 1 : index
    %c0_172 = arith.constant 0 : index
    %c0_173 = arith.constant 0 : index
    %c0_174 = arith.constant 0 : index
    %267 = vector.load %arg7[%c1_171, %c0_172, %c0_173, %c0_174] : memref<2x4x32x128xbf16, #tpu.memory_space<vmem>>, vector<1x1x32x128xbf16>
    %268 = vector.shape_cast %267 : vector<1x1x32x128xbf16> to vector<32x128xbf16>
    %cst_175 = arith.constant dense<0.000000e+00> : vector<64x128xf32>
    %269 = tpu.matmul %266, %268, %cst_175 {dimension_numbers = #tpu.dot_dimension_numbers<[1], [0], [0], [1], [0, 0, 1, 1], [], []>} : vector<64x32xbf16>, vector<32x128xbf16>, vector<64x128xf32> -> vector<64x128xf32>
    %270 = arith.addf %238, %269 : vector<64x128xf32>
    %c1_176 = arith.constant 1 : index
    %c1_177 = arith.constant 1 : index
    %c0_178 = arith.constant 0 : index
    %c0_179 = arith.constant 0 : index
    %271 = vector.load %arg4[%c1_176, %c1_177, %c0_178, %c0_179] : memref<2x4x128x32xbf16, #tpu.memory_space<vmem>>, vector<1x1x128x32xbf16>
    %272 = vector.shape_cast %271 : vector<1x1x128x32xbf16> to vector<128x32xbf16>
    %cst_180 = arith.constant dense<0.000000e+00> : vector<64x32xf32>
    %273 = tpu.matmul %237, %272, %cst_180 {dimension_numbers = #tpu.dot_dimension_numbers<[1], [0], [0], [1], [0, 0, 1, 1], [], []>} : vector<64x128xbf16>, vector<128x32xbf16>, vector<64x32xf32> -> vector<64x32xf32>
    %c1_181 = arith.constant 1 : index
    %c1_182 = arith.constant 1 : index
    %c0_183 = arith.constant 0 : index
    %c0_184 = arith.constant 0 : index
    %274 = vector.load %arg5[%c1_181, %c1_182, %c0_183, %c0_184] : memref<2x4x128x32xbf16, #tpu.memory_space<vmem>>, vector<1x1x128x32xbf16>
    %275 = vector.shape_cast %274 : vector<1x1x128x32xbf16> to vector<128x32xbf16>
    %cst_185 = arith.constant dense<0.000000e+00> : vector<64x32xf32>
    %276 = tpu.matmul %237, %275, %cst_185 {dimension_numbers = #tpu.dot_dimension_numbers<[1], [0], [0], [1], [0, 0, 1, 1], [], []>} : vector<64x128xbf16>, vector<128x32xbf16>, vector<64x32xf32> -> vector<64x32xf32>
    %c1_186 = arith.constant 1 : index
    %c1_187 = arith.constant 1 : index
    %c0_188 = arith.constant 0 : index
    %c0_189 = arith.constant 0 : index
    %277 = vector.load %arg6[%c1_186, %c1_187, %c0_188, %c0_189] : memref<2x4x128x32xbf16, #tpu.memory_space<vmem>>, vector<1x1x128x32xbf16>
    %278 = vector.shape_cast %277 : vector<1x1x128x32xbf16> to vector<128x32xbf16>
    %cst_190 = arith.constant dense<0.000000e+00> : vector<64x32xf32>
    %279 = tpu.matmul %237, %278, %cst_190 {dimension_numbers = #tpu.dot_dimension_numbers<[1], [0], [0], [1], [0, 0, 1, 1], [], []>} : vector<64x128xbf16>, vector<128x32xbf16>, vector<64x32xf32> -> vector<64x32xf32>
    %280 = arith.truncf %273 : vector<64x32xf32> to vector<64x32xbf16>
    %281 = arith.truncf %276 : vector<64x32xf32> to vector<64x32xbf16>
    %cst_191 = arith.constant dense<0.000000e+00> : vector<64x64xf32>
    %282 = tpu.matmul %280, %281, %cst_191 {dimension_numbers = #tpu.dot_dimension_numbers<[1], [1], [0], [0], [0, 0, 1, 0], [], []>} : vector<64x32xbf16>, vector<64x32xbf16>, vector<64x64xf32> -> vector<64x64xf32>
    %cst_192 = arith.constant -1.000000e+30 : f32
    %283 = vector.broadcast %cst_192 : f32 to vector<64x64xf32>
    %284 = arith.select %4, %282, %283 : vector<64x64xi1>, vector<64x64xf32>
    %cst_193 = arith.constant dense<0xFF800000> : vector<64xf32>
    %285 = vector.multi_reduction <maximumf>, %284, %cst_193 [1] : vector<64x64xf32> to vector<64xf32>
    %286 = vector.shape_cast %285 : vector<64xf32> to vector<64x1xf32>
    %287 = vector.broadcast %286 : vector<64x1xf32> to vector<64x64xf32>
    %288 = arith.subf %284, %287 : vector<64x64xf32>
    %289 = math.exp %288 : vector<64x64xf32>
    %cst_194 = arith.constant dense<0.000000e+00> : vector<64xf32>
    %290 = vector.multi_reduction <add>, %289, %cst_194 [1] : vector<64x64xf32> to vector<64xf32>
    %291 = vector.shape_cast %290 : vector<64xf32> to vector<64x1xf32>
    %292 = tpu.reciprocal %291 {approx = true} : vector<64x1xf32> -> vector<64x1xf32>
    %293 = vector.broadcast %292 : vector<64x1xf32> to vector<64x64xf32>
    %294 = arith.mulf %289, %293 : vector<64x64xf32>
    %295 = arith.truncf %294 : vector<64x64xf32> to vector<64x64xbf16>
    %296 = arith.truncf %279 : vector<64x32xf32> to vector<64x32xbf16>
    %cst_195 = arith.constant dense<0.000000e+00> : vector<64x32xf32>
    %297 = tpu.matmul %295, %296, %cst_195 {dimension_numbers = #tpu.dot_dimension_numbers<[1], [0], [0], [1], [0, 0, 1, 1], [], []>} : vector<64x64xbf16>, vector<64x32xbf16>, vector<64x32xf32> -> vector<64x32xf32>
    %298 = arith.truncf %297 : vector<64x32xf32> to vector<64x32xbf16>
    %c1_196 = arith.constant 1 : index
    %c1_197 = arith.constant 1 : index
    %c0_198 = arith.constant 0 : index
    %c0_199 = arith.constant 0 : index
    %299 = vector.load %arg7[%c1_196, %c1_197, %c0_198, %c0_199] : memref<2x4x32x128xbf16, #tpu.memory_space<vmem>>, vector<1x1x32x128xbf16>
    %300 = vector.shape_cast %299 : vector<1x1x32x128xbf16> to vector<32x128xbf16>
    %cst_200 = arith.constant dense<0.000000e+00> : vector<64x128xf32>
    %301 = tpu.matmul %298, %300, %cst_200 {dimension_numbers = #tpu.dot_dimension_numbers<[1], [0], [0], [1], [0, 0, 1, 1], [], []>} : vector<64x32xbf16>, vector<32x128xbf16>, vector<64x128xf32> -> vector<64x128xf32>
    %302 = arith.addf %270, %301 : vector<64x128xf32>
    %c1_201 = arith.constant 1 : index
    %c2_202 = arith.constant 2 : index
    %c0_203 = arith.constant 0 : index
    %c0_204 = arith.constant 0 : index
    %303 = vector.load %arg4[%c1_201, %c2_202, %c0_203, %c0_204] : memref<2x4x128x32xbf16, #tpu.memory_space<vmem>>, vector<1x1x128x32xbf16>
    %304 = vector.shape_cast %303 : vector<1x1x128x32xbf16> to vector<128x32xbf16>
    %cst_205 = arith.constant dense<0.000000e+00> : vector<64x32xf32>
    %305 = tpu.matmul %237, %304, %cst_205 {dimension_numbers = #tpu.dot_dimension_numbers<[1], [0], [0], [1], [0, 0, 1, 1], [], []>} : vector<64x128xbf16>, vector<128x32xbf16>, vector<64x32xf32> -> vector<64x32xf32>
    %c1_206 = arith.constant 1 : index
    %c2_207 = arith.constant 2 : index
    %c0_208 = arith.constant 0 : index
    %c0_209 = arith.constant 0 : index
    %306 = vector.load %arg5[%c1_206, %c2_207, %c0_208, %c0_209] : memref<2x4x128x32xbf16, #tpu.memory_space<vmem>>, vector<1x1x128x32xbf16>
    %307 = vector.shape_cast %306 : vector<1x1x128x32xbf16> to vector<128x32xbf16>
    %cst_210 = arith.constant dense<0.000000e+00> : vector<64x32xf32>
    %308 = tpu.matmul %237, %307, %cst_210 {dimension_numbers = #tpu.dot_dimension_numbers<[1], [0], [0], [1], [0, 0, 1, 1], [], []>} : vector<64x128xbf16>, vector<128x32xbf16>, vector<64x32xf32> -> vector<64x32xf32>
    %c1_211 = arith.constant 1 : index
    %c2_212 = arith.constant 2 : index
    %c0_213 = arith.constant 0 : index
    %c0_214 = arith.constant 0 : index
    %309 = vector.load %arg6[%c1_211, %c2_212, %c0_213, %c0_214] : memref<2x4x128x32xbf16, #tpu.memory_space<vmem>>, vector<1x1x128x32xbf16>
    %310 = vector.shape_cast %309 : vector<1x1x128x32xbf16> to vector<128x32xbf16>
    %cst_215 = arith.constant dense<0.000000e+00> : vector<64x32xf32>
    %311 = tpu.matmul %237, %310, %cst_215 {dimension_numbers = #tpu.dot_dimension_numbers<[1], [0], [0], [1], [0, 0, 1, 1], [], []>} : vector<64x128xbf16>, vector<128x32xbf16>, vector<64x32xf32> -> vector<64x32xf32>
    %312 = arith.truncf %305 : vector<64x32xf32> to vector<64x32xbf16>
    %313 = arith.truncf %308 : vector<64x32xf32> to vector<64x32xbf16>
    %cst_216 = arith.constant dense<0.000000e+00> : vector<64x64xf32>
    %314 = tpu.matmul %312, %313, %cst_216 {dimension_numbers = #tpu.dot_dimension_numbers<[1], [1], [0], [0], [0, 0, 1, 0], [], []>} : vector<64x32xbf16>, vector<64x32xbf16>, vector<64x64xf32> -> vector<64x64xf32>
    %cst_217 = arith.constant -1.000000e+30 : f32
    %315 = vector.broadcast %cst_217 : f32 to vector<64x64xf32>
    %316 = arith.select %4, %314, %315 : vector<64x64xi1>, vector<64x64xf32>
    %cst_218 = arith.constant dense<0xFF800000> : vector<64xf32>
    %317 = vector.multi_reduction <maximumf>, %316, %cst_218 [1] : vector<64x64xf32> to vector<64xf32>
    %318 = vector.shape_cast %317 : vector<64xf32> to vector<64x1xf32>
    %319 = vector.broadcast %318 : vector<64x1xf32> to vector<64x64xf32>
    %320 = arith.subf %316, %319 : vector<64x64xf32>
    %321 = math.exp %320 : vector<64x64xf32>
    %cst_219 = arith.constant dense<0.000000e+00> : vector<64xf32>
    %322 = vector.multi_reduction <add>, %321, %cst_219 [1] : vector<64x64xf32> to vector<64xf32>
    %323 = vector.shape_cast %322 : vector<64xf32> to vector<64x1xf32>
    %324 = tpu.reciprocal %323 {approx = true} : vector<64x1xf32> -> vector<64x1xf32>
    %325 = vector.broadcast %324 : vector<64x1xf32> to vector<64x64xf32>
    %326 = arith.mulf %321, %325 : vector<64x64xf32>
    %327 = arith.truncf %326 : vector<64x64xf32> to vector<64x64xbf16>
    %328 = arith.truncf %311 : vector<64x32xf32> to vector<64x32xbf16>
    %cst_220 = arith.constant dense<0.000000e+00> : vector<64x32xf32>
    %329 = tpu.matmul %327, %328, %cst_220 {dimension_numbers = #tpu.dot_dimension_numbers<[1], [0], [0], [1], [0, 0, 1, 1], [], []>} : vector<64x64xbf16>, vector<64x32xbf16>, vector<64x32xf32> -> vector<64x32xf32>
    %330 = arith.truncf %329 : vector<64x32xf32> to vector<64x32xbf16>
    %c1_221 = arith.constant 1 : index
    %c2_222 = arith.constant 2 : index
    %c0_223 = arith.constant 0 : index
    %c0_224 = arith.constant 0 : index
    %331 = vector.load %arg7[%c1_221, %c2_222, %c0_223, %c0_224] : memref<2x4x32x128xbf16, #tpu.memory_space<vmem>>, vector<1x1x32x128xbf16>
    %332 = vector.shape_cast %331 : vector<1x1x32x128xbf16> to vector<32x128xbf16>
    %cst_225 = arith.constant dense<0.000000e+00> : vector<64x128xf32>
    %333 = tpu.matmul %330, %332, %cst_225 {dimension_numbers = #tpu.dot_dimension_numbers<[1], [0], [0], [1], [0, 0, 1, 1], [], []>} : vector<64x32xbf16>, vector<32x128xbf16>, vector<64x128xf32> -> vector<64x128xf32>
    %334 = arith.addf %302, %333 : vector<64x128xf32>
    %c1_226 = arith.constant 1 : index
    %c3_227 = arith.constant 3 : index
    %c0_228 = arith.constant 0 : index
    %c0_229 = arith.constant 0 : index
    %335 = vector.load %arg4[%c1_226, %c3_227, %c0_228, %c0_229] : memref<2x4x128x32xbf16, #tpu.memory_space<vmem>>, vector<1x1x128x32xbf16>
    %336 = vector.shape_cast %335 : vector<1x1x128x32xbf16> to vector<128x32xbf16>
    %cst_230 = arith.constant dense<0.000000e+00> : vector<64x32xf32>
    %337 = tpu.matmul %237, %336, %cst_230 {dimension_numbers = #tpu.dot_dimension_numbers<[1], [0], [0], [1], [0, 0, 1, 1], [], []>} : vector<64x128xbf16>, vector<128x32xbf16>, vector<64x32xf32> -> vector<64x32xf32>
    %c1_231 = arith.constant 1 : index
    %c3_232 = arith.constant 3 : index
    %c0_233 = arith.constant 0 : index
    %c0_234 = arith.constant 0 : index
    %338 = vector.load %arg5[%c1_231, %c3_232, %c0_233, %c0_234] : memref<2x4x128x32xbf16, #tpu.memory_space<vmem>>, vector<1x1x128x32xbf16>
    %339 = vector.shape_cast %338 : vector<1x1x128x32xbf16> to vector<128x32xbf16>
    %cst_235 = arith.constant dense<0.000000e+00> : vector<64x32xf32>
    %340 = tpu.matmul %237, %339, %cst_235 {dimension_numbers = #tpu.dot_dimension_numbers<[1], [0], [0], [1], [0, 0, 1, 1], [], []>} : vector<64x128xbf16>, vector<128x32xbf16>, vector<64x32xf32> -> vector<64x32xf32>
    %c1_236 = arith.constant 1 : index
    %c3_237 = arith.constant 3 : index
    %c0_238 = arith.constant 0 : index
    %c0_239 = arith.constant 0 : index
    %341 = vector.load %arg6[%c1_236, %c3_237, %c0_238, %c0_239] : memref<2x4x128x32xbf16, #tpu.memory_space<vmem>>, vector<1x1x128x32xbf16>
    %342 = vector.shape_cast %341 : vector<1x1x128x32xbf16> to vector<128x32xbf16>
    %cst_240 = arith.constant dense<0.000000e+00> : vector<64x32xf32>
    %343 = tpu.matmul %237, %342, %cst_240 {dimension_numbers = #tpu.dot_dimension_numbers<[1], [0], [0], [1], [0, 0, 1, 1], [], []>} : vector<64x128xbf16>, vector<128x32xbf16>, vector<64x32xf32> -> vector<64x32xf32>
    %344 = arith.truncf %337 : vector<64x32xf32> to vector<64x32xbf16>
    %345 = arith.truncf %340 : vector<64x32xf32> to vector<64x32xbf16>
    %cst_241 = arith.constant dense<0.000000e+00> : vector<64x64xf32>
    %346 = tpu.matmul %344, %345, %cst_241 {dimension_numbers = #tpu.dot_dimension_numbers<[1], [1], [0], [0], [0, 0, 1, 0], [], []>} : vector<64x32xbf16>, vector<64x32xbf16>, vector<64x64xf32> -> vector<64x64xf32>
    %cst_242 = arith.constant -1.000000e+30 : f32
    %347 = vector.broadcast %cst_242 : f32 to vector<64x64xf32>
    %348 = arith.select %4, %346, %347 : vector<64x64xi1>, vector<64x64xf32>
    %cst_243 = arith.constant dense<0xFF800000> : vector<64xf32>
    %349 = vector.multi_reduction <maximumf>, %348, %cst_243 [1] : vector<64x64xf32> to vector<64xf32>
    %350 = vector.shape_cast %349 : vector<64xf32> to vector<64x1xf32>
    %351 = vector.broadcast %350 : vector<64x1xf32> to vector<64x64xf32>
    %352 = arith.subf %348, %351 : vector<64x64xf32>
    %353 = math.exp %352 : vector<64x64xf32>
    %cst_244 = arith.constant dense<0.000000e+00> : vector<64xf32>
    %354 = vector.multi_reduction <add>, %353, %cst_244 [1] : vector<64x64xf32> to vector<64xf32>
    %355 = vector.shape_cast %354 : vector<64xf32> to vector<64x1xf32>
    %356 = tpu.reciprocal %355 {approx = true} : vector<64x1xf32> -> vector<64x1xf32>
    %357 = vector.broadcast %356 : vector<64x1xf32> to vector<64x64xf32>
    %358 = arith.mulf %353, %357 : vector<64x64xf32>
    %359 = arith.truncf %358 : vector<64x64xf32> to vector<64x64xbf16>
    %360 = arith.truncf %343 : vector<64x32xf32> to vector<64x32xbf16>
    %cst_245 = arith.constant dense<0.000000e+00> : vector<64x32xf32>
    %361 = tpu.matmul %359, %360, %cst_245 {dimension_numbers = #tpu.dot_dimension_numbers<[1], [0], [0], [1], [0, 0, 1, 1], [], []>} : vector<64x64xbf16>, vector<64x32xbf16>, vector<64x32xf32> -> vector<64x32xf32>
    %362 = arith.truncf %361 : vector<64x32xf32> to vector<64x32xbf16>
    %c1_246 = arith.constant 1 : index
    %c3_247 = arith.constant 3 : index
    %c0_248 = arith.constant 0 : index
    %c0_249 = arith.constant 0 : index
    %363 = vector.load %arg7[%c1_246, %c3_247, %c0_248, %c0_249] : memref<2x4x32x128xbf16, #tpu.memory_space<vmem>>, vector<1x1x32x128xbf16>
    %364 = vector.shape_cast %363 : vector<1x1x32x128xbf16> to vector<32x128xbf16>
    %cst_250 = arith.constant dense<0.000000e+00> : vector<64x128xf32>
    %365 = tpu.matmul %362, %364, %cst_250 {dimension_numbers = #tpu.dot_dimension_numbers<[1], [0], [0], [1], [0, 0, 1, 1], [], []>} : vector<64x32xbf16>, vector<32x128xbf16>, vector<64x128xf32> -> vector<64x128xf32>
    %366 = arith.addf %334, %365 : vector<64x128xf32>
    %367 = arith.addf %210, %366 : vector<64x128xf32>
    %c1_251 = arith.constant 1 : index
    %c0_252 = arith.constant 0 : index
    %c0_253 = arith.constant 0 : index
    %368 = vector.load %arg8[%c1_251, %c0_252, %c0_253] : memref<2x1x128xf32, #tpu.memory_space<vmem>>, vector<1x1x128xf32>
    %369 = vector.shape_cast %368 : vector<1x1x128xf32> to vector<1x128xf32>
    %370 = vector.broadcast %369 : vector<1x128xf32> to vector<64x128xf32>
    %371 = arith.addf %367, %370 : vector<64x128xf32>
    %c1_254 = arith.constant 1 : index
    %c0_255 = arith.constant 0 : index
    %c0_256 = arith.constant 0 : index
    %372 = vector.load %arg9[%c1_254, %c0_255, %c0_256] : memref<2x1x128xf32, #tpu.memory_space<vmem>>, vector<1x1x128xf32>
    %373 = vector.shape_cast %372 : vector<1x1x128xf32> to vector<1x128xf32>
    %c1_257 = arith.constant 1 : index
    %c0_258 = arith.constant 0 : index
    %c0_259 = arith.constant 0 : index
    %374 = vector.load %arg10[%c1_257, %c0_258, %c0_259] : memref<2x1x128xf32, #tpu.memory_space<vmem>>, vector<1x1x128xf32>
    %375 = vector.shape_cast %374 : vector<1x1x128xf32> to vector<1x128xf32>
    %cst_260 = arith.constant dense<0.000000e+00> : vector<64xf32>
    %376 = vector.multi_reduction <add>, %371, %cst_260 [1] : vector<64x128xf32> to vector<64xf32>
    %377 = vector.shape_cast %376 : vector<64xf32> to vector<64x1xf32>
    %cst_261 = arith.constant 1.280000e+02 : f32
    %378 = vector.broadcast %cst_261 : f32 to vector<64x1xf32>
    %379 = arith.divf %377, %378 : vector<64x1xf32>
    %380 = vector.broadcast %379 : vector<64x1xf32> to vector<64x128xf32>
    %381 = arith.subf %371, %380 : vector<64x128xf32>
    %382 = arith.mulf %381, %381 : vector<64x128xf32>
    %cst_262 = arith.constant dense<0.000000e+00> : vector<64xf32>
    %383 = vector.multi_reduction <add>, %382, %cst_262 [1] : vector<64x128xf32> to vector<64xf32>
    %384 = vector.shape_cast %383 : vector<64xf32> to vector<64x1xf32>
    %cst_263 = arith.constant 1.280000e+02 : f32
    %385 = vector.broadcast %cst_263 : f32 to vector<64x1xf32>
    %386 = arith.divf %384, %385 : vector<64x1xf32>
    %387 = vector.broadcast %379 : vector<64x1xf32> to vector<64x128xf32>
    %388 = arith.subf %371, %387 : vector<64x128xf32>
    %cst_264 = arith.constant 9.99999974E-6 : f32
    %389 = vector.broadcast %cst_264 : f32 to vector<64x1xf32>
    %390 = arith.addf %386, %389 : vector<64x1xf32>
    %391 = math.rsqrt %390 : vector<64x1xf32>
    %392 = vector.broadcast %391 : vector<64x1xf32> to vector<64x128xf32>
    %393 = arith.mulf %388, %392 : vector<64x128xf32>
    %394 = vector.broadcast %373 : vector<1x128xf32> to vector<64x128xf32>
    %395 = arith.mulf %393, %394 : vector<64x128xf32>
    %396 = vector.broadcast %375 : vector<1x128xf32> to vector<64x128xf32>
    %397 = arith.addf %395, %396 : vector<64x128xf32>
    %398 = arith.truncf %397 : vector<64x128xf32> to vector<64x128xbf16>
    %c1_265 = arith.constant 1 : index
    %c0_266 = arith.constant 0 : index
    %c0_267 = arith.constant 0 : index
    %399 = vector.load %arg11[%c1_265, %c0_266, %c0_267] : memref<2x128x512xbf16, #tpu.memory_space<vmem>>, vector<1x128x512xbf16>
    %400 = vector.shape_cast %399 : vector<1x128x512xbf16> to vector<128x512xbf16>
    %cst_268 = arith.constant dense<0.000000e+00> : vector<64x512xf32>
    %401 = tpu.matmul %398, %400, %cst_268 {dimension_numbers = #tpu.dot_dimension_numbers<[1], [0], [0], [1], [0, 0, 1, 1], [], []>} : vector<64x128xbf16>, vector<128x512xbf16>, vector<64x512xf32> -> vector<64x512xf32>
    %c1_269 = arith.constant 1 : index
    %c0_270 = arith.constant 0 : index
    %c0_271 = arith.constant 0 : index
    %402 = vector.load %arg12[%c1_269, %c0_270, %c0_271] : memref<2x1x512xf32, #tpu.memory_space<vmem>>, vector<1x1x512xf32>
    %403 = vector.shape_cast %402 : vector<1x1x512xf32> to vector<1x512xf32>
    %404 = vector.broadcast %403 : vector<1x512xf32> to vector<64x512xf32>
    %405 = arith.addf %401, %404 : vector<64x512xf32>
    %cst_272 = arith.constant 0.000000e+00 : f32
    %406 = vector.broadcast %cst_272 : f32 to vector<64x512xf32>
    %407 = arith.maximumf %405, %406 : vector<64x512xf32>
    %408 = arith.truncf %407 : vector<64x512xf32> to vector<64x512xbf16>
    %c1_273 = arith.constant 1 : index
    %c0_274 = arith.constant 0 : index
    %c0_275 = arith.constant 0 : index
    %409 = vector.load %arg13[%c1_273, %c0_274, %c0_275] : memref<2x512x128xbf16, #tpu.memory_space<vmem>>, vector<1x512x128xbf16>
    %410 = vector.shape_cast %409 : vector<1x512x128xbf16> to vector<512x128xbf16>
    %cst_276 = arith.constant dense<0.000000e+00> : vector<64x128xf32>
    %411 = tpu.matmul %408, %410, %cst_276 {dimension_numbers = #tpu.dot_dimension_numbers<[1], [0], [0], [1], [0, 0, 1, 1], [], []>} : vector<64x512xbf16>, vector<512x128xbf16>, vector<64x128xf32> -> vector<64x128xf32>
    %c1_277 = arith.constant 1 : index
    %c0_278 = arith.constant 0 : index
    %c0_279 = arith.constant 0 : index
    %412 = vector.load %arg14[%c1_277, %c0_278, %c0_279] : memref<2x1x128xf32, #tpu.memory_space<vmem>>, vector<1x1x128xf32>
    %413 = vector.shape_cast %412 : vector<1x1x128xf32> to vector<1x128xf32>
    %414 = vector.broadcast %413 : vector<1x128xf32> to vector<64x128xf32>
    %415 = arith.addf %411, %414 : vector<64x128xf32>
    %416 = arith.addf %371, %415 : vector<64x128xf32>
    %417 = arith.truncf %416 : vector<64x128xf32> to vector<64x128xbf16>
    %c0_280 = arith.constant 0 : index
    %c0_281 = arith.constant 0 : index
    %418 = vector.load %arg15[%c0_280, %c0_281] : memref<128x128xbf16, #tpu.memory_space<vmem>>, vector<128x128xbf16>
    %cst_282 = arith.constant dense<0.000000e+00> : vector<64x128xf32>
    %419 = tpu.matmul %417, %418, %cst_282 {dimension_numbers = #tpu.dot_dimension_numbers<[1], [0], [0], [1], [0, 0, 1, 1], [], []>} : vector<64x128xbf16>, vector<128x128xbf16>, vector<64x128xf32> -> vector<64x128xf32>
    %c0_283 = arith.constant 0 : index
    %c0_284 = arith.constant 0 : index
    %420 = vector.load %arg16[%c0_283, %c0_284] : memref<1x128xf32, #tpu.memory_space<vmem>>, vector<1x128xf32>
    %421 = vector.broadcast %420 : vector<1x128xf32> to vector<64x128xf32>
    %422 = arith.addf %419, %421 : vector<64x128xf32>
    %c0_285 = arith.constant 0 : index
    %c0_286 = arith.constant 0 : index
    %c0_287 = arith.constant 0 : index
    %423 = vector.load %arg17[%c0_285, %c0_286, %c0_287] : memref<1x64x128xf32, #tpu.memory_space<vmem>>, vector<1x64x128xf32>
    %424 = vector.shape_cast %423 : vector<1x64x128xf32> to vector<64x128xf32>
    %425 = vector.shape_cast %422 : vector<64x128xf32> to vector<1x64x128xf32>
    tpu.vector_store %arg17[%c0_285, %c0_286, %c0_287], %425 {strides = array<i32>} : memref<1x64x128xf32, #tpu.memory_space<vmem>>, vector<1x64x128xf32>,
    return
  }
  func.func @transform_0(%arg0: i32) -> (i32, i32, i32) {
    %c0_i32 = arith.constant 0 : i32
    %c0_i32_0 = arith.constant 0 : i32
    %c0_i32_1 = arith.constant 0 : i32
    return %arg0, %c0_i32, %c0_i32_0 : i32, i32, i32
  }
  func.func @transform_1(%arg0: i32) -> (i32, i32, i32) {
    %c0_i32 = arith.constant 0 : i32
    %c0_i32_0 = arith.constant 0 : i32
    %c0_i32_1 = arith.constant 0 : i32
    %c0_i32_2 = arith.constant 0 : i32
    return %c0_i32, %c0_i32_0, %c0_i32_1 : i32, i32, i32
  }
  func.func @transform_2(%arg0: i32) -> (i32, i32, i32) {
    %c0_i32 = arith.constant 0 : i32
    %c0_i32_0 = arith.constant 0 : i32
    %c0_i32_1 = arith.constant 0 : i32
    %c0_i32_2 = arith.constant 0 : i32
    return %c0_i32, %c0_i32_0, %c0_i32_1 : i32, i32, i32
  }
  func.func @transform_3(%arg0: i32) -> (i32, i32, i32, i32) {
    %c0_i32 = arith.constant 0 : i32
    %c0_i32_0 = arith.constant 0 : i32
    %c0_i32_1 = arith.constant 0 : i32
    %c0_i32_2 = arith.constant 0 : i32
    %c0_i32_3 = arith.constant 0 : i32
    return %c0_i32, %c0_i32_0, %c0_i32_1, %c0_i32_2 : i32, i32, i32, i32
  }
  func.func @transform_4(%arg0: i32) -> (i32, i32, i32, i32) {
    %c0_i32 = arith.constant 0 : i32
    %c0_i32_0 = arith.constant 0 : i32
    %c0_i32_1 = arith.constant 0 : i32
    %c0_i32_2 = arith.constant 0 : i32
    %c0_i32_3 = arith.constant 0 : i32
    return %c0_i32, %c0_i32_0, %c0_i32_1, %c0_i32_2 : i32, i32, i32, i32
  }
  func.func @transform_5(%arg0: i32) -> (i32, i32, i32, i32) {
    %c0_i32 = arith.constant 0 : i32
    %c0_i32_0 = arith.constant 0 : i32
    %c0_i32_1 = arith.constant 0 : i32
    %c0_i32_2 = arith.constant 0 : i32
    %c0_i32_3 = arith.constant 0 : i32
    return %c0_i32, %c0_i32_0, %c0_i32_1, %c0_i32_2 : i32, i32, i32, i32
  }
  func.func @transform_6(%arg0: i32) -> (i32, i32, i32, i32) {
    %c0_i32 = arith.constant 0 : i32
    %c0_i32_0 = arith.constant 0 : i32
    %c0_i32_1 = arith.constant 0 : i32
    %c0_i32_2 = arith.constant 0 : i32
    %c0_i32_3 = arith.constant 0 : i32
    return %c0_i32, %c0_i32_0, %c0_i32_1, %c0_i32_2 : i32, i32, i32, i32
  }
  func.func @transform_7(%arg0: i32) -> (i32, i32, i32) {
    %c0_i32 = arith.constant 0 : i32
    %c0_i32_0 = arith.constant 0 : i32
    %c0_i32_1 = arith.constant 0 : i32
    %c0_i32_2 = arith.constant 0 : i32
    return %c0_i32, %c0_i32_0, %c0_i32_1 : i32, i32, i32
  }
  func.func @transform_8(%arg0: i32) -> (i32, i32, i32) {
    %c0_i32 = arith.constant 0 : i32
    %c0_i32_0 = arith.constant 0 : i32
    %c0_i32_1 = arith.constant 0 : i32
    %c0_i32_2 = arith.constant 0 : i32
    return %c0_i32, %c0_i32_0, %c0_i32_1 : i32, i32, i32
  }
  func.func @transform_9(%arg0: i32) -> (i32, i32, i32) {
    %c0_i32 = arith.constant 0 : i32
    %c0_i32_0 = arith.constant 0 : i32
    %c0_i32_1 = arith.constant 0 : i32
    %c0_i32_2 = arith.constant 0 : i32
    return %c0_i32, %c0_i32_0, %c0_i32_1 : i32, i32, i32
  }
  func.func @transform_10(%arg0: i32) -> (i32, i32, i32) {
    %c0_i32 = arith.constant 0 : i32
    %c0_i32_0 = arith.constant 0 : i32
    %c0_i32_1 = arith.constant 0 : i32
    %c0_i32_2 = arith.constant 0 : i32
    return %c0_i32, %c0_i32_0, %c0_i32_1 : i32, i32, i32
  }
  func.func @transform_11(%arg0: i32) -> (i32, i32, i32) {
    %c0_i32 = arith.constant 0 : i32
    %c0_i32_0 = arith.constant 0 : i32
    %c0_i32_1 = arith.constant 0 : i32
    %c0_i32_2 = arith.constant 0 : i32
    return %c0_i32, %c0_i32_0, %c0_i32_1 : i32, i32, i32
  }
  func.func @transform_12(%arg0: i32) -> (i32, i32, i32) {
    %c0_i32 = arith.constant 0 : i32
    %c0_i32_0 = arith.constant 0 : i32
    %c0_i32_1 = arith.constant 0 : i32
    %c0_i32_2 = arith.constant 0 : i32
    return %c0_i32, %c0_i32_0, %c0_i32_1 : i32, i32, i32
  }
  func.func @transform_13(%arg0: i32) -> (i32, i32, i32) {
    %c0_i32 = arith.constant 0 : i32
    %c0_i32_0 = arith.constant 0 : i32
    %c0_i32_1 = arith.constant 0 : i32
    %c0_i32_2 = arith.constant 0 : i32
    return %c0_i32, %c0_i32_0, %c0_i32_1 : i32, i32, i32
  }
  func.func @transform_14(%arg0: i32) -> (i32, i32) {
    %c0_i32 = arith.constant 0 : i32
    %c0_i32_0 = arith.constant 0 : i32
    %c0_i32_1 = arith.constant 0 : i32
    return %c0_i32, %c0_i32_0 : i32, i32
  }
  func.func @transform_15(%arg0: i32) -> (i32, i32) {
    %c0_i32 = arith.constant 0 : i32
    %c0_i32_0 = arith.constant 0 : i32
    %c0_i32_1 = arith.constant 0 : i32
    return %c0_i32, %c0_i32_0 : i32, i32
  }
  func.func @transform_16(%arg0: i32) -> (i32, i32, i32) {
    %c0_i32 = arith.constant 0 : i32
    %c0_i32_0 = arith.constant 0 : i32
    %c0_i32_1 = arith.constant 0 : i32
    return %arg0, %c0_i32, %c0_i32_0 : i32, i32, i32
  }
}

</mosaic_0001>

<llo_original>
// kernel: tpu_custom_call.1
$region0: #{tpu_custom_call.1}
  #allocation0 [shape = 'u32[]', space=smem, size = 0x4, offset = 0x4, fixed_abs, tag = 'smem constant byte address 0x4 - core index']
  #allocation1 [shape = 'u32[144,128]{1,0:T(1,128)}', space=vmem, size = 0x12000, scoped, tag = 'internal scratch']
  %s0 = inlined_call_operand.vmem [shape: f32[2,64,128], index: 0, kind: input, shape index: {}]
  %s1 = inlined_call_operand.vmem [shape: f32[2,1,128], index: 1, kind: input, shape index: {}]
  %s2 = inlined_call_operand.vmem [shape: f32[2,1,128], index: 2, kind: input, shape index: {}]
  %s3 = inlined_call_operand.vmem [shape: bf16[2,4,128,32], index: 3, kind: input, shape index: {}]
  %s4 = inlined_call_operand.vmem [shape: bf16[2,4,128,32], index: 4, kind: input, shape index: {}]
  %s5 = inlined_call_operand.vmem [shape: bf16[2,4,128,32], index: 5, kind: input, shape index: {}]
  %s6 = inlined_call_operand.vmem [shape: bf16[2,4,32,128], index: 6, kind: input, shape index: {}]
  %s7 = inlined_call_operand.vmem [shape: f32[2,1,128], index: 7, kind: input, shape index: {}]
  %s8 = inlined_call_operand.vmem [shape: f32[2,1,128], index: 8, kind: input, shape index: {}]
  %s9 = inlined_call_operand.vmem [shape: f32[2,1,128], index: 9, kind: input, shape index: {}]
  %s10 = inlined_call_operand.vmem [shape: bf16[2,128,512], index: 10, kind: input, shape index: {}]
  %s11 = inlined_call_operand.vmem [shape: f32[2,1,512], index: 11, kind: input, shape index: {}]
  %s12 = inlined_call_operand.vmem [shape: bf16[2,512,128], index: 12, kind: input, shape index: {}]
  %s13 = inlined_call_operand.vmem [shape: f32[2,1,128], index: 13, kind: input, shape index: {}]
  %s14 = inlined_call_operand.vmem [shape: bf16[128,128], index: 14, kind: input, shape index: {}]
  %s15 = inlined_call_operand.vmem [shape: f32[1,128], index: 15, kind: input, shape index: {}]
  %s16 = inlined_call_operand.hbm [shape: f32[2,64,128], index: 16, kind: output, shape index: {}]
  %s17 = sld [smem:[#allocation0]]
  $region97: #{tpu_custom_call.1} parent=0
    _
  %s19 = ssub.s32 1, %s17
  %s20 = scalar_select 0, %s19, %s17
  $region1: #{tpu_custom_call.1} parent=0
    #allocation2 [shape = 'u8[65536]{0}', space=vmem, size = 0x10000, scoped, tag = 'output window, operand 0']
    #allocation3 [shape = 's32[2]{0}', space=sflag, size = 0x8, scoped, tag = 'scoped memory for tpu_custom_call.1']
    %21 = vsyncpa [#allocation3], 0
    %s22 = scalar_lea.sflag [#allocation3], 1
    %23 = vsyncpa %s22, 0
    loop: start=0, step=1, limit=4
    $region2: #{tpu_custom_call.1} parent=1 // loop_pre_header
      _
    $region3: #{tpu_custom_call.1} parent=1 // loop_header
      %s25 = sphi 0, %s29
      %p26 = scmp.ge.s32.totalorder %s25, 4
      %s35 = sphi 0, %s37
      %s38 = sphi 0, %s35
      %s39 = sphi 0, %s38
      %s55 = sphi 0, %s39
      %s59 = sphi 0, %s59
      %s61 = sphi 0, %s59
      %s62 = sphi 0, %s61
      %s76 = sphi 0, %s62
      %s80 = sphi 0, %s80
      %s82 = sphi 0, %s80
      %s83 = sphi 0, %s82
      %s97 = sphi 0, %s83
      %s101 = sphi 0, %s101
      %s103 = sphi 0, %s101
      %s104 = sphi 0, %s103
      %s118 = sphi 0, %s104
      %s122 = sphi 0, %s122
      %s124 = sphi 0, %s122
      %s125 = sphi 0, %s124
      %s139 = sphi 0, %s125
      %s143 = sphi 0, %s143
      %s145 = sphi 0, %s143
      %s146 = sphi 0, %s145
      %s160 = sphi 0, %s146
      %s164 = sphi 0, %s164
      %s166 = sphi 0, %s164
      %s167 = sphi 0, %s166
      %s181 = sphi 0, %s167
      %s185 = sphi 0, %s185
      %s187 = sphi 0, %s185
      %s188 = sphi 0, %s187
      %s202 = sphi 0, %s188
      %s206 = sphi 0, %s206
      %s208 = sphi 0, %s206
      %s209 = sphi 0, %s208
      %s223 = sphi 0, %s209
      %s227 = sphi 0, %s227
      %s229 = sphi 0, %s227
      %s230 = sphi 0, %s229
      %s244 = sphi 0, %s230
      %s248 = sphi 0, %s248
      %s250 = sphi 0, %s248
      %s251 = sphi 0, %s250
      %s265 = sphi 0, %s251
      %s269 = sphi 0, %s269
      %s271 = sphi 0, %s269
      %s272 = sphi 0, %s271
      %s286 = sphi 0, %s272
      %s290 = sphi 0, %s290
      %s292 = sphi 0, %s290
      %s293 = sphi 0, %s292
      %s307 = sphi 0, %s293
      %s311 = sphi 0, %s311
      %s313 = sphi 0, %s311
      %s314 = sphi 0, %s313
      %s328 = sphi 0, %s314
      %s332 = sphi 0, %s332
      %s334 = sphi 0, %s332
      %s335 = sphi 0, %s334
      %s349 = sphi 0, %s335
      %s353 = sphi 0, %s353
      %s355 = sphi 0, %s353
      %s356 = sphi 0, %s355
      %s370 = sphi 0, %s356
      %s376 = sphi 0, %s378
      %s379 = sphi 0, %s376
      %s380 = sphi 0, %s379
      %s396 = sphi 0, %s380
    $region4: #{tpu_custom_call.1} parent=1 // loop_header_branch
      %28 = sbr.rel (%p26) target = $region8
    $region5: #{tpu_custom_call.1} parent=1 // loop_body
      %s30 = ssub.s32 %s25, 1
      %s31 = ssub.s32 %s25, 2
      %s32 = sadd.s32 %s25, 1
      %s33 = ssub.s32 %s25, %s32
      %p34 = scmp.eq.s32.totalorder %s33, 0
      %s36 = sadd.s32 %s35, 1
      %s37 = scalar_select %p34, %s35, %s36
      %p40 = pneg %p34
      %p41 = scmp.eq.s32.totalorder %s25, 1
      %p42 = por %p40, %p41
      %p43 = scmp.ne.s32.totalorder %s35, %s38
      %p44 = scmp.eq.s32.totalorder %s25, 0
      %p45 = por %p43, %p44
      %p46 = scmp.ne.s32.totalorder %s35, %s38
      %p47 = scmp.eq.s32.totalorder %s30, 1
      %p48 = por %p46, %p47
      %p49 = scmp.ne.s32.totalorder %s38, %s39
      %p50 = scmp.eq.s32.totalorder %s30, 0
      %p51 = por %p49, %p50
      %p52 = scmp.ne.s32.totalorder %s38, %s39
      %p53 = scmp.eq.s32.totalorder %s31, 1
      %p54 = por %p52, %p53
      %p56 = scmp.ne.s32.totalorder %s39, %s55
      %p57 = scmp.eq.s32.totalorder %s31, 0
      %p58 = por %p56, %p57
      %s60 = sadd.s32 %s59, 1
      %p63 = scmp.eq.s32.totalorder %s25, 1
      %p64 = scmp.ne.s32.totalorder %s59, %s61
      %p65 = scmp.eq.s32.totalorder %s25, 0
      %p66 = por %p64, %p65
      %p67 = scmp.ne.s32.totalorder %s59, %s61
      %p68 = scmp.eq.s32.totalorder %s30, 1
      %p69 = por %p67, %p68
      %p70 = scmp.ne.s32.totalorder %s61, %s62
      %p71 = scmp.eq.s32.totalorder %s30, 0
      %p72 = por %p70, %p71
      %p73 = scmp.ne.s32.totalorder %s61, %s62
      %p74 = scmp.eq.s32.totalorder %s31, 1
      %p75 = por %p73, %p74
      %p77 = scmp.ne.s32.totalorder %s62, %s76
      %p78 = scmp.eq.s32.totalorder %s31, 0
      %p79 = por %p77, %p78
      %s81 = sadd.s32 %s80, 1
      %p84 = scmp.eq.s32.totalorder %s25, 1
      %p85 = scmp.ne.s32.totalorder %s80, %s82
      %p86 = scmp.eq.s32.totalorder %s25, 0
      %p87 = por %p85, %p86
      %p88 = scmp.ne.s32.totalorder %s80, %s82
      %p89 = scmp.eq.s32.totalorder %s30, 1
      %p90 = por %p88, %p89
      %p91 = scmp.ne.s32.totalorder %s82, %s83
      %p92 = scmp.eq.s32.totalorder %s30, 0
      %p93 = por %p91, %p92
      %p94 = scmp.ne.s32.totalorder %s82, %s83
      %p95 = scmp.eq.s32.totalorder %s31, 1
      %p96 = por %p94, %p95
      %p98 = scmp.ne.s32.totalorder %s83, %s97
      %p99 = scmp.eq.s32.totalorder %s31, 0
      %p100 = por %p98, %p99
      %s102 = sadd.s32 %s101, 1
      %p105 = scmp.eq.s32.totalorder %s25, 1
      %p106 = scmp.ne.s32.totalorder %s101, %s103
      %p107 = scmp.eq.s32.totalorder %s25, 0
      %p108 = por %p106, %p107
      %p109 = scmp.ne.s32.totalorder %s101, %s103
      %p110 = scmp.eq.s32.totalorder %s30, 1
      %p111 = por %p109, %p110
      %p112 = scmp.ne.s32.totalorder %s103, %s104
      %p113 = scmp.eq.s32.totalorder %s30, 0
      %p114 = por %p112, %p113
      %p115 = scmp.ne.s32.totalorder %s103, %s104
      %p116 = scmp.eq.s32.totalorder %s31, 1
      %p117 = por %p115, %p116
      %p119 = scmp.ne.s32.totalorder %s104, %s118
      %p120 = scmp.eq.s32.totalorder %s31, 0
      %p121 = por %p119, %p120
      %s123 = sadd.s32 %s122, 1
      %p126 = scmp.eq.s32.totalorder %s25, 1
      %p127 = scmp.ne.s32.totalorder %s122, %s124
      %p128 = scmp.eq.s32.totalorder %s25, 0
      %p129 = por %p127, %p128
      %p130 = scmp.ne.s32.totalorder %s122, %s124
      %p131 = scmp.eq.s32.totalorder %s30, 1
      %p132 = por %p130, %p131
      %p133 = scmp.ne.s32.totalorder %s124, %s125
      %p134 = scmp.eq.s32.totalorder %s30, 0
      %p135 = por %p133, %p134
      %p136 = scmp.ne.s32.totalorder %s124, %s125
      %p137 = scmp.eq.s32.totalorder %s31, 1
      %p138 = por %p136, %p137
      %p140 = scmp.ne.s32.totalorder %s125, %s139
      %p141 = scmp.eq.s32.totalorder %s31, 0
      %p142 = por %p140, %p141
      %s144 = sadd.s32 %s143, 1
      %p147 = scmp.eq.s32.totalorder %s25, 1
      %p148 = scmp.ne.s32.totalorder %s143, %s145
      %p149 = scmp.eq.s32.totalorder %s25, 0
      %p150 = por %p148, %p149
      %p151 = scmp.ne.s32.totalorder %s143, %s145
      %p152 = scmp.eq.s32.totalorder %s30, 1
      %p153 = por %p151, %p152
      %p154 = scmp.ne.s32.totalorder %s145, %s146
      %p155 = scmp.eq.s32.totalorder %s30, 0
      %p156 = por %p154, %p155
      %p157 = scmp.ne.s32.totalorder %s145, %s146
      %p158 = scmp.eq.s32.totalorder %s31, 1
      %p159 = por %p157, %p158
      %p161 = scmp.ne.s32.totalorder %s146, %s160
      %p162 = scmp.eq.s32.totalorder %s31, 0
      %p163 = por %p161, %p162
      %s165 = sadd.s32 %s164, 1
      %p168 = scmp.eq.s32.totalorder %s25, 1
      %p169 = scmp.ne.s32.totalorder %s164, %s166
      %p170 = scmp.eq.s32.totalorder %s25, 0
      %p171 = por %p169, %p170
      %p172 = scmp.ne.s32.totalorder %s164, %s166
      %p173 = scmp.eq.s32.totalorder %s30, 1
      %p174 = por %p172, %p173
      %p175 = scmp.ne.s32.totalorder %s166, %s167
      %p176 = scmp.eq.s32.totalorder %s30, 0
      %p177 = por %p175, %p176
      %p178 = scmp.ne.s32.totalorder %s166, %s167
      %p179 = scmp.eq.s32.totalorder %s31, 1
      %p180 = por %p178, %p179
      %p182 = scmp.ne.s32.totalorder %s167, %s181
      %p183 = scmp.eq.s32.totalorder %s31, 0
      %p184 = por %p182, %p183
      %s186 = sadd.s32 %s185, 1
      %p189 = scmp.eq.s32.totalorder %s25, 1
      %p190 = scmp.ne.s32.totalorder %s185, %s187
      %p191 = scmp.eq.s32.totalorder %s25, 0
      %p192 = por %p190, %p191
      %p193 = scmp.ne.s32.totalorder %s185, %s187
      %p194 = scmp.eq.s32.totalorder %s30, 1
      %p195 = por %p193, %p194
      %p196 = scmp.ne.s32.totalorder %s187, %s188
      %p197 = scmp.eq.s32.totalorder %s30, 0
      %p198 = por %p196, %p197
      %p199 = scmp.ne.s32.totalorder %s187, %s188
      %p200 = scmp.eq.s32.totalorder %s31, 1
      %p201 = por %p199, %p200
      %p203 = scmp.ne.s32.totalorder %s188, %s202
      %p204 = scmp.eq.s32.totalorder %s31, 0
      %p205 = por %p203, %p204
      %s207 = sadd.s32 %s206, 1
      %p210 = scmp.eq.s32.totalorder %s25, 1
      %p211 = scmp.ne.s32.totalorder %s206, %s208
      %p212 = scmp.eq.s32.totalorder %s25, 0
      %p213 = por %p211, %p212
      %p214 = scmp.ne.s32.totalorder %s206, %s208
      %p215 = scmp.eq.s32.totalorder %s30, 1
      %p216 = por %p214, %p215
      %p217 = scmp.ne.s32.totalorder %s208, %s209
      %p218 = scmp.eq.s32.totalorder %s30, 0
      %p219 = por %p217, %p218
      %p220 = scmp.ne.s32.totalorder %s208, %s209
      %p221 = scmp.eq.s32.totalorder %s31, 1
      %p222 = por %p220, %p221
      %p224 = scmp.ne.s32.totalorder %s209, %s223
      %p225 = scmp.eq.s32.totalorder %s31, 0
      %p226 = por %p224, %p225
      %s228 = sadd.s32 %s227, 1
      %p231 = scmp.eq.s32.totalorder %s25, 1
      %p232 = scmp.ne.s32.totalorder %s227, %s229
      %p233 = scmp.eq.s32.totalorder %s25, 0
      %p234 = por %p232, %p233
      %p235 = scmp.ne.s32.totalorder %s227, %s229
      %p236 = scmp.eq.s32.totalorder %s30, 1
      %p237 = por %p235, %p236
      %p238 = scmp.ne.s32.totalorder %s229, %s230
      %p239 = scmp.eq.s32.totalorder %s30, 0
      %p240 = por %p238, %p239
      %p241 = scmp.ne.s32.totalorder %s229, %s230
      %p242 = scmp.eq.s32.totalorder %s31, 1
      %p243 = por %p241, %p242
      %p245 = scmp.ne.s32.totalorder %s230, %s244
      %p246 = scmp.eq.s32.totalorder %s31, 0
      %p247 = por %p245, %p246
      %s249 = sadd.s32 %s248, 1
      %p252 = scmp.eq.s32.totalorder %s25, 1
      %p253 = scmp.ne.s32.totalorder %s248, %s250
      %p254 = scmp.eq.s32.totalorder %s25, 0
      %p255 = por %p253, %p254
      %p256 = scmp.ne.s32.totalorder %s248, %s250
      %p257 = scmp.eq.s32.totalorder %s30, 1
      %p258 = por %p256, %p257
      %p259 = scmp.ne.s32.totalorder %s250, %s251
      %p260 = scmp.eq.s32.totalorder %s30, 0
      %p261 = por %p259, %p260
      %p262 = scmp.ne.s32.totalorder %s250, %s251
      %p263 = scmp.eq.s32.totalorder %s31, 1
      %p264 = por %p262, %p263
      %p266 = scmp.ne.s32.totalorder %s251, %s265
      %p267 = scmp.eq.s32.totalorder %s31, 0
      %p268 = por %p266, %p267
      %s270 = sadd.s32 %s269, 1
      %p273 = scmp.eq.s32.totalorder %s25, 1
      %p274 = scmp.ne.s32.totalorder %s269, %s271
      %p275 = scmp.eq.s32.totalorder %s25, 0
      %p276 = por %p274, %p275
      %p277 = scmp.ne.s32.totalorder %s269, %s271
      %p278 = scmp.eq.s32.totalorder %s30, 1
      %p279 = por %p277, %p278
      %p280 = scmp.ne.s32.totalorder %s271, %s272
      %p281 = scmp.eq.s32.totalorder %s30, 0
      %p282 = por %p280, %p281
      %p283 = scmp.ne.s32.totalorder %s271, %s272
      %p284 = scmp.eq.s32.totalorder %s31, 1
      %p285 = por %p283, %p284
      %p287 = scmp.ne.s32.totalorder %s272, %s286
      %p288 = scmp.eq.s32.totalorder %s31, 0
      %p289 = por %p287, %p288
      %s291 = sadd.s32 %s290, 1
      %p294 = scmp.eq.s32.totalorder %s25, 1
      %p295 = scmp.ne.s32.totalorder %s290, %s292
      %p296 = scmp.eq.s32.totalorder %s25, 0
      %p297 = por %p295, %p296
      %p298 = scmp.ne.s32.totalorder %s290, %s292
      %p299 = scmp.eq.s32.totalorder %s30, 1
      %p300 = por %p298, %p299
      %p301 = scmp.ne.s32.totalorder %s292, %s293
      %p302 = scmp.eq.s32.totalorder %s30, 0
      %p303 = por %p301, %p302
      %p304 = scmp.ne.s32.totalorder %s292, %s293
      %p305 = scmp.eq.s32.totalorder %s31, 1
      %p306 = por %p304, %p305
      %p308 = scmp.ne.s32.totalorder %s293, %s307
      %p309 = scmp.eq.s32.totalorder %s31, 0
      %p310 = por %p308, %p309
      %s312 = sadd.s32 %s311, 1
      %p315 = scmp.eq.s32.totalorder %s25, 1
      %p316 = scmp.ne.s32.totalorder %s311, %s313
      %p317 = scmp.eq.s32.totalorder %s25, 0
      %p318 = por %p316, %p317
      %p319 = scmp.ne.s32.totalorder %s311, %s313
      %p320 = scmp.eq.s32.totalorder %s30, 1
      %p321 = por %p319, %p320
      %p322 = scmp.ne.s32.totalorder %s313, %s314
      %p323 = scmp.eq.s32.totalorder %s30, 0
      %p324 = por %p322, %p323
      %p325 = scmp.ne.s32.totalorder %s313, %s314
      %p326 = scmp.eq.s32.totalorder %s31, 1
      %p327 = por %p325, %p326
      %p329 = scmp.ne.s32.totalorder %s314, %s328
      %p330 = scmp.eq.s32.totalorder %s31, 0
      %p331 = por %p329, %p330
      %s333 = sadd.s32 %s332, 1
      %p336 = scmp.eq.s32.totalorder %s25, 1
      %p337 = scmp.ne.s32.totalorder %s332, %s334
      %p338 = scmp.eq.s32.totalorder %s25, 0
      %p339 = por %p337, %p338
      %p340 = scmp.ne.s32.totalorder %s332, %s334
      %p341 = scmp.eq.s32.totalorder %s30, 1
      %p342 = por %p340, %p341
      %p343 = scmp.ne.s32.totalorder %s334, %s335
      %p344 = scmp.eq.s32.totalorder %s30, 0
      %p345 = por %p343, %p344
      %p346 = scmp.ne.s32.totalorder %s334, %s335
      %p347 = scmp.eq.s32.totalorder %s31, 1
      %p348 = por %p346, %p347
      %p350 = scmp.ne.s32.totalorder %s335, %s349
      %p351 = scmp.eq.s32.totalorder %s31, 0
      %p352 = por %p350, %p351
      %s354 = sadd.s32 %s353, 1
      %p357 = scmp.eq.s32.totalorder %s25, 1
      %p358 = scmp.ne.s32.totalorder %s353, %s355
      %p359 = scmp.eq.s32.totalorder %s25, 0
      %p360 = por %p358, %p359
      %p361 = scmp.ne.s32.totalorder %s353, %s355
      %p362 = scmp.eq.s32.totalorder %s30, 1
      %p363 = por %p361, %p362
      %p364 = scmp.ne.s32.totalorder %s355, %s356
      %p365 = scmp.eq.s32.totalorder %s30, 0
      %p366 = por %p364, %p365
      %p367 = scmp.ne.s32.totalorder %s355, %s356
      %p368 = scmp.eq.s32.totalorder %s31, 1
      %p369 = por %p367, %p368
      %p371 = scmp.ne.s32.totalorder %s356, %s370
      %p372 = scmp.eq.s32.totalorder %s31, 0
      %p373 = por %p371, %p372
      %s374 = ssub.s32 %s25, %s32
      %p375 = scmp.eq.s32.totalorder %s374, 0
      %s377 = sadd.s32 %s376, 1
      %s378 = scalar_select %p375, %s376, %s377
      %p381 = pneg %p375
      %p382 = scmp.eq.s32.totalorder %s25, 1
      %p383 = por %p381, %p382
      %p384 = scmp.ne.s32.totalorder %s376, %s379
      %p385 = scmp.eq.s32.totalorder %s25, 0
      %p386 = por %p384, %p385
      %p387 = scmp.ne.s32.totalorder %s376, %s379
      %p388 = scmp.eq.s32.totalorder %s30, 1
      %p389 = por %p387, %p388
      %p390 = scmp.ne.s32.totalorder %s379, %s380
      %p391 = scmp.eq.s32.totalorder %s30, 0
      %p392 = por %p390, %p391
      %p393 = scmp.ne.s32.totalorder %s379, %s380
      %p394 = scmp.eq.s32.totalorder %s31, 1
      %p395 = por %p393, %p394
      %p397 = scmp.ne.s32.totalorder %s380, %s396
      %p398 = scmp.eq.s32.totalorder %s31, 0
      %p399 = por %p397, %p398
      %p400 = scmp.le.s32.totalorder 1, %s25
      %p401 = scmp.lt.s32.totalorder %s25, 3
      %p402 = pnand %p400, %p401
      %p403 = pneg %p402
      // Predicated region
      $region9: #{tpu_custom_call.1} parent=5 // pred_check
        _
      $region10: #{tpu_custom_call.1} parent=5 // pred_check_branch
        %405 = sbr.rel (%p402) target = $region12
      $region11: #{tpu_custom_call.1} parent=5 // pred_region
        %s406 = ssub.s32 %s25, 1
        // Predicated region
        $region13: #{tpu_custom_call.1} parent=11 // pred_check
          %p407 = pneg %p72
        $region14: #{tpu_custom_call.1} parent=11 // pred_check_branch
          %409 = sbr.rel (%p407) target = $region16
        $region15: #{tpu_custom_call.1} parent=11 // pred_region
          _
        $region16: #{tpu_custom_call.1} parent=11 // pred_fallthru
          _
        // Predicated region
        $region17: #{tpu_custom_call.1} parent=11 // pred_check
          %p410 = pneg %p93
        $region18: #{tpu_custom_call.1} parent=11 // pred_check_branch
          %412 = sbr.rel (%p410) target = $region20
        $region19: #{tpu_custom_call.1} parent=11 // pred_region
          _
        $region20: #{tpu_custom_call.1} parent=11 // pred_fallthru
          _
        // Predicated region
        $region21: #{tpu_custom_call.1} parent=11 // pred_check
          %p413 = pneg %p114
        $region22: #{tpu_custom_call.1} parent=11 // pred_check_branch
          %415 = sbr.rel (%p413) target = $region24
        $region23: #{tpu_custom_call.1} parent=11 // pred_region
          _
        $region24: #{tpu_custom_call.1} parent=11 // pred_fallthru
          _
        // Predicated region
        $region25: #{tpu_custom_call.1} parent=11 // pred_check
          %p416 = pneg %p135
        $region26: #{tpu_custom_call.1} parent=11 // pred_check_branch
          %418 = sbr.rel (%p416) target = $region28
        $region27: #{tpu_custom_call.1} parent=11 // pred_region
          _
        $region28: #{tpu_custom_call.1} parent=11 // pred_fallthru
          _
        // Predicated region
        $region29: #{tpu_custom_call.1} parent=11 // pred_check
          %p419 = pneg %p156
        $region30: #{tpu_custom_call.1} parent=11 // pred_check_branch
          %421 = sbr.rel (%p419) target = $region32
        $region31: #{tpu_custom_call.1} parent=11 // pred_region
          _
        $region32: #{tpu_custom_call.1} parent=11 // pred_fallthru
          _
        // Predicated region
        $region33: #{tpu_custom_call.1} parent=11 // pred_check
          %p422 = pneg %p177
        $region34: #{tpu_custom_call.1} parent=11 // pred_check_branch
          %424 = sbr.rel (%p422) target = $region36
        $region35: #{tpu_custom_call.1} parent=11 // pred_region
          _
        $region36: #{tpu_custom_call.1} parent=11 // pred_fallthru
          _
        // Predicated region
        $region37: #{tpu_custom_call.1} parent=11 // pred_check
          %p425 = pneg %p198
        $region38: #{tpu_custom_call.1} parent=11 // pred_check_branch
          %427 = sbr.rel (%p425) target = $region40
        $region39: #{tpu_custom_call.1} parent=11 // pred_region
          _
        $region40: #{tpu_custom_call.1} parent=11 // pred_fallthru
          _
        // Predicated region
        $region41: #{tpu_custom_call.1} parent=11 // pred_check
          %p428 = pneg %p219
        $region42: #{tpu_custom_call.1} parent=11 // pred_check_branch
          %430 = sbr.rel (%p428) target = $region44
        $region43: #{tpu_custom_call.1} parent=11 // pred_region
          _
        $region44: #{tpu_custom_call.1} parent=11 // pred_fallthru
          _
        // Predicated region
        $region45: #{tpu_custom_call.1} parent=11 // pred_check
          %p431 = pneg %p240
        $region46: #{tpu_custom_call.1} parent=11 // pred_check_branch
          %433 = sbr.rel (%p431) target = $region48
        $region47: #{tpu_custom_call.1} parent=11 // pred_region
          _
        $region48: #{tpu_custom_call.1} parent=11 // pred_fallthru
          _
        // Predicated region
        $region49: #{tpu_custom_call.1} parent=11 // pred_check
          %p434 = pneg %p261
        $region50: #{tpu_custom_call.1} parent=11 // pred_check_branch
          %436 = sbr.rel (%p434) target = $region52
        $region51: #{tpu_custom_call.1} parent=11 // pred_region
          _
        $region52: #{tpu_custom_call.1} parent=11 // pred_fallthru
          _
        // Predicated region
        $region53: #{tpu_custom_call.1} parent=11 // pred_check
          %p437 = pneg %p282
        $region54: #{tpu_custom_call.1} parent=11 // pred_check_branch
          %439 = sbr.rel (%p437) target = $region56
        $region55: #{tpu_custom_call.1} parent=11 // pred_region
          _
        $region56: #{tpu_custom_call.1} parent=11 // pred_fallthru
          _
        // Predicated region
        $region57: #{tpu_custom_call.1} parent=11 // pred_check
          %p440 = pneg %p303
        $region58: #{tpu_custom_call.1} parent=11 // pred_check_branch
          %442 = sbr.rel (%p440) target = $region60
        $region59: #{tpu_custom_call.1} parent=11 // pred_region
          _
        $region60: #{tpu_custom_call.1} parent=11 // pred_fallthru
          _
        // Predicated region
        $region61: #{tpu_custom_call.1} parent=11 // pred_check
          %p443 = pneg %p324
        $region62: #{tpu_custom_call.1} parent=11 // pred_check_branch
          %445 = sbr.rel (%p443) target = $region64
        $region63: #{tpu_custom_call.1} parent=11 // pred_region
          _
        $region64: #{tpu_custom_call.1} parent=11 // pred_fallthru
          _
        // Predicated region
        $region65: #{tpu_custom_call.1} parent=11 // pred_check
          %p446 = pneg %p345
        $region66: #{tpu_custom_call.1} parent=11 // pred_check_branch
          %448 = sbr.rel (%p446) target = $region68
        $region67: #{tpu_custom_call.1} parent=11 // pred_region
          _
        $region68: #{tpu_custom_call.1} parent=11 // pred_fallthru
          _
        // Predicated region
        $region69: #{tpu_custom_call.1} parent=11 // pred_check
          %p449 = pneg %p366
        $region70: #{tpu_custom_call.1} parent=11 // pred_check_branch
          %451 = sbr.rel (%p449) target = $region72
        $region71: #{tpu_custom_call.1} parent=11 // pred_region
          _
        $region72: #{tpu_custom_call.1} parent=11 // pred_fallthru
          _
      $region12: #{tpu_custom_call.1} parent=5 // pred_fallthru
        _
      %p452 = scmp.lt.s32.totalorder %s25, 2
      // Predicated region
      $region73: #{tpu_custom_call.1} parent=5 // pred_check
        %p453 = pneg %p452
      $region74: #{tpu_custom_call.1} parent=5 // pred_check_branch
        %455 = sbr.rel (%p453) target = $region76
      $region75: #{tpu_custom_call.1} parent=5 // pred_region
        // Predicated region
        $region77: #{tpu_custom_call.1} parent=75 // pred_check
          %p456 = pneg %p45
        $region78: #{tpu_custom_call.1} parent=75 // pred_check_branch
          %458 = sbr.rel (%p456) target = $region80
        $region79: #{tpu_custom_call.1} parent=75 // pred_region
          %p459 = scmp.lt.s32.totalorder %s25, 1
          %s460 = scalar_select %p459, %s25, 1
          %s461 = smul.addr %s460, 8
          %s462 = smul.addr %s461, 8
          %s463 = scalar_lea.vmem %s0, %s462
        $region80: #{tpu_custom_call.1} parent=75 // pred_fallthru
          _
      $region76: #{tpu_custom_call.1} parent=5 // pred_fallthru
        _
      %p464 = scmp.le.s32.totalorder 1, %s25
      %p465 = scmp.lt.s32.totalorder %s25, 3
      %p466 = pnand %p464, %p465
      %p467 = pneg %p466
      // Predicated region
      $region81: #{tpu_custom_call.1} parent=5 // pred_check
        _
      $region82: #{tpu_custom_call.1} parent=5 // pred_check_branch
        %469 = sbr.rel (%p466) target = $region84
      $region83: #{tpu_custom_call.1} parent=5 // pred_region
        %s470 = ssub.s32 %s25, 1
        %p471 = scmp.lt.s32.totalorder %s30, 1
        %s472 = scalar_select %p471, %s30, 1
        %s473 = smul.addr %s472, 8
        %s474 = smul.addr %s473, 8
        %s475 = scalar_lea.vmem %s0, %s474
        %p476 = pneg %p51
        %p477 = pneg %p48
        %p478 = pneg %p72
        %p479 = pneg %p69
        %p480 = pneg %p93
        %p481 = pneg %p90
        %p482 = pneg %p114
        %p483 = pneg %p111
        %p484 = pneg %p135
        %p485 = pneg %p132
        %p486 = pneg %p156
        %p487 = pneg %p153
        %p488 = pneg %p177
        %p489 = pneg %p174
        %p490 = pneg %p198
        %p491 = pneg %p195
        %p492 = pneg %p219
        %p493 = pneg %p216
        %p494 = pneg %p240
        %p495 = pneg %p237
        %p496 = pneg %p261
        %p497 = pneg %p258
        %p498 = pneg %p282
        %p499 = pneg %p279
        %p500 = pneg %p303
        %p501 = pneg %p300
        %p502 = pneg %p324
        %p503 = pneg %p321
        %p504 = pneg %p345
        %p505 = pneg %p342
        %p506 = pneg %p366
        %p507 = pneg %p363
        %p508 = pneg %p392
        %p509 = pneg %p389
        %s510 = sand.u32 %s379, 1
        %s511 = scalar_lea.sflag [#allocation3], %s510
        %s512 = sand.u32 %s379, 1
        %s513 = smul.addr %s512, 64
        %s514 = scalar_lea.vmem [#allocation2], %s513
        %p515 = scmp.lt.s32.totalorder %s30, 1
        %s516 = scalar_select %p515, %s30, 1
        %s517 = smul.addr %s516, 8
        %s518 = smul.addr %s517, 8
        %s519 = scalar_lea.vmem %s0, %s518
        %v521 = vld [vmem:[%s519] sm:$0xff]
        %v522 = vld [vmem:[%s519 + $0x8] sm:$0xff]
        %v523 = vld [vmem:[%s519 + $0x10] sm:$0xff]
        %v524 = vld [vmem:[%s519 + $0x18] sm:$0xff]
        %v525 = vld [vmem:[%s519 + $0x20] sm:$0xff]
        %v526 = vld [vmem:[%s519 + $0x28] sm:$0xff]
        %v527 = vld [vmem:[%s519 + $0x30] sm:$0xff]
        %v528 = vld [vmem:[%s519 + $0x38] sm:$0xff]
        %v529 = vlaneseq
        %v530 = vshrl.u32 %v529, 7
        %v531 = vadd.s32 %v530, 8
        %v532 = vadd.s32 %v530, 16
        %v533 = vadd.s32 %v530, 24
        %v534 = vadd.s32 %v530, 32
        %v535 = vadd.s32 %v530, 40
        %v536 = vadd.s32 %v530, 48
        %v537 = vadd.s32 %v530, 56
        %v538 = vlaneseq
        %v539 = vand.u32 %v538, 127
        %vm540 = vcmp.le.s32.totalorder %v539, %v530
        %vm541 = vcmp.le.s32.totalorder %v539, %v531
        %vm542 = vcmp.le.s32.totalorder %v539, %v532
        %vm543 = vcmp.le.s32.totalorder %v539, %v533
        %vm544 = vcmp.le.s32.totalorder %v539, %v534
        %vm545 = vcmp.le.s32.totalorder %v539, %v535
        %vm546 = vcmp.le.s32.totalorder %v539, %v536
        %vm547 = vcmp.le.s32.totalorder %v539, %v537
        %v548 = vld [vmem:[%s1] sm:$0x1]
        %v549 = vld [vmem:[%s2] sm:$0x1]
        %550 = vadd.xlane.f32.xlu0 %v521
        %v551 = vpop.xlane.xlu0 %550
        %552 = vadd.xlane.f32.xlu0 %v522
        %v553 = vpop.xlane.xlu0 %552
        %554 = vadd.xlane.f32.xlu0 %v523
        %v555 = vpop.xlane.xlu0 %554
        %556 = vadd.xlane.f32.xlu0 %v524
        %v557 = vpop.xlane.xlu0 %556
        %558 = vadd.xlane.f32.xlu0 %v525
        %v559 = vpop.xlane.xlu0 %558
        %560 = vadd.xlane.f32.xlu0 %v526
        %v561 = vpop.xlane.xlu0 %560
        %562 = vadd.xlane.f32.xlu0 %v527
        %v563 = vpop.xlane.xlu0 %562
        %564 = vadd.xlane.f32.xlu0 %v528
        %v565 = vpop.xlane.xlu0 %564
        %v566 = vrcp.pop 128.0
        %v567 = vmul.f32 %v551, %v566
        %v568 = vmul.f32 %v553, %v566
        %v569 = vmul.f32 %v555, %v566
        %v570 = vmul.f32 %v557, %v566
        %v571 = vmul.f32 %v559, %v566
        %v572 = vmul.f32 %v561, %v566
        %v573 = vmul.f32 %v563, %v566
        %v574 = vmul.f32 %v565, %v566
        %v575 = vsub.f32 %v521, %v567
        %v576 = vsub.f32 %v522, %v568
        %v577 = vsub.f32 %v523, %v569
        %v578 = vsub.f32 %v524, %v570
        %v579 = vsub.f32 %v525, %v571
        %v580 = vsub.f32 %v526, %v572
        %v581 = vsub.f32 %v527, %v573
        %v582 = vsub.f32 %v528, %v574
        %v583 = vmul.f32 %v575, %v575
        %v584 = vmul.f32 %v576, %v576
        %v585 = vmul.f32 %v577, %v577
        %v586 = vmul.f32 %v578, %v578
        %v587 = vmul.f32 %v579, %v579
        %v588 = vmul.f32 %v580, %v580
        %v589 = vmul.f32 %v581, %v581
        %v590 = vmul.f32 %v582, %v582
        %591 = vadd.xlane.f32.xlu0 %v583
        %v592 = vpop.xlane.xlu0 %591
        %593 = vadd.xlane.f32.xlu0 %v584
        %v594 = vpop.xlane.xlu0 %593
        %595 = vadd.xlane.f32.xlu0 %v585
        %v596 = vpop.xlane.xlu0 %595
        %597 = vadd.xlane.f32.xlu0 %v586
        %v598 = vpop.xlane.xlu0 %597
        %599 = vadd.xlane.f32.xlu0 %v587
        %v600 = vpop.xlane.xlu0 %599
        %601 = vadd.xlane.f32.xlu0 %v588
        %v602 = vpop.xlane.xlu0 %601
        %603 = vadd.xlane.f32.xlu0 %v589
        %v604 = vpop.xlane.xlu0 %603
        %605 = vadd.xlane.f32.xlu0 %v590
        %v606 = vpop.xlane.xlu0 %605
        %v607 = vmul.f32 %v592, %v566
        %v608 = vmul.f32 %v594, %v566
        %v609 = vmul.f32 %v596, %v566
        %v610 = vmul.f32 %v598, %v566
        %v611 = vmul.f32 %v600, %v566
        %v612 = vmul.f32 %v602, %v566
        %v613 = vmul.f32 %v604, %v566
        %v614 = vmul.f32 %v606, %v566
        %v615 = vadd.f32 %v607, 1e-05
        %v616 = vadd.f32 %v608, 1e-05
        %v617 = vadd.f32 %v609, 1e-05
        %v618 = vadd.f32 %v610, 1e-05
        %v619 = vadd.f32 %v611, 1e-05
        %v620 = vadd.f32 %v612, 1e-05
        %v621 = vadd.f32 %v613, 1e-05
        %v622 = vadd.f32 %v614, 1e-05
        %v623 = vrsqrt.pop %v615
        %v624 = vrsqrt.pop %v616
        %v625 = vrsqrt.pop %v617
        %v626 = vrsqrt.pop %v618
        %v627 = vrsqrt.pop %v619
        %v628 = vrsqrt.pop %v620
        %v629 = vrsqrt.pop %v621
        %v630 = vrsqrt.pop %v622
        %v631 = vmul.f32 %v575, %v623
        %v632 = vmul.f32 %v576, %v624
        %v633 = vmul.f32 %v577, %v625
        %v634 = vmul.f32 %v578, %v626
        %v635 = vmul.f32 %v579, %v627
        %v636 = vmul.f32 %v580, %v628
        %v637 = vmul.f32 %v581, %v629
        %v638 = vmul.f32 %v582, %v630
        %v640 = vlaneseq
        %v641 = vshrl.u32 %v640, 7
        %v642 = vsub.s32 0, %v641
        %v643 = vrot.slane %v548, %v642
        %v645 = vmul.f32 %v631, %v643
        %v646 = vmul.f32 %v632, %v643
        %v647 = vmul.f32 %v633, %v643
        %v648 = vmul.f32 %v634, %v643
        %v649 = vmul.f32 %v635, %v643
        %v650 = vmul.f32 %v636, %v643
        %v651 = vmul.f32 %v637, %v643
        %v652 = vmul.f32 %v638, %v643
        %v654 = vlaneseq
        %v655 = vshrl.u32 %v654, 7
        %v656 = vsub.s32 0, %v655
        %v657 = vrot.slane %v549, %v656
        %v659 = vadd.f32 %v645, %v657
        %v660 = vadd.f32 %v646, %v657
        %v661 = vadd.f32 %v647, %v657
        %v662 = vadd.f32 %v648, %v657
        %v663 = vadd.f32 %v649, %v657
        %v664 = vadd.f32 %v650, %v657
        %v665 = vadd.f32 %v651, %v657
        %v666 = vadd.f32 %v652, %v657
        %v667 = vpack.c.bf16 %v660, %v659
        %v668 = vpack.c.bf16 %v662, %v661
        %v669 = vpack.c.bf16 %v664, %v663
        %v670 = vpack.c.bf16 %v666, %v665
        %v671 = vld [vmem:[%s3] sm:$0xf]
        %v672 = vld [vmem:[%s3 + $0x4] sm:$0xf]
        %v673 = vld [vmem:[%s3 + $0x8] sm:$0xf]
        %v674 = vld [vmem:[%s3 + $0xc] sm:$0xf]
        %v675 = vld [vmem:[%s3 + $0x10] sm:$0xf]
        %v676 = vld [vmem:[%s3 + $0x14] sm:$0xf]
        %v677 = vld [vmem:[%s3 + $0x18] sm:$0xf]
        %v678 = vld [vmem:[%s3 + $0x1c] sm:$0xf]
        %v679 = vld [vmem:[%s3 + $0x20] sm:$0xf]
        %v680 = vld [vmem:[%s3 + $0x24] sm:$0xf]
        %v681 = vld [vmem:[%s3 + $0x28] sm:$0xf]
        %v682 = vld [vmem:[%s3 + $0x2c] sm:$0xf]
        %v683 = vld [vmem:[%s3 + $0x30] sm:$0xf]
        %v684 = vld [vmem:[%s3 + $0x34] sm:$0xf]
        %v685 = vld [vmem:[%s3 + $0x38] sm:$0xf]
        %v686 = vld [vmem:[%s3 + $0x3c] sm:$0xf]
        %v703 = vunpack.c.l.b16 %v671
        %v704 = vunpack.c.l.b16 %v672
        %v705 = vunpack.c.l.b16 %v673
        %v706 = vunpack.c.l.b16 %v674
        %v707 = vunpack.c.l.b16 %v675
        %v708 = vunpack.c.l.b16 %v676
        %v709 = vunpack.c.l.b16 %v677
        %v710 = vunpack.c.l.b16 %v678
        %v711 = vunpack.c.l.b16 %v679
        %v712 = vunpack.c.l.b16 %v680
        %v713 = vunpack.c.l.b16 %v681
        %v714 = vunpack.c.l.b16 %v682
        %v715 = vunpack.c.l.b16 %v683
        %v716 = vunpack.c.l.b16 %v684
        %v717 = vunpack.c.l.b16 %v685
        %v718 = vunpack.c.l.b16 %v686
        %v719 = vpack.c.b16 %v704, %v703
        %v720 = vpack.c.b16 %v706, %v705
        %v721 = vpack.c.b16 %v708, %v707
        %v722 = vpack.c.b16 %v710, %v709
        %v723 = vpack.c.b16 %v712, %v711
        %v724 = vpack.c.b16 %v714, %v713
        %v725 = vpack.c.b16 %v716, %v715
        %v726 = vpack.c.b16 %v718, %v717
        %735 = vmatprep.subr.bf16.mxu0 0
        %736 = vmatpush1.bf16.msra.mxu0 %v719
        %737 = vmatprep.subr.bf16.mxu0 0
        %738 = vmatpush1.bf16.msra.mxu0 %v720
        %739 = vmatprep.subr.bf16.mxu0 0
        %740 = vmatpush1.bf16.msra.mxu0 %v721
        %741 = vmatprep.subr.bf16.mxu0 0
        %742 = vmatpush1.bf16.msra.mxu0 %v722
        %743 = vmatprep.subr.bf16.mxu0 0
        %744 = vmatpush1.bf16.msra.mxu0 %v723
        %745 = vmatprep.subr.bf16.mxu0 0
        %746 = vmatpush1.bf16.msra.mxu0 %v724
        %747 = vmatprep.subr.bf16.mxu0 0
        %748 = vmatpush1.bf16.msra.mxu0 %v725
        %749 = vmatprep.subr.bf16.mxu0 0
        %750 = vmatpush1.bf16.msra.mxu0 %v726
        %751 = vmatprep.subr.bf16.mxu0 0
        %752 = vmatpush1.bf16.msra.mxu0 0
        %753 = vmatprep.subr.bf16.mxu0 0
        %754 = vmatpush1.bf16.msra.mxu0 0
        %755 = vmatprep.subr.bf16.mxu0 0
        %756 = vmatpush1.bf16.msra.mxu0 0
        %757 = vmatprep.subr.bf16.mxu0 0
        %758 = vmatpush1.bf16.msra.mxu0 0
        %759 = vmatprep.subr.bf16.mxu0 0
        %760 = vmatpush1.bf16.msra.mxu0 0
        %761 = vmatprep.subr.bf16.mxu0 0
        %762 = vmatpush1.bf16.msra.mxu0 0
        %763 = vmatprep.subr.bf16.mxu0 0
        %764 = vmatpush1.bf16.msra.mxu0 0
        %765 = vmatprep.subr.bf16.mxu0 0
        %766 = vmatpush1.bf16.msra.mxu0 0
        %767 = vmatprep.mubr.bf16.mxu0 0
        %768 = vmatmul.mubr.bf16.gmra.mrb[0].mxu0 %v667
        %v769 = vpop.f32.mrb[0].mxu0
        %v770 = vadd.f32 0.0, %v769
        %v771 = vpop.f32.mrb[0].mxu0
        %v772 = vpop.f32.mrb[0].mxu0
        %v773 = vadd.f32 0.0, %v772
        %v774 = vpop.f32.mrb[0].mxu0
        %775 = vmatprep.mubr.bf16.mxu0 0
        %776 = vmatmul.mubr.bf16.gmra.mrb[0].mxu0 %v668
        %v777 = vpop.f32.mrb[0].mxu0
        %v778 = vadd.f32 0.0, %v777
        %v779 = vpop.f32.mrb[0].mxu0
        %v780 = vpop.f32.mrb[0].mxu0
        %v781 = vadd.f32 0.0, %v780
        %v782 = vpop.f32.mrb[0].mxu0
        %783 = vmatprep.mubr.bf16.mxu0 0
        %784 = vmatmul.mubr.bf16.gmra.mrb[0].mxu0 %v669
        %v785 = vpop.f32.mrb[0].mxu0
        %v786 = vadd.f32 0.0, %v785
        %v787 = vpop.f32.mrb[0].mxu0
        %v788 = vpop.f32.mrb[0].mxu0
        %v789 = vadd.f32 0.0, %v788
        %v790 = vpop.f32.mrb[0].mxu0
        %791 = vmatprep.mubr.bf16.mxu0 0
        %792 = vmatmul.mubr.bf16.gmra.mrb[0].mxu0 %v670
        %v793 = vpop.f32.mrb[0].mxu0
        %v794 = vadd.f32 0.0, %v793
        %v795 = vpop.f32.mrb[0].mxu0
        %v796 = vpop.f32.mrb[0].mxu0
        %v797 = vadd.f32 0.0, %v796
        %v798 = vpop.f32.mrb[0].mxu0
        %799 = vdwg.mxu0
        %v800 = vld [vmem:[%s4] sm:$0xf]
        %v801 = vld [vmem:[%s4 + $0x4] sm:$0xf]
        %v802 = vld [vmem:[%s4 + $0x8] sm:$0xf]
        %v803 = vld [vmem:[%s4 + $0xc] sm:$0xf]
        %v804 = vld [vmem:[%s4 + $0x10] sm:$0xf]
        %v805 = vld [vmem:[%s4 + $0x14] sm:$0xf]
        %v806 = vld [vmem:[%s4 + $0x18] sm:$0xf]
        %v807 = vld [vmem:[%s4 + $0x1c] sm:$0xf]
        %v808 = vld [vmem:[%s4 + $0x20] sm:$0xf]
        %v809 = vld [vmem:[%s4 + $0x24] sm:$0xf]
        %v810 = vld [vmem:[%s4 + $0x28] sm:$0xf]
        %v811 = vld [vmem:[%s4 + $0x2c] sm:$0xf]
        %v812 = vld [vmem:[%s4 + $0x30] sm:$0xf]
        %v813 = vld [vmem:[%s4 + $0x34] sm:$0xf]
        %v814 = vld [vmem:[%s4 + $0x38] sm:$0xf]
        %v815 = vld [vmem:[%s4 + $0x3c] sm:$0xf]
        %v832 = vunpack.c.l.b16 %v800
        %v833 = vunpack.c.l.b16 %v801
        %v834 = vunpack.c.l.b16 %v802
        %v835 = vunpack.c.l.b16 %v803
        %v836 = vunpack.c.l.b16 %v804
        %v837 = vunpack.c.l.b16 %v805
        %v838 = vunpack.c.l.b16 %v806
        %v839 = vunpack.c.l.b16 %v807
        %v840 = vunpack.c.l.b16 %v808
        %v841 = vunpack.c.l.b16 %v809
        %v842 = vunpack.c.l.b16 %v810
        %v843 = vunpack.c.l.b16 %v811
        %v844 = vunpack.c.l.b16 %v812
        %v845 = vunpack.c.l.b16 %v813
        %v846 = vunpack.c.l.b16 %v814
        %v847 = vunpack.c.l.b16 %v815
        %v848 = vpack.c.b16 %v833, %v832
        %v849 = vpack.c.b16 %v835, %v834
        %v850 = vpack.c.b16 %v837, %v836
        %v851 = vpack.c.b16 %v839, %v838
        %v852 = vpack.c.b16 %v841, %v840
        %v853 = vpack.c.b16 %v843, %v842
        %v854 = vpack.c.b16 %v845, %v844
        %v855 = vpack.c.b16 %v847, %v846
        %864 = vmatprep.subr.bf16.mxu0 0
        %865 = vmatpush1.bf16.msra.mxu0 %v848
        %866 = vmatprep.subr.bf16.mxu0 0
        %867 = vmatpush1.bf16.msra.mxu0 %v849
        %868 = vmatprep.subr.bf16.mxu0 0
        %869 = vmatpush1.bf16.msra.mxu0 %v850
        %870 = vmatprep.subr.bf16.mxu0 0
        %871 = vmatpush1.bf16.msra.mxu0 %v851
        %872 = vmatprep.subr.bf16.mxu0 0
        %873 = vmatpush1.bf16.msra.mxu0 %v852
        %874 = vmatprep.subr.bf16.mxu0 0
        %875 = vmatpush1.bf16.msra.mxu0 %v853
        %876 = vmatprep.subr.bf16.mxu0 0
        %877 = vmatpush1.bf16.msra.mxu0 %v854
        %878 = vmatprep.subr.bf16.mxu0 0
        %879 = vmatpush1.bf16.msra.mxu0 %v855
        %880 = vmatprep.subr.bf16.mxu0 0
        %881 = vmatpush1.bf16.msra.mxu0 0
        %882 = vmatprep.subr.bf16.mxu0 0
        %883 = vmatpush1.bf16.msra.mxu0 0
        %884 = vmatprep.subr.bf16.mxu0 0
        %885 = vmatpush1.bf16.msra.mxu0 0
        %886 = vmatprep.subr.bf16.mxu0 0
        %887 = vmatpush1.bf16.msra.mxu0 0
        %888 = vmatprep.subr.bf16.mxu0 0
        %889 = vmatpush1.bf16.msra.mxu0 0
        %890 = vmatprep.subr.bf16.mxu0 0
        %891 = vmatpush1.bf16.msra.mxu0 0
        %892 = vmatprep.subr.bf16.mxu0 0
        %893 = vmatpush1.bf16.msra.mxu0 0
        %894 = vmatprep.subr.bf16.mxu0 0
        %895 = vmatpush1.bf16.msra.mxu0 0
        %896 = vmatprep.mubr.bf16.mxu0 0
        %897 = vmatmul.mubr.bf16.gmra.mrb[0].mxu0 %v667
        %v898 = vpop.f32.mrb[0].mxu0
        %v899 = vadd.f32 0.0, %v898
        %v900 = vpop.f32.mrb[0].mxu0
        %v901 = vpop.f32.mrb[0].mxu0
        %v902 = vadd.f32 0.0, %v901
        %v903 = vpop.f32.mrb[0].mxu0
        %904 = vmatprep.mubr.bf16.mxu0 0
        %905 = vmatmul.mubr.bf16.gmra.mrb[0].mxu0 %v668
        %v906 = vpop.f32.mrb[0].mxu0
        %v907 = vadd.f32 0.0, %v906
        %v908 = vpop.f32.mrb[0].mxu0
        %v909 = vpop.f32.mrb[0].mxu0
        %v910 = vadd.f32 0.0, %v909
        %v911 = vpop.f32.mrb[0].mxu0
        %912 = vmatprep.mubr.bf16.mxu0 0
        %913 = vmatmul.mubr.bf16.gmra.mrb[0].mxu0 %v669
        %v914 = vpop.f32.mrb[0].mxu0
        %v915 = vadd.f32 0.0, %v914
        %v916 = vpop.f32.mrb[0].mxu0
        %v917 = vpop.f32.mrb[0].mxu0
        %v918 = vadd.f32 0.0, %v917
        %v919 = vpop.f32.mrb[0].mxu0
        %920 = vmatprep.mubr.bf16.mxu0 0
        %921 = vmatmul.mubr.bf16.gmra.mrb[0].mxu0 %v670
        %v922 = vpop.f32.mrb[0].mxu0
        %v923 = vadd.f32 0.0, %v922
        %v924 = vpop.f32.mrb[0].mxu0
        %v925 = vpop.f32.mrb[0].mxu0
        %v926 = vadd.f32 0.0, %v925
        %v927 = vpop.f32.mrb[0].mxu0
        %928 = vdwg.mxu0
        %v929 = vld [vmem:[%s5] sm:$0xf]
        %v930 = vld [vmem:[%s5 + $0x4] sm:$0xf]
        %v931 = vld [vmem:[%s5 + $0x8] sm:$0xf]
        %v932 = vld [vmem:[%s5 + $0xc] sm:$0xf]
        %v933 = vld [vmem:[%s5 + $0x10] sm:$0xf]
        %v934 = vld [vmem:[%s5 + $0x14] sm:$0xf]
        %v935 = vld [vmem:[%s5 + $0x18] sm:$0xf]
        %v936 = vld [vmem:[%s5 + $0x1c] sm:$0xf]
        %v937 = vld [vmem:[%s5 + $0x20] sm:$0xf]
        %v938 = vld [vmem:[%s5 + $0x24] sm:$0xf]
        %v939 = vld [vmem:[%s5 + $0x28] sm:$0xf]
        %v940 = vld [vmem:[%s5 + $0x2c] sm:$0xf]
        %v941 = vld [vmem:[%s5 + $0x30] sm:$0xf]
        %v942 = vld [vmem:[%s5 + $0x34] sm:$0xf]
        %v943 = vld [vmem:[%s5 + $0x38] sm:$0xf]
        %v944 = vld [vmem:[%s5 + $0x3c] sm:$0xf]
        %v961 = vunpack.c.l.b16 %v929
        %v962 = vunpack.c.l.b16 %v930
        %v963 = vunpack.c.l.b16 %v931
        %v964 = vunpack.c.l.b16 %v932
        %v965 = vunpack.c.l.b16 %v933
        %v966 = vunpack.c.l.b16 %v934
        %v967 = vunpack.c.l.b16 %v935
        %v968 = vunpack.c.l.b16 %v936
        %v969 = vunpack.c.l.b16 %v937
        %v970 = vunpack.c.l.b16 %v938
        %v971 = vunpack.c.l.b16 %v939
        %v972 = vunpack.c.l.b16 %v940
        %v973 = vunpack.c.l.b16 %v941
        %v974 = vunpack.c.l.b16 %v942
        %v975 = vunpack.c.l.b16 %v943
        %v976 = vunpack.c.l.b16 %v944
        %v977 = vpack.c.b16 %v962, %v961
        %v978 = vpack.c.b16 %v964, %v963
        %v979 = vpack.c.b16 %v966, %v965
        %v980 = vpack.c.b16 %v968, %v967
        %v981 = vpack.c.b16 %v970, %v969
        %v982 = vpack.c.b16 %v972, %v971
        %v983 = vpack.c.b16 %v974, %v973
        %v984 = vpack.c.b16 %v976, %v975
        %993 = vmatprep.subr.bf16.mxu0 0
        %994 = vmatpush1.bf16.msra.mxu0 %v977
        %995 = vmatprep.subr.bf16.mxu0 0
        %996 = vmatpush1.bf16.msra.mxu0 %v978
        %997 = vmatprep.subr.bf16.mxu0 0
        %998 = vmatpush1.bf16.msra.mxu0 %v979
        %999 = vmatprep.subr.bf16.mxu0 0
        %1000 = vmatpush1.bf16.msra.mxu0 %v980
        %1001 = vmatprep.subr.bf16.mxu0 0
        %1002 = vmatpush1.bf16.msra.mxu0 %v981
        %1003 = vmatprep.subr.bf16.mxu0 0
        %1004 = vmatpush1.bf16.msra.mxu0 %v982
        %1005 = vmatprep.subr.bf16.mxu0 0
        %1006 = vmatpush1.bf16.msra.mxu0 %v983
        %1007 = vmatprep.subr.bf16.mxu0 0
        %1008 = vmatpush1.bf16.msra.mxu0 %v984
        %1009 = vmatprep.subr.bf16.mxu0 0
        %1010 = vmatpush1.bf16.msra.mxu0 0
        %1011 = vmatprep.subr.bf16.mxu0 0
        %1012 = vmatpush1.bf16.msra.mxu0 0
        %1013 = vmatprep.subr.bf16.mxu0 0
        %1014 = vmatpush1.bf16.msra.mxu0 0
        %1015 = vmatprep.subr.bf16.mxu0 0
        %1016 = vmatpush1.bf16.msra.mxu0 0
        %1017 = vmatprep.subr.bf16.mxu0 0
        %1018 = vmatpush1.bf16.msra.mxu0 0
        %1019 = vmatprep.subr.bf16.mxu0 0
        %1020 = vmatpush1.bf16.msra.mxu0 0
        %1021 = vmatprep.subr.bf16.mxu0 0
        %1022 = vmatpush1.bf16.msra.mxu0 0
        %1023 = vmatprep.subr.bf16.mxu0 0
        %1024 = vmatpush1.bf16.msra.mxu0 0
        %1025 = vmatprep.mubr.bf16.mxu0 0
        %1026 = vmatmul.mubr.bf16.gmra.mrb[0].mxu0 %v667
        %v1027 = vpop.f32.mrb[0].mxu0
        %v1028 = vadd.f32 0.0, %v1027
        %v1029 = vpop.f32.mrb[0].mxu0
        %v1030 = vpop.f32.mrb[0].mxu0
        %v1031 = vadd.f32 0.0, %v1030
        %v1032 = vpop.f32.mrb[0].mxu0
        %1033 = vmatprep.mubr.bf16.mxu0 0
        %1034 = vmatmul.mubr.bf16.gmra.mrb[0].mxu0 %v668
        %v1035 = vpop.f32.mrb[0].mxu0
        %v1036 = vadd.f32 0.0, %v1035
        %v1037 = vpop.f32.mrb[0].mxu0
        %v1038 = vpop.f32.mrb[0].mxu0
        %v1039 = vadd.f32 0.0, %v1038
        %v1040 = vpop.f32.mrb[0].mxu0
        %1041 = vmatprep.mubr.bf16.mxu0 0
        %1042 = vmatmul.mubr.bf16.gmra.mrb[0].mxu0 %v669
        %v1043 = vpop.f32.mrb[0].mxu0
        %v1044 = vadd.f32 0.0, %v1043
        %v1045 = vpop.f32.mrb[0].mxu0
        %v1046 = vpop.f32.mrb[0].mxu0
        %v1047 = vadd.f32 0.0, %v1046
        %v1048 = vpop.f32.mrb[0].mxu0
        %1049 = vmatprep.mubr.bf16.mxu0 0
        %1050 = vmatmul.mubr.bf16.gmra.mrb[0].mxu0 %v670
        %v1051 = vpop.f32.mrb[0].mxu0
        %v1052 = vadd.f32 0.0, %v1051
        %v1053 = vpop.f32.mrb[0].mxu0
        %v1054 = vpop.f32.mrb[0].mxu0
        %v1055 = vadd.f32 0.0, %v1054
        %v1056 = vpop.f32.mrb[0].mxu0
        %1057 = vdwg.mxu0
        %v1058 = vpack.c.bf16 %v773, %v770
        %v1059 = vpack.c.bf16 %v781, %v778
        %v1060 = vpack.c.bf16 %v789, %v786
        %v1061 = vpack.c.bf16 %v797, %v794
        %v1062 = vpack.c.bf16 %v902, %v899
        %v1063 = vpack.c.bf16 %v910, %v907
        %v1064 = vpack.c.bf16 %v918, %v915
        %v1065 = vpack.c.bf16 %v926, %v923
        %vm1066 = vcmask 261120
        %v1068 = vsel %vm1066, %v1058, 0
        %v1071 = vsel %vm1066, %v1059, 0
        %v1074 = vsel %vm1066, %v1060, 0
        %v1077 = vsel %vm1066, %v1061, 0
        %v1080 = vsel %vm1066, %v1062, 0
        %v1083 = vsel %vm1066, %v1063, 0
        %v1086 = vsel %vm1066, %v1064, 0
        %v1089 = vsel %vm1066, %v1065, 0
        %1091 = vmatprep.subr.bf16.mxu0 0
        %1092 = vmatpush1.bf16.xpose.msra.mxu0 %v1080
        %1093 = vmatprep.subr.bf16.mxu0 0
        %1094 = vmatpush1.bf16.xpose.msra.mxu0 %v1083
        %1095 = vmatprep.subr.bf16.mxu0 0
        %1096 = vmatpush1.bf16.xpose.msra.mxu0 %v1086
        %1097 = vmatprep.subr.bf16.mxu0 0
        %1098 = vmatpush1.bf16.xpose.msra.mxu0 %v1089
        %1099 = vmatprep.subr.bf16.mxu0 0
        %1100 = vmatpush1.bf16.xpose.msra.mxu0 0
        %1101 = vmatprep.subr.bf16.mxu0 0
        %1102 = vmatpush1.bf16.xpose.msra.mxu0 0
        %1103 = vmatprep.subr.bf16.mxu0 0
        %1104 = vmatpush1.bf16.xpose.msra.mxu0 0
        %1105 = vmatprep.subr.bf16.mxu0 0
        %1106 = vmatpush1.bf16.xpose.msra.mxu0 0
        %1107 = vmatprep.subr.bf16.mxu0 0
        %1108 = vmatpush1.bf16.xpose.msra.mxu0 0
        %1109 = vmatprep.subr.bf16.mxu0 0
        %1110 = vmatpush1.bf16.xpose.msra.mxu0 0
        %1111 = vmatprep.subr.bf16.mxu0 0
        %1112 = vmatpush1.bf16.xpose.msra.mxu0 0
        %1113 = vmatprep.subr.bf16.mxu0 0
        %1114 = vmatpush1.bf16.xpose.msra.mxu0 0
        %1115 = vmatprep.subr.bf16.mxu0 0
        %1116 = vmatpush1.bf16.xpose.msra.mxu0 0
        %1117 = vmatprep.subr.bf16.mxu0 0
        %1118 = vmatpush1.bf16.xpose.msra.mxu0 0
        %1119 = vmatprep.subr.bf16.mxu0 0
        %1120 = vmatpush1.bf16.xpose.msra.mxu0 0
        %1121 = vmatprep.subr.bf16.mxu0 0
        %1122 = vmatpush1.bf16.xpose.msra.mxu0 0
        %1123 = vmatprep.mubr.bf16.mxu0 0
        %1124 = vmatmul.mubr.bf16.gmra.mrb[0].mxu0 %v1068
        %v1125 = vpop.f32.mrb[0].mxu0
        %v1126 = vadd.f32 0.0, %v1125
        %v1127 = vpop.f32.mrb[0].mxu0
        %v1128 = vpop.f32.mrb[0].mxu0
        %v1129 = vadd.f32 0.0, %v1128
        %v1130 = vpop.f32.mrb[0].mxu0
        %1131 = vmatprep.mubr.bf16.mxu0 0
        %1132 = vmatmul.mubr.bf16.gmra.mrb[0].mxu0 %v1071
        %v1133 = vpop.f32.mrb[0].mxu0
        %v1134 = vadd.f32 0.0, %v1133
        %v1135 = vpop.f32.mrb[0].mxu0
        %v1136 = vpop.f32.mrb[0].mxu0
        %v1137 = vadd.f32 0.0, %v1136
        %v1138 = vpop.f32.mrb[0].mxu0
        %1139 = vmatprep.mubr.bf16.mxu0 0
        %1140 = vmatmul.mubr.bf16.gmra.mrb[0].mxu0 %v1074
        %v1141 = vpop.f32.mrb[0].mxu0
        %v1142 = vadd.f32 0.0, %v1141
        %v1143 = vpop.f32.mrb[0].mxu0
        %v1144 = vpop.f32.mrb[0].mxu0
        %v1145 = vadd.f32 0.0, %v1144
        %v1146 = vpop.f32.mrb[0].mxu0
        %1147 = vmatprep.mubr.bf16.mxu0 0
        %1148 = vmatmul.mubr.bf16.gmra.mrb[0].mxu0 %v1077
        %v1149 = vpop.f32.mrb[0].mxu0
        %v1150 = vadd.f32 0.0, %v1149
        %v1151 = vpop.f32.mrb[0].mxu0
        %v1152 = vpop.f32.mrb[0].mxu0
        %v1153 = vadd.f32 0.0, %v1152
        %v1154 = vpop.f32.mrb[0].mxu0
        %1155 = vdwg.mxu0
        %v1156 = vsel %vm540, %v1126, -1e+30
        %v1157 = vsel %vm541, %v1129, -1e+30
        %v1158 = vsel %vm542, %v1134, -1e+30
        %v1159 = vsel %vm543, %v1137, -1e+30
        %v1160 = vsel %vm544, %v1142, -1e+30
        %v1161 = vsel %vm545, %v1145, -1e+30
        %v1162 = vsel %vm546, %v1150, -1e+30
        %v1163 = vsel %vm547, %v1153, -1e+30
        %vm1164 = vcmask 523264
        %v1165 = vsel %vm1164, %v1156, -inf
        %1166 = vmax.xlane.f32.xlu0 %v1165
        %v1167 = vpop.xlane.xlu0 %1166
        %v1168 = vsel %vm1164, %v1157, -inf
        %1169 = vmax.xlane.f32.xlu0 %v1168
        %v1170 = vpop.xlane.xlu0 %1169
        %v1171 = vsel %vm1164, %v1158, -inf
        %1172 = vmax.xlane.f32.xlu0 %v1171
        %v1173 = vpop.xlane.xlu0 %1172
        %v1174 = vsel %vm1164, %v1159, -inf
        %1175 = vmax.xlane.f32.xlu0 %v1174
        %v1176 = vpop.xlane.xlu0 %1175
        %v1177 = vsel %vm1164, %v1160, -inf
        %1178 = vmax.xlane.f32.xlu0 %v1177
        %v1179 = vpop.xlane.xlu0 %1178
        %v1180 = vsel %vm1164, %v1161, -inf
        %1181 = vmax.xlane.f32.xlu0 %v1180
        %v1182 = vpop.xlane.xlu0 %1181
        %v1183 = vsel %vm1164, %v1162, -inf
        %1184 = vmax.xlane.f32.xlu0 %v1183
        %v1185 = vpop.xlane.xlu0 %1184
        %v1186 = vsel %vm1164, %v1163, -inf
        %1187 = vmax.xlane.f32.xlu0 %v1186
        %v1188 = vpop.xlane.xlu0 %1187
        %v1189 = vsub.f32 %v1156, %v1167
        %v1190 = vsub.f32 %v1157, %v1170
        %v1191 = vsub.f32 %v1158, %v1173
        %v1192 = vsub.f32 %v1159, %v1176
        %v1193 = vsub.f32 %v1160, %v1179
        %v1194 = vsub.f32 %v1161, %v1182
        %v1195 = vsub.f32 %v1162, %v1185
        %v1196 = vsub.f32 %v1163, %v1188
        %v1197 = vmul.f32 %v1189, 1.442695
        %v1198 = vpow.pop %v1197
        %v1199 = vmul.f32 %v1190, 1.442695
        %v1200 = vpow.pop %v1199
        %v1201 = vmul.f32 %v1191, 1.442695
        %v1202 = vpow.pop %v1201
        %v1203 = vmul.f32 %v1192, 1.442695
        %v1204 = vpow.pop %v1203
        %v1205 = vmul.f32 %v1193, 1.442695
        %v1206 = vpow.pop %v1205
        %v1207 = vmul.f32 %v1194, 1.442695
        %v1208 = vpow.pop %v1207
        %v1209 = vmul.f32 %v1195, 1.442695
        %v1210 = vpow.pop %v1209
        %v1211 = vmul.f32 %v1196, 1.442695
        %v1212 = vpow.pop %v1211
        %v1213 = vsel %vm1164, %v1198, 0.0
        %1214 = vadd.xlane.f32.xlu0 %v1213
        %v1215 = vpop.xlane.xlu0 %1214
        %v1216 = vsel %vm1164, %v1200, 0.0
        %1217 = vadd.xlane.f32.xlu0 %v1216
        %v1218 = vpop.xlane.xlu0 %1217
        %v1219 = vsel %vm1164, %v1202, 0.0
        %1220 = vadd.xlane.f32.xlu0 %v1219
        %v1221 = vpop.xlane.xlu0 %1220
        %v1222 = vsel %vm1164, %v1204, 0.0
        %1223 = vadd.xlane.f32.xlu0 %v1222
        %v1224 = vpop.xlane.xlu0 %1223
        %v1225 = vsel %vm1164, %v1206, 0.0
        %1226 = vadd.xlane.f32.xlu0 %v1225
        %v1227 = vpop.xlane.xlu0 %1226
        %v1228 = vsel %vm1164, %v1208, 0.0
        %1229 = vadd.xlane.f32.xlu0 %v1228
        %v1230 = vpop.xlane.xlu0 %1229
        %v1231 = vsel %vm1164, %v1210, 0.0
        %1232 = vadd.xlane.f32.xlu0 %v1231
        %v1233 = vpop.xlane.xlu0 %1232
        %v1234 = vsel %vm1164, %v1212, 0.0
        %1235 = vadd.xlane.f32.xlu0 %v1234
        %v1236 = vpop.xlane.xlu0 %1235
        %v1237 = vrcp.pop %v1215
        %v1238 = vrcp.pop %v1218
        %v1239 = vrcp.pop %v1221
        %v1240 = vrcp.pop %v1224
        %v1241 = vrcp.pop %v1227
        %v1242 = vrcp.pop %v1230
        %v1243 = vrcp.pop %v1233
        %v1244 = vrcp.pop %v1236
        %v1245 = vmul.f32 %v1198, %v1237
        %v1246 = vmul.f32 %v1200, %v1238
        %v1247 = vmul.f32 %v1202, %v1239
        %v1248 = vmul.f32 %v1204, %v1240
        %v1249 = vmul.f32 %v1206, %v1241
        %v1250 = vmul.f32 %v1208, %v1242
        %v1251 = vmul.f32 %v1210, %v1243
        %v1252 = vmul.f32 %v1212, %v1244
        %v1253 = vpack.c.bf16 %v1246, %v1245
        %v1254 = vpack.c.bf16 %v1248, %v1247
        %v1255 = vpack.c.bf16 %v1250, %v1249
        %v1256 = vpack.c.bf16 %v1252, %v1251
        %v1257 = vpack.c.bf16 %v1031, %v1028
        %v1258 = vpack.c.bf16 %v1039, %v1036
        %v1259 = vpack.c.bf16 %v1047, %v1044
        %v1260 = vpack.c.bf16 %v1055, %v1052
        %v1262 = vsel %vm1164, %v1253, 0
        %v1265 = vsel %vm1164, %v1254, 0
        %v1268 = vsel %vm1164, %v1255, 0
        %v1271 = vsel %vm1164, %v1256, 0
        %1273 = vmatprep.subr.bf16.mxu0 0
        %1274 = vmatpush1.bf16.msra.mxu0 %v1257
        %1275 = vmatprep.subr.bf16.mxu0 0
        %1276 = vmatpush1.bf16.msra.mxu0 %v1258
        %1277 = vmatprep.subr.bf16.mxu0 0
        %1278 = vmatpush1.bf16.msra.mxu0 %v1259
        %1279 = vmatprep.subr.bf16.mxu0 0
        %1280 = vmatpush1.bf16.msra.mxu0 %v1260
        %1281 = vmatprep.subr.bf16.mxu0 0
        %1282 = vmatpush1.bf16.msra.mxu0 0
        %1283 = vmatprep.subr.bf16.mxu0 0
        %1284 = vmatpush1.bf16.msra.mxu0 0
        %1285 = vmatprep.subr.bf16.mxu0 0
        %1286 = vmatpush1.bf16.msra.mxu0 0
        %1287 = vmatprep.subr.bf16.mxu0 0
        %1288 = vmatpush1.bf16.msra.mxu0 0
        %1289 = vmatprep.subr.bf16.mxu0 0
        %1290 = vmatpush1.bf16.msra.mxu0 0
        %1291 = vmatprep.subr.bf16.mxu0 0
        %1292 = vmatpush1.bf16.msra.mxu0 0
        %1293 = vmatprep.subr.bf16.mxu0 0
        %1294 = vmatpush1.bf16.msra.mxu0 0
        %1295 = vmatprep.subr.bf16.mxu0 0
        %1296 = vmatpush1.bf16.msra.mxu0 0
        %1297 = vmatprep.subr.bf16.mxu0 0
        %1298 = vmatpush1.bf16.msra.mxu0 0
        %1299 = vmatprep.subr.bf16.mxu0 0
        %1300 = vmatpush1.bf16.msra.mxu0 0
        %1301 = vmatprep.subr.bf16.mxu0 0
        %1302 = vmatpush1.bf16.msra.mxu0 0
        %1303 = vmatprep.subr.bf16.mxu0 0
        %1304 = vmatpush1.bf16.msra.mxu0 0
        %1305 = vmatprep.mubr.bf16.mxu0 0
        %1306 = vmatmul.mubr.bf16.gmra.mrb[0].mxu0 %v1262
        %v1307 = vpop.f32.mrb[0].mxu0
        %v1308 = vadd.f32 0.0, %v1307
        %v1309 = vpop.f32.mrb[0].mxu0
        %v1310 = vpop.f32.mrb[0].mxu0
        %v1311 = vadd.f32 0.0, %v1310
        %v1312 = vpop.f32.mrb[0].mxu0
        %1313 = vmatprep.mubr.bf16.mxu0 0
        %1314 = vmatmul.mubr.bf16.gmra.mrb[0].mxu0 %v1265
        %v1315 = vpop.f32.mrb[0].mxu0
        %v1316 = vadd.f32 0.0, %v1315
        %v1317 = vpop.f32.mrb[0].mxu0
        %v1318 = vpop.f32.mrb[0].mxu0
        %v1319 = vadd.f32 0.0, %v1318
        %v1320 = vpop.f32.mrb[0].mxu0
        %1321 = vmatprep.mubr.bf16.mxu0 0
        %1322 = vmatmul.mubr.bf16.gmra.mrb[0].mxu0 %v1268
        %v1323 = vpop.f32.mrb[0].mxu0
        %v1324 = vadd.f32 0.0, %v1323
        %v1325 = vpop.f32.mrb[0].mxu0
        %v1326 = vpop.f32.mrb[0].mxu0
        %v1327 = vadd.f32 0.0, %v1326
        %v1328 = vpop.f32.mrb[0].mxu0
        %1329 = vmatprep.mubr.bf16.mxu0 0
        %1330 = vmatmul.mubr.bf16.gmra.mrb[0].mxu0 %v1271
        %v1331 = vpop.f32.mrb[0].mxu0
        %v1332 = vadd.f32 0.0, %v1331
        %v1333 = vpop.f32.mrb[0].mxu0
        %v1334 = vpop.f32.mrb[0].mxu0
        %v1335 = vadd.f32 0.0, %v1334
        %v1336 = vpop.f32.mrb[0].mxu0
        %1337 = vdwg.mxu0
        %v1338 = vpack.c.bf16 %v1311, %v1308
        %v1339 = vpack.c.bf16 %v1319, %v1316
        %v1340 = vpack.c.bf16 %v1327, %v1324
        %v1341 = vpack.c.bf16 %v1335, %v1332
        %v1342 = vld [vmem:[%s6] sm:$0xf]
        %v1343 = vld [vmem:[%s6 + $0x4] sm:$0xf]
        %v1344 = vld [vmem:[%s6 + $0x8] sm:$0xf]
        %v1345 = vld [vmem:[%s6 + $0xc] sm:$0xf]
        %s1346 = scalar_lea.vmem %s3, 64
        %v1347 = vld [vmem:[%s1346] sm:$0xf]
        %v1348 = vld [vmem:[%s1346 + $0x4] sm:$0xf]
        %v1349 = vld [vmem:[%s1346 + $0x8] sm:$0xf]
        %v1350 = vld [vmem:[%s1346 + $0xc] sm:$0xf]
        %v1351 = vld [vmem:[%s1346 + $0x10] sm:$0xf]
        %v1352 = vld [vmem:[%s1346 + $0x14] sm:$0xf]
        %v1353 = vld [vmem:[%s1346 + $0x18] sm:$0xf]
        %v1354 = vld [vmem:[%s1346 + $0x1c] sm:$0xf]
        %v1355 = vld [vmem:[%s1346 + $0x20] sm:$0xf]
        %v1356 = vld [vmem:[%s1346 + $0x24] sm:$0xf]
        %v1357 = vld [vmem:[%s1346 + $0x28] sm:$0xf]
        %v1358 = vld [vmem:[%s1346 + $0x2c] sm:$0xf]
        %v1359 = vld [vmem:[%s1346 + $0x30] sm:$0xf]
        %v1360 = vld [vmem:[%s1346 + $0x34] sm:$0xf]
        %v1361 = vld [vmem:[%s1346 + $0x38] sm:$0xf]
        %v1362 = vld [vmem:[%s1346 + $0x3c] sm:$0xf]
        %v1379 = vunpack.c.l.b16 %v1347
        %v1380 = vunpack.c.l.b16 %v1348
        %v1381 = vunpack.c.l.b16 %v1349
        %v1382 = vunpack.c.l.b16 %v1350
        %v1383 = vunpack.c.l.b16 %v1351
        %v1384 = vunpack.c.l.b16 %v1352
        %v1385 = vunpack.c.l.b16 %v1353
        %v1386 = vunpack.c.l.b16 %v1354
        %v1387 = vunpack.c.l.b16 %v1355
        %v1388 = vunpack.c.l.b16 %v1356
        %v1389 = vunpack.c.l.b16 %v1357
        %v1390 = vunpack.c.l.b16 %v1358
        %v1391 = vunpack.c.l.b16 %v1359
        %v1392 = vunpack.c.l.b16 %v1360
        %v1393 = vunpack.c.l.b16 %v1361
        %v1394 = vunpack.c.l.b16 %v1362
        %v1395 = vpack.c.b16 %v1380, %v1379
        %v1396 = vpack.c.b16 %v1382, %v1381
        %v1397 = vpack.c.b16 %v1384, %v1383
        %v1398 = vpack.c.b16 %v1386, %v1385
        %v1399 = vpack.c.b16 %v1388, %v1387
        %v1400 = vpack.c.b16 %v1390, %v1389
        %v1401 = vpack.c.b16 %v1392, %v1391
        %v1402 = vpack.c.b16 %v1394, %v1393
        %1411 = vmatprep.subr.bf16.mxu0 0
        %1412 = vmatpush1.bf16.msra.mxu0 %v1395
        %1413 = vmatprep.subr.bf16.mxu0 0
        %1414 = vmatpush1.bf16.msra.mxu0 %v1396
        %1415 = vmatprep.subr.bf16.mxu0 0
        %1416 = vmatpush1.bf16.msra.mxu0 %v1397
        %1417 = vmatprep.subr.bf16.mxu0 0
        %1418 = vmatpush1.bf16.msra.mxu0 %v1398
        %1419 = vmatprep.subr.bf16.mxu0 0
        %1420 = vmatpush1.bf16.msra.mxu0 %v1399
        %1421 = vmatprep.subr.bf16.mxu0 0
        %1422 = vmatpush1.bf16.msra.mxu0 %v1400
        %1423 = vmatprep.subr.bf16.mxu0 0
        %1424 = vmatpush1.bf16.msra.mxu0 %v1401
        %1425 = vmatprep.subr.bf16.mxu0 0
        %1426 = vmatpush1.bf16.msra.mxu0 %v1402
        %1427 = vmatprep.subr.bf16.mxu0 0
        %1428 = vmatpush1.bf16.msra.mxu0 0
        %1429 = vmatprep.subr.bf16.mxu0 0
        %1430 = vmatpush1.bf16.msra.mxu0 0
        %1431 = vmatprep.subr.bf16.mxu0 0
        %1432 = vmatpush1.bf16.msra.mxu0 0
        %1433 = vmatprep.subr.bf16.mxu0 0
        %1434 = vmatpush1.bf16.msra.mxu0 0
        %1435 = vmatprep.subr.bf16.mxu0 0
        %1436 = vmatpush1.bf16.msra.mxu0 0
        %1437 = vmatprep.subr.bf16.mxu0 0
        %1438 = vmatpush1.bf16.msra.mxu0 0
        %1439 = vmatprep.subr.bf16.mxu0 0
        %1440 = vmatpush1.bf16.msra.mxu0 0
        %1441 = vmatprep.subr.bf16.mxu0 0
        %1442 = vmatpush1.bf16.msra.mxu0 0
        %1443 = vmatprep.mubr.bf16.mxu0 0
        %1444 = vmatmul.mubr.bf16.gmra.mrb[0].mxu0 %v667
        %v1445 = vpop.f32.mrb[0].mxu0
        %v1446 = vadd.f32 0.0, %v1445
        %v1447 = vpop.f32.mrb[0].mxu0
        %v1448 = vpop.f32.mrb[0].mxu0
        %v1449 = vadd.f32 0.0, %v1448
        %v1450 = vpop.f32.mrb[0].mxu0
        %1451 = vmatprep.mubr.bf16.mxu0 0
        %1452 = vmatmul.mubr.bf16.gmra.mrb[0].mxu0 %v668
        %v1453 = vpop.f32.mrb[0].mxu0
        %v1454 = vadd.f32 0.0, %v1453
        %v1455 = vpop.f32.mrb[0].mxu0
        %v1456 = vpop.f32.mrb[0].mxu0
        %v1457 = vadd.f32 0.0, %v1456
        %v1458 = vpop.f32.mrb[0].mxu0
        %1459 = vmatprep.mubr.bf16.mxu0 0
        %1460 = vmatmul.mubr.bf16.gmra.mrb[0].mxu0 %v669
        %v1461 = vpop.f32.mrb[0].mxu0
        %v1462 = vadd.f32 0.0, %v1461
        %v1463 = vpop.f32.mrb[0].mxu0
        %v1464 = vpop.f32.mrb[0].mxu0
        %v1465 = vadd.f32 0.0, %v1464
        %v1466 = vpop.f32.mrb[0].mxu0
        %1467 = vmatprep.mubr.bf16.mxu0 0
        %1468 = vmatmul.mubr.bf16.gmra.mrb[0].mxu0 %v670
        %v1469 = vpop.f32.mrb[0].mxu0
        %v1470 = vadd.f32 0.0, %v1469
        %v1471 = vpop.f32.mrb[0].mxu0
        %v1472 = vpop.f32.mrb[0].mxu0
        %v1473 = vadd.f32 0.0, %v1472
        %v1474 = vpop.f32.mrb[0].mxu0
        %1475 = vdwg.mxu0
        %s1476 = scalar_lea.vmem %s4, 64
        %v1477 = vld [vmem:[%s1476] sm:$0xf]
        %v1478 = vld [vmem:[%s1476 + $0x4] sm:$0xf]
        %v1479 = vld [vmem:[%s1476 + $0x8] sm:$0xf]
        %v1480 = vld [vmem:[%s1476 + $0xc] sm:$0xf]
        %v1481 = vld [vmem:[%s1476 + $0x10] sm:$0xf]
        %v1482 = vld [vmem:[%s1476 + $0x14] sm:$0xf]
        %v1483 = vld [vmem:[%s1476 + $0x18] sm:$0xf]
        %v1484 = vld [vmem:[%s1476 + $0x1c] sm:$0xf]
        %v1485 = vld [vmem:[%s1476 + $0x20] sm:$0xf]
        %v1486 = vld [vmem:[%s1476 + $0x24] sm:$0xf]
        %v1487 = vld [vmem:[%s1476 + $0x28] sm:$0xf]
        %v1488 = vld [vmem:[%s1476 + $0x2c] sm:$0xf]
        %v1489 = vld [vmem:[%s1476 + $0x30] sm:$0xf]
        %v1490 = vld [vmem:[%s1476 + $0x34] sm:$0xf]
        %v1491 = vld [vmem:[%s1476 + $0x38] sm:$0xf]
        %v1492 = vld [vmem:[%s1476 + $0x3c] sm:$0xf]
        %v1509 = vunpack.c.l.b16 %v1477
        %v1510 = vunpack.c.l.b16 %v1478
        %v1511 = vunpack.c.l.b16 %v1479
        %v1512 = vunpack.c.l.b16 %v1480
        %v1513 = vunpack.c.l.b16 %v1481
        %v1514 = vunpack.c.l.b16 %v1482
        %v1515 = vunpack.c.l.b16 %v1483
        %v1516 = vunpack.c.l.b16 %v1484
        %v1517 = vunpack.c.l.b16 %v1485
        %v1518 = vunpack.c.l.b16 %v1486
        %v1519 = vunpack.c.l.b16 %v1487
        %v1520 = vunpack.c.l.b16 %v1488
        %v1521 = vunpack.c.l.b16 %v1489
        %v1522 = vunpack.c.l.b16 %v1490
        %v1523 = vunpack.c.l.b16 %v1491
        %v1524 = vunpack.c.l.b16 %v1492
        %v1525 = vpack.c.b16 %v1510, %v1509
        %v1526 = vpack.c.b16 %v1512, %v1511
        %v1527 = vpack.c.b16 %v1514, %v1513
        %v1528 = vpack.c.b16 %v1516, %v1515
        %v1529 = vpack.c.b16 %v1518, %v1517
        %v1530 = vpack.c.b16 %v1520, %v1519
        %v1531 = vpack.c.b16 %v1522, %v1521
        %v1532 = vpack.c.b16 %v1524, %v1523
        %1541 = vmatprep.subr.bf16.mxu0 0
        %1542 = vmatpush1.bf16.msra.mxu0 %v1525
        %1543 = vmatprep.subr.bf16.mxu0 0
        %1544 = vmatpush1.bf16.msra.mxu0 %v1526
        %1545 = vmatprep.subr.bf16.mxu0 0
        %1546 = vmatpush1.bf16.msra.mxu0 %v1527
        %1547 = vmatprep.subr.bf16.mxu0 0
        %1548 = vmatpush1.bf16.msra.mxu0 %v1528
        %1549 = vmatprep.subr.bf16.mxu0 0
        %1550 = vmatpush1.bf16.msra.mxu0 %v1529
        %1551 = vmatprep.subr.bf16.mxu0 0
        %1552 = vmatpush1.bf16.msra.mxu0 %v1530
        %1553 = vmatprep.subr.bf16.mxu0 0
        %1554 = vmatpush1.bf16.msra.mxu0 %v1531
        %1555 = vmatprep.subr.bf16.mxu0 0
        %1556 = vmatpush1.bf16.msra.mxu0 %v1532
        %1557 = vmatprep.subr.bf16.mxu0 0
        %1558 = vmatpush1.bf16.msra.mxu0 0
        %1559 = vmatprep.subr.bf16.mxu0 0
        %1560 = vmatpush1.bf16.msra.mxu0 0
        %1561 = vmatprep.subr.bf16.mxu0 0
        %1562 = vmatpush1.bf16.msra.mxu0 0
        %1563 = vmatprep.subr.bf16.mxu0 0
        %1564 = vmatpush1.bf16.msra.mxu0 0
        %1565 = vmatprep.subr.bf16.mxu0 0
        %1566 = vmatpush1.bf16.msra.mxu0 0
        %1567 = vmatprep.subr.bf16.mxu0 0
        %1568 = vmatpush1.bf16.msra.mxu0 0
        %1569 = vmatprep.subr.bf16.mxu0 0
        %1570 = vmatpush1.bf16.msra.mxu0 0
        %1571 = vmatprep.subr.bf16.mxu0 0
        %1572 = vmatpush1.bf16.msra.mxu0 0
        %1573 = vmatprep.mubr.bf16.mxu0 0
        %1574 = vmatmul.mubr.bf16.gmra.mrb[0].mxu0 %v667
        %v1575 = vpop.f32.mrb[0].mxu0
        %v1576 = vadd.f32 0.0, %v1575
        %v1577 = vpop.f32.mrb[0].mxu0
        %v1578 = vpop.f32.mrb[0].mxu0
        %v1579 = vadd.f32 0.0, %v1578
        %v1580 = vpop.f32.mrb[0].mxu0
        %1581 = vmatprep.mubr.bf16.mxu0 0
        %1582 = vmatmul.mubr.bf16.gmra.mrb[0].mxu0 %v668
        %v1583 = vpop.f32.mrb[0].mxu0
        %v1584 = vadd.f32 0.0, %v1583
        %v1585 = vpop.f32.mrb[0].mxu0
        %v1586 = vpop.f32.mrb[0].mxu0
        %v1587 = vadd.f32 0.0, %v1586
        %v1588 = vpop.f32.mrb[0].mxu0
        %1589 = vmatprep.mubr.bf16.mxu0 0
        %1590 = vmatmul.mubr.bf16.gmra.mrb[0].mxu0 %v669
        %v1591 = vpop.f32.mrb[0].mxu0
        %v1592 = vadd.f32 0.0, %v1591
        %v1593 = vpop.f32.mrb[0].mxu0
        %v1594 = vpop.f32.mrb[0].mxu0
        %v1595 = vadd.f32 0.0, %v1594
        %v1596 = vpop.f32.mrb[0].mxu0
        %1597 = vmatprep.mubr.bf16.mxu0 0
        %1598 = vmatmul.mubr.bf16.gmra.mrb[0].mxu0 %v670
        %v1599 = vpop.f32.mrb[0].mxu0
        %v1600 = vadd.f32 0.0, %v1599
        %v1601 = vpop.f32.mrb[0].mxu0
        %v1602 = vpop.f32.mrb[0].mxu0
        %v1603 = vadd.f32 0.0, %v1602
        %v1604 = vpop.f32.mrb[0].mxu0
        %1605 = vdwg.mxu0
        %s1606 = scalar_lea.vmem %s5, 64
        %v1607 = vld [vmem:[%s1606] sm:$0xf]
        %v1608 = vld [vmem:[%s1606 + $0x4] sm:$0xf]
        %v1609 = vld [vmem:[%s1606 + $0x8] sm:$0xf]
        %v1610 = vld [vmem:[%s1606 + $0xc] sm:$0xf]
        %v1611 = vld [vmem:[%s1606 + $0x10] sm:$0xf]
        %v1612 = vld [vmem:[%s1606 + $0x14] sm:$0xf]
        %v1613 = vld [vmem:[%s1606 + $0x18] sm:$0xf]
        %v1614 = vld [vmem:[%s1606 + $0x1c] sm:$0xf]
        %v1615 = vld [vmem:[%s1606 + $0x20] sm:$0xf]
        %v1616 = vld [vmem:[%s1606 + $0x24] sm:$0xf]
        %v1617 = vld [vmem:[%s1606 + $0x28] sm:$0xf]
        %v1618 = vld [vmem:[%s1606 + $0x2c] sm:$0xf]
        %v1619 = vld [vmem:[%s1606 + $0x30] sm:$0xf]
        %v1620 = vld [vmem:[%s1606 + $0x34] sm:$0xf]
        %v1621 = vld [vmem:[%s1606 + $0x38] sm:$0xf]
        %v1622 = vld [vmem:[%s1606 + $0x3c] sm:$0xf]
        %v1639 = vunpack.c.l.b16 %v1607
        %v1640 = vunpack.c.l.b16 %v1608
        %v1641 = vunpack.c.l.b16 %v1609
        %v1642 = vunpack.c.l.b16 %v1610
        %v1643 = vunpack.c.l.b16 %v1611
        %v1644 = vunpack.c.l.b16 %v1612
        %v1645 = vunpack.c.l.b16 %v1613
        %v1646 = vunpack.c.l.b16 %v1614
        %v1647 = vunpack.c.l.b16 %v1615
        %v1648 = vunpack.c.l.b16 %v1616
        %v1649 = vunpack.c.l.b16 %v1617
        %v1650 = vunpack.c.l.b16 %v1618
        %v1651 = vunpack.c.l.b16 %v1619
        %v1652 = vunpack.c.l.b16 %v1620
        %v1653 = vunpack.c.l.b16 %v1621
        %v1654 = vunpack.c.l.b16 %v1622
        %v1655 = vpack.c.b16 %v1640, %v1639
        %v1656 = vpack.c.b16 %v1642, %v1641
        %v1657 = vpack.c.b16 %v1644, %v1643
        %v1658 = vpack.c.b16 %v1646, %v1645
        %v1659 = vpack.c.b16 %v1648, %v1647
        %v1660 = vpack.c.b16 %v1650, %v1649
        %v1661 = vpack.c.b16 %v1652, %v1651
        %v1662 = vpack.c.b16 %v1654, %v1653
        %1671 = vmatprep.subr.bf16.mxu0 0
        %1672 = vmatpush1.bf16.msra.mxu0 %v1655
        %1673 = vmatprep.subr.bf16.mxu0 0
        %1674 = vmatpush1.bf16.msra.mxu0 %v1656
        %1675 = vmatprep.subr.bf16.mxu0 0
        %1676 = vmatpush1.bf16.msra.mxu0 %v1657
        %1677 = vmatprep.subr.bf16.mxu0 0
        %1678 = vmatpush1.bf16.msra.mxu0 %v1658
        %1679 = vmatprep.subr.bf16.mxu0 0
        %1680 = vmatpush1.bf16.msra.mxu0 %v1659
        %1681 = vmatprep.subr.bf16.mxu0 0
        %1682 = vmatpush1.bf16.msra.mxu0 %v1660
        %1683 = vmatprep.subr.bf16.mxu0 0
        %1684 = vmatpush1.bf16.msra.mxu0 %v1661
        %1685 = vmatprep.subr.bf16.mxu0 0
        %1686 = vmatpush1.bf16.msra.mxu0 %v1662
        %1687 = vmatprep.subr.bf16.mxu0 0
        %1688 = vmatpush1.bf16.msra.mxu0 0
        %1689 = vmatprep.subr.bf16.mxu0 0
        %1690 = vmatpush1.bf16.msra.mxu0 0
        %1691 = vmatprep.subr.bf16.mxu0 0
        %1692 = vmatpush1.bf16.msra.mxu0 0
        %1693 = vmatprep.subr.bf16.mxu0 0
        %1694 = vmatpush1.bf16.msra.mxu0 0
        %1695 = vmatprep.subr.bf16.mxu0 0
        %1696 = vmatpush1.bf16.msra.mxu0 0
        %1697 = vmatprep.subr.bf16.mxu0 0
        %1698 = vmatpush1.bf16.msra.mxu0 0
        %1699 = vmatprep.subr.bf16.mxu0 0
        %1700 = vmatpush1.bf16.msra.mxu0 0
        %1701 = vmatprep.subr.bf16.mxu0 0
        %1702 = vmatpush1.bf16.msra.mxu0 0
        %1703 = vmatprep.mubr.bf16.mxu0 0
        %1704 = vmatmul.mubr.bf16.gmra.mrb[0].mxu0 %v667
        %v1705 = vpop.f32.mrb[0].mxu0
        %v1706 = vadd.f32 0.0, %v1705
        %v1707 = vpop.f32.mrb[0].mxu0
        %v1708 = vpop.f32.mrb[0].mxu0
        %v1709 = vadd.f32 0.0, %v1708
        %v1710 = vpop.f32.mrb[0].mxu0
        %1711 = vmatprep.mubr.bf16.mxu0 0
        %1712 = vmatmul.mubr.bf16.gmra.mrb[0].mxu0 %v668
        %v1713 = vpop.f32.mrb[0].mxu0
        %v1714 = vadd.f32 0.0, %v1713
        %v1715 = vpop.f32.mrb[0].mxu0
        %v1716 = vpop.f32.mrb[0].mxu0
        %v1717 = vadd.f32 0.0, %v1716
        %v1718 = vpop.f32.mrb[0].mxu0
        %1719 = vmatprep.mubr.bf16.mxu0 0
        %1720 = vmatmul.mubr.bf16.gmra.mrb[0].mxu0 %v669
        %v1721 = vpop.f32.mrb[0].mxu0
        %v1722 = vadd.f32 0.0, %v1721
        %v1723 = vpop.f32.mrb[0].mxu0
        %v1724 = vpop.f32.mrb[0].mxu0
        %v1725 = vadd.f32 0.0, %v1724
        %v1726 = vpop.f32.mrb[0].mxu0
        %1727 = vmatprep.mubr.bf16.mxu0 0
        %1728 = vmatmul.mubr.bf16.gmra.mrb[0].mxu0 %v670
        %v1729 = vpop.f32.mrb[0].mxu0
        %v1730 = vadd.f32 0.0, %v1729
        %v1731 = vpop.f32.mrb[0].mxu0
        %v1732 = vpop.f32.mrb[0].mxu0
        %v1733 = vadd.f32 0.0, %v1732
        %v1734 = vpop.f32.mrb[0].mxu0
        %1735 = vdwg.mxu0
        %v1736 = vpack.c.bf16 %v1449, %v1446
        %v1737 = vpack.c.bf16 %v1457, %v1454
        %v1738 = vpack.c.bf16 %v1465, %v1462
        %v1739 = vpack.c.bf16 %v1473, %v1470
        %v1740 = vpack.c.bf16 %v1579, %v1576
        %v1741 = vpack.c.bf16 %v1587, %v1584
        %v1742 = vpack.c.bf16 %v1595, %v1592
        %v1743 = vpack.c.bf16 %v1603, %v1600
        %v1745 = vsel %vm1066, %v1736, 0
        %v1748 = vsel %vm1066, %v1737, 0
        %v1751 = vsel %vm1066, %v1738, 0
        %v1754 = vsel %vm1066, %v1739, 0
        %v1757 = vsel %vm1066, %v1740, 0
        %v1760 = vsel %vm1066, %v1741, 0
        %v1763 = vsel %vm1066, %v1742, 0
        %v1766 = vsel %vm1066, %v1743, 0
        %1768 = vmatprep.subr.bf16.mxu0 0
        %1769 = vmatpush1.bf16.xpose.msra.mxu0 %v1757
        %1770 = vmatprep.subr.bf16.mxu0 0
        %1771 = vmatpush1.bf16.xpose.msra.mxu0 %v1760
        %1772 = vmatprep.subr.bf16.mxu0 0
        %1773 = vmatpush1.bf16.xpose.msra.mxu0 %v1763
        %1774 = vmatprep.subr.bf16.mxu0 0
        %1775 = vmatpush1.bf16.xpose.msra.mxu0 %v1766
        %1776 = vmatprep.subr.bf16.mxu0 0
        %1777 = vmatpush1.bf16.xpose.msra.mxu0 0
        %1778 = vmatprep.subr.bf16.mxu0 0
        %1779 = vmatpush1.bf16.xpose.msra.mxu0 0
        %1780 = vmatprep.subr.bf16.mxu0 0
        %1781 = vmatpush1.bf16.xpose.msra.mxu0 0
        %1782 = vmatprep.subr.bf16.mxu0 0
        %1783 = vmatpush1.bf16.xpose.msra.mxu0 0
        %1784 = vmatprep.subr.bf16.mxu0 0
        %1785 = vmatpush1.bf16.xpose.msra.mxu0 0
        %1786 = vmatprep.subr.bf16.mxu0 0
        %1787 = vmatpush1.bf16.xpose.msra.mxu0 0
        %1788 = vmatprep.subr.bf16.mxu0 0
        %1789 = vmatpush1.bf16.xpose.msra.mxu0 0
        %1790 = vmatprep.subr.bf16.mxu0 0
        %1791 = vmatpush1.bf16.xpose.msra.mxu0 0
        %1792 = vmatprep.subr.bf16.mxu0 0
        %1793 = vmatpush1.bf16.xpose.msra.mxu0 0
        %1794 = vmatprep.subr.bf16.mxu0 0
        %1795 = vmatpush1.bf16.xpose.msra.mxu0 0
        %1796 = vmatprep.subr.bf16.mxu0 0
        %1797 = vmatpush1.bf16.xpose.msra.mxu0 0
        %1798 = vmatprep.subr.bf16.mxu0 0
        %1799 = vmatpush1.bf16.xpose.msra.mxu0 0
        %1800 = vmatprep.mubr.bf16.mxu0 0
        %1801 = vmatmul.mubr.bf16.gmra.mrb[0].mxu0 %v1745
        %v1802 = vpop.f32.mrb[0].mxu0
        %v1803 = vadd.f32 0.0, %v1802
        %v1804 = vpop.f32.mrb[0].mxu0
        %v1805 = vpop.f32.mrb[0].mxu0
        %v1806 = vadd.f32 0.0, %v1805
        %v1807 = vpop.f32.mrb[0].mxu0
        %1808 = vmatprep.mubr.bf16.mxu0 0
        %1809 = vmatmul.mubr.bf16.gmra.mrb[0].mxu0 %v1748
        %v1810 = vpop.f32.mrb[0].mxu0
        %v1811 = vadd.f32 0.0, %v1810
        %v1812 = vpop.f32.mrb[0].mxu0
        %v1813 = vpop.f32.mrb[0].mxu0
        %v1814 = vadd.f32 0.0, %v1813
        %v1815 = vpop.f32.mrb[0].mxu0
        %1816 = vmatprep.mubr.bf16.mxu0 0
        %1817 = vmatmul.mubr.bf16.gmra.mrb[0].mxu0 %v1751
        %v1818 = vpop.f32.mrb[0].mxu0
        %v1819 = vadd.f32 0.0, %v1818
        %v1820 = vpop.f32.mrb[0].mxu0
        %v1821 = vpop.f32.mrb[0].mxu0
        %v1822 = vadd.f32 0.0, %v1821
        %v1823 = vpop.f32.mrb[0].mxu0
        %1824 = vmatprep.mubr.bf16.mxu0 0
        %1825 = vmatmul.mubr.bf16.gmra.mrb[0].mxu0 %v1754
        %v1826 = vpop.f32.mrb[0].mxu0
        %v1827 = vadd.f32 0.0, %v1826
        %v1828 = vpop.f32.mrb[0].mxu0
        %v1829 = vpop.f32.mrb[0].mxu0
        %v1830 = vadd.f32 0.0, %v1829
        %v1831 = vpop.f32.mrb[0].mxu0
        %1832 = vdwg.mxu0
        %v1833 = vsel %vm540, %v1803, -1e+30
        %v1834 = vsel %vm541, %v1806, -1e+30
        %v1835 = vsel %vm542, %v1811, -1e+30
        %v1836 = vsel %vm543, %v1814, -1e+30
        %v1837 = vsel %vm544, %v1819, -1e+30
        %v1838 = vsel %vm545, %v1822, -1e+30
        %v1839 = vsel %vm546, %v1827, -1e+30
        %v1840 = vsel %vm547, %v1830, -1e+30
        %v1841 = vsel %vm1164, %v1833, -inf
        %1842 = vmax.xlane.f32.xlu0 %v1841
        %v1843 = vpop.xlane.xlu0 %1842
        %v1844 = vsel %vm1164, %v1834, -inf
        %1845 = vmax.xlane.f32.xlu0 %v1844
        %v1846 = vpop.xlane.xlu0 %1845
        %v1847 = vsel %vm1164, %v1835, -inf
        %1848 = vmax.xlane.f32.xlu0 %v1847
        %v1849 = vpop.xlane.xlu0 %1848
        %v1850 = vsel %vm1164, %v1836, -inf
        %1851 = vmax.xlane.f32.xlu0 %v1850
        %v1852 = vpop.xlane.xlu0 %1851
        %v1853 = vsel %vm1164, %v1837, -inf
        %1854 = vmax.xlane.f32.xlu0 %v1853
        %v1855 = vpop.xlane.xlu0 %1854
        %v1856 = vsel %vm1164, %v1838, -inf
        %1857 = vmax.xlane.f32.xlu0 %v1856
        %v1858 = vpop.xlane.xlu0 %1857
        %v1859 = vsel %vm1164, %v1839, -inf
        %1860 = vmax.xlane.f32.xlu0 %v1859
        %v1861 = vpop.xlane.xlu0 %1860
        %v1862 = vsel %vm1164, %v1840, -inf
        %1863 = vmax.xlane.f32.xlu0 %v1862
        %v1864 = vpop.xlane.xlu0 %1863
        %v1865 = vsub.f32 %v1833, %v1843
        %v1866 = vsub.f32 %v1834, %v1846
        %v1867 = vsub.f32 %v1835, %v1849
        %v1868 = vsub.f32 %v1836, %v1852
        %v1869 = vsub.f32 %v1837, %v1855
        %v1870 = vsub.f32 %v1838, %v1858
        %v1871 = vsub.f32 %v1839, %v1861
        %v1872 = vsub.f32 %v1840, %v1864
        %v1873 = vmul.f32 %v1865, 1.442695
        %v1874 = vpow.pop %v1873
        %v1875 = vmul.f32 %v1866, 1.442695
        %v1876 = vpow.pop %v1875
        %v1877 = vmul.f32 %v1867, 1.442695
        %v1878 = vpow.pop %v1877
        %v1879 = vmul.f32 %v1868, 1.442695
        %v1880 = vpow.pop %v1879
        %v1881 = vmul.f32 %v1869, 1.442695
        %v1882 = vpow.pop %v1881
        %v1883 = vmul.f32 %v1870, 1.442695
        %v1884 = vpow.pop %v1883
        %v1885 = vmul.f32 %v1871, 1.442695
        %v1886 = vpow.pop %v1885
        %v1887 = vmul.f32 %v1872, 1.442695
        %v1888 = vpow.pop %v1887
        %v1889 = vsel %vm1164, %v1874, 0.0
        %1890 = vadd.xlane.f32.xlu0 %v1889
        %v1891 = vpop.xlane.xlu0 %1890
        %v1892 = vsel %vm1164, %v1876, 0.0
        %1893 = vadd.xlane.f32.xlu0 %v1892
        %v1894 = vpop.xlane.xlu0 %1893
        %v1895 = vsel %vm1164, %v1878, 0.0
        %1896 = vadd.xlane.f32.xlu0 %v1895
        %v1897 = vpop.xlane.xlu0 %1896
        %v1898 = vsel %vm1164, %v1880, 0.0
        %1899 = vadd.xlane.f32.xlu0 %v1898
        %v1900 = vpop.xlane.xlu0 %1899
        %v1901 = vsel %vm1164, %v1882, 0.0
        %1902 = vadd.xlane.f32.xlu0 %v1901
        %v1903 = vpop.xlane.xlu0 %1902
        %v1904 = vsel %vm1164, %v1884, 0.0
        %1905 = vadd.xlane.f32.xlu0 %v1904
        %v1906 = vpop.xlane.xlu0 %1905
        %v1907 = vsel %vm1164, %v1886, 0.0
        %1908 = vadd.xlane.f32.xlu0 %v1907
        %v1909 = vpop.xlane.xlu0 %1908
        %v1910 = vsel %vm1164, %v1888, 0.0
        %1911 = vadd.xlane.f32.xlu0 %v1910
        %v1912 = vpop.xlane.xlu0 %1911
        %v1913 = vrcp.pop %v1891
        %v1914 = vrcp.pop %v1894
        %v1915 = vrcp.pop %v1897
        %v1916 = vrcp.pop %v1900
        %v1917 = vrcp.pop %v1903
        %v1918 = vrcp.pop %v1906
        %v1919 = vrcp.pop %v1909
        %v1920 = vrcp.pop %v1912
        %v1921 = vmul.f32 %v1874, %v1913
        %v1922 = vmul.f32 %v1876, %v1914
        %v1923 = vmul.f32 %v1878, %v1915
        %v1924 = vmul.f32 %v1880, %v1916
        %v1925 = vmul.f32 %v1882, %v1917
        %v1926 = vmul.f32 %v1884, %v1918
        %v1927 = vmul.f32 %v1886, %v1919
        %v1928 = vmul.f32 %v1888, %v1920
        %v1929 = vpack.c.bf16 %v1922, %v1921
        %v1930 = vpack.c.bf16 %v1924, %v1923
        %v1931 = vpack.c.bf16 %v1926, %v1925
        %v1932 = vpack.c.bf16 %v1928, %v1927
        %v1933 = vpack.c.bf16 %v1709, %v1706
        %v1934 = vpack.c.bf16 %v1717, %v1714
        %v1935 = vpack.c.bf16 %v1725, %v1722
        %v1936 = vpack.c.bf16 %v1733, %v1730
        %v1938 = vsel %vm1164, %v1929, 0
        %v1941 = vsel %vm1164, %v1930, 0
        %v1944 = vsel %vm1164, %v1931, 0
        %v1947 = vsel %vm1164, %v1932, 0
        %1949 = vmatprep.subr.bf16.mxu0 0
        %1950 = vmatpush1.bf16.msra.mxu0 %v1933
        %1951 = vmatprep.subr.bf16.mxu0 0
        %1952 = vmatpush1.bf16.msra.mxu0 %v1934
        %1953 = vmatprep.subr.bf16.mxu0 0
        %1954 = vmatpush1.bf16.msra.mxu0 %v1935
        %1955 = vmatprep.subr.bf16.mxu0 0
        %1956 = vmatpush1.bf16.msra.mxu0 %v1936
        %1957 = vmatprep.subr.bf16.mxu0 0
        %1958 = vmatpush1.bf16.msra.mxu0 0
        %1959 = vmatprep.subr.bf16.mxu0 0
        %1960 = vmatpush1.bf16.msra.mxu0 0
        %1961 = vmatprep.subr.bf16.mxu0 0
        %1962 = vmatpush1.bf16.msra.mxu0 0
        %1963 = vmatprep.subr.bf16.mxu0 0
        %1964 = vmatpush1.bf16.msra.mxu0 0
        %1965 = vmatprep.subr.bf16.mxu0 0
        %1966 = vmatpush1.bf16.msra.mxu0 0
        %1967 = vmatprep.subr.bf16.mxu0 0
        %1968 = vmatpush1.bf16.msra.mxu0 0
        %1969 = vmatprep.subr.bf16.mxu0 0
        %1970 = vmatpush1.bf16.msra.mxu0 0
        %1971 = vmatprep.subr.bf16.mxu0 0
        %1972 = vmatpush1.bf16.msra.mxu0 0
        %1973 = vmatprep.subr.bf16.mxu0 0
        %1974 = vmatpush1.bf16.msra.mxu0 0
        %1975 = vmatprep.subr.bf16.mxu0 0
        %1976 = vmatpush1.bf16.msra.mxu0 0
        %1977 = vmatprep.subr.bf16.mxu0 0
        %1978 = vmatpush1.bf16.msra.mxu0 0
        %1979 = vmatprep.subr.bf16.mxu0 0
        %1980 = vmatpush1.bf16.msra.mxu0 0
        %1981 = vmatprep.mubr.bf16.mxu0 0
        %1982 = vmatmul.mubr.bf16.gmra.mrb[0].mxu0 %v1938
        %v1983 = vpop.f32.mrb[0].mxu0
        %v1984 = vadd.f32 0.0, %v1983
        %v1985 = vpop.f32.mrb[0].mxu0
        %v1986 = vpop.f32.mrb[0].mxu0
        %v1987 = vadd.f32 0.0, %v1986
        %v1988 = vpop.f32.mrb[0].mxu0
        %1989 = vmatprep.mubr.bf16.mxu0 0
        %1990 = vmatmul.mubr.bf16.gmra.mrb[0].mxu0 %v1941
        %v1991 = vpop.f32.mrb[0].mxu0
        %v1992 = vadd.f32 0.0, %v1991
        %v1993 = vpop.f32.mrb[0].mxu0
        %v1994 = vpop.f32.mrb[0].mxu0
        %v1995 = vadd.f32 0.0, %v1994
        %v1996 = vpop.f32.mrb[0].mxu0
        %1997 = vmatprep.mubr.bf16.mxu0 0
        %1998 = vmatmul.mubr.bf16.gmra.mrb[0].mxu0 %v1944
        %v1999 = vpop.f32.mrb[0].mxu0
        %v2000 = vadd.f32 0.0, %v1999
        %v2001 = vpop.f32.mrb[0].mxu0
        %v2002 = vpop.f32.mrb[0].mxu0
        %v2003 = vadd.f32 0.0, %v2002
        %v2004 = vpop.f32.mrb[0].mxu0
        %2005 = vmatprep.mubr.bf16.mxu0 0
        %2006 = vmatmul.mubr.bf16.gmra.mrb[0].mxu0 %v1947
        %v2007 = vpop.f32.mrb[0].mxu0
        %v2008 = vadd.f32 0.0, %v2007
        %v2009 = vpop.f32.mrb[0].mxu0
        %v2010 = vpop.f32.mrb[0].mxu0
        %v2011 = vadd.f32 0.0, %v2010
        %v2012 = vpop.f32.mrb[0].mxu0
        %2013 = vdwg.mxu0
        %v2014 = vpack.c.bf16 %v1987, %v1984
        %v2015 = vpack.c.bf16 %v1995, %v1992
        %v2016 = vpack.c.bf16 %v2003, %v2000
        %v2017 = vpack.c.bf16 %v2011, %v2008
        %s2018 = scalar_lea.vmem %s6, 16
        %v2019 = vld [vmem:[%s2018] sm:$0xf]
        %v2020 = vld [vmem:[%s2018 + $0x4] sm:$0xf]
        %v2021 = vld [vmem:[%s2018 + $0x8] sm:$0xf]
        %v2022 = vld [vmem:[%s2018 + $0xc] sm:$0xf]
        %v2027 = vunpack.c.l.b16 %v2019
        %v2028 = vunpack.c.l.b16 %v2020
        %v2029 = vunpack.c.l.b16 %v2021
        %v2030 = vunpack.c.l.b16 %v2022
        %v2031 = vpack.c.b16 %v2028, %v2027
        %v2032 = vpack.c.b16 %v2030, %v2029
        %v2036 = vsel %vm1066, %v2014, 0
        %v2039 = vsel %vm1066, %v2015, 0
        %v2042 = vsel %vm1066, %v2016, 0
        %v2045 = vsel %vm1066, %v2017, 0
        %2047 = vmatprep.subr.bf16.mxu0 0
        %2048 = vmatpush1.bf16.msra.mxu0 %v2031
        %2049 = vmatprep.subr.bf16.mxu0 0
        %2050 = vmatpush1.bf16.msra.mxu0 %v2032
        %2051 = vmatprep.subr.bf16.mxu0 0
        %2052 = vmatpush1.bf16.msra.mxu0 0
        %2053 = vmatprep.subr.bf16.mxu0 0
        %2054 = vmatpush1.bf16.msra.mxu0 0
        %2055 = vmatprep.subr.bf16.mxu0 0
        %2056 = vmatpush1.bf16.msra.mxu0 0
        %2057 = vmatprep.subr.bf16.mxu0 0
        %2058 = vmatpush1.bf16.msra.mxu0 0
        %2059 = vmatprep.subr.bf16.mxu0 0
        %2060 = vmatpush1.bf16.msra.mxu0 0
        %2061 = vmatprep.subr.bf16.mxu0 0
        %2062 = vmatpush1.bf16.msra.mxu0 0
        %2063 = vmatprep.subr.bf16.mxu0 0
        %2064 = vmatpush1.bf16.msra.mxu0 0
        %2065 = vmatprep.subr.bf16.mxu0 0
        %2066 = vmatpush1.bf16.msra.mxu0 0
        %2067 = vmatprep.subr.bf16.mxu0 0
        %2068 = vmatpush1.bf16.msra.mxu0 0
        %2069 = vmatprep.subr.bf16.mxu0 0
        %2070 = vmatpush1.bf16.msra.mxu0 0
        %2071 = vmatprep.subr.bf16.mxu0 0
        %2072 = vmatpush1.bf16.msra.mxu0 0
        %2073 = vmatprep.subr.bf16.mxu0 0
        %2074 = vmatpush1.bf16.msra.mxu0 0
        %2075 = vmatprep.subr.bf16.mxu0 0
        %2076 = vmatpush1.bf16.msra.mxu0 0
        %2077 = vmatprep.subr.bf16.mxu0 0
        %2078 = vmatpush1.bf16.msra.mxu0 0
        %2079 = vmatprep.mubr.bf16.mxu0 0
        %2080 = vmatmul.mubr.bf16.gmra.mrb[0].mxu0 %v2036
        %v2081 = vpop.f32.mrb[0].mxu0
        %v2082 = vadd.f32 0.0, %v2081
        %v2083 = vpop.f32.mrb[0].mxu0
        %v2084 = vpop.f32.mrb[0].mxu0
        %v2085 = vadd.f32 0.0, %v2084
        %v2086 = vpop.f32.mrb[0].mxu0
        %2087 = vmatprep.mubr.bf16.mxu0 0
        %2088 = vmatmul.mubr.bf16.gmra.mrb[0].mxu0 %v2039
        %v2089 = vpop.f32.mrb[0].mxu0
        %v2090 = vadd.f32 0.0, %v2089
        %v2091 = vpop.f32.mrb[0].mxu0
        %v2092 = vpop.f32.mrb[0].mxu0
        %v2093 = vadd.f32 0.0, %v2092
        %v2094 = vpop.f32.mrb[0].mxu0
        %2095 = vmatprep.mubr.bf16.mxu0 0
        %2096 = vmatmul.mubr.bf16.gmra.mrb[0].mxu0 %v2042
        %v2097 = vpop.f32.mrb[0].mxu0
        %v2098 = vadd.f32 0.0, %v2097
        %v2099 = vpop.f32.mrb[0].mxu0
        %v2100 = vpop.f32.mrb[0].mxu0
        %v2101 = vadd.f32 0.0, %v2100
        %v2102 = vpop.f32.mrb[0].mxu0
        %2103 = vmatprep.mubr.bf16.mxu0 0
        %2104 = vmatmul.mubr.bf16.gmra.mrb[0].mxu0 %v2045
        %v2105 = vpop.f32.mrb[0].mxu0
        %v2106 = vadd.f32 0.0, %v2105
        %v2107 = vpop.f32.mrb[0].mxu0
        %v2108 = vpop.f32.mrb[0].mxu0
        %v2109 = vadd.f32 0.0, %v2108
        %v2110 = vpop.f32.mrb[0].mxu0
        %2111 = vdwg.mxu0
        %v2116 = vunpack.c.l.b16 %v1342
        %v2117 = vunpack.c.l.b16 %v1343
        %v2118 = vunpack.c.l.b16 %v1344
        %v2119 = vunpack.c.l.b16 %v1345
        %v2120 = vpack.c.b16 %v2117, %v2116
        %v2121 = vpack.c.b16 %v2119, %v2118
        %v2125 = vsel %vm1066, %v1338, 0
        %v2128 = vsel %vm1066, %v1339, 0
        %v2131 = vsel %vm1066, %v1340, 0
        %v2134 = vsel %vm1066, %v1341, 0
        %2136 = vmatprep.subr.bf16.mxu0 0
        %2137 = vmatpush1.bf16.msra.mxu0 %v2120
        %2138 = vmatprep.subr.bf16.mxu0 0
        %2139 = vmatpush1.bf16.msra.mxu0 %v2121
        %2140 = vmatprep.subr.bf16.mxu0 0
        %2141 = vmatpush1.bf16.msra.mxu0 0
        %2142 = vmatprep.subr.bf16.mxu0 0
        %2143 = vmatpush1.bf16.msra.mxu0 0
        %2144 = vmatprep.subr.bf16.mxu0 0
        %2145 = vmatpush1.bf16.msra.mxu0 0
        %2146 = vmatprep.subr.bf16.mxu0 0
        %2147 = vmatpush1.bf16.msra.mxu0 0
        %2148 = vmatprep.subr.bf16.mxu0 0
        %2149 = vmatpush1.bf16.msra.mxu0 0
        %2150 = vmatprep.subr.bf16.mxu0 0
        %2151 = vmatpush1.bf16.msra.mxu0 0
        %2152 = vmatprep.subr.bf16.mxu0 0
        %2153 = vmatpush1.bf16.msra.mxu0 0
        %2154 = vmatprep.subr.bf16.mxu0 0
        %2155 = vmatpush1.bf16.msra.mxu0 0
        %2156 = vmatprep.subr.bf16.mxu0 0
        %2157 = vmatpush1.bf16.msra.mxu0 0
        %2158 = vmatprep.subr.bf16.mxu0 0
        %2159 = vmatpush1.bf16.msra.mxu0 0
        %2160 = vmatprep.subr.bf16.mxu0 0
        %2161 = vmatpush1.bf16.msra.mxu0 0
        %2162 = vmatprep.subr.bf16.mxu0 0
        %2163 = vmatpush1.bf16.msra.mxu0 0
        %2164 = vmatprep.subr.bf16.mxu0 0
        %2165 = vmatpush1.bf16.msra.mxu0 0
        %2166 = vmatprep.subr.bf16.mxu0 0
        %2167 = vmatpush1.bf16.msra.mxu0 0
        %2168 = vmatprep.mubr.bf16.mxu0 0
        %2169 = vmatmul.mubr.bf16.gmra.mrb[0].mxu0 %v2125
        %v2170 = vpop.f32.mrb[0].mxu0
        %v2171 = vadd.f32 %v2082, %v2170
        %v2172 = vpop.f32.mrb[0].mxu0
        %v2173 = vpop.f32.mrb[0].mxu0
        %v2174 = vadd.f32 %v2085, %v2173
        %v2175 = vpop.f32.mrb[0].mxu0
        %2176 = vmatprep.mubr.bf16.mxu0 0
        %2177 = vmatmul.mubr.bf16.gmra.mrb[0].mxu0 %v2128
        %v2178 = vpop.f32.mrb[0].mxu0
        %v2179 = vadd.f32 %v2090, %v2178
        %v2180 = vpop.f32.mrb[0].mxu0
        %v2181 = vpop.f32.mrb[0].mxu0
        %v2182 = vadd.f32 %v2093, %v2181
        %v2183 = vpop.f32.mrb[0].mxu0
        %2184 = vmatprep.mubr.bf16.mxu0 0
        %2185 = vmatmul.mubr.bf16.gmra.mrb[0].mxu0 %v2131
        %v2186 = vpop.f32.mrb[0].mxu0
        %v2187 = vadd.f32 %v2098, %v2186
        %v2188 = vpop.f32.mrb[0].mxu0
        %v2189 = vpop.f32.mrb[0].mxu0
        %v2190 = vadd.f32 %v2101, %v2189
        %v2191 = vpop.f32.mrb[0].mxu0
        %2192 = vmatprep.mubr.bf16.mxu0 0
        %2193 = vmatmul.mubr.bf16.gmra.mrb[0].mxu0 %v2134
        %v2194 = vpop.f32.mrb[0].mxu0
        %v2195 = vadd.f32 %v2106, %v2194
        %v2196 = vpop.f32.mrb[0].mxu0
        %v2197 = vpop.f32.mrb[0].mxu0
        %v2198 = vadd.f32 %v2109, %v2197
        %v2199 = vpop.f32.mrb[0].mxu0
        %2200 = vdwg.mxu0
        %s2201 = scalar_lea.vmem %s3, 128
        %v2202 = vld [vmem:[%s2201] sm:$0xf]
        %v2203 = vld [vmem:[%s2201 + $0x4] sm:$0xf]
        %v2204 = vld [vmem:[%s2201 + $0x8] sm:$0xf]
        %v2205 = vld [vmem:[%s2201 + $0xc] sm:$0xf]
        %v2206 = vld [vmem:[%s2201 + $0x10] sm:$0xf]
        %v2207 = vld [vmem:[%s2201 + $0x14] sm:$0xf]
        %v2208 = vld [vmem:[%s2201 + $0x18] sm:$0xf]
        %v2209 = vld [vmem:[%s2201 + $0x1c] sm:$0xf]
        %v2210 = vld [vmem:[%s2201 + $0x20] sm:$0xf]
        %v2211 = vld [vmem:[%s2201 + $0x24] sm:$0xf]
        %v2212 = vld [vmem:[%s2201 + $0x28] sm:$0xf]
        %v2213 = vld [vmem:[%s2201 + $0x2c] sm:$0xf]
        %v2214 = vld [vmem:[%s2201 + $0x30] sm:$0xf]
        %v2215 = vld [vmem:[%s2201 + $0x34] sm:$0xf]
        %v2216 = vld [vmem:[%s2201 + $0x38] sm:$0xf]
        %v2217 = vld [vmem:[%s2201 + $0x3c] sm:$0xf]
        %v2234 = vunpack.c.l.b16 %v2202
        %v2235 = vunpack.c.l.b16 %v2203
        %v2236 = vunpack.c.l.b16 %v2204
        %v2237 = vunpack.c.l.b16 %v2205
        %v2238 = vunpack.c.l.b16 %v2206
        %v2239 = vunpack.c.l.b16 %v2207
        %v2240 = vunpack.c.l.b16 %v2208
        %v2241 = vunpack.c.l.b16 %v2209
        %v2242 = vunpack.c.l.b16 %v2210
        %v2243 = vunpack.c.l.b16 %v2211
        %v2244 = vunpack.c.l.b16 %v2212
        %v2245 = vunpack.c.l.b16 %v2213
        %v2246 = vunpack.c.l.b16 %v2214
        %v2247 = vunpack.c.l.b16 %v2215
        %v2248 = vunpack.c.l.b16 %v2216
        %v2249 = vunpack.c.l.b16 %v2217
        %v2250 = vpack.c.b16 %v2235, %v2234
        %v2251 = vpack.c.b16 %v2237, %v2236
        %v2252 = vpack.c.b16 %v2239, %v2238
        %v2253 = vpack.c.b16 %v2241, %v2240
        %v2254 = vpack.c.b16 %v2243, %v2242
        %v2255 = vpack.c.b16 %v2245, %v2244
        %v2256 = vpack.c.b16 %v2247, %v2246
        %v2257 = vpack.c.b16 %v2249, %v2248
        %2266 = vmatprep.subr.bf16.mxu0 0
        %2267 = vmatpush1.bf16.msra.mxu0 %v2250
        %2268 = vmatprep.subr.bf16.mxu0 0
        %2269 = vmatpush1.bf16.msra.mxu0 %v2251
        %2270 = vmatprep.subr.bf16.mxu0 0
        %2271 = vmatpush1.bf16.msra.mxu0 %v2252
        %2272 = vmatprep.subr.bf16.mxu0 0
        %2273 = vmatpush1.bf16.msra.mxu0 %v2253
        %2274 = vmatprep.subr.bf16.mxu0 0
        %2275 = vmatpush1.bf16.msra.mxu0 %v2254
        %2276 = vmatprep.subr.bf16.mxu0 0
        %2277 = vmatpush1.bf16.msra.mxu0 %v2255
        %2278 = vmatprep.subr.bf16.mxu0 0
        %2279 = vmatpush1.bf16.msra.mxu0 %v2256
        %2280 = vmatprep.subr.bf16.mxu0 0
        %2281 = vmatpush1.bf16.msra.mxu0 %v2257
        %2282 = vmatprep.subr.bf16.mxu0 0
        %2283 = vmatpush1.bf16.msra.mxu0 0
        %2284 = vmatprep.subr.bf16.mxu0 0
        %2285 = vmatpush1.bf16.msra.mxu0 0
        %2286 = vmatprep.subr.bf16.mxu0 0
        %2287 = vmatpush1.bf16.msra.mxu0 0
        %2288 = vmatprep.subr.bf16.mxu0 0
        %2289 = vmatpush1.bf16.msra.mxu0 0
        %2290 = vmatprep.subr.bf16.mxu0 0
        %2291 = vmatpush1.bf16.msra.mxu0 0
        %2292 = vmatprep.subr.bf16.mxu0 0
        %2293 = vmatpush1.bf16.msra.mxu0 0
        %2294 = vmatprep.subr.bf16.mxu0 0
        %2295 = vmatpush1.bf16.msra.mxu0 0
        %2296 = vmatprep.subr.bf16.mxu0 0
        %2297 = vmatpush1.bf16.msra.mxu0 0
        %2298 = vmatprep.mubr.bf16.mxu0 0
        %2299 = vmatmul.mubr.bf16.gmra.mrb[0].mxu0 %v667
        %v2300 = vpop.f32.mrb[0].mxu0
        %v2301 = vadd.f32 0.0, %v2300
        %v2302 = vpop.f32.mrb[0].mxu0
        %v2303 = vpop.f32.mrb[0].mxu0
        %v2304 = vadd.f32 0.0, %v2303
        %v2305 = vpop.f32.mrb[0].mxu0
        %2306 = vmatprep.mubr.bf16.mxu0 0
        %2307 = vmatmul.mubr.bf16.gmra.mrb[0].mxu0 %v668
        %v2308 = vpop.f32.mrb[0].mxu0
        %v2309 = vadd.f32 0.0, %v2308
        %v2310 = vpop.f32.mrb[0].mxu0
        %v2311 = vpop.f32.mrb[0].mxu0
        %v2312 = vadd.f32 0.0, %v2311
        %v2313 = vpop.f32.mrb[0].mxu0
        %2314 = vmatprep.mubr.bf16.mxu0 0
        %2315 = vmatmul.mubr.bf16.gmra.mrb[0].mxu0 %v669
        %v2316 = vpop.f32.mrb[0].mxu0
        %v2317 = vadd.f32 0.0, %v2316
        %v2318 = vpop.f32.mrb[0].mxu0
        %v2319 = vpop.f32.mrb[0].mxu0
        %v2320 = vadd.f32 0.0, %v2319
        %v2321 = vpop.f32.mrb[0].mxu0
        %2322 = vmatprep.mubr.bf16.mxu0 0
        %2323 = vmatmul.mubr.bf16.gmra.mrb[0].mxu0 %v670
        %v2324 = vpop.f32.mrb[0].mxu0
        %v2325 = vadd.f32 0.0, %v2324
        %v2326 = vpop.f32.mrb[0].mxu0
        %v2327 = vpop.f32.mrb[0].mxu0
        %v2328 = vadd.f32 0.0, %v2327
        %v2329 = vpop.f32.mrb[0].mxu0
        %2330 = vdwg.mxu0
        %s2331 = scalar_lea.vmem %s4, 128
        %v2332 = vld [vmem:[%s2331] sm:$0xf]
        %v2333 = vld [vmem:[%s2331 + $0x4] sm:$0xf]
        %v2334 = vld [vmem:[%s2331 + $0x8] sm:$0xf]
        %v2335 = vld [vmem:[%s2331 + $0xc] sm:$0xf]
        %v2336 = vld [vmem:[%s2331 + $0x10] sm:$0xf]
        %v2337 = vld [vmem:[%s2331 + $0x14] sm:$0xf]
        %v2338 = vld [vmem:[%s2331 + $0x18] sm:$0xf]
        %v2339 = vld [vmem:[%s2331 + $0x1c] sm:$0xf]
        %v2340 = vld [vmem:[%s2331 + $0x20] sm:$0xf]
        %v2341 = vld [vmem:[%s2331 + $0x24] sm:$0xf]
        %v2342 = vld [vmem:[%s2331 + $0x28] sm:$0xf]
        %v2343 = vld [vmem:[%s2331 + $0x2c] sm:$0xf]
        %v2344 = vld [vmem:[%s2331 + $0x30] sm:$0xf]
        %v2345 = vld [vmem:[%s2331 + $0x34] sm:$0xf]
        %v2346 = vld [vmem:[%s2331 + $0x38] sm:$0xf]
        %v2347 = vld [vmem:[%s2331 + $0x3c] sm:$0xf]
        %v2364 = vunpack.c.l.b16 %v2332
        %v2365 = vunpack.c.l.b16 %v2333
        %v2366 = vunpack.c.l.b16 %v2334
        %v2367 = vunpack.c.l.b16 %v2335
        %v2368 = vunpack.c.l.b16 %v2336
        %v2369 = vunpack.c.l.b16 %v2337
        %v2370 = vunpack.c.l.b16 %v2338
        %v2371 = vunpack.c.l.b16 %v2339
        %v2372 = vunpack.c.l.b16 %v2340
        %v2373 = vunpack.c.l.b16 %v2341
        %v2374 = vunpack.c.l.b16 %v2342
        %v2375 = vunpack.c.l.b16 %v2343
        %v2376 = vunpack.c.l.b16 %v2344
        %v2377 = vunpack.c.l.b16 %v2345
        %v2378 = vunpack.c.l.b16 %v2346
        %v2379 = vunpack.c.l.b16 %v2347
        %v2380 = vpack.c.b16 %v2365, %v2364
        %v2381 = vpack.c.b16 %v2367, %v2366
        %v2382 = vpack.c.b16 %v2369, %v2368
        %v2383 = vpack.c.b16 %v2371, %v2370
        %v2384 = vpack.c.b16 %v2373, %v2372
        %v2385 = vpack.c.b16 %v2375, %v2374
        %v2386 = vpack.c.b16 %v2377, %v2376
        %v2387 = vpack.c.b16 %v2379, %v2378
        %2396 = vmatprep.subr.bf16.mxu0 0
        %2397 = vmatpush1.bf16.msra.mxu0 %v2380
        %2398 = vmatprep.subr.bf16.mxu0 0
        %2399 = vmatpush1.bf16.msra.mxu0 %v2381
        %2400 = vmatprep.subr.bf16.mxu0 0
        %2401 = vmatpush1.bf16.msra.mxu0 %v2382
        %2402 = vmatprep.subr.bf16.mxu0 0
        %2403 = vmatpush1.bf16.msra.mxu0 %v2383
        %2404 = vmatprep.subr.bf16.mxu0 0
        %2405 = vmatpush1.bf16.msra.mxu0 %v2384
        %2406 = vmatprep.subr.bf16.mxu0 0
        %2407 = vmatpush1.bf16.msra.mxu0 %v2385
        %2408 = vmatprep.subr.bf16.mxu0 0
        %2409 = vmatpush1.bf16.msra.mxu0 %v2386
        %2410 = vmatprep.subr.bf16.mxu0 0
        %2411 = vmatpush1.bf16.msra.mxu0 %v2387
        %2412 = vmatprep.subr.bf16.mxu0 0
        %2413 = vmatpush1.bf16.msra.mxu0 0
        %2414 = vmatprep.subr.bf16.mxu0 0
        %2415 = vmatpush1.bf16.msra.mxu0 0
        %2416 = vmatprep.subr.bf16.mxu0 0
        %2417 = vmatpush1.bf16.msra.mxu0 0
        %2418 = vmatprep.subr.bf16.mxu0 0
        %2419 = vmatpush1.bf16.msra.mxu0 0
        %2420 = vmatprep.subr.bf16.mxu0 0
        %2421 = vmatpush1.bf16.msra.mxu0 0
        %2422 = vmatprep.subr.bf16.mxu0 0
        %2423 = vmatpush1.bf16.msra.mxu0 0
        %2424 = vmatprep.subr.bf16.mxu0 0
        %2425 = vmatpush1.bf16.msra.mxu0 0
        %2426 = vmatprep.subr.bf16.mxu0 0
        %2427 = vmatpush1.bf16.msra.mxu0 0
        %2428 = vmatprep.mubr.bf16.mxu0 0
        %2429 = vmatmul.mubr.bf16.gmra.mrb[0].mxu0 %v667
        %v2430 = vpop.f32.mrb[0].mxu0
        %v2431 = vadd.f32 0.0, %v2430
        %v2432 = vpop.f32.mrb[0].mxu0
        %v2433 = vpop.f32.mrb[0].mxu0
        %v2434 = vadd.f32 0.0, %v2433
        %v2435 = vpop.f32.mrb[0].mxu0
        %2436 = vmatprep.mubr.bf16.mxu0 0
        %2437 = vmatmul.mubr.bf16.gmra.mrb[0].mxu0 %v668
        %v2438 = vpop.f32.mrb[0].mxu0
        %v2439 = vadd.f32 0.0, %v2438
        %v2440 = vpop.f32.mrb[0].mxu0
        %v2441 = vpop.f32.mrb[0].mxu0
        %v2442 = vadd.f32 0.0, %v2441
        %v2443 = vpop.f32.mrb[0].mxu0
        %2444 = vmatprep.mubr.bf16.mxu0 0
        %2445 = vmatmul.mubr.bf16.gmra.mrb[0].mxu0 %v669
        %v2446 = vpop.f32.mrb[0].mxu0
        %v2447 = vadd.f32 0.0, %v2446
        %v2448 = vpop.f32.mrb[0].mxu0
        %v2449 = vpop.f32.mrb[0].mxu0
        %v2450 = vadd.f32 0.0, %v2449
        %v2451 = vpop.f32.mrb[0].mxu0
        %2452 = vmatprep.mubr.bf16.mxu0 0
        %2453 = vmatmul.mubr.bf16.gmra.mrb[0].mxu0 %v670
        %v2454 = vpop.f32.mrb[0].mxu0
        %v2455 = vadd.f32 0.0, %v2454
        %v2456 = vpop.f32.mrb[0].mxu0
        %v2457 = vpop.f32.mrb[0].mxu0
        %v2458 = vadd.f32 0.0, %v2457
        %v2459 = vpop.f32.mrb[0].mxu0
        %2460 = vdwg.mxu0
        %s2461 = scalar_lea.vmem %s5, 128
        %v2462 = vld [vmem:[%s2461] sm:$0xf]
        %v2463 = vld [vmem:[%s2461 + $0x4] sm:$0xf]
        %v2464 = vld [vmem:[%s2461 + $0x8] sm:$0xf]
        %v2465 = vld [vmem:[%s2461 + $0xc] sm:$0xf]
        %v2466 = vld [vmem:[%s2461 + $0x10] sm:$0xf]
        %v2467 = vld [vmem:[%s2461 + $0x14] sm:$0xf]
        %v2468 = vld [vmem:[%s2461 + $0x18] sm:$0xf]
        %v2469 = vld [vmem:[%s2461 + $0x1c] sm:$0xf]
        %v2470 = vld [vmem:[%s2461 + $0x20] sm:$0xf]
        %v2471 = vld [vmem:[%s2461 + $0x24] sm:$0xf]
        %v2472 = vld [vmem:[%s2461 + $0x28] sm:$0xf]
        %v2473 = vld [vmem:[%s2461 + $0x2c] sm:$0xf]
        %v2474 = vld [vmem:[%s2461 + $0x30] sm:$0xf]
        %v2475 = vld [vmem:[%s2461 + $0x34] sm:$0xf]
        %v2476 = vld [vmem:[%s2461 + $0x38] sm:$0xf]
        %v2477 = vld [vmem:[%s2461 + $0x3c] sm:$0xf]
        %v2494 = vunpack.c.l.b16 %v2462
        %v2495 = vunpack.c.l.b16 %v2463
        %v2496 = vunpack.c.l.b16 %v2464
        %v2497 = vunpack.c.l.b16 %v2465
        %v2498 = vunpack.c.l.b16 %v2466
        %v2499 = vunpack.c.l.b16 %v2467
        %v2500 = vunpack.c.l.b16 %v2468
        %v2501 = vunpack.c.l.b16 %v2469
        %v2502 = vunpack.c.l.b16 %v2470
        %v2503 = vunpack.c.l.b16 %v2471
        %v2504 = vunpack.c.l.b16 %v2472
        %v2505 = vunpack.c.l.b16 %v2473
        %v2506 = vunpack.c.l.b16 %v2474
        %v2507 = vunpack.c.l.b16 %v2475
        %v2508 = vunpack.c.l.b16 %v2476
        %v2509 = vunpack.c.l.b16 %v2477
        %v2510 = vpack.c.b16 %v2495, %v2494
        %v2511 = vpack.c.b16 %v2497, %v2496
        %v2512 = vpack.c.b16 %v2499, %v2498
        %v2513 = vpack.c.b16 %v2501, %v2500
        %v2514 = vpack.c.b16 %v2503, %v2502
        %v2515 = vpack.c.b16 %v2505, %v2504
        %v2516 = vpack.c.b16 %v2507, %v2506
        %v2517 = vpack.c.b16 %v2509, %v2508
        %2526 = vmatprep.subr.bf16.mxu0 0
        %2527 = vmatpush1.bf16.msra.mxu0 %v2510
        %2528 = vmatprep.subr.bf16.mxu0 0
        %2529 = vmatpush1.bf16.msra.mxu0 %v2511
        %2530 = vmatprep.subr.bf16.mxu0 0
        %2531 = vmatpush1.bf16.msra.mxu0 %v2512
        %2532 = vmatprep.subr.bf16.mxu0 0
        %2533 = vmatpush1.bf16.msra.mxu0 %v2513
        %2534 = vmatprep.subr.bf16.mxu0 0
        %2535 = vmatpush1.bf16.msra.mxu0 %v2514
        %2536 = vmatprep.subr.bf16.mxu0 0
        %2537 = vmatpush1.bf16.msra.mxu0 %v2515
        %2538 = vmatprep.subr.bf16.mxu0 0
        %2539 = vmatpush1.bf16.msra.mxu0 %v2516
        %2540 = vmatprep.subr.bf16.mxu0 0
        %2541 = vmatpush1.bf16.msra.mxu0 %v2517
        %2542 = vmatprep.subr.bf16.mxu0 0
        %2543 = vmatpush1.bf16.msra.mxu0 0
        %2544 = vmatprep.subr.bf16.mxu0 0
        %2545 = vmatpush1.bf16.msra.mxu0 0
        %2546 = vmatprep.subr.bf16.mxu0 0
        %2547 = vmatpush1.bf16.msra.mxu0 0
        %2548 = vmatprep.subr.bf16.mxu0 0
        %2549 = vmatpush1.bf16.msra.mxu0 0
        %2550 = vmatprep.subr.bf16.mxu0 0
        %2551 = vmatpush1.bf16.msra.mxu0 0
        %2552 = vmatprep.subr.bf16.mxu0 0
        %2553 = vmatpush1.bf16.msra.mxu0 0
        %2554 = vmatprep.subr.bf16.mxu0 0
        %2555 = vmatpush1.bf16.msra.mxu0 0
        %2556 = vmatprep.subr.bf16.mxu0 0
        %2557 = vmatpush1.bf16.msra.mxu0 0
        %2558 = vmatprep.mubr.bf16.mxu0 0
        %2559 = vmatmul.mubr.bf16.gmra.mrb[0].mxu0 %v667
        %v2560 = vpop.f32.mrb[0].mxu0
        %v2561 = vadd.f32 0.0, %v2560
        %v2562 = vpop.f32.mrb[0].mxu0
        %v2563 = vpop.f32.mrb[0].mxu0
        %v2564 = vadd.f32 0.0, %v2563
        %v2565 = vpop.f32.mrb[0].mxu0
        %2566 = vmatprep.mubr.bf16.mxu0 0
        %2567 = vmatmul.mubr.bf16.gmra.mrb[0].mxu0 %v668
        %v2568 = vpop.f32.mrb[0].mxu0
        %v2569 = vadd.f32 0.0, %v2568
        %v2570 = vpop.f32.mrb[0].mxu0
        %v2571 = vpop.f32.mrb[0].mxu0
        %v2572 = vadd.f32 0.0, %v2571
        %v2573 = vpop.f32.mrb[0].mxu0
        %2574 = vmatprep.mubr.bf16.mxu0 0
        %2575 = vmatmul.mubr.bf16.gmra.mrb[0].mxu0 %v669
        %v2576 = vpop.f32.mrb[0].mxu0
        %v2577 = vadd.f32 0.0, %v2576
        %v2578 = vpop.f32.mrb[0].mxu0
        %v2579 = vpop.f32.mrb[0].mxu0
        %v2580 = vadd.f32 0.0, %v2579
        %v2581 = vpop.f32.mrb[0].mxu0
        %2582 = vmatprep.mubr.bf16.mxu0 0
        %2583 = vmatmul.mubr.bf16.gmra.mrb[0].mxu0 %v670
        %v2584 = vpop.f32.mrb[0].mxu0
        %v2585 = vadd.f32 0.0, %v2584
        %v2586 = vpop.f32.mrb[0].mxu0
        %v2587 = vpop.f32.mrb[0].mxu0
        %v2588 = vadd.f32 0.0, %v2587
        %v2589 = vpop.f32.mrb[0].mxu0
        %2590 = vdwg.mxu0
        %v2591 = vpack.c.bf16 %v2304, %v2301
        %v2592 = vpack.c.bf16 %v2312, %v2309
        %v2593 = vpack.c.bf16 %v2320, %v2317
        %v2594 = vpack.c.bf16 %v2328, %v2325
        %v2595 = vpack.c.bf16 %v2434, %v2431
        %v2596 = vpack.c.bf16 %v2442, %v2439
        %v2597 = vpack.c.bf16 %v2450, %v2447
        %v2598 = vpack.c.bf16 %v2458, %v2455
        %v2600 = vsel %vm1066, %v2591, 0
        %v2603 = vsel %vm1066, %v2592, 0
        %v2606 = vsel %vm1066, %v2593, 0
        %v2609 = vsel %vm1066, %v2594, 0
        %v2612 = vsel %vm1066, %v2595, 0
        %v2615 = vsel %vm1066, %v2596, 0
        %v2618 = vsel %vm1066, %v2597, 0
        %v2621 = vsel %vm1066, %v2598, 0
        %2623 = vmatprep.subr.bf16.mxu0 0
        %2624 = vmatpush1.bf16.xpose.msra.mxu0 %v2612
        %2625 = vmatprep.subr.bf16.mxu0 0
        %2626 = vmatpush1.bf16.xpose.msra.mxu0 %v2615
        %2627 = vmatprep.subr.bf16.mxu0 0
        %2628 = vmatpush1.bf16.xpose.msra.mxu0 %v2618
        %2629 = vmatprep.subr.bf16.mxu0 0
        %2630 = vmatpush1.bf16.xpose.msra.mxu0 %v2621
        %2631 = vmatprep.subr.bf16.mxu0 0
        %2632 = vmatpush1.bf16.xpose.msra.mxu0 0
        %2633 = vmatprep.subr.bf16.mxu0 0
        %2634 = vmatpush1.bf16.xpose.msra.mxu0 0
        %2635 = vmatprep.subr.bf16.mxu0 0
        %2636 = vmatpush1.bf16.xpose.msra.mxu0 0
        %2637 = vmatprep.subr.bf16.mxu0 0
        %2638 = vmatpush1.bf16.xpose.msra.mxu0 0
        %2639 = vmatprep.subr.bf16.mxu0 0
        %2640 = vmatpush1.bf16.xpose.msra.mxu0 0
        %2641 = vmatprep.subr.bf16.mxu0 0
        %2642 = vmatpush1.bf16.xpose.msra.mxu0 0
        %2643 = vmatprep.subr.bf16.mxu0 0
        %2644 = vmatpush1.bf16.xpose.msra.mxu0 0
        %2645 = vmatprep.subr.bf16.mxu0 0
        %2646 = vmatpush1.bf16.xpose.msra.mxu0 0
        %2647 = vmatprep.subr.bf16.mxu0 0
        %2648 = vmatpush1.bf16.xpose.msra.mxu0 0
        %2649 = vmatprep.subr.bf16.mxu0 0
        %2650 = vmatpush1.bf16.xpose.msra.mxu0 0
        %2651 = vmatprep.subr.bf16.mxu0 0
        %2652 = vmatpush1.bf16.xpose.msra.mxu0 0
        %2653 = vmatprep.subr.bf16.mxu0 0
        %2654 = vmatpush1.bf16.xpose.msra.mxu0 0
        %2655 = vmatprep.mubr.bf16.mxu0 0
        %2656 = vmatmul.mubr.bf16.gmra.mrb[0].mxu0 %v2600
        %v2657 = vpop.f32.mrb[0].mxu0
        %v2658 = vadd.f32 0.0, %v2657
        %v2659 = vpop.f32.mrb[0].mxu0
        %v2660 = vpop.f32.mrb[0].mxu0
        %v2661 = vadd.f32 0.0, %v2660
        %v2662 = vpop.f32.mrb[0].mxu0
        %2663 = vmatprep.mubr.bf16.mxu0 0
        %2664 = vmatmul.mubr.bf16.gmra.mrb[0].mxu0 %v2603
        %v2665 = vpop.f32.mrb[0].mxu0
        %v2666 = vadd.f32 0.0, %v2665
        %v2667 = vpop.f32.mrb[0].mxu0
        %v2668 = vpop.f32.mrb[0].mxu0
        %v2669 = vadd.f32 0.0, %v2668
        %v2670 = vpop.f32.mrb[0].mxu0
        %2671 = vmatprep.mubr.bf16.mxu0 0
        %2672 = vmatmul.mubr.bf16.gmra.mrb[0].mxu0 %v2606
        %v2673 = vpop.f32.mrb[0].mxu0
        %v2674 = vadd.f32 0.0, %v2673
        %v2675 = vpop.f32.mrb[0].mxu0
        %v2676 = vpop.f32.mrb[0].mxu0
        %v2677 = vadd.f32 0.0, %v2676
        %v2678 = vpop.f32.mrb[0].mxu0
        %2679 = vmatprep.mubr.bf16.mxu0 0
        %2680 = vmatmul.mubr.bf16.gmra.mrb[0].mxu0 %v2609
        %v2681 = vpop.f32.mrb[0].mxu0
        %v2682 = vadd.f32 0.0, %v2681
        %v2683 = vpop.f32.mrb[0].mxu0
        %v2684 = vpop.f32.mrb[0].mxu0
        %v2685 = vadd.f32 0.0, %v2684
        %v2686 = vpop.f32.mrb[0].mxu0
        %2687 = vdwg.mxu0
        %v2688 = vsel %vm540, %v2658, -1e+30
        %v2689 = vsel %vm541, %v2661, -1e+30
        %v2690 = vsel %vm542, %v2666, -1e+30
        %v2691 = vsel %vm543, %v2669, -1e+30
        %v2692 = vsel %vm544, %v2674, -1e+30
        %v2693 = vsel %vm545, %v2677, -1e+30
        %v2694 = vsel %vm546, %v2682, -1e+30
        %v2695 = vsel %vm547, %v2685, -1e+30
        %v2696 = vsel %vm1164, %v2688, -inf
        %2697 = vmax.xlane.f32.xlu0 %v2696
        %v2698 = vpop.xlane.xlu0 %2697
        %v2699 = vsel %vm1164, %v2689, -inf
        %2700 = vmax.xlane.f32.xlu0 %v2699
        %v2701 = vpop.xlane.xlu0 %2700
        %v2702 = vsel %vm1164, %v2690, -inf
        %2703 = vmax.xlane.f32.xlu0 %v2702
        %v2704 = vpop.xlane.xlu0 %2703
        %v2705 = vsel %vm1164, %v2691, -inf
        %2706 = vmax.xlane.f32.xlu0 %v2705
        %v2707 = vpop.xlane.xlu0 %2706
        %v2708 = vsel %vm1164, %v2692, -inf
        %2709 = vmax.xlane.f32.xlu0 %v2708
        %v2710 = vpop.xlane.xlu0 %2709
        %v2711 = vsel %vm1164, %v2693, -inf
        %2712 = vmax.xlane.f32.xlu0 %v2711
        %v2713 = vpop.xlane.xlu0 %2712
        %v2714 = vsel %vm1164, %v2694, -inf
        %2715 = vmax.xlane.f32.xlu0 %v2714
        %v2716 = vpop.xlane.xlu0 %2715
        %v2717 = vsel %vm1164, %v2695, -inf
        %2718 = vmax.xlane.f32.xlu0 %v2717
        %v2719 = vpop.xlane.xlu0 %2718
        %v2720 = vsub.f32 %v2688, %v2698
        %v2721 = vsub.f32 %v2689, %v2701
        %v2722 = vsub.f32 %v2690, %v2704
        %v2723 = vsub.f32 %v2691, %v2707
        %v2724 = vsub.f32 %v2692, %v2710
        %v2725 = vsub.f32 %v2693, %v2713
        %v2726 = vsub.f32 %v2694, %v2716
        %v2727 = vsub.f32 %v2695, %v2719
        %v2728 = vmul.f32 %v2720, 1.442695
        %v2729 = vpow.pop %v2728
        %v2730 = vmul.f32 %v2721, 1.442695
        %v2731 = vpow.pop %v2730
        %v2732 = vmul.f32 %v2722, 1.442695
        %v2733 = vpow.pop %v2732
        %v2734 = vmul.f32 %v2723, 1.442695
        %v2735 = vpow.pop %v2734
        %v2736 = vmul.f32 %v2724, 1.442695
        %v2737 = vpow.pop %v2736
        %v2738 = vmul.f32 %v2725, 1.442695
        %v2739 = vpow.pop %v2738
        %v2740 = vmul.f32 %v2726, 1.442695
        %v2741 = vpow.pop %v2740
        %v2742 = vmul.f32 %v2727, 1.442695
        %v2743 = vpow.pop %v2742
        %v2744 = vsel %vm1164, %v2729, 0.0
        %2745 = vadd.xlane.f32.xlu0 %v2744
        %v2746 = vpop.xlane.xlu0 %2745
        %v2747 = vsel %vm1164, %v2731, 0.0
        %2748 = vadd.xlane.f32.xlu0 %v2747
        %v2749 = vpop.xlane.xlu0 %2748
        %v2750 = vsel %vm1164, %v2733, 0.0
        %2751 = vadd.xlane.f32.xlu0 %v2750
        %v2752 = vpop.xlane.xlu0 %2751
        %v2753 = vsel %vm1164, %v2735, 0.0
        %2754 = vadd.xlane.f32.xlu0 %v2753
        %v2755 = vpop.xlane.xlu0 %2754
        %v2756 = vsel %vm1164, %v2737, 0.0
        %2757 = vadd.xlane.f32.xlu0 %v2756
        %v2758 = vpop.xlane.xlu0 %2757
        %v2759 = vsel %vm1164, %v2739, 0.0
        %2760 = vadd.xlane.f32.xlu0 %v2759
        %v2761 = vpop.xlane.xlu0 %2760
        %v2762 = vsel %vm1164, %v2741, 0.0
        %2763 = vadd.xlane.f32.xlu0 %v2762
        %v2764 = vpop.xlane.xlu0 %2763
        %v2765 = vsel %vm1164, %v2743, 0.0
        %2766 = vadd.xlane.f32.xlu0 %v2765
        %v2767 = vpop.xlane.xlu0 %2766
        %v2768 = vrcp.pop %v2746
        %v2769 = vrcp.pop %v2749
        %v2770 = vrcp.pop %v2752
        %v2771 = vrcp.pop %v2755
        %v2772 = vrcp.pop %v2758
        %v2773 = vrcp.pop %v2761
        %v2774 = vrcp.pop %v2764
        %v2775 = vrcp.pop %v2767
        %v2776 = vmul.f32 %v2729, %v2768
        %v2777 = vmul.f32 %v2731, %v2769
        %v2778 = vmul.f32 %v2733, %v2770
        %v2779 = vmul.f32 %v2735, %v2771
        %v2780 = vmul.f32 %v2737, %v2772
        %v2781 = vmul.f32 %v2739, %v2773
        %v2782 = vmul.f32 %v2741, %v2774
        %v2783 = vmul.f32 %v2743, %v2775
        %v2784 = vpack.c.bf16 %v2777, %v2776
        %v2785 = vpack.c.bf16 %v2779, %v2778
        %v2786 = vpack.c.bf16 %v2781, %v2780
        %v2787 = vpack.c.bf16 %v2783, %v2782
        %v2788 = vpack.c.bf16 %v2564, %v2561
        %v2789 = vpack.c.bf16 %v2572, %v2569
        %v2790 = vpack.c.bf16 %v2580, %v2577
        %v2791 = vpack.c.bf16 %v2588, %v2585
        %v2793 = vsel %vm1164, %v2784, 0
        %v2796 = vsel %vm1164, %v2785, 0
        %v2799 = vsel %vm1164, %v2786, 0
        %v2802 = vsel %vm1164, %v2787, 0
        %2804 = vmatprep.subr.bf16.mxu0 0
        %2805 = vmatpush1.bf16.msra.mxu0 %v2788
        %2806 = vmatprep.subr.bf16.mxu0 0
        %2807 = vmatpush1.bf16.msra.mxu0 %v2789
        %2808 = vmatprep.subr.bf16.mxu0 0
        %2809 = vmatpush1.bf16.msra.mxu0 %v2790
        %2810 = vmatprep.subr.bf16.mxu0 0
        %2811 = vmatpush1.bf16.msra.mxu0 %v2791
        %2812 = vmatprep.subr.bf16.mxu0 0
        %2813 = vmatpush1.bf16.msra.mxu0 0
        %2814 = vmatprep.subr.bf16.mxu0 0
        %2815 = vmatpush1.bf16.msra.mxu0 0
        %2816 = vmatprep.subr.bf16.mxu0 0
        %2817 = vmatpush1.bf16.msra.mxu0 0
        %2818 = vmatprep.subr.bf16.mxu0 0
        %2819 = vmatpush1.bf16.msra.mxu0 0
        %2820 = vmatprep.subr.bf16.mxu0 0
        %2821 = vmatpush1.bf16.msra.mxu0 0
        %2822 = vmatprep.subr.bf16.mxu0 0
        %2823 = vmatpush1.bf16.msra.mxu0 0
        %2824 = vmatprep.subr.bf16.mxu0 0
        %2825 = vmatpush1.bf16.msra.mxu0 0
        %2826 = vmatprep.subr.bf16.mxu0 0
        %2827 = vmatpush1.bf16.msra.mxu0 0
        %2828 = vmatprep.subr.bf16.mxu0 0
        %2829 = vmatpush1.bf16.msra.mxu0 0
        %2830 = vmatprep.subr.bf16.mxu0 0
        %2831 = vmatpush1.bf16.msra.mxu0 0
        %2832 = vmatprep.subr.bf16.mxu0 0
        %2833 = vmatpush1.bf16.msra.mxu0 0
        %2834 = vmatprep.subr.bf16.mxu0 0
        %2835 = vmatpush1.bf16.msra.mxu0 0
        %2836 = vmatprep.mubr.bf16.mxu0 0
        %2837 = vmatmul.mubr.bf16.gmra.mrb[0].mxu0 %v2793
        %v2838 = vpop.f32.mrb[0].mxu0
        %v2839 = vadd.f32 0.0, %v2838
        %v2840 = vpop.f32.mrb[0].mxu0
        %v2841 = vpop.f32.mrb[0].mxu0
        %v2842 = vadd.f32 0.0, %v2841
        %v2843 = vpop.f32.mrb[0].mxu0
        %2844 = vmatprep.mubr.bf16.mxu0 0
        %2845 = vmatmul.mubr.bf16.gmra.mrb[0].mxu0 %v2796
        %v2846 = vpop.f32.mrb[0].mxu0
        %v2847 = vadd.f32 0.0, %v2846
        %v2848 = vpop.f32.mrb[0].mxu0
        %v2849 = vpop.f32.mrb[0].mxu0
        %v2850 = vadd.f32 0.0, %v2849
        %v2851 = vpop.f32.mrb[0].mxu0
        %2852 = vmatprep.mubr.bf16.mxu0 0
        %2853 = vmatmul.mubr.bf16.gmra.mrb[0].mxu0 %v2799
        %v2854 = vpop.f32.mrb[0].mxu0
        %v2855 = vadd.f32 0.0, %v2854
        %v2856 = vpop.f32.mrb[0].mxu0
        %v2857 = vpop.f32.mrb[0].mxu0
        %v2858 = vadd.f32 0.0, %v2857
        %v2859 = vpop.f32.mrb[0].mxu0
        %2860 = vmatprep.mubr.bf16.mxu0 0
        %2861 = vmatmul.mubr.bf16.gmra.mrb[0].mxu0 %v2802
        %v2862 = vpop.f32.mrb[0].mxu0
        %v2863 = vadd.f32 0.0, %v2862
        %v2864 = vpop.f32.mrb[0].mxu0
        %v2865 = vpop.f32.mrb[0].mxu0
        %v2866 = vadd.f32 0.0, %v2865
        %v2867 = vpop.f32.mrb[0].mxu0
        %2868 = vdwg.mxu0
        %v2869 = vpack.c.bf16 %v2842, %v2839
        %v2870 = vpack.c.bf16 %v2850, %v2847
        %v2871 = vpack.c.bf16 %v2858, %v2855
        %v2872 = vpack.c.bf16 %v2866, %v2863
        %s2873 = scalar_lea.vmem %s6, 32
        %v2874 = vld [vmem:[%s2873] sm:$0xf]
        %v2875 = vld [vmem:[%s2873 + $0x4] sm:$0xf]
        %v2876 = vld [vmem:[%s2873 + $0x8] sm:$0xf]
        %v2877 = vld [vmem:[%s2873 + $0xc] sm:$0xf]
        %v2882 = vunpack.c.l.b16 %v2874
        %v2883 = vunpack.c.l.b16 %v2875
        %v2884 = vunpack.c.l.b16 %v2876
        %v2885 = vunpack.c.l.b16 %v2877
        %v2886 = vpack.c.b16 %v2883, %v2882
        %v2887 = vpack.c.b16 %v2885, %v2884
        %v2891 = vsel %vm1066, %v2869, 0
        %v2894 = vsel %vm1066, %v2870, 0
        %v2897 = vsel %vm1066, %v2871, 0
        %v2900 = vsel %vm1066, %v2872, 0
        %2902 = vmatprep.subr.bf16.mxu0 0
        %2903 = vmatpush1.bf16.msra.mxu0 %v2886
        %2904 = vmatprep.subr.bf16.mxu0 0
        %2905 = vmatpush1.bf16.msra.mxu0 %v2887
        %2906 = vmatprep.subr.bf16.mxu0 0
        %2907 = vmatpush1.bf16.msra.mxu0 0
        %2908 = vmatprep.subr.bf16.mxu0 0
        %2909 = vmatpush1.bf16.msra.mxu0 0
        %2910 = vmatprep.subr.bf16.mxu0 0
        %2911 = vmatpush1.bf16.msra.mxu0 0
        %2912 = vmatprep.subr.bf16.mxu0 0
        %2913 = vmatpush1.bf16.msra.mxu0 0
        %2914 = vmatprep.subr.bf16.mxu0 0
        %2915 = vmatpush1.bf16.msra.mxu0 0
        %2916 = vmatprep.subr.bf16.mxu0 0
        %2917 = vmatpush1.bf16.msra.mxu0 0
        %2918 = vmatprep.subr.bf16.mxu0 0
        %2919 = vmatpush1.bf16.msra.mxu0 0
        %2920 = vmatprep.subr.bf16.mxu0 0
        %2921 = vmatpush1.bf16.msra.mxu0 0
        %2922 = vmatprep.subr.bf16.mxu0 0
        %2923 = vmatpush1.bf16.msra.mxu0 0
        %2924 = vmatprep.subr.bf16.mxu0 0
        %2925 = vmatpush1.bf16.msra.mxu0 0
        %2926 = vmatprep.subr.bf16.mxu0 0
        %2927 = vmatpush1.bf16.msra.mxu0 0
        %2928 = vmatprep.subr.bf16.mxu0 0
        %2929 = vmatpush1.bf16.msra.mxu0 0
        %2930 = vmatprep.subr.bf16.mxu0 0
        %2931 = vmatpush1.bf16.msra.mxu0 0
        %2932 = vmatprep.subr.bf16.mxu0 0
        %2933 = vmatpush1.bf16.msra.mxu0 0
        %2934 = vmatprep.mubr.bf16.mxu0 0
        %2935 = vmatmul.mubr.bf16.gmra.mrb[0].mxu0 %v2891
        %v2936 = vpop.f32.mrb[0].mxu0
        %v2937 = vadd.f32 0.0, %v2936
        %v2938 = vpop.f32.mrb[0].mxu0
        %v2939 = vpop.f32.mrb[0].mxu0
        %v2940 = vadd.f32 0.0, %v2939
        %v2941 = vpop.f32.mrb[0].mxu0
        %2942 = vmatprep.mubr.bf16.mxu0 0
        %2943 = vmatmul.mubr.bf16.gmra.mrb[0].mxu0 %v2894
        %v2944 = vpop.f32.mrb[0].mxu0
        %v2945 = vadd.f32 0.0, %v2944
        %v2946 = vpop.f32.mrb[0].mxu0
        %v2947 = vpop.f32.mrb[0].mxu0
        %v2948 = vadd.f32 0.0, %v2947
        %v2949 = vpop.f32.mrb[0].mxu0
        %2950 = vmatprep.mubr.bf16.mxu0 0
        %2951 = vmatmul.mubr.bf16.gmra.mrb[0].mxu0 %v2897
        %v2952 = vpop.f32.mrb[0].mxu0
        %v2953 = vadd.f32 0.0, %v2952
        %v2954 = vpop.f32.mrb[0].mxu0
        %v2955 = vpop.f32.mrb[0].mxu0
        %v2956 = vadd.f32 0.0, %v2955
        %v2957 = vpop.f32.mrb[0].mxu0
        %2958 = vmatprep.mubr.bf16.mxu0 0
        %2959 = vmatmul.mubr.bf16.gmra.mrb[0].mxu0 %v2900
        %v2960 = vpop.f32.mrb[0].mxu0
        %v2961 = vadd.f32 0.0, %v2960
        %v2962 = vpop.f32.mrb[0].mxu0
        %v2963 = vpop.f32.mrb[0].mxu0
        %v2964 = vadd.f32 0.0, %v2963
        %v2965 = vpop.f32.mrb[0].mxu0
        %2966 = vdwg.mxu0
        %v2967 = vadd.f32 %v2171, %v2937
        %v2968 = vadd.f32 %v2174, %v2940
        %v2969 = vadd.f32 %v2179, %v2945
        %v2970 = vadd.f32 %v2182, %v2948
        %v2971 = vadd.f32 %v2187, %v2953
        %v2972 = vadd.f32 %v2190, %v2956
        %v2973 = vadd.f32 %v2195, %v2961
        %v2974 = vadd.f32 %v2198, %v2964
        %s2975 = scalar_lea.vmem %s3, 192
        %v2976 = vld [vmem:[%s2975] sm:$0xf]
        %v2977 = vld [vmem:[%s2975 + $0x4] sm:$0xf]
        %v2978 = vld [vmem:[%s2975 + $0x8] sm:$0xf]
        %v2979 = vld [vmem:[%s2975 + $0xc] sm:$0xf]
        %v2980 = vld [vmem:[%s2975 + $0x10] sm:$0xf]
        %v2981 = vld [vmem:[%s2975 + $0x14] sm:$0xf]
        %v2982 = vld [vmem:[%s2975 + $0x18] sm:$0xf]
        %v2983 = vld [vmem:[%s2975 + $0x1c] sm:$0xf]
        %v2984 = vld [vmem:[%s2975 + $0x20] sm:$0xf]
        %v2985 = vld [vmem:[%s2975 + $0x24] sm:$0xf]
        %v2986 = vld [vmem:[%s2975 + $0x28] sm:$0xf]
        %v2987 = vld [vmem:[%s2975 + $0x2c] sm:$0xf]
        %v2988 = vld [vmem:[%s2975 + $0x30] sm:$0xf]
        %v2989 = vld [vmem:[%s2975 + $0x34] sm:$0xf]
        %v2990 = vld [vmem:[%s2975 + $0x38] sm:$0xf]
        %v2991 = vld [vmem:[%s2975 + $0x3c] sm:$0xf]
        %v3008 = vunpack.c.l.b16 %v2976
        %v3009 = vunpack.c.l.b16 %v2977
        %v3010 = vunpack.c.l.b16 %v2978
        %v3011 = vunpack.c.l.b16 %v2979
        %v3012 = vunpack.c.l.b16 %v2980
        %v3013 = vunpack.c.l.b16 %v2981
        %v3014 = vunpack.c.l.b16 %v2982
        %v3015 = vunpack.c.l.b16 %v2983
        %v3016 = vunpack.c.l.b16 %v2984
        %v3017 = vunpack.c.l.b16 %v2985
        %v3018 = vunpack.c.l.b16 %v2986
        %v3019 = vunpack.c.l.b16 %v2987
        %v3020 = vunpack.c.l.b16 %v2988
        %v3021 = vunpack.c.l.b16 %v2989
        %v3022 = vunpack.c.l.b16 %v2990
        %v3023 = vunpack.c.l.b16 %v2991
        %v3024 = vpack.c.b16 %v3009, %v3008
        %v3025 = vpack.c.b16 %v3011, %v3010
        %v3026 = vpack.c.b16 %v3013, %v3012
        %v3027 = vpack.c.b16 %v3015, %v3014
        %v3028 = vpack.c.b16 %v3017, %v3016
        %v3029 = vpack.c.b16 %v3019, %v3018
        %v3030 = vpack.c.b16 %v3021, %v3020
        %v3031 = vpack.c.b16 %v3023, %v3022
        %3040 = vmatprep.subr.bf16.mxu0 0
        %3041 = vmatpush1.bf16.msra.mxu0 %v3024
        %3042 = vmatprep.subr.bf16.mxu0 0
        %3043 = vmatpush1.bf16.msra.mxu0 %v3025
        %3044 = vmatprep.subr.bf16.mxu0 0
        %3045 = vmatpush1.bf16.msra.mxu0 %v3026
        %3046 = vmatprep.subr.bf16.mxu0 0
        %3047 = vmatpush1.bf16.msra.mxu0 %v3027
        %3048 = vmatprep.subr.bf16.mxu0 0
        %3049 = vmatpush1.bf16.msra.mxu0 %v3028
        %3050 = vmatprep.subr.bf16.mxu0 0
        %3051 = vmatpush1.bf16.msra.mxu0 %v3029
        %3052 = vmatprep.subr.bf16.mxu0 0
        %3053 = vmatpush1.bf16.msra.mxu0 %v3030
        %3054 = vmatprep.subr.bf16.mxu0 0
        %3055 = vmatpush1.bf16.msra.mxu0 %v3031
        %3056 = vmatprep.subr.bf16.mxu0 0
        %3057 = vmatpush1.bf16.msra.mxu0 0
        %3058 = vmatprep.subr.bf16.mxu0 0
        %3059 = vmatpush1.bf16.msra.mxu0 0
        %3060 = vmatprep.subr.bf16.mxu0 0
        %3061 = vmatpush1.bf16.msra.mxu0 0
        %3062 = vmatprep.subr.bf16.mxu0 0
        %3063 = vmatpush1.bf16.msra.mxu0 0
        %3064 = vmatprep.subr.bf16.mxu0 0
        %3065 = vmatpush1.bf16.msra.mxu0 0
        %3066 = vmatprep.subr.bf16.mxu0 0
        %3067 = vmatpush1.bf16.msra.mxu0 0
        %3068 = vmatprep.subr.bf16.mxu0 0
        %3069 = vmatpush1.bf16.msra.mxu0 0
        %3070 = vmatprep.subr.bf16.mxu0 0
        %3071 = vmatpush1.bf16.msra.mxu0 0
        %3072 = vmatprep.mubr.bf16.mxu0 0
        %3073 = vmatmul.mubr.bf16.gmra.mrb[0].mxu0 %v667
        %v3074 = vpop.f32.mrb[0].mxu0
        %v3075 = vadd.f32 0.0, %v3074
        %v3076 = vpop.f32.mrb[0].mxu0
        %v3077 = vpop.f32.mrb[0].mxu0
        %v3078 = vadd.f32 0.0, %v3077
        %v3079 = vpop.f32.mrb[0].mxu0
        %3080 = vmatprep.mubr.bf16.mxu0 0
        %3081 = vmatmul.mubr.bf16.gmra.mrb[0].mxu0 %v668
        %v3082 = vpop.f32.mrb[0].mxu0
        %v3083 = vadd.f32 0.0, %v3082
        %v3084 = vpop.f32.mrb[0].mxu0
        %v3085 = vpop.f32.mrb[0].mxu0
        %v3086 = vadd.f32 0.0, %v3085
        %v3087 = vpop.f32.mrb[0].mxu0
        %3088 = vmatprep.mubr.bf16.mxu0 0
        %3089 = vmatmul.mubr.bf16.gmra.mrb[0].mxu0 %v669
        %v3090 = vpop.f32.mrb[0].mxu0
        %v3091 = vadd.f32 0.0, %v3090
        %v3092 = vpop.f32.mrb[0].mxu0
        %v3093 = vpop.f32.mrb[0].mxu0
        %v3094 = vadd.f32 0.0, %v3093
        %v3095 = vpop.f32.mrb[0].mxu0
        %3096 = vmatprep.mubr.bf16.mxu0 0
        %3097 = vmatmul.mubr.bf16.gmra.mrb[0].mxu0 %v670
        %v3098 = vpop.f32.mrb[0].mxu0
        %v3099 = vadd.f32 0.0, %v3098
        %v3100 = vpop.f32.mrb[0].mxu0
        %v3101 = vpop.f32.mrb[0].mxu0
        %v3102 = vadd.f32 0.0, %v3101
        %v3103 = vpop.f32.mrb[0].mxu0
        %3104 = vdwg.mxu0
        %s3105 = scalar_lea.vmem %s4, 192
        %v3106 = vld [vmem:[%s3105] sm:$0xf]
        %v3107 = vld [vmem:[%s3105 + $0x4] sm:$0xf]
        %v3108 = vld [vmem:[%s3105 + $0x8] sm:$0xf]
        %v3109 = vld [vmem:[%s3105 + $0xc] sm:$0xf]
        %v3110 = vld [vmem:[%s3105 + $0x10] sm:$0xf]
        %v3111 = vld [vmem:[%s3105 + $0x14] sm:$0xf]
        %v3112 = vld [vmem:[%s3105 + $0x18] sm:$0xf]
        %v3113 = vld [vmem:[%s3105 + $0x1c] sm:$0xf]
        %v3114 = vld [vmem:[%s3105 + $0x20] sm:$0xf]
        %v3115 = vld [vmem:[%s3105 + $0x24] sm:$0xf]
        %v3116 = vld [vmem:[%s3105 + $0x28] sm:$0xf]
        %v3117 = vld [vmem:[%s3105 + $0x2c] sm:$0xf]
        %v3118 = vld [vmem:[%s3105 + $0x30] sm:$0xf]
        %v3119 = vld [vmem:[%s3105 + $0x34] sm:$0xf]
        %v3120 = vld [vmem:[%s3105 + $0x38] sm:$0xf]
        %v3121 = vld [vmem:[%s3105 + $0x3c] sm:$0xf]
        %v3138 = vunpack.c.l.b16 %v3106
        %v3139 = vunpack.c.l.b16 %v3107
        %v3140 = vunpack.c.l.b16 %v3108
        %v3141 = vunpack.c.l.b16 %v3109
        %v3142 = vunpack.c.l.b16 %v3110
        %v3143 = vunpack.c.l.b16 %v3111
        %v3144 = vunpack.c.l.b16 %v3112
        %v3145 = vunpack.c.l.b16 %v3113
        %v3146 = vunpack.c.l.b16 %v3114
        %v3147 = vunpack.c.l.b16 %v3115
        %v3148 = vunpack.c.l.b16 %v3116
        %v3149 = vunpack.c.l.b16 %v3117
        %v3150 = vunpack.c.l.b16 %v3118
        %v3151 = vunpack.c.l.b16 %v3119
        %v3152 = vunpack.c.l.b16 %v3120
        %v3153 = vunpack.c.l.b16 %v3121
        %v3154 = vpack.c.b16 %v3139, %v3138
        %v3155 = vpack.c.b16 %v3141, %v3140
        %v3156 = vpack.c.b16 %v3143, %v3142
        %v3157 = vpack.c.b16 %v3145, %v3144
        %v3158 = vpack.c.b16 %v3147, %v3146
        %v3159 = vpack.c.b16 %v3149, %v3148
        %v3160 = vpack.c.b16 %v3151, %v3150
        %v3161 = vpack.c.b16 %v3153, %v3152
        %3170 = vmatprep.subr.bf16.mxu0 0
        %3171 = vmatpush1.bf16.msra.mxu0 %v3154
        %3172 = vmatprep.subr.bf16.mxu0 0
        %3173 = vmatpush1.bf16.msra.mxu0 %v3155
        %3174 = vmatprep.subr.bf16.mxu0 0
        %3175 = vmatpush1.bf16.msra.mxu0 %v3156
        %3176 = vmatprep.subr.bf16.mxu0 0
        %3177 = vmatpush1.bf16.msra.mxu0 %v3157
        %3178 = vmatprep.subr.bf16.mxu0 0
        %3179 = vmatpush1.bf16.msra.mxu0 %v3158
        %3180 = vmatprep.subr.bf16.mxu0 0
        %3181 = vmatpush1.bf16.msra.mxu0 %v3159
        %3182 = vmatprep.subr.bf16.mxu0 0
        %3183 = vmatpush1.bf16.msra.mxu0 %v3160
        %3184 = vmatprep.subr.bf16.mxu0 0
        %3185 = vmatpush1.bf16.msra.mxu0 %v3161
        %3186 = vmatprep.subr.bf16.mxu0 0
        %3187 = vmatpush1.bf16.msra.mxu0 0
        %3188 = vmatprep.subr.bf16.mxu0 0
        %3189 = vmatpush1.bf16.msra.mxu0 0
        %3190 = vmatprep.subr.bf16.mxu0 0
        %3191 = vmatpush1.bf16.msra.mxu0 0
        %3192 = vmatprep.subr.bf16.mxu0 0
        %3193 = vmatpush1.bf16.msra.mxu0 0
        %3194 = vmatprep.subr.bf16.mxu0 0
        %3195 = vmatpush1.bf16.msra.mxu0 0
        %3196 = vmatprep.subr.bf16.mxu0 0
        %3197 = vmatpush1.bf16.msra.mxu0 0
        %3198 = vmatprep.subr.bf16.mxu0 0
        %3199 = vmatpush1.bf16.msra.mxu0 0
        %3200 = vmatprep.subr.bf16.mxu0 0
        %3201 = vmatpush1.bf16.msra.mxu0 0
        %3202 = vmatprep.mubr.bf16.mxu0 0
        %3203 = vmatmul.mubr.bf16.gmra.mrb[0].mxu0 %v667
        %v3204 = vpop.f32.mrb[0].mxu0
        %v3205 = vadd.f32 0.0, %v3204
        %v3206 = vpop.f32.mrb[0].mxu0
        %v3207 = vpop.f32.mrb[0].mxu0
        %v3208 = vadd.f32 0.0, %v3207
        %v3209 = vpop.f32.mrb[0].mxu0
        %3210 = vmatprep.mubr.bf16.mxu0 0
        %3211 = vmatmul.mubr.bf16.gmra.mrb[0].mxu0 %v668
        %v3212 = vpop.f32.mrb[0].mxu0
        %v3213 = vadd.f32 0.0, %v3212
        %v3214 = vpop.f32.mrb[0].mxu0
        %v3215 = vpop.f32.mrb[0].mxu0
        %v3216 = vadd.f32 0.0, %v3215
        %v3217 = vpop.f32.mrb[0].mxu0
        %3218 = vmatprep.mubr.bf16.mxu0 0
        %3219 = vmatmul.mubr.bf16.gmra.mrb[0].mxu0 %v669
        %v3220 = vpop.f32.mrb[0].mxu0
        %v3221 = vadd.f32 0.0, %v3220
        %v3222 = vpop.f32.mrb[0].mxu0
        %v3223 = vpop.f32.mrb[0].mxu0
        %v3224 = vadd.f32 0.0, %v3223
        %v3225 = vpop.f32.mrb[0].mxu0
        %3226 = vmatprep.mubr.bf16.mxu0 0
        %3227 = vmatmul.mubr.bf16.gmra.mrb[0].mxu0 %v670
        %v3228 = vpop.f32.mrb[0].mxu0
        %v3229 = vadd.f32 0.0, %v3228
        %v3230 = vpop.f32.mrb[0].mxu0
        %v3231 = vpop.f32.mrb[0].mxu0
        %v3232 = vadd.f32 0.0, %v3231
        %v3233 = vpop.f32.mrb[0].mxu0
        %3234 = vdwg.mxu0
        %s3235 = scalar_lea.vmem %s5, 192
        %v3236 = vld [vmem:[%s3235] sm:$0xf]
        %v3237 = vld [vmem:[%s3235 + $0x4] sm:$0xf]
        %v3238 = vld [vmem:[%s3235 + $0x8] sm:$0xf]
        %v3239 = vld [vmem:[%s3235 + $0xc] sm:$0xf]
        %v3240 = vld [vmem:[%s3235 + $0x10] sm:$0xf]
        %v3241 = vld [vmem:[%s3235 + $0x14] sm:$0xf]
        %v3242 = vld [vmem:[%s3235 + $0x18] sm:$0xf]
        %v3243 = vld [vmem:[%s3235 + $0x1c] sm:$0xf]
        %v3244 = vld [vmem:[%s3235 + $0x20] sm:$0xf]
        %v3245 = vld [vmem:[%s3235 + $0x24] sm:$0xf]
        %v3246 = vld [vmem:[%s3235 + $0x28] sm:$0xf]
        %v3247 = vld [vmem:[%s3235 + $0x2c] sm:$0xf]
        %v3248 = vld [vmem:[%s3235 + $0x30] sm:$0xf]
        %v3249 = vld [vmem:[%s3235 + $0x34] sm:$0xf]
        %v3250 = vld [vmem:[%s3235 + $0x38] sm:$0xf]
        %v3251 = vld [vmem:[%s3235 + $0x3c] sm:$0xf]
        %v3268 = vunpack.c.l.b16 %v3236
        %v3269 = vunpack.c.l.b16 %v3237
        %v3270 = vunpack.c.l.b16 %v3238
        %v3271 = vunpack.c.l.b16 %v3239
        %v3272 = vunpack.c.l.b16 %v3240
        %v3273 = vunpack.c.l.b16 %v3241
        %v3274 = vunpack.c.l.b16 %v3242
        %v3275 = vunpack.c.l.b16 %v3243
        %v3276 = vunpack.c.l.b16 %v3244
        %v3277 = vunpack.c.l.b16 %v3245
        %v3278 = vunpack.c.l.b16 %v3246
        %v3279 = vunpack.c.l.b16 %v3247
        %v3280 = vunpack.c.l.b16 %v3248
        %v3281 = vunpack.c.l.b16 %v3249
        %v3282 = vunpack.c.l.b16 %v3250
        %v3283 = vunpack.c.l.b16 %v3251
        %v3284 = vpack.c.b16 %v3269, %v3268
        %v3285 = vpack.c.b16 %v3271, %v3270
        %v3286 = vpack.c.b16 %v3273, %v3272
        %v3287 = vpack.c.b16 %v3275, %v3274
        %v3288 = vpack.c.b16 %v3277, %v3276
        %v3289 = vpack.c.b16 %v3279, %v3278
        %v3290 = vpack.c.b16 %v3281, %v3280
        %v3291 = vpack.c.b16 %v3283, %v3282
        %3300 = vmatprep.subr.bf16.mxu0 0
        %3301 = vmatpush1.bf16.msra.mxu0 %v3284
        %3302 = vmatprep.subr.bf16.mxu0 0
        %3303 = vmatpush1.bf16.msra.mxu0 %v3285
        %3304 = vmatprep.subr.bf16.mxu0 0
        %3305 = vmatpush1.bf16.msra.mxu0 %v3286
        %3306 = vmatprep.subr.bf16.mxu0 0
        %3307 = vmatpush1.bf16.msra.mxu0 %v3287
        %3308 = vmatprep.subr.bf16.mxu0 0
        %3309 = vmatpush1.bf16.msra.mxu0 %v3288
        %3310 = vmatprep.subr.bf16.mxu0 0
        %3311 = vmatpush1.bf16.msra.mxu0 %v3289
        %3312 = vmatprep.subr.bf16.mxu0 0
        %3313 = vmatpush1.bf16.msra.mxu0 %v3290
        %3314 = vmatprep.subr.bf16.mxu0 0
        %3315 = vmatpush1.bf16.msra.mxu0 %v3291
        %3316 = vmatprep.subr.bf16.mxu0 0
        %3317 = vmatpush1.bf16.msra.mxu0 0
        %3318 = vmatprep.subr.bf16.mxu0 0
        %3319 = vmatpush1.bf16.msra.mxu0 0
        %3320 = vmatprep.subr.bf16.mxu0 0
        %3321 = vmatpush1.bf16.msra.mxu0 0
        %3322 = vmatprep.subr.bf16.mxu0 0
        %3323 = vmatpush1.bf16.msra.mxu0 0
        %3324 = vmatprep.subr.bf16.mxu0 0
        %3325 = vmatpush1.bf16.msra.mxu0 0
        %3326 = vmatprep.subr.bf16.mxu0 0
        %3327 = vmatpush1.bf16.msra.mxu0 0
        %3328 = vmatprep.subr.bf16.mxu0 0
        %3329 = vmatpush1.bf16.msra.mxu0 0
        %3330 = vmatprep.subr.bf16.mxu0 0
        %3331 = vmatpush1.bf16.msra.mxu0 0
        %3332 = vmatprep.mubr.bf16.mxu0 0
        %3333 = vmatmul.mubr.bf16.gmra.mrb[0].mxu0 %v667
        %v3334 = vpop.f32.mrb[0].mxu0
        %v3335 = vadd.f32 0.0, %v3334
        %v3336 = vpop.f32.mrb[0].mxu0
        %v3337 = vpop.f32.mrb[0].mxu0
        %v3338 = vadd.f32 0.0, %v3337
        %v3339 = vpop.f32.mrb[0].mxu0
        %3340 = vmatprep.mubr.bf16.mxu0 0
        %3341 = vmatmul.mubr.bf16.gmra.mrb[0].mxu0 %v668
        %v3342 = vpop.f32.mrb[0].mxu0
        %v3343 = vadd.f32 0.0, %v3342
        %v3344 = vpop.f32.mrb[0].mxu0
        %v3345 = vpop.f32.mrb[0].mxu0
        %v3346 = vadd.f32 0.0, %v3345
        %v3347 = vpop.f32.mrb[0].mxu0
        %3348 = vmatprep.mubr.bf16.mxu0 0
        %3349 = vmatmul.mubr.bf16.gmra.mrb[0].mxu0 %v669
        %v3350 = vpop.f32.mrb[0].mxu0
        %v3351 = vadd.f32 0.0, %v3350
        %v3352 = vpop.f32.mrb[0].mxu0
        %v3353 = vpop.f32.mrb[0].mxu0
        %v3354 = vadd.f32 0.0, %v3353
        %v3355 = vpop.f32.mrb[0].mxu0
        %3356 = vmatprep.mubr.bf16.mxu0 0
        %3357 = vmatmul.mubr.bf16.gmra.mrb[0].mxu0 %v670
        %v3358 = vpop.f32.mrb[0].mxu0
        %v3359 = vadd.f32 0.0, %v3358
        %v3360 = vpop.f32.mrb[0].mxu0
        %v3361 = vpop.f32.mrb[0].mxu0
        %v3362 = vadd.f32 0.0, %v3361
        %v3363 = vpop.f32.mrb[0].mxu0
        %3364 = vdwg.mxu0
        %v3365 = vpack.c.bf16 %v3078, %v3075
        %v3366 = vpack.c.bf16 %v3086, %v3083
        %v3367 = vpack.c.bf16 %v3094, %v3091
        %v3368 = vpack.c.bf16 %v3102, %v3099
        %v3369 = vpack.c.bf16 %v3208, %v3205
        %v3370 = vpack.c.bf16 %v3216, %v3213
        %v3371 = vpack.c.bf16 %v3224, %v3221
        %v3372 = vpack.c.bf16 %v3232, %v3229
        %v3374 = vsel %vm1066, %v3365, 0
        %v3377 = vsel %vm1066, %v3366, 0
        %v3380 = vsel %vm1066, %v3367, 0
        %v3383 = vsel %vm1066, %v3368, 0
        %v3386 = vsel %vm1066, %v3369, 0
        %v3389 = vsel %vm1066, %v3370, 0
        %v3392 = vsel %vm1066, %v3371, 0
        %v3395 = vsel %vm1066, %v3372, 0
        %3397 = vmatprep.subr.bf16.mxu0 0
        %3398 = vmatpush1.bf16.xpose.msra.mxu0 %v3386
        %3399 = vmatprep.subr.bf16.mxu0 0
        %3400 = vmatpush1.bf16.xpose.msra.mxu0 %v3389
        %3401 = vmatprep.subr.bf16.mxu0 0
        %3402 = vmatpush1.bf16.xpose.msra.mxu0 %v3392
        %3403 = vmatprep.subr.bf16.mxu0 0
        %3404 = vmatpush1.bf16.xpose.msra.mxu0 %v3395
        %3405 = vmatprep.subr.bf16.mxu0 0
        %3406 = vmatpush1.bf16.xpose.msra.mxu0 0
        %3407 = vmatprep.subr.bf16.mxu0 0
        %3408 = vmatpush1.bf16.xpose.msra.mxu0 0
        %3409 = vmatprep.subr.bf16.mxu0 0
        %3410 = vmatpush1.bf16.xpose.msra.mxu0 0
        %3411 = vmatprep.subr.bf16.mxu0 0
        %3412 = vmatpush1.bf16.xpose.msra.mxu0 0
        %3413 = vmatprep.subr.bf16.mxu0 0
        %3414 = vmatpush1.bf16.xpose.msra.mxu0 0
        %3415 = vmatprep.subr.bf16.mxu0 0
        %3416 = vmatpush1.bf16.xpose.msra.mxu0 0
        %3417 = vmatprep.subr.bf16.mxu0 0
        %3418 = vmatpush1.bf16.xpose.msra.mxu0 0
        %3419 = vmatprep.subr.bf16.mxu0 0
        %3420 = vmatpush1.bf16.xpose.msra.mxu0 0
        %3421 = vmatprep.subr.bf16.mxu0 0
        %3422 = vmatpush1.bf16.xpose.msra.mxu0 0
        %3423 = vmatprep.subr.bf16.mxu0 0
        %3424 = vmatpush1.bf16.xpose.msra.mxu0 0
        %3425 = vmatprep.subr.bf16.mxu0 0
        %3426 = vmatpush1.bf16.xpose.msra.mxu0 0
        %3427 = vmatprep.subr.bf16.mxu0 0
        %3428 = vmatpush1.bf16.xpose.msra.mxu0 0
        %3429 = vmatprep.mubr.bf16.mxu0 0
        %3430 = vmatmul.mubr.bf16.gmra.mrb[0].mxu0 %v3374
        %v3431 = vpop.f32.mrb[0].mxu0
        %v3432 = vadd.f32 0.0, %v3431
        %v3433 = vpop.f32.mrb[0].mxu0
        %v3434 = vpop.f32.mrb[0].mxu0
        %v3435 = vadd.f32 0.0, %v3434
        %v3436 = vpop.f32.mrb[0].mxu0
        %3437 = vmatprep.mubr.bf16.mxu0 0
        %3438 = vmatmul.mubr.bf16.gmra.mrb[0].mxu0 %v3377
        %v3439 = vpop.f32.mrb[0].mxu0
        %v3440 = vadd.f32 0.0, %v3439
        %v3441 = vpop.f32.mrb[0].mxu0
        %v3442 = vpop.f32.mrb[0].mxu0
        %v3443 = vadd.f32 0.0, %v3442
        %v3444 = vpop.f32.mrb[0].mxu0
        %3445 = vmatprep.mubr.bf16.mxu0 0
        %3446 = vmatmul.mubr.bf16.gmra.mrb[0].mxu0 %v3380
        %v3447 = vpop.f32.mrb[0].mxu0
        %v3448 = vadd.f32 0.0, %v3447
        %v3449 = vpop.f32.mrb[0].mxu0
        %v3450 = vpop.f32.mrb[0].mxu0
        %v3451 = vadd.f32 0.0, %v3450
        %v3452 = vpop.f32.mrb[0].mxu0
        %3453 = vmatprep.mubr.bf16.mxu0 0
        %3454 = vmatmul.mubr.bf16.gmra.mrb[0].mxu0 %v3383
        %v3455 = vpop.f32.mrb[0].mxu0
        %v3456 = vadd.f32 0.0, %v3455
        %v3457 = vpop.f32.mrb[0].mxu0
        %v3458 = vpop.f32.mrb[0].mxu0
        %v3459 = vadd.f32 0.0, %v3458
        %v3460 = vpop.f32.mrb[0].mxu0
        %3461 = vdwg.mxu0
        %v3462 = vsel %vm540, %v3432, -1e+30
        %v3463 = vsel %vm541, %v3435, -1e+30
        %v3464 = vsel %vm542, %v3440, -1e+30
        %v3465 = vsel %vm543, %v3443, -1e+30
        %v3466 = vsel %vm544, %v3448, -1e+30
        %v3467 = vsel %vm545, %v3451, -1e+30
        %v3468 = vsel %vm546, %v3456, -1e+30
        %v3469 = vsel %vm547, %v3459, -1e+30
        %v3470 = vsel %vm1164, %v3462, -inf
        %3471 = vmax.xlane.f32.xlu0 %v3470
        %v3472 = vpop.xlane.xlu0 %3471
        %v3473 = vsel %vm1164, %v3463, -inf
        %3474 = vmax.xlane.f32.xlu0 %v3473
        %v3475 = vpop.xlane.xlu0 %3474
        %v3476 = vsel %vm1164, %v3464, -inf
        %3477 = vmax.xlane.f32.xlu0 %v3476
        %v3478 = vpop.xlane.xlu0 %3477
        %v3479 = vsel %vm1164, %v3465, -inf
        %3480 = vmax.xlane.f32.xlu0 %v3479
        %v3481 = vpop.xlane.xlu0 %3480
        %v3482 = vsel %vm1164, %v3466, -inf
        %3483 = vmax.xlane.f32.xlu0 %v3482
        %v3484 = vpop.xlane.xlu0 %3483
        %v3485 = vsel %vm1164, %v3467, -inf
        %3486 = vmax.xlane.f32.xlu0 %v3485
        %v3487 = vpop.xlane.xlu0 %3486
        %v3488 = vsel %vm1164, %v3468, -inf
        %3489 = vmax.xlane.f32.xlu0 %v3488
        %v3490 = vpop.xlane.xlu0 %3489
        %v3491 = vsel %vm1164, %v3469, -inf
        %3492 = vmax.xlane.f32.xlu0 %v3491
        %v3493 = vpop.xlane.xlu0 %3492
        %v3494 = vsub.f32 %v3462, %v3472
        %v3495 = vsub.f32 %v3463, %v3475
        %v3496 = vsub.f32 %v3464, %v3478
        %v3497 = vsub.f32 %v3465, %v3481
        %v3498 = vsub.f32 %v3466, %v3484
        %v3499 = vsub.f32 %v3467, %v3487
        %v3500 = vsub.f32 %v3468, %v3490
        %v3501 = vsub.f32 %v3469, %v3493
        %v3502 = vmul.f32 %v3494, 1.442695
        %v3503 = vpow.pop %v3502
        %v3504 = vmul.f32 %v3495, 1.442695
        %v3505 = vpow.pop %v3504
        %v3506 = vmul.f32 %v3496, 1.442695
        %v3507 = vpow.pop %v3506
        %v3508 = vmul.f32 %v3497, 1.442695
        %v3509 = vpow.pop %v3508
        %v3510 = vmul.f32 %v3498, 1.442695
        %v3511 = vpow.pop %v3510
        %v3512 = vmul.f32 %v3499, 1.442695
        %v3513 = vpow.pop %v3512
        %v3514 = vmul.f32 %v3500, 1.442695
        %v3515 = vpow.pop %v3514
        %v3516 = vmul.f32 %v3501, 1.442695
        %v3517 = vpow.pop %v3516
        %v3518 = vsel %vm1164, %v3503, 0.0
        %3519 = vadd.xlane.f32.xlu0 %v3518
        %v3520 = vpop.xlane.xlu0 %3519
        %v3521 = vsel %vm1164, %v3505, 0.0
        %3522 = vadd.xlane.f32.xlu0 %v3521
        %v3523 = vpop.xlane.xlu0 %3522
        %v3524 = vsel %vm1164, %v3507, 0.0
        %3525 = vadd.xlane.f32.xlu0 %v3524
        %v3526 = vpop.xlane.xlu0 %3525
        %v3527 = vsel %vm1164, %v3509, 0.0
        %3528 = vadd.xlane.f32.xlu0 %v3527
        %v3529 = vpop.xlane.xlu0 %3528
        %v3530 = vsel %vm1164, %v3511, 0.0
        %3531 = vadd.xlane.f32.xlu0 %v3530
        %v3532 = vpop.xlane.xlu0 %3531
        %v3533 = vsel %vm1164, %v3513, 0.0
        %3534 = vadd.xlane.f32.xlu0 %v3533
        %v3535 = vpop.xlane.xlu0 %3534
        %v3536 = vsel %vm1164, %v3515, 0.0
        %3537 = vadd.xlane.f32.xlu0 %v3536
        %v3538 = vpop.xlane.xlu0 %3537
        %v3539 = vsel %vm1164, %v3517, 0.0
        %3540 = vadd.xlane.f32.xlu0 %v3539
        %v3541 = vpop.xlane.xlu0 %3540
        %v3542 = vrcp.pop %v3520
        %v3543 = vrcp.pop %v3523
        %v3544 = vrcp.pop %v3526
        %v3545 = vrcp.pop %v3529
        %v3546 = vrcp.pop %v3532
        %v3547 = vrcp.pop %v3535
        %v3548 = vrcp.pop %v3538
        %v3549 = vrcp.pop %v3541
        %v3550 = vmul.f32 %v3503, %v3542
        %v3551 = vmul.f32 %v3505, %v3543
        %v3552 = vmul.f32 %v3507, %v3544
        %v3553 = vmul.f32 %v3509, %v3545
        %v3554 = vmul.f32 %v3511, %v3546
        %v3555 = vmul.f32 %v3513, %v3547
        %v3556 = vmul.f32 %v3515, %v3548
        %v3557 = vmul.f32 %v3517, %v3549
        %v3558 = vpack.c.bf16 %v3551, %v3550
        %v3559 = vpack.c.bf16 %v3553, %v3552
        %v3560 = vpack.c.bf16 %v3555, %v3554
        %v3561 = vpack.c.bf16 %v3557, %v3556
        %v3562 = vpack.c.bf16 %v3338, %v3335
        %v3563 = vpack.c.bf16 %v3346, %v3343
        %v3564 = vpack.c.bf16 %v3354, %v3351
        %v3565 = vpack.c.bf16 %v3362, %v3359
        %v3567 = vsel %vm1164, %v3558, 0
        %v3570 = vsel %vm1164, %v3559, 0
        %v3573 = vsel %vm1164, %v3560, 0
        %v3576 = vsel %vm1164, %v3561, 0
        %3578 = vmatprep.subr.bf16.mxu0 0
        %3579 = vmatpush1.bf16.msra.mxu0 %v3562
        %3580 = vmatprep.subr.bf16.mxu0 0
        %3581 = vmatpush1.bf16.msra.mxu0 %v3563
        %3582 = vmatprep.subr.bf16.mxu0 0
        %3583 = vmatpush1.bf16.msra.mxu0 %v3564
        %3584 = vmatprep.subr.bf16.mxu0 0
        %3585 = vmatpush1.bf16.msra.mxu0 %v3565
        %3586 = vmatprep.subr.bf16.mxu0 0
        %3587 = vmatpush1.bf16.msra.mxu0 0
        %3588 = vmatprep.subr.bf16.mxu0 0
        %3589 = vmatpush1.bf16.msra.mxu0 0
        %3590 = vmatprep.subr.bf16.mxu0 0
        %3591 = vmatpush1.bf16.msra.mxu0 0
        %3592 = vmatprep.subr.bf16.mxu0 0
        %3593 = vmatpush1.bf16.msra.mxu0 0
        %3594 = vmatprep.subr.bf16.mxu0 0
        %3595 = vmatpush1.bf16.msra.mxu0 0
        %3596 = vmatprep.subr.bf16.mxu0 0
        %3597 = vmatpush1.bf16.msra.mxu0 0
        %3598 = vmatprep.subr.bf16.mxu0 0
        %3599 = vmatpush1.bf16.msra.mxu0 0
        %3600 = vmatprep.subr.bf16.mxu0 0
        %3601 = vmatpush1.bf16.msra.mxu0 0
        %3602 = vmatprep.subr.bf16.mxu0 0
        %3603 = vmatpush1.bf16.msra.mxu0 0
        %3604 = vmatprep.subr.bf16.mxu0 0
        %3605 = vmatpush1.bf16.msra.mxu0 0
        %3606 = vmatprep.subr.bf16.mxu0 0
        %3607 = vmatpush1.bf16.msra.mxu0 0
        %3608 = vmatprep.subr.bf16.mxu0 0
        %3609 = vmatpush1.bf16.msra.mxu0 0
        %3610 = vmatprep.mubr.bf16.mxu0 0
        %3611 = vmatmul.mubr.bf16.gmra.mrb[0].mxu0 %v3567
        %v3612 = vpop.f32.mrb[0].mxu0
        %v3613 = vadd.f32 0.0, %v3612
        %v3614 = vpop.f32.mrb[0].mxu0
        %v3615 = vpop.f32.mrb[0].mxu0
        %v3616 = vadd.f32 0.0, %v3615
        %v3617 = vpop.f32.mrb[0].mxu0
        %3618 = vmatprep.mubr.bf16.mxu0 0
        %3619 = vmatmul.mubr.bf16.gmra.mrb[0].mxu0 %v3570
        %v3620 = vpop.f32.mrb[0].mxu0
        %v3621 = vadd.f32 0.0, %v3620
        %v3622 = vpop.f32.mrb[0].mxu0
        %v3623 = vpop.f32.mrb[0].mxu0
        %v3624 = vadd.f32 0.0, %v3623
        %v3625 = vpop.f32.mrb[0].mxu0
        %3626 = vmatprep.mubr.bf16.mxu0 0
        %3627 = vmatmul.mubr.bf16.gmra.mrb[0].mxu0 %v3573
        %v3628 = vpop.f32.mrb[0].mxu0
        %v3629 = vadd.f32 0.0, %v3628
        %v3630 = vpop.f32.mrb[0].mxu0
        %v3631 = vpop.f32.mrb[0].mxu0
        %v3632 = vadd.f32 0.0, %v3631
        %v3633 = vpop.f32.mrb[0].mxu0
        %3634 = vmatprep.mubr.bf16.mxu0 0
        %3635 = vmatmul.mubr.bf16.gmra.mrb[0].mxu0 %v3576
        %v3636 = vpop.f32.mrb[0].mxu0
        %v3637 = vadd.f32 0.0, %v3636
        %v3638 = vpop.f32.mrb[0].mxu0
        %v3639 = vpop.f32.mrb[0].mxu0
        %v3640 = vadd.f32 0.0, %v3639
        %v3641 = vpop.f32.mrb[0].mxu0
        %3642 = vdwg.mxu0
        %v3643 = vpack.c.bf16 %v3616, %v3613
        %v3644 = vpack.c.bf16 %v3624, %v3621
        %v3645 = vpack.c.bf16 %v3632, %v3629
        %v3646 = vpack.c.bf16 %v3640, %v3637
        %s3647 = scalar_lea.vmem %s6, 48
        %v3648 = vld [vmem:[%s3647] sm:$0xf]
        %v3649 = vld [vmem:[%s3647 + $0x4] sm:$0xf]
        %v3650 = vld [vmem:[%s3647 + $0x8] sm:$0xf]
        %v3651 = vld [vmem:[%s3647 + $0xc] sm:$0xf]
        %v3656 = vunpack.c.l.b16 %v3648
        %v3657 = vunpack.c.l.b16 %v3649
        %v3658 = vunpack.c.l.b16 %v3650
        %v3659 = vunpack.c.l.b16 %v3651
        %v3660 = vpack.c.b16 %v3657, %v3656
        %v3661 = vpack.c.b16 %v3659, %v3658
        %v3665 = vsel %vm1066, %v3643, 0
        %v3668 = vsel %vm1066, %v3644, 0
        %v3671 = vsel %vm1066, %v3645, 0
        %v3674 = vsel %vm1066, %v3646, 0
        %3676 = vmatprep.subr.bf16.mxu0 0
        %3677 = vmatpush1.bf16.msra.mxu0 %v3660
        %3678 = vmatprep.subr.bf16.mxu0 0
        %3679 = vmatpush1.bf16.msra.mxu0 %v3661
        %3680 = vmatprep.subr.bf16.mxu0 0
        %3681 = vmatpush1.bf16.msra.mxu0 0
        %3682 = vmatprep.subr.bf16.mxu0 0
        %3683 = vmatpush1.bf16.msra.mxu0 0
        %3684 = vmatprep.subr.bf16.mxu0 0
        %3685 = vmatpush1.bf16.msra.mxu0 0
        %3686 = vmatprep.subr.bf16.mxu0 0
        %3687 = vmatpush1.bf16.msra.mxu0 0
        %3688 = vmatprep.subr.bf16.mxu0 0
        %3689 = vmatpush1.bf16.msra.mxu0 0
        %3690 = vmatprep.subr.bf16.mxu0 0
        %3691 = vmatpush1.bf16.msra.mxu0 0
        %3692 = vmatprep.subr.bf16.mxu0 0
        %3693 = vmatpush1.bf16.msra.mxu0 0
        %3694 = vmatprep.subr.bf16.mxu0 0
        %3695 = vmatpush1.bf16.msra.mxu0 0
        %3696 = vmatprep.subr.bf16.mxu0 0
        %3697 = vmatpush1.bf16.msra.mxu0 0
        %3698 = vmatprep.subr.bf16.mxu0 0
        %3699 = vmatpush1.bf16.msra.mxu0 0
        %3700 = vmatprep.subr.bf16.mxu0 0
        %3701 = vmatpush1.bf16.msra.mxu0 0
        %3702 = vmatprep.subr.bf16.mxu0 0
        %3703 = vmatpush1.bf16.msra.mxu0 0
        %3704 = vmatprep.subr.bf16.mxu0 0
        %3705 = vmatpush1.bf16.msra.mxu0 0
        %3706 = vmatprep.subr.bf16.mxu0 0
        %3707 = vmatpush1.bf16.msra.mxu0 0
        %3708 = vmatprep.mubr.bf16.mxu0 0
        %3709 = vmatmul.mubr.bf16.gmra.mrb[0].mxu0 %v3665
        %v3710 = vpop.f32.mrb[0].mxu0
        %v3711 = vadd.f32 0.0, %v3710
        %v3712 = vpop.f32.mrb[0].mxu0
        %v3713 = vpop.f32.mrb[0].mxu0
        %v3714 = vadd.f32 0.0, %v3713
        %v3715 = vpop.f32.mrb[0].mxu0
        %3716 = vmatprep.mubr.bf16.mxu0 0
        %3717 = vmatmul.mubr.bf16.gmra.mrb[0].mxu0 %v3668
        %v3718 = vpop.f32.mrb[0].mxu0
        %v3719 = vadd.f32 0.0, %v3718
        %v3720 = vpop.f32.mrb[0].mxu0
        %v3721 = vpop.f32.mrb[0].mxu0
        %v3722 = vadd.f32 0.0, %v3721
        %v3723 = vpop.f32.mrb[0].mxu0
        %3724 = vmatprep.mubr.bf16.mxu0 0
        %3725 = vmatmul.mubr.bf16.gmra.mrb[0].mxu0 %v3671
        %v3726 = vpop.f32.mrb[0].mxu0
        %v3727 = vadd.f32 0.0, %v3726
        %v3728 = vpop.f32.mrb[0].mxu0
        %v3729 = vpop.f32.mrb[0].mxu0
        %v3730 = vadd.f32 0.0, %v3729
        %v3731 = vpop.f32.mrb[0].mxu0
        %3732 = vmatprep.mubr.bf16.mxu0 0
        %3733 = vmatmul.mubr.bf16.gmra.mrb[0].mxu0 %v3674
        %v3734 = vpop.f32.mrb[0].mxu0
        %v3735 = vadd.f32 0.0, %v3734
        %v3736 = vpop.f32.mrb[0].mxu0
        %v3737 = vpop.f32.mrb[0].mxu0
        %v3738 = vadd.f32 0.0, %v3737
        %v3739 = vpop.f32.mrb[0].mxu0
        %3740 = vdwg.mxu0
        %v3741 = vadd.f32 %v2967, %v3711
        %v3742 = vadd.f32 %v2968, %v3714
        %v3743 = vadd.f32 %v2969, %v3719
        %v3744 = vadd.f32 %v2970, %v3722
        %v3745 = vadd.f32 %v2971, %v3727
        %v3746 = vadd.f32 %v2972, %v3730
        %v3747 = vadd.f32 %v2973, %v3735
        %v3748 = vadd.f32 %v2974, %v3738
        %v3749 = vadd.f32 %v521, %v3741
        %v3750 = vadd.f32 %v522, %v3742
        %v3751 = vadd.f32 %v523, %v3743
        %v3752 = vadd.f32 %v524, %v3744
        %v3753 = vadd.f32 %v525, %v3745
        %v3754 = vadd.f32 %v526, %v3746
        %v3755 = vadd.f32 %v527, %v3747
        %v3756 = vadd.f32 %v528, %v3748
        %v3757 = vld [vmem:[%s7] sm:$0x1]
        %v3759 = vlaneseq
        %v3760 = vshrl.u32 %v3759, 7
        %v3761 = vsub.s32 0, %v3760
        %v3762 = vrot.slane %v3757, %v3761
        %v3764 = vadd.f32 %v3749, %v3762
        %v3765 = vadd.f32 %v3750, %v3762
        %v3766 = vadd.f32 %v3751, %v3762
        %v3767 = vadd.f32 %v3752, %v3762
        %v3768 = vadd.f32 %v3753, %v3762
        %v3769 = vadd.f32 %v3754, %v3762
        %v3770 = vadd.f32 %v3755, %v3762
        %v3771 = vadd.f32 %v3756, %v3762
        %v3772 = vld [vmem:[%s8] sm:$0x1]
        %v3773 = vld [vmem:[%s9] sm:$0x1]
        %3774 = vadd.xlane.f32.xlu0 %v3764
        %v3775 = vpop.xlane.xlu0 %3774
        %3776 = vadd.xlane.f32.xlu0 %v3765
        %v3777 = vpop.xlane.xlu0 %3776
        %3778 = vadd.xlane.f32.xlu0 %v3766
        %v3779 = vpop.xlane.xlu0 %3778
        %3780 = vadd.xlane.f32.xlu0 %v3767
        %v3781 = vpop.xlane.xlu0 %3780
        %3782 = vadd.xlane.f32.xlu0 %v3768
        %v3783 = vpop.xlane.xlu0 %3782
        %3784 = vadd.xlane.f32.xlu0 %v3769
        %v3785 = vpop.xlane.xlu0 %3784
        %3786 = vadd.xlane.f32.xlu0 %v3770
        %v3787 = vpop.xlane.xlu0 %3786
        %3788 = vadd.xlane.f32.xlu0 %v3771
        %v3789 = vpop.xlane.xlu0 %3788
        %v3790 = vmul.f32 %v3775, %v566
        %v3791 = vmul.f32 %v3777, %v566
        %v3792 = vmul.f32 %v3779, %v566
        %v3793 = vmul.f32 %v3781, %v566
        %v3794 = vmul.f32 %v3783, %v566
        %v3795 = vmul.f32 %v3785, %v566
        %v3796 = vmul.f32 %v3787, %v566
        %v3797 = vmul.f32 %v3789, %v566
        %v3798 = vsub.f32 %v3764, %v3790
        %v3799 = vsub.f32 %v3765, %v3791
        %v3800 = vsub.f32 %v3766, %v3792
        %v3801 = vsub.f32 %v3767, %v3793
        %v3802 = vsub.f32 %v3768, %v3794
        %v3803 = vsub.f32 %v3769, %v3795
        %v3804 = vsub.f32 %v3770, %v3796
        %v3805 = vsub.f32 %v3771, %v3797
        %v3806 = vmul.f32 %v3798, %v3798
        %v3807 = vmul.f32 %v3799, %v3799
        %v3808 = vmul.f32 %v3800, %v3800
        %v3809 = vmul.f32 %v3801, %v3801
        %v3810 = vmul.f32 %v3802, %v3802
        %v3811 = vmul.f32 %v3803, %v3803
        %v3812 = vmul.f32 %v3804, %v3804
        %v3813 = vmul.f32 %v3805, %v3805
        %3814 = vadd.xlane.f32.xlu0 %v3806
        %v3815 = vpop.xlane.xlu0 %3814
        %3816 = vadd.xlane.f32.xlu0 %v3807
        %v3817 = vpop.xlane.xlu0 %3816
        %3818 = vadd.xlane.f32.xlu0 %v3808
        %v3819 = vpop.xlane.xlu0 %3818
        %3820 = vadd.xlane.f32.xlu0 %v3809
        %v3821 = vpop.xlane.xlu0 %3820
        %3822 = vadd.xlane.f32.xlu0 %v3810
        %v3823 = vpop.xlane.xlu0 %3822
        %3824 = vadd.xlane.f32.xlu0 %v3811
        %v3825 = vpop.xlane.xlu0 %3824
        %3826 = vadd.xlane.f32.xlu0 %v3812
        %v3827 = vpop.xlane.xlu0 %3826
        %3828 = vadd.xlane.f32.xlu0 %v3813
        %v3829 = vpop.xlane.xlu0 %3828
        %v3830 = vmul.f32 %v3815, %v566
        %v3831 = vmul.f32 %v3817, %v566
        %v3832 = vmul.f32 %v3819, %v566
        %v3833 = vmul.f32 %v3821, %v566
        %v3834 = vmul.f32 %v3823, %v566
        %v3835 = vmul.f32 %v3825, %v566
        %v3836 = vmul.f32 %v3827, %v566
        %v3837 = vmul.f32 %v3829, %v566
        %v3838 = vadd.f32 %v3830, 1e-05
        %v3839 = vadd.f32 %v3831, 1e-05
        %v3840 = vadd.f32 %v3832, 1e-05
        %v3841 = vadd.f32 %v3833, 1e-05
        %v3842 = vadd.f32 %v3834, 1e-05
        %v3843 = vadd.f32 %v3835, 1e-05
        %v3844 = vadd.f32 %v3836, 1e-05
        %v3845 = vadd.f32 %v3837, 1e-05
        %v3846 = vrsqrt.pop %v3838
        %v3847 = vrsqrt.pop %v3839
        %v3848 = vrsqrt.pop %v3840
        %v3849 = vrsqrt.pop %v3841
        %v3850 = vrsqrt.pop %v3842
        %v3851 = vrsqrt.pop %v3843
        %v3852 = vrsqrt.pop %v3844
        %v3853 = vrsqrt.pop %v3845
        %v3854 = vmul.f32 %v3798, %v3846
        %v3855 = vmul.f32 %v3799, %v3847
        %v3856 = vmul.f32 %v3800, %v3848
        %v3857 = vmul.f32 %v3801, %v3849
        %v3858 = vmul.f32 %v3802, %v3850
        %v3859 = vmul.f32 %v3803, %v3851
        %v3860 = vmul.f32 %v3804, %v3852
        %v3861 = vmul.f32 %v3805, %v3853
        %v3863 = vlaneseq
        %v3864 = vshrl.u32 %v3863, 7
        %v3865 = vsub.s32 0, %v3864
        %v3866 = vrot.slane %v3772, %v3865
        %v3868 = vmul.f32 %v3854, %v3866
        %v3869 = vmul.f32 %v3855, %v3866
        %v3870 = vmul.f32 %v3856, %v3866
        %v3871 = vmul.f32 %v3857, %v3866
        %v3872 = vmul.f32 %v3858, %v3866
        %v3873 = vmul.f32 %v3859, %v3866
        %v3874 = vmul.f32 %v3860, %v3866
        %v3875 = vmul.f32 %v3861, %v3866
        %v3877 = vlaneseq
        %v3878 = vshrl.u32 %v3877, 7
        %v3879 = vsub.s32 0, %v3878
        %v3880 = vrot.slane %v3773, %v3879
        %v3882 = vadd.f32 %v3868, %v3880
        %v3883 = vadd.f32 %v3869, %v3880
        %v3884 = vadd.f32 %v3870, %v3880
        %v3885 = vadd.f32 %v3871, %v3880
        %v3886 = vadd.f32 %v3872, %v3880
        %v3887 = vadd.f32 %v3873, %v3880
        %v3888 = vadd.f32 %v3874, %v3880
        %v3889 = vadd.f32 %v3875, %v3880
        %v3890 = vpack.c.bf16 %v3883, %v3882
        %v3891 = vpack.c.bf16 %v3885, %v3884
        %v3892 = vpack.c.bf16 %v3887, %v3886
        %v3893 = vpack.c.bf16 %v3889, %v3888
        %v3894 = vld [vmem:[%s10] sm:$0xff]
        %v3895 = vld [vmem:[%s10 + $0x8] sm:$0xff]
        %v3896 = vld [vmem:[%s10 + $0x10] sm:$0xff]
        %v3897 = vld [vmem:[%s10 + $0x18] sm:$0xff]
        %v3898 = vld [vmem:[%s10 + $0x20] sm:$0xff]
        %v3899 = vld [vmem:[%s10 + $0x28] sm:$0xff]
        %v3900 = vld [vmem:[%s10 + $0x30] sm:$0xff]
        %v3901 = vld [vmem:[%s10 + $0x38] sm:$0xff]
        %v3902 = vld [vmem:[%s10 + $0x40] sm:$0xff]
        %v3903 = vld [vmem:[%s10 + $0x48] sm:$0xff]
        %v3904 = vld [vmem:[%s10 + $0x50] sm:$0xff]
        %v3905 = vld [vmem:[%s10 + $0x58] sm:$0xff]
        %v3906 = vld [vmem:[%s10 + $0x60] sm:$0xff]
        %v3907 = vld [vmem:[%s10 + $0x68] sm:$0xff]
        %v3908 = vld [vmem:[%s10 + $0x70] sm:$0xff]
        %v3909 = vld [vmem:[%s10 + $0x78] sm:$0xff]
        %v3910 = vld [vmem:[%s10 + $0x80] sm:$0xff]
        %v3911 = vld [vmem:[%s10 + $0x88] sm:$0xff]
        %v3912 = vld [vmem:[%s10 + $0x90] sm:$0xff]
        %v3913 = vld [vmem:[%s10 + $0x98] sm:$0xff]
        %v3914 = vld [vmem:[%s10 + $0xa0] sm:$0xff]
        %v3915 = vld [vmem:[%s10 + $0xa8] sm:$0xff]
        %v3916 = vld [vmem:[%s10 + $0xb0] sm:$0xff]
        %v3917 = vld [vmem:[%s10 + $0xb8] sm:$0xff]
        %v3918 = vld [vmem:[%s10 + $0xc0] sm:$0xff]
        %v3919 = vld [vmem:[%s10 + $0xc8] sm:$0xff]
        %v3920 = vld [vmem:[%s10 + $0xd0] sm:$0xff]
        %v3921 = vld [vmem:[%s10 + $0xd8] sm:$0xff]
        %v3922 = vld [vmem:[%s10 + $0xe0] sm:$0xff]
        %v3923 = vld [vmem:[%s10 + $0xe8] sm:$0xff]
        %v3924 = vld [vmem:[%s10 + $0xf0] sm:$0xff]
        %v3925 = vld [vmem:[%s10 + $0xf8] sm:$0xff]
        %v3926 = vld [vmem:[%s11] sm:$0xf]
        %v3928 = vlaneseq
        %v3929 = vshrl.u32 %v3928, 7
        %v3930 = vsub.s32 0, %v3929
        %v3931 = vrot.slane %v3926, %v3930
        %v3932 = vlaneseq
        %v3933 = vshrl.u32 %v3932, 7
        %v3934 = vsub.s32 1, %v3933
        %v3935 = vrot.slane %v3926, %v3934
        %v3936 = vlaneseq
        %v3937 = vshrl.u32 %v3936, 7
        %v3938 = vsub.s32 2, %v3937
        %v3939 = vrot.slane %v3926, %v3938
        %v3940 = vlaneseq
        %v3941 = vshrl.u32 %v3940, 7
        %v3942 = vsub.s32 3, %v3941
        %v3943 = vrot.slane %v3926, %v3942
        %v3980 = vunpack.c.l.b16 %v3894
        %v3981 = vunpack.c.h.b16 %v3894
        %v3982 = vunpack.c.l.b16 %v3895
        %v3983 = vunpack.c.h.b16 %v3895
        %v3984 = vunpack.c.l.b16 %v3896
        %v3985 = vunpack.c.h.b16 %v3896
        %v3986 = vunpack.c.l.b16 %v3897
        %v3987 = vunpack.c.h.b16 %v3897
        %v3988 = vunpack.c.l.b16 %v3898
        %v3989 = vunpack.c.h.b16 %v3898
        %v3990 = vunpack.c.l.b16 %v3899
        %v3991 = vunpack.c.h.b16 %v3899
        %v3992 = vunpack.c.l.b16 %v3900
        %v3993 = vunpack.c.h.b16 %v3900
        %v3994 = vunpack.c.l.b16 %v3901
        %v3995 = vunpack.c.h.b16 %v3901
        %v3996 = vunpack.c.l.b16 %v3902
        %v3997 = vunpack.c.h.b16 %v3902
        %v3998 = vunpack.c.l.b16 %v3903
        %v3999 = vunpack.c.h.b16 %v3903
        %v4000 = vunpack.c.l.b16 %v3904
        %v4001 = vunpack.c.h.b16 %v3904
        %v4002 = vunpack.c.l.b16 %v3905
        %v4003 = vunpack.c.h.b16 %v3905
        %v4004 = vunpack.c.l.b16 %v3906
        %v4005 = vunpack.c.h.b16 %v3906
        %v4006 = vunpack.c.l.b16 %v3907
        %v4007 = vunpack.c.h.b16 %v3907
        %v4008 = vunpack.c.l.b16 %v3908
        %v4009 = vunpack.c.h.b16 %v3908
        %v4010 = vunpack.c.l.b16 %v3909
        %v4011 = vunpack.c.h.b16 %v3909
        %v4012 = vunpack.c.l.b16 %v3910
        %v4013 = vunpack.c.h.b16 %v3910
        %v4014 = vunpack.c.l.b16 %v3911
        %v4015 = vunpack.c.h.b16 %v3911
        %v4016 = vunpack.c.l.b16 %v3912
        %v4017 = vunpack.c.h.b16 %v3912
        %v4018 = vunpack.c.l.b16 %v3913
        %v4019 = vunpack.c.h.b16 %v3913
        %v4020 = vunpack.c.l.b16 %v3914
        %v4021 = vunpack.c.h.b16 %v3914
        %v4022 = vunpack.c.l.b16 %v3915
        %v4023 = vunpack.c.h.b16 %v3915
        %v4024 = vunpack.c.l.b16 %v3916
        %v4025 = vunpack.c.h.b16 %v3916
        %v4026 = vunpack.c.l.b16 %v3917
        %v4027 = vunpack.c.h.b16 %v3917
        %v4028 = vunpack.c.l.b16 %v3918
        %v4029 = vunpack.c.h.b16 %v3918
        %v4030 = vunpack.c.l.b16 %v3919
        %v4031 = vunpack.c.h.b16 %v3919
        %v4032 = vunpack.c.l.b16 %v3920
        %v4033 = vunpack.c.h.b16 %v3920
        %v4034 = vunpack.c.l.b16 %v3921
        %v4035 = vunpack.c.h.b16 %v3921
        %v4036 = vunpack.c.l.b16 %v3922
        %v4037 = vunpack.c.h.b16 %v3922
        %v4038 = vunpack.c.l.b16 %v3923
        %v4039 = vunpack.c.h.b16 %v3923
        %v4040 = vunpack.c.l.b16 %v3924
        %v4041 = vunpack.c.h.b16 %v3924
        %v4042 = vunpack.c.l.b16 %v3925
        %v4043 = vunpack.c.h.b16 %v3925
        %v4044 = vpack.c.b16 %v3984, %v3980
        %v4045 = vpack.c.b16 %v3985, %v3981
        %v4046 = vpack.c.b16 %v3986, %v3982
        %v4047 = vpack.c.b16 %v3987, %v3983
        %v4048 = vpack.c.b16 %v3992, %v3988
        %v4049 = vpack.c.b16 %v3993, %v3989
        %v4050 = vpack.c.b16 %v3994, %v3990
        %v4051 = vpack.c.b16 %v3995, %v3991
        %v4052 = vpack.c.b16 %v4000, %v3996
        %v4053 = vpack.c.b16 %v4001, %v3997
        %v4054 = vpack.c.b16 %v4002, %v3998
        %v4055 = vpack.c.b16 %v4003, %v3999
        %v4056 = vpack.c.b16 %v4008, %v4004
        %v4057 = vpack.c.b16 %v4009, %v4005
        %v4058 = vpack.c.b16 %v4010, %v4006
        %v4059 = vpack.c.b16 %v4011, %v4007
        %v4060 = vpack.c.b16 %v4016, %v4012
        %v4061 = vpack.c.b16 %v4017, %v4013
        %v4062 = vpack.c.b16 %v4018, %v4014
        %v4063 = vpack.c.b16 %v4019, %v4015
        %v4064 = vpack.c.b16 %v4024, %v4020
        %v4065 = vpack.c.b16 %v4025, %v4021
        %v4066 = vpack.c.b16 %v4026, %v4022
        %v4067 = vpack.c.b16 %v4027, %v4023
        %v4068 = vpack.c.b16 %v4032, %v4028
        %v4069 = vpack.c.b16 %v4033, %v4029
        %v4070 = vpack.c.b16 %v4034, %v4030
        %v4071 = vpack.c.b16 %v4035, %v4031
        %v4072 = vpack.c.b16 %v4040, %v4036
        %v4073 = vpack.c.b16 %v4041, %v4037
        %v4074 = vpack.c.b16 %v4042, %v4038
        %v4075 = vpack.c.b16 %v4043, %v4039
        %4108 = vmatprep.subr.bf16.mxu0 %v4045
        %4109 = vmatpush1.bf16.msra.mxu0 %v4044
        %4110 = vmatprep.subr.bf16.mxu0 %v4049
        %4111 = vmatpush1.bf16.msra.mxu0 %v4048
        %4112 = vmatprep.subr.bf16.mxu0 %v4053
        %4113 = vmatpush1.bf16.msra.mxu0 %v4052
        %4114 = vmatprep.subr.bf16.mxu0 %v4057
        %4115 = vmatpush1.bf16.msra.mxu0 %v4056
        %4116 = vmatprep.subr.bf16.mxu0 %v4061
        %4117 = vmatpush1.bf16.msra.mxu0 %v4060
        %4118 = vmatprep.subr.bf16.mxu0 %v4065
        %4119 = vmatpush1.bf16.msra.mxu0 %v4064
        %4120 = vmatprep.subr.bf16.mxu0 %v4069
        %4121 = vmatpush1.bf16.msra.mxu0 %v4068
        %4122 = vmatprep.subr.bf16.mxu0 %v4073
        %4123 = vmatpush1.bf16.msra.mxu0 %v4072
        %4124 = vmatprep.subr.bf16.mxu0 0
        %4125 = vmatpush1.bf16.msra.mxu0 0
        %4126 = vmatprep.subr.bf16.mxu0 0
        %4127 = vmatpush1.bf16.msra.mxu0 0
        %4128 = vmatprep.subr.bf16.mxu0 0
        %4129 = vmatpush1.bf16.msra.mxu0 0
        %4130 = vmatprep.subr.bf16.mxu0 0
        %4131 = vmatpush1.bf16.msra.mxu0 0
        %4132 = vmatprep.subr.bf16.mxu0 0
        %4133 = vmatpush1.bf16.msra.mxu0 0
        %4134 = vmatprep.subr.bf16.mxu0 0
        %4135 = vmatpush1.bf16.msra.mxu0 0
        %4136 = vmatprep.subr.bf16.mxu0 0
        %4137 = vmatpush1.bf16.msra.mxu0 0
        %4138 = vmatprep.subr.bf16.mxu0 0
        %4139 = vmatpush1.bf16.msra.mxu0 0
        %4140 = vmatprep.mubr.bf16.mxu0 0
        %4141 = vmatmul.mubr.bf16.gmra.mrb[0].mxu0 %v3890
        %v4142 = vpop.f32.mrb[0].mxu0
        %v4143 = vadd.f32 %v3931, %v4142
        %v4144 = vpop.f32.mrb[0].mxu0
        %v4145 = vadd.f32 %v3935, %v4144
        %v4146 = vpop.f32.mrb[0].mxu0
        %v4147 = vadd.f32 %v3931, %v4146
        %v4148 = vpop.f32.mrb[0].mxu0
        %v4149 = vadd.f32 %v3935, %v4148
        %4150 = vmatprep.mubr.bf16.mxu0 0
        %4151 = vmatmul.mubr.bf16.gmra.mrb[0].mxu0 %v3891
        %v4152 = vpop.f32.mrb[0].mxu0
        %v4153 = vadd.f32 %v3931, %v4152
        %v4154 = vpop.f32.mrb[0].mxu0
        %v4155 = vadd.f32 %v3935, %v4154
        %v4156 = vpop.f32.mrb[0].mxu0
        %v4157 = vadd.f32 %v3931, %v4156
        %v4158 = vpop.f32.mrb[0].mxu0
        %v4159 = vadd.f32 %v3935, %v4158
        %4160 = vmatprep.mubr.bf16.mxu0 0
        %4161 = vmatmul.mubr.bf16.gmra.mrb[0].mxu0 %v3892
        %v4162 = vpop.f32.mrb[0].mxu0
        %v4163 = vadd.f32 %v3931, %v4162
        %v4164 = vpop.f32.mrb[0].mxu0
        %v4165 = vadd.f32 %v3935, %v4164
        %v4166 = vpop.f32.mrb[0].mxu0
        %v4167 = vadd.f32 %v3931, %v4166
        %v4168 = vpop.f32.mrb[0].mxu0
        %v4169 = vadd.f32 %v3935, %v4168
        %4170 = vmatprep.mubr.bf16.mxu0 0
        %4171 = vmatmul.mubr.bf16.gmra.mrb[0].mxu0 %v3893
        %v4172 = vpop.f32.mrb[0].mxu0
        %v4173 = vadd.f32 %v3931, %v4172
        %v4174 = vpop.f32.mrb[0].mxu0
        %v4175 = vadd.f32 %v3935, %v4174
        %v4176 = vpop.f32.mrb[0].mxu0
        %v4177 = vadd.f32 %v3931, %v4176
        %v4178 = vpop.f32.mrb[0].mxu0
        %v4179 = vadd.f32 %v3935, %v4178
        %4180 = vdwg.mxu0
        %4181 = vmatprep.subr.bf16.mxu0 %v4047
        %4182 = vmatpush1.bf16.msra.mxu0 %v4046
        %4183 = vmatprep.subr.bf16.mxu0 %v4051
        %4184 = vmatpush1.bf16.msra.mxu0 %v4050
        %4185 = vmatprep.subr.bf16.mxu0 %v4055
        %4186 = vmatpush1.bf16.msra.mxu0 %v4054
        %4187 = vmatprep.subr.bf16.mxu0 %v4059
        %4188 = vmatpush1.bf16.msra.mxu0 %v4058
        %4189 = vmatprep.subr.bf16.mxu0 %v4063
        %4190 = vmatpush1.bf16.msra.mxu0 %v4062
        %4191 = vmatprep.subr.bf16.mxu0 %v4067
        %4192 = vmatpush1.bf16.msra.mxu0 %v4066
        %4193 = vmatprep.subr.bf16.mxu0 %v4071
        %4194 = vmatpush1.bf16.msra.mxu0 %v4070
        %4195 = vmatprep.subr.bf16.mxu0 %v4075
        %4196 = vmatpush1.bf16.msra.mxu0 %v4074
        %4197 = vmatprep.subr.bf16.mxu0 0
        %4198 = vmatpush1.bf16.msra.mxu0 0
        %4199 = vmatprep.subr.bf16.mxu0 0
        %4200 = vmatpush1.bf16.msra.mxu0 0
        %4201 = vmatprep.subr.bf16.mxu0 0
        %4202 = vmatpush1.bf16.msra.mxu0 0
        %4203 = vmatprep.subr.bf16.mxu0 0
        %4204 = vmatpush1.bf16.msra.mxu0 0
        %4205 = vmatprep.subr.bf16.mxu0 0
        %4206 = vmatpush1.bf16.msra.mxu0 0
        %4207 = vmatprep.subr.bf16.mxu0 0
        %4208 = vmatpush1.bf16.msra.mxu0 0
        %4209 = vmatprep.subr.bf16.mxu0 0
        %4210 = vmatpush1.bf16.msra.mxu0 0
        %4211 = vmatprep.subr.bf16.mxu0 0
        %4212 = vmatpush1.bf16.msra.mxu0 0
        %4213 = vmatprep.mubr.bf16.mxu0 0
        %4214 = vmatmul.mubr.bf16.gmra.mrb[0].mxu0 %v3890
        %v4215 = vpop.f32.mrb[0].mxu0
        %v4216 = vadd.f32 %v3939, %v4215
        %v4217 = vpop.f32.mrb[0].mxu0
        %v4218 = vadd.f32 %v3943, %v4217
        %v4219 = vpop.f32.mrb[0].mxu0
        %v4220 = vadd.f32 %v3939, %v4219
        %v4221 = vpop.f32.mrb[0].mxu0
        %v4222 = vadd.f32 %v3943, %v4221
        %4223 = vmatprep.mubr.bf16.mxu0 0
        %4224 = vmatmul.mubr.bf16.gmra.mrb[0].mxu0 %v3891
        %v4225 = vpop.f32.mrb[0].mxu0
        %v4226 = vadd.f32 %v3939, %v4225
        %v4227 = vpop.f32.mrb[0].mxu0
        %v4228 = vadd.f32 %v3943, %v4227
        %v4229 = vpop.f32.mrb[0].mxu0
        %v4230 = vadd.f32 %v3939, %v4229
        %v4231 = vpop.f32.mrb[0].mxu0
        %v4232 = vadd.f32 %v3943, %v4231
        %4233 = vmatprep.mubr.bf16.mxu0 0
        %4234 = vmatmul.mubr.bf16.gmra.mrb[0].mxu0 %v3892
        %v4235 = vpop.f32.mrb[0].mxu0
        %v4236 = vadd.f32 %v3939, %v4235
        %v4237 = vpop.f32.mrb[0].mxu0
        %v4238 = vadd.f32 %v3943, %v4237
        %v4239 = vpop.f32.mrb[0].mxu0
        %v4240 = vadd.f32 %v3939, %v4239
        %v4241 = vpop.f32.mrb[0].mxu0
        %v4242 = vadd.f32 %v3943, %v4241
        %4243 = vmatprep.mubr.bf16.mxu0 0
        %4244 = vmatmul.mubr.bf16.gmra.mrb[0].mxu0 %v3893
        %v4245 = vpop.f32.mrb[0].mxu0
        %v4246 = vadd.f32 %v3939, %v4245
        %v4247 = vpop.f32.mrb[0].mxu0
        %v4248 = vadd.f32 %v3943, %v4247
        %v4249 = vpop.f32.mrb[0].mxu0
        %v4250 = vadd.f32 %v3939, %v4249
        %v4251 = vpop.f32.mrb[0].mxu0
        %v4252 = vadd.f32 %v3943, %v4251
        %4253 = vdwg.mxu0
        %v4254 = vmax.f32 %v4143, 0.0
        %v4255 = vmax.f32 %v4145, 0.0
        %v4256 = vmax.f32 %v4216, 0.0
        %v4257 = vmax.f32 %v4218, 0.0
        %v4258 = vmax.f32 %v4147, 0.0
        %v4259 = vmax.f32 %v4149, 0.0
        %v4260 = vmax.f32 %v4220, 0.0
        %v4261 = vmax.f32 %v4222, 0.0
        %v4262 = vmax.f32 %v4153, 0.0
        %v4263 = vmax.f32 %v4155, 0.0
        %v4264 = vmax.f32 %v4226, 0.0
        %v4265 = vmax.f32 %v4228, 0.0
        %v4266 = vmax.f32 %v4157, 0.0
        %v4267 = vmax.f32 %v4159, 0.0
        %v4268 = vmax.f32 %v4230, 0.0
        %v4269 = vmax.f32 %v4232, 0.0
        %v4270 = vmax.f32 %v4163, 0.0
        %v4271 = vmax.f32 %v4165, 0.0
        %v4272 = vmax.f32 %v4236, 0.0
        %v4273 = vmax.f32 %v4238, 0.0
        %v4274 = vmax.f32 %v4167, 0.0
        %v4275 = vmax.f32 %v4169, 0.0
        %v4276 = vmax.f32 %v4240, 0.0
        %v4277 = vmax.f32 %v4242, 0.0
        %v4278 = vmax.f32 %v4173, 0.0
        %v4279 = vmax.f32 %v4175, 0.0
        %v4280 = vmax.f32 %v4246, 0.0
        %v4281 = vmax.f32 %v4248, 0.0
        %v4282 = vmax.f32 %v4177, 0.0
        %v4283 = vmax.f32 %v4179, 0.0
        %v4284 = vmax.f32 %v4250, 0.0
        %v4285 = vmax.f32 %v4252, 0.0
        %v4286 = vpack.c.bf16 %v4258, %v4254
        %v4287 = vpack.c.bf16 %v4259, %v4255
        %v4288 = vpack.c.bf16 %v4260, %v4256
        %v4289 = vpack.c.bf16 %v4261, %v4257
        %v4290 = vpack.c.bf16 %v4266, %v4262
        %v4291 = vpack.c.bf16 %v4267, %v4263
        %v4292 = vpack.c.bf16 %v4268, %v4264
        %v4293 = vpack.c.bf16 %v4269, %v4265
        %v4294 = vpack.c.bf16 %v4274, %v4270
        %v4295 = vpack.c.bf16 %v4275, %v4271
        %v4296 = vpack.c.bf16 %v4276, %v4272
        %v4297 = vpack.c.bf16 %v4277, %v4273
        %v4298 = vpack.c.bf16 %v4282, %v4278
        %v4299 = vpack.c.bf16 %v4283, %v4279
        %v4300 = vpack.c.bf16 %v4284, %v4280
        %v4301 = vpack.c.bf16 %v4285, %v4281
        %v4302 = vld [vmem:[%s12] sm:$0xf]
        %v4303 = vld [vmem:[%s12 + $0x4] sm:$0xf]
        %v4304 = vld [vmem:[%s12 + $0x8] sm:$0xf]
        %v4305 = vld [vmem:[%s12 + $0xc] sm:$0xf]
        %v4306 = vld [vmem:[%s12 + $0x10] sm:$0xf]
        %v4307 = vld [vmem:[%s12 + $0x14] sm:$0xf]
        %v4308 = vld [vmem:[%s12 + $0x18] sm:$0xf]
        %v4309 = vld [vmem:[%s12 + $0x1c] sm:$0xf]
        %v4310 = vld [vmem:[%s12 + $0x20] sm:$0xf]
        %v4311 = vld [vmem:[%s12 + $0x24] sm:$0xf]
        %v4312 = vld [vmem:[%s12 + $0x28] sm:$0xf]
        %v4313 = vld [vmem:[%s12 + $0x2c] sm:$0xf]
        %v4314 = vld [vmem:[%s12 + $0x30] sm:$0xf]
        %v4315 = vld [vmem:[%s12 + $0x34] sm:$0xf]
        %v4316 = vld [vmem:[%s12 + $0x38] sm:$0xf]
        %v4317 = vld [vmem:[%s12 + $0x3c] sm:$0xf]
        %v4318 = vld [vmem:[%s12 + $0x40] sm:$0xf]
        %v4319 = vld [vmem:[%s12 + $0x44] sm:$0xf]
        %v4320 = vld [vmem:[%s12 + $0x48] sm:$0xf]
        %v4321 = vld [vmem:[%s12 + $0x4c] sm:$0xf]
        %v4322 = vld [vmem:[%s12 + $0x50] sm:$0xf]
        %v4323 = vld [vmem:[%s12 + $0x54] sm:$0xf]
        %v4324 = vld [vmem:[%s12 + $0x58] sm:$0xf]
        %v4325 = vld [vmem:[%s12 + $0x5c] sm:$0xf]
        %v4326 = vld [vmem:[%s12 + $0x60] sm:$0xf]
        %v4327 = vld [vmem:[%s12 + $0x64] sm:$0xf]
        %v4328 = vld [vmem:[%s12 + $0x68] sm:$0xf]
        %v4329 = vld [vmem:[%s12 + $0x6c] sm:$0xf]
        %v4330 = vld [vmem:[%s12 + $0x70] sm:$0xf]
        %v4331 = vld [vmem:[%s12 + $0x74] sm:$0xf]
        %v4332 = vld [vmem:[%s12 + $0x78] sm:$0xf]
        %v4333 = vld [vmem:[%s12 + $0x7c] sm:$0xf]
        %v4334 = vld [vmem:[%s12 + $0x80] sm:$0xf]
        %v4335 = vld [vmem:[%s12 + $0x84] sm:$0xf]
        %v4336 = vld [vmem:[%s12 + $0x88] sm:$0xf]
        %v4337 = vld [vmem:[%s12 + $0x8c] sm:$0xf]
        %v4338 = vld [vmem:[%s12 + $0x90] sm:$0xf]
        %v4339 = vld [vmem:[%s12 + $0x94] sm:$0xf]
        %v4340 = vld [vmem:[%s12 + $0x98] sm:$0xf]
        %v4341 = vld [vmem:[%s12 + $0x9c] sm:$0xf]
        %v4342 = vld [vmem:[%s12 + $0xa0] sm:$0xf]
        %v4343 = vld [vmem:[%s12 + $0xa4] sm:$0xf]
        %v4344 = vld [vmem:[%s12 + $0xa8] sm:$0xf]
        %v4345 = vld [vmem:[%s12 + $0xac] sm:$0xf]
        %v4346 = vld [vmem:[%s12 + $0xb0] sm:$0xf]
        %v4347 = vld [vmem:[%s12 + $0xb4] sm:$0xf]
        %v4348 = vld [vmem:[%s12 + $0xb8] sm:$0xf]
        %v4349 = vld [vmem:[%s12 + $0xbc] sm:$0xf]
        %v4350 = vld [vmem:[%s12 + $0xc0] sm:$0xf]
        %v4351 = vld [vmem:[%s12 + $0xc4] sm:$0xf]
        %v4352 = vld [vmem:[%s12 + $0xc8] sm:$0xf]
        %v4353 = vld [vmem:[%s12 + $0xcc] sm:$0xf]
        %v4354 = vld [vmem:[%s12 + $0xd0] sm:$0xf]
        %v4355 = vld [vmem:[%s12 + $0xd4] sm:$0xf]
        %v4356 = vld [vmem:[%s12 + $0xd8] sm:$0xf]
        %v4357 = vld [vmem:[%s12 + $0xdc] sm:$0xf]
        %v4358 = vld [vmem:[%s12 + $0xe0] sm:$0xf]
        %v4359 = vld [vmem:[%s12 + $0xe4] sm:$0xf]
        %v4360 = vld [vmem:[%s12 + $0xe8] sm:$0xf]
        %v4361 = vld [vmem:[%s12 + $0xec] sm:$0xf]
        %v4362 = vld [vmem:[%s12 + $0xf0] sm:$0xf]
        %v4363 = vld [vmem:[%s12 + $0xf4] sm:$0xf]
        %v4364 = vld [vmem:[%s12 + $0xf8] sm:$0xf]
        %v4365 = vld [vmem:[%s12 + $0xfc] sm:$0xf]
        %v4366 = vld [vmem:[%s13] sm:$0x1]
        %v4368 = vlaneseq
        %v4369 = vshrl.u32 %v4368, 7
        %v4370 = vsub.s32 0, %v4369
        %v4371 = vrot.slane %v4366, %v4370
        %v4437 = vunpack.c.l.b16 %v4302
        %v4438 = vunpack.c.l.b16 %v4303
        %v4439 = vunpack.c.l.b16 %v4304
        %v4440 = vunpack.c.l.b16 %v4305
        %v4441 = vunpack.c.l.b16 %v4306
        %v4442 = vunpack.c.l.b16 %v4307
        %v4443 = vunpack.c.l.b16 %v4308
        %v4444 = vunpack.c.l.b16 %v4309
        %v4445 = vunpack.c.l.b16 %v4310
        %v4446 = vunpack.c.l.b16 %v4311
        %v4447 = vunpack.c.l.b16 %v4312
        %v4448 = vunpack.c.l.b16 %v4313
        %v4449 = vunpack.c.l.b16 %v4314
        %v4450 = vunpack.c.l.b16 %v4315
        %v4451 = vunpack.c.l.b16 %v4316
        %v4452 = vunpack.c.l.b16 %v4317
        %v4453 = vunpack.c.l.b16 %v4318
        %v4454 = vunpack.c.l.b16 %v4319
        %v4455 = vunpack.c.l.b16 %v4320
        %v4456 = vunpack.c.l.b16 %v4321
        %v4457 = vunpack.c.l.b16 %v4322
        %v4458 = vunpack.c.l.b16 %v4323
        %v4459 = vunpack.c.l.b16 %v4324
        %v4460 = vunpack.c.l.b16 %v4325
        %v4461 = vunpack.c.l.b16 %v4326
        %v4462 = vunpack.c.l.b16 %v4327
        %v4463 = vunpack.c.l.b16 %v4328
        %v4464 = vunpack.c.l.b16 %v4329
        %v4465 = vunpack.c.l.b16 %v4330
        %v4466 = vunpack.c.l.b16 %v4331
        %v4467 = vunpack.c.l.b16 %v4332
        %v4468 = vunpack.c.l.b16 %v4333
        %v4469 = vunpack.c.l.b16 %v4334
        %v4470 = vunpack.c.l.b16 %v4335
        %v4471 = vunpack.c.l.b16 %v4336
        %v4472 = vunpack.c.l.b16 %v4337
        %v4473 = vunpack.c.l.b16 %v4338
        %v4474 = vunpack.c.l.b16 %v4339
        %v4475 = vunpack.c.l.b16 %v4340
        %v4476 = vunpack.c.l.b16 %v4341
        %v4477 = vunpack.c.l.b16 %v4342
        %v4478 = vunpack.c.l.b16 %v4343
        %v4479 = vunpack.c.l.b16 %v4344
        %v4480 = vunpack.c.l.b16 %v4345
        %v4481 = vunpack.c.l.b16 %v4346
        %v4482 = vunpack.c.l.b16 %v4347
        %v4483 = vunpack.c.l.b16 %v4348
        %v4484 = vunpack.c.l.b16 %v4349
        %v4485 = vunpack.c.l.b16 %v4350
        %v4486 = vunpack.c.l.b16 %v4351
        %v4487 = vunpack.c.l.b16 %v4352
        %v4488 = vunpack.c.l.b16 %v4353
        %v4489 = vunpack.c.l.b16 %v4354
        %v4490 = vunpack.c.l.b16 %v4355
        %v4491 = vunpack.c.l.b16 %v4356
        %v4492 = vunpack.c.l.b16 %v4357
        %v4493 = vunpack.c.l.b16 %v4358
        %v4494 = vunpack.c.l.b16 %v4359
        %v4495 = vunpack.c.l.b16 %v4360
        %v4496 = vunpack.c.l.b16 %v4361
        %v4497 = vunpack.c.l.b16 %v4362
        %v4498 = vunpack.c.l.b16 %v4363
        %v4499 = vunpack.c.l.b16 %v4364
        %v4500 = vunpack.c.l.b16 %v4365
        %v4501 = vpack.c.b16 %v4438, %v4437
        %v4502 = vpack.c.b16 %v4440, %v4439
        %v4503 = vpack.c.b16 %v4442, %v4441
        %v4504 = vpack.c.b16 %v4444, %v4443
        %v4505 = vpack.c.b16 %v4446, %v4445
        %v4506 = vpack.c.b16 %v4448, %v4447
        %v4507 = vpack.c.b16 %v4450, %v4449
        %v4508 = vpack.c.b16 %v4452, %v4451
        %v4509 = vpack.c.b16 %v4454, %v4453
        %v4510 = vpack.c.b16 %v4456, %v4455
        %v4511 = vpack.c.b16 %v4458, %v4457
        %v4512 = vpack.c.b16 %v4460, %v4459
        %v4513 = vpack.c.b16 %v4462, %v4461
        %v4514 = vpack.c.b16 %v4464, %v4463
        %v4515 = vpack.c.b16 %v4466, %v4465
        %v4516 = vpack.c.b16 %v4468, %v4467
        %v4517 = vpack.c.b16 %v4470, %v4469
        %v4518 = vpack.c.b16 %v4472, %v4471
        %v4519 = vpack.c.b16 %v4474, %v4473
        %v4520 = vpack.c.b16 %v4476, %v4475
        %v4521 = vpack.c.b16 %v4478, %v4477
        %v4522 = vpack.c.b16 %v4480, %v4479
        %v4523 = vpack.c.b16 %v4482, %v4481
        %v4524 = vpack.c.b16 %v4484, %v4483
        %v4525 = vpack.c.b16 %v4486, %v4485
        %v4526 = vpack.c.b16 %v4488, %v4487
        %v4527 = vpack.c.b16 %v4490, %v4489
        %v4528 = vpack.c.b16 %v4492, %v4491
        %v4529 = vpack.c.b16 %v4494, %v4493
        %v4530 = vpack.c.b16 %v4496, %v4495
        %v4531 = vpack.c.b16 %v4498, %v4497
        %v4532 = vpack.c.b16 %v4500, %v4499
        %4565 = vmatprep.subr.bf16.mxu0 0
        %4566 = vmatpush1.bf16.msra.mxu0 %v4501
        %4567 = vmatprep.subr.bf16.mxu0 0
        %4568 = vmatpush1.bf16.msra.mxu0 %v4502
        %4569 = vmatprep.subr.bf16.mxu0 0
        %4570 = vmatpush1.bf16.msra.mxu0 %v4503
        %4571 = vmatprep.subr.bf16.mxu0 0
        %4572 = vmatpush1.bf16.msra.mxu0 %v4504
        %4573 = vmatprep.subr.bf16.mxu0 0
        %4574 = vmatpush1.bf16.msra.mxu0 %v4505
        %4575 = vmatprep.subr.bf16.mxu0 0
        %4576 = vmatpush1.bf16.msra.mxu0 %v4506
        %4577 = vmatprep.subr.bf16.mxu0 0
        %4578 = vmatpush1.bf16.msra.mxu0 %v4507
        %4579 = vmatprep.subr.bf16.mxu0 0
        %4580 = vmatpush1.bf16.msra.mxu0 %v4508
        %4581 = vmatprep.subr.bf16.mxu0 0
        %4582 = vmatpush1.bf16.msra.mxu0 %v4509
        %4583 = vmatprep.subr.bf16.mxu0 0
        %4584 = vmatpush1.bf16.msra.mxu0 %v4510
        %4585 = vmatprep.subr.bf16.mxu0 0
        %4586 = vmatpush1.bf16.msra.mxu0 %v4511
        %4587 = vmatprep.subr.bf16.mxu0 0
        %4588 = vmatpush1.bf16.msra.mxu0 %v4512
        %4589 = vmatprep.subr.bf16.mxu0 0
        %4590 = vmatpush1.bf16.msra.mxu0 %v4513
        %4591 = vmatprep.subr.bf16.mxu0 0
        %4592 = vmatpush1.bf16.msra.mxu0 %v4514
        %4593 = vmatprep.subr.bf16.mxu0 0
        %4594 = vmatpush1.bf16.msra.mxu0 %v4515
        %4595 = vmatprep.subr.bf16.mxu0 0
        %4596 = vmatpush1.bf16.msra.mxu0 %v4516
        %4597 = vmatprep.mubr.bf16.mxu0 %v4287
        %4598 = vmatmul.mubr.bf16.gmra.mrb[0].mxu0 %v4286
        %v4599 = vpop.f32.mrb[0].mxu0
        %v4600 = vadd.f32 %v4371, %v4599
        %v4601 = vpop.f32.mrb[0].mxu0
        %v4602 = vpop.f32.mrb[0].mxu0
        %v4603 = vadd.f32 %v4371, %v4602
        %v4604 = vpop.f32.mrb[0].mxu0
        %4605 = vmatprep.mubr.bf16.mxu0 %v4291
        %4606 = vmatmul.mubr.bf16.gmra.mrb[0].mxu0 %v4290
        %v4607 = vpop.f32.mrb[0].mxu0
        %v4608 = vadd.f32 %v4371, %v4607
        %v4609 = vpop.f32.mrb[0].mxu0
        %v4610 = vpop.f32.mrb[0].mxu0
        %v4611 = vadd.f32 %v4371, %v4610
        %v4612 = vpop.f32.mrb[0].mxu0
        %4613 = vmatprep.mubr.bf16.mxu0 %v4295
        %4614 = vmatmul.mubr.bf16.gmra.mrb[0].mxu0 %v4294
        %v4615 = vpop.f32.mrb[0].mxu0
        %v4616 = vadd.f32 %v4371, %v4615
        %v4617 = vpop.f32.mrb[0].mxu0
        %v4618 = vpop.f32.mrb[0].mxu0
        %v4619 = vadd.f32 %v4371, %v4618
        %v4620 = vpop.f32.mrb[0].mxu0
        %4621 = vmatprep.mubr.bf16.mxu0 %v4299
        %4622 = vmatmul.mubr.bf16.gmra.mrb[0].mxu0 %v4298
        %v4623 = vpop.f32.mrb[0].mxu0
        %v4624 = vadd.f32 %v4371, %v4623
        %v4625 = vpop.f32.mrb[0].mxu0
        %v4626 = vpop.f32.mrb[0].mxu0
        %v4627 = vadd.f32 %v4371, %v4626
        %v4628 = vpop.f32.mrb[0].mxu0
        %4629 = vdwg.mxu0
        %4630 = vmatprep.subr.bf16.mxu0 0
        %4631 = vmatpush1.bf16.msra.mxu0 %v4517
        %4632 = vmatprep.subr.bf16.mxu0 0
        %4633 = vmatpush1.bf16.msra.mxu0 %v4518
        %4634 = vmatprep.subr.bf16.mxu0 0
        %4635 = vmatpush1.bf16.msra.mxu0 %v4519
        %4636 = vmatprep.subr.bf16.mxu0 0
        %4637 = vmatpush1.bf16.msra.mxu0 %v4520
        %4638 = vmatprep.subr.bf16.mxu0 0
        %4639 = vmatpush1.bf16.msra.mxu0 %v4521
        %4640 = vmatprep.subr.bf16.mxu0 0
        %4641 = vmatpush1.bf16.msra.mxu0 %v4522
        %4642 = vmatprep.subr.bf16.mxu0 0
        %4643 = vmatpush1.bf16.msra.mxu0 %v4523
        %4644 = vmatprep.subr.bf16.mxu0 0
        %4645 = vmatpush1.bf16.msra.mxu0 %v4524
        %4646 = vmatprep.subr.bf16.mxu0 0
        %4647 = vmatpush1.bf16.msra.mxu0 %v4525
        %4648 = vmatprep.subr.bf16.mxu0 0
        %4649 = vmatpush1.bf16.msra.mxu0 %v4526
        %4650 = vmatprep.subr.bf16.mxu0 0
        %4651 = vmatpush1.bf16.msra.mxu0 %v4527
        %4652 = vmatprep.subr.bf16.mxu0 0
        %4653 = vmatpush1.bf16.msra.mxu0 %v4528
        %4654 = vmatprep.subr.bf16.mxu0 0
        %4655 = vmatpush1.bf16.msra.mxu0 %v4529
        %4656 = vmatprep.subr.bf16.mxu0 0
        %4657 = vmatpush1.bf16.msra.mxu0 %v4530
        %4658 = vmatprep.subr.bf16.mxu0 0
        %4659 = vmatpush1.bf16.msra.mxu0 %v4531
        %4660 = vmatprep.subr.bf16.mxu0 0
        %4661 = vmatpush1.bf16.msra.mxu0 %v4532
        %4662 = vmatprep.mubr.bf16.mxu0 %v4289
        %4663 = vmatmul.mubr.bf16.gmra.mrb[0].mxu0 %v4288
        %v4664 = vpop.f32.mrb[0].mxu0
        %v4665 = vadd.f32 %v4600, %v4664
        %v4666 = vpop.f32.mrb[0].mxu0
        %v4667 = vpop.f32.mrb[0].mxu0
        %v4668 = vadd.f32 %v4603, %v4667
        %v4669 = vpop.f32.mrb[0].mxu0
        %4670 = vmatprep.mubr.bf16.mxu0 %v4293
        %4671 = vmatmul.mubr.bf16.gmra.mrb[0].mxu0 %v4292
        %v4672 = vpop.f32.mrb[0].mxu0
        %v4673 = vadd.f32 %v4608, %v4672
        %v4674 = vpop.f32.mrb[0].mxu0
        %v4675 = vpop.f32.mrb[0].mxu0
        %v4676 = vadd.f32 %v4611, %v4675
        %v4677 = vpop.f32.mrb[0].mxu0
        %4678 = vmatprep.mubr.bf16.mxu0 %v4297
        %4679 = vmatmul.mubr.bf16.gmra.mrb[0].mxu0 %v4296
        %v4680 = vpop.f32.mrb[0].mxu0
        %v4681 = vadd.f32 %v4616, %v4680
        %v4682 = vpop.f32.mrb[0].mxu0
        %v4683 = vpop.f32.mrb[0].mxu0
        %v4684 = vadd.f32 %v4619, %v4683
        %v4685 = vpop.f32.mrb[0].mxu0
        %4686 = vmatprep.mubr.bf16.mxu0 %v4301
        %4687 = vmatmul.mubr.bf16.gmra.mrb[0].mxu0 %v4300
        %v4688 = vpop.f32.mrb[0].mxu0
        %v4689 = vadd.f32 %v4624, %v4688
        %v4690 = vpop.f32.mrb[0].mxu0
        %v4691 = vpop.f32.mrb[0].mxu0
        %v4692 = vadd.f32 %v4627, %v4691
        %v4693 = vpop.f32.mrb[0].mxu0
        %4694 = vdwg.mxu0
        %v4695 = vadd.f32 %v3764, %v4665
        %v4696 = vadd.f32 %v3765, %v4668
        %v4697 = vadd.f32 %v3766, %v4673
        %v4698 = vadd.f32 %v3767, %v4676
        %v4699 = vadd.f32 %v3768, %v4681
        %v4700 = vadd.f32 %v3769, %v4684
        %v4701 = vadd.f32 %v3770, %v4689
        %v4702 = vadd.f32 %v3771, %v4692
        %s4703 = scalar_lea.vmem %s1, 1
        %v4704 = vld [vmem:[%s4703] sm:$0x1]
        %s4705 = scalar_lea.vmem %s2, 1
        %v4706 = vld [vmem:[%s4705] sm:$0x1]
        %4707 = vadd.xlane.f32.xlu0 %v4695
        %v4708 = vpop.xlane.xlu0 %4707
        %4709 = vadd.xlane.f32.xlu0 %v4696
        %v4710 = vpop.xlane.xlu0 %4709
        %4711 = vadd.xlane.f32.xlu0 %v4697
        %v4712 = vpop.xlane.xlu0 %4711
        %4713 = vadd.xlane.f32.xlu0 %v4698
        %v4714 = vpop.xlane.xlu0 %4713
        %4715 = vadd.xlane.f32.xlu0 %v4699
        %v4716 = vpop.xlane.xlu0 %4715
        %4717 = vadd.xlane.f32.xlu0 %v4700
        %v4718 = vpop.xlane.xlu0 %4717
        %4719 = vadd.xlane.f32.xlu0 %v4701
        %v4720 = vpop.xlane.xlu0 %4719
        %4721 = vadd.xlane.f32.xlu0 %v4702
        %v4722 = vpop.xlane.xlu0 %4721
        %v4723 = vmul.f32 %v4708, %v566
        %v4724 = vmul.f32 %v4710, %v566
        %v4725 = vmul.f32 %v4712, %v566
        %v4726 = vmul.f32 %v4714, %v566
        %v4727 = vmul.f32 %v4716, %v566
        %v4728 = vmul.f32 %v4718, %v566
        %v4729 = vmul.f32 %v4720, %v566
        %v4730 = vmul.f32 %v4722, %v566
        %v4731 = vsub.f32 %v4695, %v4723
        %v4732 = vsub.f32 %v4696, %v4724
        %v4733 = vsub.f32 %v4697, %v4725
        %v4734 = vsub.f32 %v4698, %v4726
        %v4735 = vsub.f32 %v4699, %v4727
        %v4736 = vsub.f32 %v4700, %v4728
        %v4737 = vsub.f32 %v4701, %v4729
        %v4738 = vsub.f32 %v4702, %v4730
        %v4739 = vmul.f32 %v4731, %v4731
        %v4740 = vmul.f32 %v4732, %v4732
        %v4741 = vmul.f32 %v4733, %v4733
        %v4742 = vmul.f32 %v4734, %v4734
        %v4743 = vmul.f32 %v4735, %v4735
        %v4744 = vmul.f32 %v4736, %v4736
        %v4745 = vmul.f32 %v4737, %v4737
        %v4746 = vmul.f32 %v4738, %v4738
        %4747 = vadd.xlane.f32.xlu0 %v4739
        %v4748 = vpop.xlane.xlu0 %4747
        %4749 = vadd.xlane.f32.xlu0 %v4740
        %v4750 = vpop.xlane.xlu0 %4749
        %4751 = vadd.xlane.f32.xlu0 %v4741
        %v4752 = vpop.xlane.xlu0 %4751
        %4753 = vadd.xlane.f32.xlu0 %v4742
        %v4754 = vpop.xlane.xlu0 %4753
        %4755 = vadd.xlane.f32.xlu0 %v4743
        %v4756 = vpop.xlane.xlu0 %4755
        %4757 = vadd.xlane.f32.xlu0 %v4744
        %v4758 = vpop.xlane.xlu0 %4757
        %4759 = vadd.xlane.f32.xlu0 %v4745
        %v4760 = vpop.xlane.xlu0 %4759
        %4761 = vadd.xlane.f32.xlu0 %v4746
        %v4762 = vpop.xlane.xlu0 %4761
        %v4763 = vmul.f32 %v4748, %v566
        %v4764 = vmul.f32 %v4750, %v566
        %v4765 = vmul.f32 %v4752, %v566
        %v4766 = vmul.f32 %v4754, %v566
        %v4767 = vmul.f32 %v4756, %v566
        %v4768 = vmul.f32 %v4758, %v566
        %v4769 = vmul.f32 %v4760, %v566
        %v4770 = vmul.f32 %v4762, %v566
        %v4771 = vadd.f32 %v4763, 1e-05
        %v4772 = vadd.f32 %v4764, 1e-05
        %v4773 = vadd.f32 %v4765, 1e-05
        %v4774 = vadd.f32 %v4766, 1e-05
        %v4775 = vadd.f32 %v4767, 1e-05
        %v4776 = vadd.f32 %v4768, 1e-05
        %v4777 = vadd.f32 %v4769, 1e-05
        %v4778 = vadd.f32 %v4770, 1e-05
        %v4779 = vrsqrt.pop %v4771
        %v4780 = vrsqrt.pop %v4772
        %v4781 = vrsqrt.pop %v4773
        %v4782 = vrsqrt.pop %v4774
        %v4783 = vrsqrt.pop %v4775
        %v4784 = vrsqrt.pop %v4776
        %v4785 = vrsqrt.pop %v4777
        %v4786 = vrsqrt.pop %v4778
        %v4787 = vmul.f32 %v4731, %v4779
        %v4788 = vmul.f32 %v4732, %v4780
        %v4789 = vmul.f32 %v4733, %v4781
        %v4790 = vmul.f32 %v4734, %v4782
        %v4791 = vmul.f32 %v4735, %v4783
        %v4792 = vmul.f32 %v4736, %v4784
        %v4793 = vmul.f32 %v4737, %v4785
        %v4794 = vmul.f32 %v4738, %v4786
        %v4796 = vlaneseq
        %v4797 = vshrl.u32 %v4796, 7
        %v4798 = vsub.s32 0, %v4797
        %v4799 = vrot.slane %v4704, %v4798
        %v4801 = vmul.f32 %v4787, %v4799
        %v4802 = vmul.f32 %v4788, %v4799
        %v4803 = vmul.f32 %v4789, %v4799
        %v4804 = vmul.f32 %v4790, %v4799
        %v4805 = vmul.f32 %v4791, %v4799
        %v4806 = vmul.f32 %v4792, %v4799
        %v4807 = vmul.f32 %v4793, %v4799
        %v4808 = vmul.f32 %v4794, %v4799
        %v4810 = vlaneseq
        %v4811 = vshrl.u32 %v4810, 7
        %v4812 = vsub.s32 0, %v4811
        %v4813 = vrot.slane %v4706, %v4812
        %v4815 = vadd.f32 %v4801, %v4813
        %v4816 = vadd.f32 %v4802, %v4813
        %v4817 = vadd.f32 %v4803, %v4813
        %v4818 = vadd.f32 %v4804, %v4813
        %v4819 = vadd.f32 %v4805, %v4813
        %v4820 = vadd.f32 %v4806, %v4813
        %v4821 = vadd.f32 %v4807, %v4813
        %v4822 = vadd.f32 %v4808, %v4813
        %v4823 = vpack.c.bf16 %v4816, %v4815
        %v4824 = vpack.c.bf16 %v4818, %v4817
        %v4825 = vpack.c.bf16 %v4820, %v4819
        %v4826 = vpack.c.bf16 %v4822, %v4821
        %s4827 = scalar_lea.vmem %s3, 256
        %v4828 = vld [vmem:[%s4827] sm:$0xf]
        %v4829 = vld [vmem:[%s4827 + $0x4] sm:$0xf]
        %v4830 = vld [vmem:[%s4827 + $0x8] sm:$0xf]
        %v4831 = vld [vmem:[%s4827 + $0xc] sm:$0xf]
        %v4832 = vld [vmem:[%s4827 + $0x10] sm:$0xf]
        %v4833 = vld [vmem:[%s4827 + $0x14] sm:$0xf]
        %v4834 = vld [vmem:[%s4827 + $0x18] sm:$0xf]
        %v4835 = vld [vmem:[%s4827 + $0x1c] sm:$0xf]
        %v4836 = vld [vmem:[%s4827 + $0x20] sm:$0xf]
        %v4837 = vld [vmem:[%s4827 + $0x24] sm:$0xf]
        %v4838 = vld [vmem:[%s4827 + $0x28] sm:$0xf]
        %v4839 = vld [vmem:[%s4827 + $0x2c] sm:$0xf]
        %v4840 = vld [vmem:[%s4827 + $0x30] sm:$0xf]
        %v4841 = vld [vmem:[%s4827 + $0x34] sm:$0xf]
        %v4842 = vld [vmem:[%s4827 + $0x38] sm:$0xf]
        %v4843 = vld [vmem:[%s4827 + $0x3c] sm:$0xf]
        %v4860 = vunpack.c.l.b16 %v4828
        %v4861 = vunpack.c.l.b16 %v4829
        %v4862 = vunpack.c.l.b16 %v4830
        %v4863 = vunpack.c.l.b16 %v4831
        %v4864 = vunpack.c.l.b16 %v4832
        %v4865 = vunpack.c.l.b16 %v4833
        %v4866 = vunpack.c.l.b16 %v4834
        %v4867 = vunpack.c.l.b16 %v4835
        %v4868 = vunpack.c.l.b16 %v4836
        %v4869 = vunpack.c.l.b16 %v4837
        %v4870 = vunpack.c.l.b16 %v4838
        %v4871 = vunpack.c.l.b16 %v4839
        %v4872 = vunpack.c.l.b16 %v4840
        %v4873 = vunpack.c.l.b16 %v4841
        %v4874 = vunpack.c.l.b16 %v4842
        %v4875 = vunpack.c.l.b16 %v4843
        %v4876 = vpack.c.b16 %v4861, %v4860
        %v4877 = vpack.c.b16 %v4863, %v4862
        %v4878 = vpack.c.b16 %v4865, %v4864
        %v4879 = vpack.c.b16 %v4867, %v4866
        %v4880 = vpack.c.b16 %v4869, %v4868
        %v4881 = vpack.c.b16 %v4871, %v4870
        %v4882 = vpack.c.b16 %v4873, %v4872
        %v4883 = vpack.c.b16 %v4875, %v4874
        %4892 = vmatprep.subr.bf16.mxu0 0
        %4893 = vmatpush1.bf16.msra.mxu0 %v4876
        %4894 = vmatprep.subr.bf16.mxu0 0
        %4895 = vmatpush1.bf16.msra.mxu0 %v4877
        %4896 = vmatprep.subr.bf16.mxu0 0
        %4897 = vmatpush1.bf16.msra.mxu0 %v4878
        %4898 = vmatprep.subr.bf16.mxu0 0
        %4899 = vmatpush1.bf16.msra.mxu0 %v4879
        %4900 = vmatprep.subr.bf16.mxu0 0
        %4901 = vmatpush1.bf16.msra.mxu0 %v4880
        %4902 = vmatprep.subr.bf16.mxu0 0
        %4903 = vmatpush1.bf16.msra.mxu0 %v4881
        %4904 = vmatprep.subr.bf16.mxu0 0
        %4905 = vmatpush1.bf16.msra.mxu0 %v4882
        %4906 = vmatprep.subr.bf16.mxu0 0
        %4907 = vmatpush1.bf16.msra.mxu0 %v4883
        %4908 = vmatprep.subr.bf16.mxu0 0
        %4909 = vmatpush1.bf16.msra.mxu0 0
        %4910 = vmatprep.subr.bf16.mxu0 0
        %4911 = vmatpush1.bf16.msra.mxu0 0
        %4912 = vmatprep.subr.bf16.mxu0 0
        %4913 = vmatpush1.bf16.msra.mxu0 0
        %4914 = vmatprep.subr.bf16.mxu0 0
        %4915 = vmatpush1.bf16.msra.mxu0 0
        %4916 = vmatprep.subr.bf16.mxu0 0
        %4917 = vmatpush1.bf16.msra.mxu0 0
        %4918 = vmatprep.subr.bf16.mxu0 0
        %4919 = vmatpush1.bf16.msra.mxu0 0
        %4920 = vmatprep.subr.bf16.mxu0 0
        %4921 = vmatpush1.bf16.msra.mxu0 0
        %4922 = vmatprep.subr.bf16.mxu0 0
        %4923 = vmatpush1.bf16.msra.mxu0 0
        %4924 = vmatprep.mubr.bf16.mxu0 0
        %4925 = vmatmul.mubr.bf16.gmra.mrb[0].mxu0 %v4823
        %v4926 = vpop.f32.mrb[0].mxu0
        %v4927 = vadd.f32 0.0, %v4926
        %v4928 = vpop.f32.mrb[0].mxu0
        %v4929 = vpop.f32.mrb[0].mxu0
        %v4930 = vadd.f32 0.0, %v4929
        %v4931 = vpop.f32.mrb[0].mxu0
        %4932 = vmatprep.mubr.bf16.mxu0 0
        %4933 = vmatmul.mubr.bf16.gmra.mrb[0].mxu0 %v4824
        %v4934 = vpop.f32.mrb[0].mxu0
        %v4935 = vadd.f32 0.0, %v4934
        %v4936 = vpop.f32.mrb[0].mxu0
        %v4937 = vpop.f32.mrb[0].mxu0
        %v4938 = vadd.f32 0.0, %v4937
        %v4939 = vpop.f32.mrb[0].mxu0
        %4940 = vmatprep.mubr.bf16.mxu0 0
        %4941 = vmatmul.mubr.bf16.gmra.mrb[0].mxu0 %v4825
        %v4942 = vpop.f32.mrb[0].mxu0
        %v4943 = vadd.f32 0.0, %v4942
        %v4944 = vpop.f32.mrb[0].mxu0
        %v4945 = vpop.f32.mrb[0].mxu0
        %v4946 = vadd.f32 0.0, %v4945
        %v4947 = vpop.f32.mrb[0].mxu0
        %4948 = vmatprep.mubr.bf16.mxu0 0
        %4949 = vmatmul.mubr.bf16.gmra.mrb[0].mxu0 %v4826
        %v4950 = vpop.f32.mrb[0].mxu0
        %v4951 = vadd.f32 0.0, %v4950
        %v4952 = vpop.f32.mrb[0].mxu0
        %v4953 = vpop.f32.mrb[0].mxu0
        %v4954 = vadd.f32 0.0, %v4953
        %v4955 = vpop.f32.mrb[0].mxu0
        %4956 = vdwg.mxu0
        %s4957 = scalar_lea.vmem %s4, 256
        %v4958 = vld [vmem:[%s4957] sm:$0xf]
        %v4959 = vld [vmem:[%s4957 + $0x4] sm:$0xf]
        %v4960 = vld [vmem:[%s4957 + $0x8] sm:$0xf]
        %v4961 = vld [vmem:[%s4957 + $0xc] sm:$0xf]
        %v4962 = vld [vmem:[%s4957 + $0x10] sm:$0xf]
        %v4963 = vld [vmem:[%s4957 + $0x14] sm:$0xf]
        %v4964 = vld [vmem:[%s4957 + $0x18] sm:$0xf]
        %v4965 = vld [vmem:[%s4957 + $0x1c] sm:$0xf]
        %v4966 = vld [vmem:[%s4957 + $0x20] sm:$0xf]
        %v4967 = vld [vmem:[%s4957 + $0x24] sm:$0xf]
        %v4968 = vld [vmem:[%s4957 + $0x28] sm:$0xf]
        %v4969 = vld [vmem:[%s4957 + $0x2c] sm:$0xf]
        %v4970 = vld [vmem:[%s4957 + $0x30] sm:$0xf]
        %v4971 = vld [vmem:[%s4957 + $0x34] sm:$0xf]
        %v4972 = vld [vmem:[%s4957 + $0x38] sm:$0xf]
        %v4973 = vld [vmem:[%s4957 + $0x3c] sm:$0xf]
        %v4990 = vunpack.c.l.b16 %v4958
        %v4991 = vunpack.c.l.b16 %v4959
        %v4992 = vunpack.c.l.b16 %v4960
        %v4993 = vunpack.c.l.b16 %v4961
        %v4994 = vunpack.c.l.b16 %v4962
        %v4995 = vunpack.c.l.b16 %v4963
        %v4996 = vunpack.c.l.b16 %v4964
        %v4997 = vunpack.c.l.b16 %v4965
        %v4998 = vunpack.c.l.b16 %v4966
        %v4999 = vunpack.c.l.b16 %v4967
        %v5000 = vunpack.c.l.b16 %v4968
        %v5001 = vunpack.c.l.b16 %v4969
        %v5002 = vunpack.c.l.b16 %v4970
        %v5003 = vunpack.c.l.b16 %v4971
        %v5004 = vunpack.c.l.b16 %v4972
        %v5005 = vunpack.c.l.b16 %v4973
        %v5006 = vpack.c.b16 %v4991, %v4990
        %v5007 = vpack.c.b16 %v4993, %v4992
        %v5008 = vpack.c.b16 %v4995, %v4994
        %v5009 = vpack.c.b16 %v4997, %v4996
        %v5010 = vpack.c.b16 %v4999, %v4998
        %v5011 = vpack.c.b16 %v5001, %v5000
        %v5012 = vpack.c.b16 %v5003, %v5002
        %v5013 = vpack.c.b16 %v5005, %v5004
        %5022 = vmatprep.subr.bf16.mxu0 0
        %5023 = vmatpush1.bf16.msra.mxu0 %v5006
        %5024 = vmatprep.subr.bf16.mxu0 0
        %5025 = vmatpush1.bf16.msra.mxu0 %v5007
        %5026 = vmatprep.subr.bf16.mxu0 0
        %5027 = vmatpush1.bf16.msra.mxu0 %v5008
        %5028 = vmatprep.subr.bf16.mxu0 0
        %5029 = vmatpush1.bf16.msra.mxu0 %v5009
        %5030 = vmatprep.subr.bf16.mxu0 0
        %5031 = vmatpush1.bf16.msra.mxu0 %v5010
        %5032 = vmatprep.subr.bf16.mxu0 0
        %5033 = vmatpush1.bf16.msra.mxu0 %v5011
        %5034 = vmatprep.subr.bf16.mxu0 0
        %5035 = vmatpush1.bf16.msra.mxu0 %v5012
        %5036 = vmatprep.subr.bf16.mxu0 0
        %5037 = vmatpush1.bf16.msra.mxu0 %v5013
        %5038 = vmatprep.subr.bf16.mxu0 0
        %5039 = vmatpush1.bf16.msra.mxu0 0
        %5040 = vmatprep.subr.bf16.mxu0 0
        %5041 = vmatpush1.bf16.msra.mxu0 0
        %5042 = vmatprep.subr.bf16.mxu0 0
        %5043 = vmatpush1.bf16.msra.mxu0 0
        %5044 = vmatprep.subr.bf16.mxu0 0
        %5045 = vmatpush1.bf16.msra.mxu0 0
        %5046 = vmatprep.subr.bf16.mxu0 0
        %5047 = vmatpush1.bf16.msra.mxu0 0
        %5048 = vmatprep.subr.bf16.mxu0 0
        %5049 = vmatpush1.bf16.msra.mxu0 0
        %5050 = vmatprep.subr.bf16.mxu0 0
        %5051 = vmatpush1.bf16.msra.mxu0 0
        %5052 = vmatprep.subr.bf16.mxu0 0
        %5053 = vmatpush1.bf16.msra.mxu0 0
        %5054 = vmatprep.mubr.bf16.mxu0 0
        %5055 = vmatmul.mubr.bf16.gmra.mrb[0].mxu0 %v4823
        %v5056 = vpop.f32.mrb[0].mxu0
        %v5057 = vadd.f32 0.0, %v5056
        %v5058 = vpop.f32.mrb[0].mxu0
        %v5059 = vpop.f32.mrb[0].mxu0
        %v5060 = vadd.f32 0.0, %v5059
        %v5061 = vpop.f32.mrb[0].mxu0
        %5062 = vmatprep.mubr.bf16.mxu0 0
        %5063 = vmatmul.mubr.bf16.gmra.mrb[0].mxu0 %v4824
        %v5064 = vpop.f32.mrb[0].mxu0
        %v5065 = vadd.f32 0.0, %v5064
        %v5066 = vpop.f32.mrb[0].mxu0
        %v5067 = vpop.f32.mrb[0].mxu0
        %v5068 = vadd.f32 0.0, %v5067
        %v5069 = vpop.f32.mrb[0].mxu0
        %5070 = vmatprep.mubr.bf16.mxu0 0
        %5071 = vmatmul.mubr.bf16.gmra.mrb[0].mxu0 %v4825
        %v5072 = vpop.f32.mrb[0].mxu0
        %v5073 = vadd.f32 0.0, %v5072
        %v5074 = vpop.f32.mrb[0].mxu0
        %v5075 = vpop.f32.mrb[0].mxu0
        %v5076 = vadd.f32 0.0, %v5075
        %v5077 = vpop.f32.mrb[0].mxu0
        %5078 = vmatprep.mubr.bf16.mxu0 0
        %5079 = vmatmul.mubr.bf16.gmra.mrb[0].mxu0 %v4826
        %v5080 = vpop.f32.mrb[0].mxu0
        %v5081 = vadd.f32 0.0, %v5080
        %v5082 = vpop.f32.mrb[0].mxu0
        %v5083 = vpop.f32.mrb[0].mxu0
        %v5084 = vadd.f32 0.0, %v5083
        %v5085 = vpop.f32.mrb[0].mxu0
        %5086 = vdwg.mxu0
        %s5087 = scalar_lea.vmem %s5, 256
        %v5088 = vld [vmem:[%s5087] sm:$0xf]
        %v5089 = vld [vmem:[%s5087 + $0x4] sm:$0xf]
        %v5090 = vld [vmem:[%s5087 + $0x8] sm:$0xf]
        %v5091 = vld [vmem:[%s5087 + $0xc] sm:$0xf]
        %v5092 = vld [vmem:[%s5087 + $0x10] sm:$0xf]
        %v5093 = vld [vmem:[%s5087 + $0x14] sm:$0xf]
        %v5094 = vld [vmem:[%s5087 + $0x18] sm:$0xf]
        %v5095 = vld [vmem:[%s5087 + $0x1c] sm:$0xf]
        %v5096 = vld [vmem:[%s5087 + $0x20] sm:$0xf]
        %v5097 = vld [vmem:[%s5087 + $0x24] sm:$0xf]
        %v5098 = vld [vmem:[%s5087 + $0x28] sm:$0xf]
        %v5099 = vld [vmem:[%s5087 + $0x2c] sm:$0xf]
        %v5100 = vld [vmem:[%s5087 + $0x30] sm:$0xf]
        %v5101 = vld [vmem:[%s5087 + $0x34] sm:$0xf]
        %v5102 = vld [vmem:[%s5087 + $0x38] sm:$0xf]
        %v5103 = vld [vmem:[%s5087 + $0x3c] sm:$0xf]
        %v5120 = vunpack.c.l.b16 %v5088
        %v5121 = vunpack.c.l.b16 %v5089
        %v5122 = vunpack.c.l.b16 %v5090
        %v5123 = vunpack.c.l.b16 %v5091
        %v5124 = vunpack.c.l.b16 %v5092
        %v5125 = vunpack.c.l.b16 %v5093
        %v5126 = vunpack.c.l.b16 %v5094
        %v5127 = vunpack.c.l.b16 %v5095
        %v5128 = vunpack.c.l.b16 %v5096
        %v5129 = vunpack.c.l.b16 %v5097
        %v5130 = vunpack.c.l.b16 %v5098
        %v5131 = vunpack.c.l.b16 %v5099
        %v5132 = vunpack.c.l.b16 %v5100
        %v5133 = vunpack.c.l.b16 %v5101
        %v5134 = vunpack.c.l.b16 %v5102
        %v5135 = vunpack.c.l.b16 %v5103
        %v5136 = vpack.c.b16 %v5121, %v5120
        %v5137 = vpack.c.b16 %v5123, %v5122
        %v5138 = vpack.c.b16 %v5125, %v5124
        %v5139 = vpack.c.b16 %v5127, %v5126
        %v5140 = vpack.c.b16 %v5129, %v5128
        %v5141 = vpack.c.b16 %v5131, %v5130
        %v5142 = vpack.c.b16 %v5133, %v5132
        %v5143 = vpack.c.b16 %v5135, %v5134
        %5152 = vmatprep.subr.bf16.mxu0 0
        %5153 = vmatpush1.bf16.msra.mxu0 %v5136
        %5154 = vmatprep.subr.bf16.mxu0 0
        %5155 = vmatpush1.bf16.msra.mxu0 %v5137
        %5156 = vmatprep.subr.bf16.mxu0 0
        %5157 = vmatpush1.bf16.msra.mxu0 %v5138
        %5158 = vmatprep.subr.bf16.mxu0 0
        %5159 = vmatpush1.bf16.msra.mxu0 %v5139
        %5160 = vmatprep.subr.bf16.mxu0 0
        %5161 = vmatpush1.bf16.msra.mxu0 %v5140
        %5162 = vmatprep.subr.bf16.mxu0 0
        %5163 = vmatpush1.bf16.msra.mxu0 %v5141
        %5164 = vmatprep.subr.bf16.mxu0 0
        %5165 = vmatpush1.bf16.msra.mxu0 %v5142
        %5166 = vmatprep.subr.bf16.mxu0 0
        %5167 = vmatpush1.bf16.msra.mxu0 %v5143
        %5168 = vmatprep.subr.bf16.mxu0 0
        %5169 = vmatpush1.bf16.msra.mxu0 0
        %5170 = vmatprep.subr.bf16.mxu0 0
        %5171 = vmatpush1.bf16.msra.mxu0 0
        %5172 = vmatprep.subr.bf16.mxu0 0
        %5173 = vmatpush1.bf16.msra.mxu0 0
        %5174 = vmatprep.subr.bf16.mxu0 0
        %5175 = vmatpush1.bf16.msra.mxu0 0
        %5176 = vmatprep.subr.bf16.mxu0 0
        %5177 = vmatpush1.bf16.msra.mxu0 0
        %5178 = vmatprep.subr.bf16.mxu0 0
        %5179 = vmatpush1.bf16.msra.mxu0 0
        %5180 = vmatprep.subr.bf16.mxu0 0
        %5181 = vmatpush1.bf16.msra.mxu0 0
        %5182 = vmatprep.subr.bf16.mxu0 0
        %5183 = vmatpush1.bf16.msra.mxu0 0
        %5184 = vmatprep.mubr.bf16.mxu0 0
        %5185 = vmatmul.mubr.bf16.gmra.mrb[0].mxu0 %v4823
        %v5186 = vpop.f32.mrb[0].mxu0
        %v5187 = vadd.f32 0.0, %v5186
        %v5188 = vpop.f32.mrb[0].mxu0
        %v5189 = vpop.f32.mrb[0].mxu0
        %v5190 = vadd.f32 0.0, %v5189
        %v5191 = vpop.f32.mrb[0].mxu0
        %5192 = vmatprep.mubr.bf16.mxu0 0
        %5193 = vmatmul.mubr.bf16.gmra.mrb[0].mxu0 %v4824
        %v5194 = vpop.f32.mrb[0].mxu0
        %v5195 = vadd.f32 0.0, %v5194
        %v5196 = vpop.f32.mrb[0].mxu0
        %v5197 = vpop.f32.mrb[0].mxu0
        %v5198 = vadd.f32 0.0, %v5197
        %v5199 = vpop.f32.mrb[0].mxu0
        %5200 = vmatprep.mubr.bf16.mxu0 0
        %5201 = vmatmul.mubr.bf16.gmra.mrb[0].mxu0 %v4825
        %v5202 = vpop.f32.mrb[0].mxu0
        %v5203 = vadd.f32 0.0, %v5202
        %v5204 = vpop.f32.mrb[0].mxu0
        %v5205 = vpop.f32.mrb[0].mxu0
        %v5206 = vadd.f32 0.0, %v5205
        %v5207 = vpop.f32.mrb[0].mxu0
        %5208 = vmatprep.mubr.bf16.mxu0 0
        %5209 = vmatmul.mubr.bf16.gmra.mrb[0].mxu0 %v4826
        %v5210 = vpop.f32.mrb[0].mxu0
        %v5211 = vadd.f32 0.0, %v5210
        %v5212 = vpop.f32.mrb[0].mxu0
        %v5213 = vpop.f32.mrb[0].mxu0
        %v5214 = vadd.f32 0.0, %v5213
        %v5215 = vpop.f32.mrb[0].mxu0
        %5216 = vdwg.mxu0
        %v5217 = vpack.c.bf16 %v4930, %v4927
        %v5218 = vpack.c.bf16 %v4938, %v4935
        %v5219 = vpack.c.bf16 %v4946, %v4943
        %v5220 = vpack.c.bf16 %v4954, %v4951
        %v5221 = vpack.c.bf16 %v5060, %v5057
        %v5222 = vpack.c.bf16 %v5068, %v5065
        %v5223 = vpack.c.bf16 %v5076, %v5073
        %v5224 = vpack.c.bf16 %v5084, %v5081
        %v5226 = vsel %vm1066, %v5217, 0
        %v5229 = vsel %vm1066, %v5218, 0
        %v5232 = vsel %vm1066, %v5219, 0
        %v5235 = vsel %vm1066, %v5220, 0
        %v5238 = vsel %vm1066, %v5221, 0
        %v5241 = vsel %vm1066, %v5222, 0
        %v5244 = vsel %vm1066, %v5223, 0
        %v5247 = vsel %vm1066, %v5224, 0
        %5249 = vmatprep.subr.bf16.mxu0 0
        %5250 = vmatpush1.bf16.xpose.msra.mxu0 %v5238
        %5251 = vmatprep.subr.bf16.mxu0 0
        %5252 = vmatpush1.bf16.xpose.msra.mxu0 %v5241
        %5253 = vmatprep.subr.bf16.mxu0 0
        %5254 = vmatpush1.bf16.xpose.msra.mxu0 %v5244
        %5255 = vmatprep.subr.bf16.mxu0 0
        %5256 = vmatpush1.bf16.xpose.msra.mxu0 %v5247
        %5257 = vmatprep.subr.bf16.mxu0 0
        %5258 = vmatpush1.bf16.xpose.msra.mxu0 0
        %5259 = vmatprep.subr.bf16.mxu0 0
        %5260 = vmatpush1.bf16.xpose.msra.mxu0 0
        %5261 = vmatprep.subr.bf16.mxu0 0
        %5262 = vmatpush1.bf16.xpose.msra.mxu0 0
        %5263 = vmatprep.subr.bf16.mxu0 0
        %5264 = vmatpush1.bf16.xpose.msra.mxu0 0
        %5265 = vmatprep.subr.bf16.mxu0 0
        %5266 = vmatpush1.bf16.xpose.msra.mxu0 0
        %5267 = vmatprep.subr.bf16.mxu0 0
        %5268 = vmatpush1.bf16.xpose.msra.mxu0 0
        %5269 = vmatprep.subr.bf16.mxu0 0
        %5270 = vmatpush1.bf16.xpose.msra.mxu0 0
        %5271 = vmatprep.subr.bf16.mxu0 0
        %5272 = vmatpush1.bf16.xpose.msra.mxu0 0
        %5273 = vmatprep.subr.bf16.mxu0 0
        %5274 = vmatpush1.bf16.xpose.msra.mxu0 0
        %5275 = vmatprep.subr.bf16.mxu0 0
        %5276 = vmatpush1.bf16.xpose.msra.mxu0 0
        %5277 = vmatprep.subr.bf16.mxu0 0
        %5278 = vmatpush1.bf16.xpose.msra.mxu0 0
        %5279 = vmatprep.subr.bf16.mxu0 0
        %5280 = vmatpush1.bf16.xpose.msra.mxu0 0
        %5281 = vmatprep.mubr.bf16.mxu0 0
        %5282 = vmatmul.mubr.bf16.gmra.mrb[0].mxu0 %v5226
        %v5283 = vpop.f32.mrb[0].mxu0
        %v5284 = vadd.f32 0.0, %v5283
        %v5285 = vpop.f32.mrb[0].mxu0
        %v5286 = vpop.f32.mrb[0].mxu0
        %v5287 = vadd.f32 0.0, %v5286
        %v5288 = vpop.f32.mrb[0].mxu0
        %5289 = vmatprep.mubr.bf16.mxu0 0
        %5290 = vmatmul.mubr.bf16.gmra.mrb[0].mxu0 %v5229
        %v5291 = vpop.f32.mrb[0].mxu0
        %v5292 = vadd.f32 0.0, %v5291
        %v5293 = vpop.f32.mrb[0].mxu0
        %v5294 = vpop.f32.mrb[0].mxu0
        %v5295 = vadd.f32 0.0, %v5294
        %v5296 = vpop.f32.mrb[0].mxu0
        %5297 = vmatprep.mubr.bf16.mxu0 0
        %5298 = vmatmul.mubr.bf16.gmra.mrb[0].mxu0 %v5232
        %v5299 = vpop.f32.mrb[0].mxu0
        %v5300 = vadd.f32 0.0, %v5299
        %v5301 = vpop.f32.mrb[0].mxu0
        %v5302 = vpop.f32.mrb[0].mxu0
        %v5303 = vadd.f32 0.0, %v5302
        %v5304 = vpop.f32.mrb[0].mxu0
        %5305 = vmatprep.mubr.bf16.mxu0 0
        %5306 = vmatmul.mubr.bf16.gmra.mrb[0].mxu0 %v5235
        %v5307 = vpop.f32.mrb[0].mxu0
        %v5308 = vadd.f32 0.0, %v5307
        %v5309 = vpop.f32.mrb[0].mxu0
        %v5310 = vpop.f32.mrb[0].mxu0
        %v5311 = vadd.f32 0.0, %v5310
        %v5312 = vpop.f32.mrb[0].mxu0
        %5313 = vdwg.mxu0
        %v5314 = vsel %vm540, %v5284, -1e+30
        %v5315 = vsel %vm541, %v5287, -1e+30
        %v5316 = vsel %vm542, %v5292, -1e+30
        %v5317 = vsel %vm543, %v5295, -1e+30
        %v5318 = vsel %vm544, %v5300, -1e+30
        %v5319 = vsel %vm545, %v5303, -1e+30
        %v5320 = vsel %vm546, %v5308, -1e+30
        %v5321 = vsel %vm547, %v5311, -1e+30
        %v5322 = vsel %vm1164, %v5314, -inf
        %5323 = vmax.xlane.f32.xlu0 %v5322
        %v5324 = vpop.xlane.xlu0 %5323
        %v5325 = vsel %vm1164, %v5315, -inf
        %5326 = vmax.xlane.f32.xlu0 %v5325
        %v5327 = vpop.xlane.xlu0 %5326
        %v5328 = vsel %vm1164, %v5316, -inf
        %5329 = vmax.xlane.f32.xlu0 %v5328
        %v5330 = vpop.xlane.xlu0 %5329
        %v5331 = vsel %vm1164, %v5317, -inf
        %5332 = vmax.xlane.f32.xlu0 %v5331
        %v5333 = vpop.xlane.xlu0 %5332
        %v5334 = vsel %vm1164, %v5318, -inf
        %5335 = vmax.xlane.f32.xlu0 %v5334
        %v5336 = vpop.xlane.xlu0 %5335
        %v5337 = vsel %vm1164, %v5319, -inf
        %5338 = vmax.xlane.f32.xlu0 %v5337
        %v5339 = vpop.xlane.xlu0 %5338
        %v5340 = vsel %vm1164, %v5320, -inf
        %5341 = vmax.xlane.f32.xlu0 %v5340
        %v5342 = vpop.xlane.xlu0 %5341
        %v5343 = vsel %vm1164, %v5321, -inf
        %5344 = vmax.xlane.f32.xlu0 %v5343
        %v5345 = vpop.xlane.xlu0 %5344
        %v5346 = vsub.f32 %v5314, %v5324
        %v5347 = vsub.f32 %v5315, %v5327
        %v5348 = vsub.f32 %v5316, %v5330
        %v5349 = vsub.f32 %v5317, %v5333
        %v5350 = vsub.f32 %v5318, %v5336
        %v5351 = vsub.f32 %v5319, %v5339
        %v5352 = vsub.f32 %v5320, %v5342
        %v5353 = vsub.f32 %v5321, %v5345
        %v5354 = vmul.f32 %v5346, 1.442695
        %v5355 = vpow.pop %v5354
        %v5356 = vmul.f32 %v5347, 1.442695
        %v5357 = vpow.pop %v5356
        %v5358 = vmul.f32 %v5348, 1.442695
        %v5359 = vpow.pop %v5358
        %v5360 = vmul.f32 %v5349, 1.442695
        %v5361 = vpow.pop %v5360
        %v5362 = vmul.f32 %v5350, 1.442695
        %v5363 = vpow.pop %v5362
        %v5364 = vmul.f32 %v5351, 1.442695
        %v5365 = vpow.pop %v5364
        %v5366 = vmul.f32 %v5352, 1.442695
        %v5367 = vpow.pop %v5366
        %v5368 = vmul.f32 %v5353, 1.442695
        %v5369 = vpow.pop %v5368
        %v5370 = vsel %vm1164, %v5355, 0.0
        %5371 = vadd.xlane.f32.xlu0 %v5370
        %v5372 = vpop.xlane.xlu0 %5371
        %v5373 = vsel %vm1164, %v5357, 0.0
        %5374 = vadd.xlane.f32.xlu0 %v5373
        %v5375 = vpop.xlane.xlu0 %5374
        %v5376 = vsel %vm1164, %v5359, 0.0
        %5377 = vadd.xlane.f32.xlu0 %v5376
        %v5378 = vpop.xlane.xlu0 %5377
        %v5379 = vsel %vm1164, %v5361, 0.0
        %5380 = vadd.xlane.f32.xlu0 %v5379
        %v5381 = vpop.xlane.xlu0 %5380
        %v5382 = vsel %vm1164, %v5363, 0.0
        %5383 = vadd.xlane.f32.xlu0 %v5382
        %v5384 = vpop.xlane.xlu0 %5383
        %v5385 = vsel %vm1164, %v5365, 0.0
        %5386 = vadd.xlane.f32.xlu0 %v5385
        %v5387 = vpop.xlane.xlu0 %5386
        %v5388 = vsel %vm1164, %v5367, 0.0
        %5389 = vadd.xlane.f32.xlu0 %v5388
        %v5390 = vpop.xlane.xlu0 %5389
        %v5391 = vsel %vm1164, %v5369, 0.0
        %5392 = vadd.xlane.f32.xlu0 %v5391
        %v5393 = vpop.xlane.xlu0 %5392
        %v5394 = vrcp.pop %v5372
        %v5395 = vrcp.pop %v5375
        %v5396 = vrcp.pop %v5378
        %v5397 = vrcp.pop %v5381
        %v5398 = vrcp.pop %v5384
        %v5399 = vrcp.pop %v5387
        %v5400 = vrcp.pop %v5390
        %v5401 = vrcp.pop %v5393
        %v5402 = vmul.f32 %v5355, %v5394
        %v5403 = vmul.f32 %v5357, %v5395
        %v5404 = vmul.f32 %v5359, %v5396
        %v5405 = vmul.f32 %v5361, %v5397
        %v5406 = vmul.f32 %v5363, %v5398
        %v5407 = vmul.f32 %v5365, %v5399
        %v5408 = vmul.f32 %v5367, %v5400
        %v5409 = vmul.f32 %v5369, %v5401
        %v5410 = vpack.c.bf16 %v5403, %v5402
        %v5411 = vpack.c.bf16 %v5405, %v5404
        %v5412 = vpack.c.bf16 %v5407, %v5406
        %v5413 = vpack.c.bf16 %v5409, %v5408
        %v5414 = vpack.c.bf16 %v5190, %v5187
        %v5415 = vpack.c.bf16 %v5198, %v5195
        %v5416 = vpack.c.bf16 %v5206, %v5203
        %v5417 = vpack.c.bf16 %v5214, %v5211
        %v5419 = vsel %vm1164, %v5410, 0
        %v5422 = vsel %vm1164, %v5411, 0
        %v5425 = vsel %vm1164, %v5412, 0
        %v5428 = vsel %vm1164, %v5413, 0
        %5430 = vmatprep.subr.bf16.mxu0 0
        %5431 = vmatpush1.bf16.msra.mxu0 %v5414
        %5432 = vmatprep.subr.bf16.mxu0 0
        %5433 = vmatpush1.bf16.msra.mxu0 %v5415
        %5434 = vmatprep.subr.bf16.mxu0 0
        %5435 = vmatpush1.bf16.msra.mxu0 %v5416
        %5436 = vmatprep.subr.bf16.mxu0 0
        %5437 = vmatpush1.bf16.msra.mxu0 %v5417
        %5438 = vmatprep.subr.bf16.mxu0 0
        %5439 = vmatpush1.bf16.msra.mxu0 0
        %5440 = vmatprep.subr.bf16.mxu0 0
        %5441 = vmatpush1.bf16.msra.mxu0 0
        %5442 = vmatprep.subr.bf16.mxu0 0
        %5443 = vmatpush1.bf16.msra.mxu0 0
        %5444 = vmatprep.subr.bf16.mxu0 0
        %5445 = vmatpush1.bf16.msra.mxu0 0
        %5446 = vmatprep.subr.bf16.mxu0 0
        %5447 = vmatpush1.bf16.msra.mxu0 0
        %5448 = vmatprep.subr.bf16.mxu0 0
        %5449 = vmatpush1.bf16.msra.mxu0 0
        %5450 = vmatprep.subr.bf16.mxu0 0
        %5451 = vmatpush1.bf16.msra.mxu0 0
        %5452 = vmatprep.subr.bf16.mxu0 0
        %5453 = vmatpush1.bf16.msra.mxu0 0
        %5454 = vmatprep.subr.bf16.mxu0 0
        %5455 = vmatpush1.bf16.msra.mxu0 0
        %5456 = vmatprep.subr.bf16.mxu0 0
        %5457 = vmatpush1.bf16.msra.mxu0 0
        %5458 = vmatprep.subr.bf16.mxu0 0
        %5459 = vmatpush1.bf16.msra.mxu0 0
        %5460 = vmatprep.subr.bf16.mxu0 0
        %5461 = vmatpush1.bf16.msra.mxu0 0
        %5462 = vmatprep.mubr.bf16.mxu0 0
        %5463 = vmatmul.mubr.bf16.gmra.mrb[0].mxu0 %v5419
        %v5464 = vpop.f32.mrb[0].mxu0
        %v5465 = vadd.f32 0.0, %v5464
        %v5466 = vpop.f32.mrb[0].mxu0
        %v5467 = vpop.f32.mrb[0].mxu0
        %v5468 = vadd.f32 0.0, %v5467
        %v5469 = vpop.f32.mrb[0].mxu0
        %5470 = vmatprep.mubr.bf16.mxu0 0
        %5471 = vmatmul.mubr.bf16.gmra.mrb[0].mxu0 %v5422
        %v5472 = vpop.f32.mrb[0].mxu0
        %v5473 = vadd.f32 0.0, %v5472
        %v5474 = vpop.f32.mrb[0].mxu0
        %v5475 = vpop.f32.mrb[0].mxu0
        %v5476 = vadd.f32 0.0, %v5475
        %v5477 = vpop.f32.mrb[0].mxu0
        %5478 = vmatprep.mubr.bf16.mxu0 0
        %5479 = vmatmul.mubr.bf16.gmra.mrb[0].mxu0 %v5425
        %v5480 = vpop.f32.mrb[0].mxu0
        %v5481 = vadd.f32 0.0, %v5480
        %v5482 = vpop.f32.mrb[0].mxu0
        %v5483 = vpop.f32.mrb[0].mxu0
        %v5484 = vadd.f32 0.0, %v5483
        %v5485 = vpop.f32.mrb[0].mxu0
        %5486 = vmatprep.mubr.bf16.mxu0 0
        %5487 = vmatmul.mubr.bf16.gmra.mrb[0].mxu0 %v5428
        %v5488 = vpop.f32.mrb[0].mxu0
        %v5489 = vadd.f32 0.0, %v5488
        %v5490 = vpop.f32.mrb[0].mxu0
        %v5491 = vpop.f32.mrb[0].mxu0
        %v5492 = vadd.f32 0.0, %v5491
        %v5493 = vpop.f32.mrb[0].mxu0
        %5494 = vdwg.mxu0
        %v5495 = vpack.c.bf16 %v5468, %v5465
        %v5496 = vpack.c.bf16 %v5476, %v5473
        %v5497 = vpack.c.bf16 %v5484, %v5481
        %v5498 = vpack.c.bf16 %v5492, %v5489
        %s5499 = scalar_lea.vmem %s6, 64
        %v5500 = vld [vmem:[%s5499] sm:$0xf]
        %v5501 = vld [vmem:[%s5499 + $0x4] sm:$0xf]
        %v5502 = vld [vmem:[%s5499 + $0x8] sm:$0xf]
        %v5503 = vld [vmem:[%s5499 + $0xc] sm:$0xf]
        %s5504 = scalar_lea.vmem %s3, 320
        %v5505 = vld [vmem:[%s5504] sm:$0xf]
        %v5506 = vld [vmem:[%s5504 + $0x4] sm:$0xf]
        %v5507 = vld [vmem:[%s5504 + $0x8] sm:$0xf]
        %v5508 = vld [vmem:[%s5504 + $0xc] sm:$0xf]
        %v5509 = vld [vmem:[%s5504 + $0x10] sm:$0xf]
        %v5510 = vld [vmem:[%s5504 + $0x14] sm:$0xf]
        %v5511 = vld [vmem:[%s5504 + $0x18] sm:$0xf]
        %v5512 = vld [vmem:[%s5504 + $0x1c] sm:$0xf]
        %v5513 = vld [vmem:[%s5504 + $0x20] sm:$0xf]
        %v5514 = vld [vmem:[%s5504 + $0x24] sm:$0xf]
        %v5515 = vld [vmem:[%s5504 + $0x28] sm:$0xf]
        %v5516 = vld [vmem:[%s5504 + $0x2c] sm:$0xf]
        %v5517 = vld [vmem:[%s5504 + $0x30] sm:$0xf]
        %v5518 = vld [vmem:[%s5504 + $0x34] sm:$0xf]
        %v5519 = vld [vmem:[%s5504 + $0x38] sm:$0xf]
        %v5520 = vld [vmem:[%s5504 + $0x3c] sm:$0xf]
        %v5537 = vunpack.c.l.b16 %v5505
        %v5538 = vunpack.c.l.b16 %v5506
        %v5539 = vunpack.c.l.b16 %v5507
        %v5540 = vunpack.c.l.b16 %v5508
        %v5541 = vunpack.c.l.b16 %v5509
        %v5542 = vunpack.c.l.b16 %v5510
        %v5543 = vunpack.c.l.b16 %v5511
        %v5544 = vunpack.c.l.b16 %v5512
        %v5545 = vunpack.c.l.b16 %v5513
        %v5546 = vunpack.c.l.b16 %v5514
        %v5547 = vunpack.c.l.b16 %v5515
        %v5548 = vunpack.c.l.b16 %v5516
        %v5549 = vunpack.c.l.b16 %v5517
        %v5550 = vunpack.c.l.b16 %v5518
        %v5551 = vunpack.c.l.b16 %v5519
        %v5552 = vunpack.c.l.b16 %v5520
        %v5553 = vpack.c.b16 %v5538, %v5537
        %v5554 = vpack.c.b16 %v5540, %v5539
        %v5555 = vpack.c.b16 %v5542, %v5541
        %v5556 = vpack.c.b16 %v5544, %v5543
        %v5557 = vpack.c.b16 %v5546, %v5545
        %v5558 = vpack.c.b16 %v5548, %v5547
        %v5559 = vpack.c.b16 %v5550, %v5549
        %v5560 = vpack.c.b16 %v5552, %v5551
        %5569 = vmatprep.subr.bf16.mxu0 0
        %5570 = vmatpush1.bf16.msra.mxu0 %v5553
        %5571 = vmatprep.subr.bf16.mxu0 0
        %5572 = vmatpush1.bf16.msra.mxu0 %v5554
        %5573 = vmatprep.subr.bf16.mxu0 0
        %5574 = vmatpush1.bf16.msra.mxu0 %v5555
        %5575 = vmatprep.subr.bf16.mxu0 0
        %5576 = vmatpush1.bf16.msra.mxu0 %v5556
        %5577 = vmatprep.subr.bf16.mxu0 0
        %5578 = vmatpush1.bf16.msra.mxu0 %v5557
        %5579 = vmatprep.subr.bf16.mxu0 0
        %5580 = vmatpush1.bf16.msra.mxu0 %v5558
        %5581 = vmatprep.subr.bf16.mxu0 0
        %5582 = vmatpush1.bf16.msra.mxu0 %v5559
        %5583 = vmatprep.subr.bf16.mxu0 0
        %5584 = vmatpush1.bf16.msra.mxu0 %v5560
        %5585 = vmatprep.subr.bf16.mxu0 0
        %5586 = vmatpush1.bf16.msra.mxu0 0
        %5587 = vmatprep.subr.bf16.mxu0 0
        %5588 = vmatpush1.bf16.msra.mxu0 0
        %5589 = vmatprep.subr.bf16.mxu0 0
        %5590 = vmatpush1.bf16.msra.mxu0 0
        %5591 = vmatprep.subr.bf16.mxu0 0
        %5592 = vmatpush1.bf16.msra.mxu0 0
        %5593 = vmatprep.subr.bf16.mxu0 0
        %5594 = vmatpush1.bf16.msra.mxu0 0
        %5595 = vmatprep.subr.bf16.mxu0 0
        %5596 = vmatpush1.bf16.msra.mxu0 0
        %5597 = vmatprep.subr.bf16.mxu0 0
        %5598 = vmatpush1.bf16.msra.mxu0 0
        %5599 = vmatprep.subr.bf16.mxu0 0
        %5600 = vmatpush1.bf16.msra.mxu0 0
        %5601 = vmatprep.mubr.bf16.mxu0 0
        %5602 = vmatmul.mubr.bf16.gmra.mrb[0].mxu0 %v4823
        %v5603 = vpop.f32.mrb[0].mxu0
        %v5604 = vadd.f32 0.0, %v5603
        %v5605 = vpop.f32.mrb[0].mxu0
        %v5606 = vpop.f32.mrb[0].mxu0
        %v5607 = vadd.f32 0.0, %v5606
        %v5608 = vpop.f32.mrb[0].mxu0
        %5609 = vmatprep.mubr.bf16.mxu0 0
        %5610 = vmatmul.mubr.bf16.gmra.mrb[0].mxu0 %v4824
        %v5611 = vpop.f32.mrb[0].mxu0
        %v5612 = vadd.f32 0.0, %v5611
        %v5613 = vpop.f32.mrb[0].mxu0
        %v5614 = vpop.f32.mrb[0].mxu0
        %v5615 = vadd.f32 0.0, %v5614
        %v5616 = vpop.f32.mrb[0].mxu0
        %5617 = vmatprep.mubr.bf16.mxu0 0
        %5618 = vmatmul.mubr.bf16.gmra.mrb[0].mxu0 %v4825
        %v5619 = vpop.f32.mrb[0].mxu0
        %v5620 = vadd.f32 0.0, %v5619
        %v5621 = vpop.f32.mrb[0].mxu0
        %v5622 = vpop.f32.mrb[0].mxu0
        %v5623 = vadd.f32 0.0, %v5622
        %v5624 = vpop.f32.mrb[0].mxu0
        %5625 = vmatprep.mubr.bf16.mxu0 0
        %5626 = vmatmul.mubr.bf16.gmra.mrb[0].mxu0 %v4826
        %v5627 = vpop.f32.mrb[0].mxu0
        %v5628 = vadd.f32 0.0, %v5627
        %v5629 = vpop.f32.mrb[0].mxu0
        %v5630 = vpop.f32.mrb[0].mxu0
        %v5631 = vadd.f32 0.0, %v5630
        %v5632 = vpop.f32.mrb[0].mxu0
        %5633 = vdwg.mxu0
        %s5634 = scalar_lea.vmem %s4, 320
        %v5635 = vld [vmem:[%s5634] sm:$0xf]
        %v5636 = vld [vmem:[%s5634 + $0x4] sm:$0xf]
        %v5637 = vld [vmem:[%s5634 + $0x8] sm:$0xf]
        %v5638 = vld [vmem:[%s5634 + $0xc] sm:$0xf]
        %v5639 = vld [vmem:[%s5634 + $0x10] sm:$0xf]
        %v5640 = vld [vmem:[%s5634 + $0x14] sm:$0xf]
        %v5641 = vld [vmem:[%s5634 + $0x18] sm:$0xf]
        %v5642 = vld [vmem:[%s5634 + $0x1c] sm:$0xf]
        %v5643 = vld [vmem:[%s5634 + $0x20] sm:$0xf]
        %v5644 = vld [vmem:[%s5634 + $0x24] sm:$0xf]
        %v5645 = vld [vmem:[%s5634 + $0x28] sm:$0xf]
        %v5646 = vld [vmem:[%s5634 + $0x2c] sm:$0xf]
        %v5647 = vld [vmem:[%s5634 + $0x30] sm:$0xf]
        %v5648 = vld [vmem:[%s5634 + $0x34] sm:$0xf]
        %v5649 = vld [vmem:[%s5634 + $0x38] sm:$0xf]
        %v5650 = vld [vmem:[%s5634 + $0x3c] sm:$0xf]
        %v5667 = vunpack.c.l.b16 %v5635
        %v5668 = vunpack.c.l.b16 %v5636
        %v5669 = vunpack.c.l.b16 %v5637
        %v5670 = vunpack.c.l.b16 %v5638
        %v5671 = vunpack.c.l.b16 %v5639
        %v5672 = vunpack.c.l.b16 %v5640
        %v5673 = vunpack.c.l.b16 %v5641
        %v5674 = vunpack.c.l.b16 %v5642
        %v5675 = vunpack.c.l.b16 %v5643
        %v5676 = vunpack.c.l.b16 %v5644
        %v5677 = vunpack.c.l.b16 %v5645
        %v5678 = vunpack.c.l.b16 %v5646
        %v5679 = vunpack.c.l.b16 %v5647
        %v5680 = vunpack.c.l.b16 %v5648
        %v5681 = vunpack.c.l.b16 %v5649
        %v5682 = vunpack.c.l.b16 %v5650
        %v5683 = vpack.c.b16 %v5668, %v5667
        %v5684 = vpack.c.b16 %v5670, %v5669
        %v5685 = vpack.c.b16 %v5672, %v5671
        %v5686 = vpack.c.b16 %v5674, %v5673
        %v5687 = vpack.c.b16 %v5676, %v5675
        %v5688 = vpack.c.b16 %v5678, %v5677
        %v5689 = vpack.c.b16 %v5680, %v5679
        %v5690 = vpack.c.b16 %v5682, %v5681
        %5699 = vmatprep.subr.bf16.mxu0 0
        %5700 = vmatpush1.bf16.msra.mxu0 %v5683
        %5701 = vmatprep.subr.bf16.mxu0 0
        %5702 = vmatpush1.bf16.msra.mxu0 %v5684
        %5703 = vmatprep.subr.bf16.mxu0 0
        %5704 = vmatpush1.bf16.msra.mxu0 %v5685
        %5705 = vmatprep.subr.bf16.mxu0 0
        %5706 = vmatpush1.bf16.msra.mxu0 %v5686
        %5707 = vmatprep.subr.bf16.mxu0 0
        %5708 = vmatpush1.bf16.msra.mxu0 %v5687
        %5709 = vmatprep.subr.bf16.mxu0 0
        %5710 = vmatpush1.bf16.msra.mxu0 %v5688
        %5711 = vmatprep.subr.bf16.mxu0 0
        %5712 = vmatpush1.bf16.msra.mxu0 %v5689
        %5713 = vmatprep.subr.bf16.mxu0 0
        %5714 = vmatpush1.bf16.msra.mxu0 %v5690
        %5715 = vmatprep.subr.bf16.mxu0 0
        %5716 = vmatpush1.bf16.msra.mxu0 0
        %5717 = vmatprep.subr.bf16.mxu0 0
        %5718 = vmatpush1.bf16.msra.mxu0 0
        %5719 = vmatprep.subr.bf16.mxu0 0
        %5720 = vmatpush1.bf16.msra.mxu0 0
        %5721 = vmatprep.subr.bf16.mxu0 0
        %5722 = vmatpush1.bf16.msra.mxu0 0
        %5723 = vmatprep.subr.bf16.mxu0 0
        %5724 = vmatpush1.bf16.msra.mxu0 0
        %5725 = vmatprep.subr.bf16.mxu0 0
        %5726 = vmatpush1.bf16.msra.mxu0 0
        %5727 = vmatprep.subr.bf16.mxu0 0
        %5728 = vmatpush1.bf16.msra.mxu0 0
        %5729 = vmatprep.subr.bf16.mxu0 0
        %5730 = vmatpush1.bf16.msra.mxu0 0
        %5731 = vmatprep.mubr.bf16.mxu0 0
        %5732 = vmatmul.mubr.bf16.gmra.mrb[0].mxu0 %v4823
        %v5733 = vpop.f32.mrb[0].mxu0
        %v5734 = vadd.f32 0.0, %v5733
        %v5735 = vpop.f32.mrb[0].mxu0
        %v5736 = vpop.f32.mrb[0].mxu0
        %v5737 = vadd.f32 0.0, %v5736
        %v5738 = vpop.f32.mrb[0].mxu0
        %5739 = vmatprep.mubr.bf16.mxu0 0
        %5740 = vmatmul.mubr.bf16.gmra.mrb[0].mxu0 %v4824
        %v5741 = vpop.f32.mrb[0].mxu0
        %v5742 = vadd.f32 0.0, %v5741
        %v5743 = vpop.f32.mrb[0].mxu0
        %v5744 = vpop.f32.mrb[0].mxu0
        %v5745 = vadd.f32 0.0, %v5744
        %v5746 = vpop.f32.mrb[0].mxu0
        %5747 = vmatprep.mubr.bf16.mxu0 0
        %5748 = vmatmul.mubr.bf16.gmra.mrb[0].mxu0 %v4825
        %v5749 = vpop.f32.mrb[0].mxu0
        %v5750 = vadd.f32 0.0, %v5749
        %v5751 = vpop.f32.mrb[0].mxu0
        %v5752 = vpop.f32.mrb[0].mxu0
        %v5753 = vadd.f32 0.0, %v5752
        %v5754 = vpop.f32.mrb[0].mxu0
        %5755 = vmatprep.mubr.bf16.mxu0 0
        %5756 = vmatmul.mubr.bf16.gmra.mrb[0].mxu0 %v4826
        %v5757 = vpop.f32.mrb[0].mxu0
        %v5758 = vadd.f32 0.0, %v5757
        %v5759 = vpop.f32.mrb[0].mxu0
        %v5760 = vpop.f32.mrb[0].mxu0
        %v5761 = vadd.f32 0.0, %v5760
        %v5762 = vpop.f32.mrb[0].mxu0
        %5763 = vdwg.mxu0
        %s5764 = scalar_lea.vmem %s5, 320
        %v5765 = vld [vmem:[%s5764] sm:$0xf]
        %v5766 = vld [vmem:[%s5764 + $0x4] sm:$0xf]
        %v5767 = vld [vmem:[%s5764 + $0x8] sm:$0xf]
        %v5768 = vld [vmem:[%s5764 + $0xc] sm:$0xf]
        %v5769 = vld [vmem:[%s5764 + $0x10] sm:$0xf]
        %v5770 = vld [vmem:[%s5764 + $0x14] sm:$0xf]
        %v5771 = vld [vmem:[%s5764 + $0x18] sm:$0xf]
        %v5772 = vld [vmem:[%s5764 + $0x1c] sm:$0xf]
        %v5773 = vld [vmem:[%s5764 + $0x20] sm:$0xf]
        %v5774 = vld [vmem:[%s5764 + $0x24] sm:$0xf]
        %v5775 = vld [vmem:[%s5764 + $0x28] sm:$0xf]
        %v5776 = vld [vmem:[%s5764 + $0x2c] sm:$0xf]
        %v5777 = vld [vmem:[%s5764 + $0x30] sm:$0xf]
        %v5778 = vld [vmem:[%s5764 + $0x34] sm:$0xf]
        %v5779 = vld [vmem:[%s5764 + $0x38] sm:$0xf]
        %v5780 = vld [vmem:[%s5764 + $0x3c] sm:$0xf]
        %v5797 = vunpack.c.l.b16 %v5765
        %v5798 = vunpack.c.l.b16 %v5766
        %v5799 = vunpack.c.l.b16 %v5767
        %v5800 = vunpack.c.l.b16 %v5768
        %v5801 = vunpack.c.l.b16 %v5769
        %v5802 = vunpack.c.l.b16 %v5770
        %v5803 = vunpack.c.l.b16 %v5771
        %v5804 = vunpack.c.l.b16 %v5772
        %v5805 = vunpack.c.l.b16 %v5773
        %v5806 = vunpack.c.l.b16 %v5774
        %v5807 = vunpack.c.l.b16 %v5775
        %v5808 = vunpack.c.l.b16 %v5776
        %v5809 = vunpack.c.l.b16 %v5777
        %v5810 = vunpack.c.l.b16 %v5778
        %v5811 = vunpack.c.l.b16 %v5779
        %v5812 = vunpack.c.l.b16 %v5780
        %v5813 = vpack.c.b16 %v5798, %v5797
        %v5814 = vpack.c.b16 %v5800, %v5799
        %v5815 = vpack.c.b16 %v5802, %v5801
        %v5816 = vpack.c.b16 %v5804, %v5803
        %v5817 = vpack.c.b16 %v5806, %v5805
        %v5818 = vpack.c.b16 %v5808, %v5807
        %v5819 = vpack.c.b16 %v5810, %v5809
        %v5820 = vpack.c.b16 %v5812, %v5811
        %5829 = vmatprep.subr.bf16.mxu0 0
        %5830 = vmatpush1.bf16.msra.mxu0 %v5813
        %5831 = vmatprep.subr.bf16.mxu0 0
        %5832 = vmatpush1.bf16.msra.mxu0 %v5814
        %5833 = vmatprep.subr.bf16.mxu0 0
        %5834 = vmatpush1.bf16.msra.mxu0 %v5815
        %5835 = vmatprep.subr.bf16.mxu0 0
        %5836 = vmatpush1.bf16.msra.mxu0 %v5816
        %5837 = vmatprep.subr.bf16.mxu0 0
        %5838 = vmatpush1.bf16.msra.mxu0 %v5817
        %5839 = vmatprep.subr.bf16.mxu0 0
        %5840 = vmatpush1.bf16.msra.mxu0 %v5818
        %5841 = vmatprep.subr.bf16.mxu0 0
        %5842 = vmatpush1.bf16.msra.mxu0 %v5819
        %5843 = vmatprep.subr.bf16.mxu0 0
        %5844 = vmatpush1.bf16.msra.mxu0 %v5820
        %5845 = vmatprep.subr.bf16.mxu0 0
        %5846 = vmatpush1.bf16.msra.mxu0 0
        %5847 = vmatprep.subr.bf16.mxu0 0
        %5848 = vmatpush1.bf16.msra.mxu0 0
        %5849 = vmatprep.subr.bf16.mxu0 0
        %5850 = vmatpush1.bf16.msra.mxu0 0
        %5851 = vmatprep.subr.bf16.mxu0 0
        %5852 = vmatpush1.bf16.msra.mxu0 0
        %5853 = vmatprep.subr.bf16.mxu0 0
        %5854 = vmatpush1.bf16.msra.mxu0 0
        %5855 = vmatprep.subr.bf16.mxu0 0
        %5856 = vmatpush1.bf16.msra.mxu0 0
        %5857 = vmatprep.subr.bf16.mxu0 0
        %5858 = vmatpush1.bf16.msra.mxu0 0
        %5859 = vmatprep.subr.bf16.mxu0 0
        %5860 = vmatpush1.bf16.msra.mxu0 0
        %5861 = vmatprep.mubr.bf16.mxu0 0
        %5862 = vmatmul.mubr.bf16.gmra.mrb[0].mxu0 %v4823
        %v5863 = vpop.f32.mrb[0].mxu0
        %v5864 = vadd.f32 0.0, %v5863
        %v5865 = vpop.f32.mrb[0].mxu0
        %v5866 = vpop.f32.mrb[0].mxu0
        %v5867 = vadd.f32 0.0, %v5866
        %v5868 = vpop.f32.mrb[0].mxu0
        %5869 = vmatprep.mubr.bf16.mxu0 0
        %5870 = vmatmul.mubr.bf16.gmra.mrb[0].mxu0 %v4824
        %v5871 = vpop.f32.mrb[0].mxu0
        %v5872 = vadd.f32 0.0, %v5871
        %v5873 = vpop.f32.mrb[0].mxu0
        %v5874 = vpop.f32.mrb[0].mxu0
        %v5875 = vadd.f32 0.0, %v5874
        %v5876 = vpop.f32.mrb[0].mxu0
        %5877 = vmatprep.mubr.bf16.mxu0 0
        %5878 = vmatmul.mubr.bf16.gmra.mrb[0].mxu0 %v4825
        %v5879 = vpop.f32.mrb[0].mxu0
        %v5880 = vadd.f32 0.0, %v5879
        %v5881 = vpop.f32.mrb[0].mxu0
        %v5882 = vpop.f32.mrb[0].mxu0
        %v5883 = vadd.f32 0.0, %v5882
        %v5884 = vpop.f32.mrb[0].mxu0
        %5885 = vmatprep.mubr.bf16.mxu0 0
        %5886 = vmatmul.mubr.bf16.gmra.mrb[0].mxu0 %v4826
        %v5887 = vpop.f32.mrb[0].mxu0
        %v5888 = vadd.f32 0.0, %v5887
        %v5889 = vpop.f32.mrb[0].mxu0
        %v5890 = vpop.f32.mrb[0].mxu0
        %v5891 = vadd.f32 0.0, %v5890
        %v5892 = vpop.f32.mrb[0].mxu0
        %5893 = vdwg.mxu0
        %v5894 = vpack.c.bf16 %v5607, %v5604
        %v5895 = vpack.c.bf16 %v5615, %v5612
        %v5896 = vpack.c.bf16 %v5623, %v5620
        %v5897 = vpack.c.bf16 %v5631, %v5628
        %v5898 = vpack.c.bf16 %v5737, %v5734
        %v5899 = vpack.c.bf16 %v5745, %v5742
        %v5900 = vpack.c.bf16 %v5753, %v5750
        %v5901 = vpack.c.bf16 %v5761, %v5758
        %v5903 = vsel %vm1066, %v5894, 0
        %v5906 = vsel %vm1066, %v5895, 0
        %v5909 = vsel %vm1066, %v5896, 0
        %v5912 = vsel %vm1066, %v5897, 0
        %v5915 = vsel %vm1066, %v5898, 0
        %v5918 = vsel %vm1066, %v5899, 0
        %v5921 = vsel %vm1066, %v5900, 0
        %v5924 = vsel %vm1066, %v5901, 0
        %5926 = vmatprep.subr.bf16.mxu0 0
        %5927 = vmatpush1.bf16.xpose.msra.mxu0 %v5915
        %5928 = vmatprep.subr.bf16.mxu0 0
        %5929 = vmatpush1.bf16.xpose.msra.mxu0 %v5918
        %5930 = vmatprep.subr.bf16.mxu0 0
        %5931 = vmatpush1.bf16.xpose.msra.mxu0 %v5921
        %5932 = vmatprep.subr.bf16.mxu0 0
        %5933 = vmatpush1.bf16.xpose.msra.mxu0 %v5924
        %5934 = vmatprep.subr.bf16.mxu0 0
        %5935 = vmatpush1.bf16.xpose.msra.mxu0 0
        %5936 = vmatprep.subr.bf16.mxu0 0
        %5937 = vmatpush1.bf16.xpose.msra.mxu0 0
        %5938 = vmatprep.subr.bf16.mxu0 0
        %5939 = vmatpush1.bf16.xpose.msra.mxu0 0
        %5940 = vmatprep.subr.bf16.mxu0 0
        %5941 = vmatpush1.bf16.xpose.msra.mxu0 0
        %5942 = vmatprep.subr.bf16.mxu0 0
        %5943 = vmatpush1.bf16.xpose.msra.mxu0 0
        %5944 = vmatprep.subr.bf16.mxu0 0
        %5945 = vmatpush1.bf16.xpose.msra.mxu0 0
        %5946 = vmatprep.subr.bf16.mxu0 0
        %5947 = vmatpush1.bf16.xpose.msra.mxu0 0
        %5948 = vmatprep.subr.bf16.mxu0 0
        %5949 = vmatpush1.bf16.xpose.msra.mxu0 0
        %5950 = vmatprep.subr.bf16.mxu0 0
        %5951 = vmatpush1.bf16.xpose.msra.mxu0 0
        %5952 = vmatprep.subr.bf16.mxu0 0
        %5953 = vmatpush1.bf16.xpose.msra.mxu0 0
        %5954 = vmatprep.subr.bf16.mxu0 0
        %5955 = vmatpush1.bf16.xpose.msra.mxu0 0
        %5956 = vmatprep.subr.bf16.mxu0 0
        %5957 = vmatpush1.bf16.xpose.msra.mxu0 0
        %5958 = vmatprep.mubr.bf16.mxu0 0
        %5959 = vmatmul.mubr.bf16.gmra.mrb[0].mxu0 %v5903
        %v5960 = vpop.f32.mrb[0].mxu0
        %v5961 = vadd.f32 0.0, %v5960
        %v5962 = vpop.f32.mrb[0].mxu0
        %v5963 = vpop.f32.mrb[0].mxu0
        %v5964 = vadd.f32 0.0, %v5963
        %v5965 = vpop.f32.mrb[0].mxu0
        %5966 = vmatprep.mubr.bf16.mxu0 0
        %5967 = vmatmul.mubr.bf16.gmra.mrb[0].mxu0 %v5906
        %v5968 = vpop.f32.mrb[0].mxu0
        %v5969 = vadd.f32 0.0, %v5968
        %v5970 = vpop.f32.mrb[0].mxu0
        %v5971 = vpop.f32.mrb[0].mxu0
        %v5972 = vadd.f32 0.0, %v5971
        %v5973 = vpop.f32.mrb[0].mxu0
        %5974 = vmatprep.mubr.bf16.mxu0 0
        %5975 = vmatmul.mubr.bf16.gmra.mrb[0].mxu0 %v5909
        %v5976 = vpop.f32.mrb[0].mxu0
        %v5977 = vadd.f32 0.0, %v5976
        %v5978 = vpop.f32.mrb[0].mxu0
        %v5979 = vpop.f32.mrb[0].mxu0
        %v5980 = vadd.f32 0.0, %v5979
        %v5981 = vpop.f32.mrb[0].mxu0
        %5982 = vmatprep.mubr.bf16.mxu0 0
        %5983 = vmatmul.mubr.bf16.gmra.mrb[0].mxu0 %v5912
        %v5984 = vpop.f32.mrb[0].mxu0
        %v5985 = vadd.f32 0.0, %v5984
        %v5986 = vpop.f32.mrb[0].mxu0
        %v5987 = vpop.f32.mrb[0].mxu0
        %v5988 = vadd.f32 0.0, %v5987
        %v5989 = vpop.f32.mrb[0].mxu0
        %5990 = vdwg.mxu0
        %v5991 = vsel %vm540, %v5961, -1e+30
        %v5992 = vsel %vm541, %v5964, -1e+30
        %v5993 = vsel %vm542, %v5969, -1e+30
        %v5994 = vsel %vm543, %v5972, -1e+30
        %v5995 = vsel %vm544, %v5977, -1e+30
        %v5996 = vsel %vm545, %v5980, -1e+30
        %v5997 = vsel %vm546, %v5985, -1e+30
        %v5998 = vsel %vm547, %v5988, -1e+30
        %v5999 = vsel %vm1164, %v5991, -inf
        %6000 = vmax.xlane.f32.xlu0 %v5999
        %v6001 = vpop.xlane.xlu0 %6000
        %v6002 = vsel %vm1164, %v5992, -inf
        %6003 = vmax.xlane.f32.xlu0 %v6002
        %v6004 = vpop.xlane.xlu0 %6003
        %v6005 = vsel %vm1164, %v5993, -inf
        %6006 = vmax.xlane.f32.xlu0 %v6005
        %v6007 = vpop.xlane.xlu0 %6006
        %v6008 = vsel %vm1164, %v5994, -inf
        %6009 = vmax.xlane.f32.xlu0 %v6008
        %v6010 = vpop.xlane.xlu0 %6009
        %v6011 = vsel %vm1164, %v5995, -inf
        %6012 = vmax.xlane.f32.xlu0 %v6011
        %v6013 = vpop.xlane.xlu0 %6012
        %v6014 = vsel %vm1164, %v5996, -inf
        %6015 = vmax.xlane.f32.xlu0 %v6014
        %v6016 = vpop.xlane.xlu0 %6015
        %v6017 = vsel %vm1164, %v5997, -inf
        %6018 = vmax.xlane.f32.xlu0 %v6017
        %v6019 = vpop.xlane.xlu0 %6018
        %v6020 = vsel %vm1164, %v5998, -inf
        %6021 = vmax.xlane.f32.xlu0 %v6020
        %v6022 = vpop.xlane.xlu0 %6021
        %v6023 = vsub.f32 %v5991, %v6001
        %v6024 = vsub.f32 %v5992, %v6004
        %v6025 = vsub.f32 %v5993, %v6007
        %v6026 = vsub.f32 %v5994, %v6010
        %v6027 = vsub.f32 %v5995, %v6013
        %v6028 = vsub.f32 %v5996, %v6016
        %v6029 = vsub.f32 %v5997, %v6019
        %v6030 = vsub.f32 %v5998, %v6022
        %v6031 = vmul.f32 %v6023, 1.442695
        %v6032 = vpow.pop %v6031
        %v6033 = vmul.f32 %v6024, 1.442695
        %v6034 = vpow.pop %v6033
        %v6035 = vmul.f32 %v6025, 1.442695
        %v6036 = vpow.pop %v6035
        %v6037 = vmul.f32 %v6026, 1.442695
        %v6038 = vpow.pop %v6037
        %v6039 = vmul.f32 %v6027, 1.442695
        %v6040 = vpow.pop %v6039
        %v6041 = vmul.f32 %v6028, 1.442695
        %v6042 = vpow.pop %v6041
        %v6043 = vmul.f32 %v6029, 1.442695
        %v6044 = vpow.pop %v6043
        %v6045 = vmul.f32 %v6030, 1.442695
        %v6046 = vpow.pop %v6045
        %v6047 = vsel %vm1164, %v6032, 0.0
        %6048 = vadd.xlane.f32.xlu0 %v6047
        %v6049 = vpop.xlane.xlu0 %6048
        %v6050 = vsel %vm1164, %v6034, 0.0
        %6051 = vadd.xlane.f32.xlu0 %v6050
        %v6052 = vpop.xlane.xlu0 %6051
        %v6053 = vsel %vm1164, %v6036, 0.0
        %6054 = vadd.xlane.f32.xlu0 %v6053
        %v6055 = vpop.xlane.xlu0 %6054
        %v6056 = vsel %vm1164, %v6038, 0.0
        %6057 = vadd.xlane.f32.xlu0 %v6056
        %v6058 = vpop.xlane.xlu0 %6057
        %v6059 = vsel %vm1164, %v6040, 0.0
        %6060 = vadd.xlane.f32.xlu0 %v6059
        %v6061 = vpop.xlane.xlu0 %6060
        %v6062 = vsel %vm1164, %v6042, 0.0
        %6063 = vadd.xlane.f32.xlu0 %v6062
        %v6064 = vpop.xlane.xlu0 %6063
        %v6065 = vsel %vm1164, %v6044, 0.0
        %6066 = vadd.xlane.f32.xlu0 %v6065
        %v6067 = vpop.xlane.xlu0 %6066
        %v6068 = vsel %vm1164, %v6046, 0.0
        %6069 = vadd.xlane.f32.xlu0 %v6068
        %v6070 = vpop.xlane.xlu0 %6069
        %v6071 = vrcp.pop %v6049
        %v6072 = vrcp.pop %v6052
        %v6073 = vrcp.pop %v6055
        %v6074 = vrcp.pop %v6058
        %v6075 = vrcp.pop %v6061
        %v6076 = vrcp.pop %v6064
        %v6077 = vrcp.pop %v6067
        %v6078 = vrcp.pop %v6070
        %v6079 = vmul.f32 %v6032, %v6071
        %v6080 = vmul.f32 %v6034, %v6072
        %v6081 = vmul.f32 %v6036, %v6073
        %v6082 = vmul.f32 %v6038, %v6074
        %v6083 = vmul.f32 %v6040, %v6075
        %v6084 = vmul.f32 %v6042, %v6076
        %v6085 = vmul.f32 %v6044, %v6077
        %v6086 = vmul.f32 %v6046, %v6078
        %v6087 = vpack.c.bf16 %v6080, %v6079
        %v6088 = vpack.c.bf16 %v6082, %v6081
        %v6089 = vpack.c.bf16 %v6084, %v6083
        %v6090 = vpack.c.bf16 %v6086, %v6085
        %v6091 = vpack.c.bf16 %v5867, %v5864
        %v6092 = vpack.c.bf16 %v5875, %v5872
        %v6093 = vpack.c.bf16 %v5883, %v5880
        %v6094 = vpack.c.bf16 %v5891, %v5888
        %v6096 = vsel %vm1164, %v6087, 0
        %v6099 = vsel %vm1164, %v6088, 0
        %v6102 = vsel %vm1164, %v6089, 0
        %v6105 = vsel %vm1164, %v6090, 0
        %6107 = vmatprep.subr.bf16.mxu0 0
        %6108 = vmatpush1.bf16.msra.mxu0 %v6091
        %6109 = vmatprep.subr.bf16.mxu0 0
        %6110 = vmatpush1.bf16.msra.mxu0 %v6092
        %6111 = vmatprep.subr.bf16.mxu0 0
        %6112 = vmatpush1.bf16.msra.mxu0 %v6093
        %6113 = vmatprep.subr.bf16.mxu0 0
        %6114 = vmatpush1.bf16.msra.mxu0 %v6094
        %6115 = vmatprep.subr.bf16.mxu0 0
        %6116 = vmatpush1.bf16.msra.mxu0 0
        %6117 = vmatprep.subr.bf16.mxu0 0
        %6118 = vmatpush1.bf16.msra.mxu0 0
        %6119 = vmatprep.subr.bf16.mxu0 0
        %6120 = vmatpush1.bf16.msra.mxu0 0
        %6121 = vmatprep.subr.bf16.mxu0 0
        %6122 = vmatpush1.bf16.msra.mxu0 0
        %6123 = vmatprep.subr.bf16.mxu0 0
        %6124 = vmatpush1.bf16.msra.mxu0 0
        %6125 = vmatprep.subr.bf16.mxu0 0
        %6126 = vmatpush1.bf16.msra.mxu0 0
        %6127 = vmatprep.subr.bf16.mxu0 0
        %6128 = vmatpush1.bf16.msra.mxu0 0
        %6129 = vmatprep.subr.bf16.mxu0 0
        %6130 = vmatpush1.bf16.msra.mxu0 0
        %6131 = vmatprep.subr.bf16.mxu0 0
        %6132 = vmatpush1.bf16.msra.mxu0 0
        %6133 = vmatprep.subr.bf16.mxu0 0
        %6134 = vmatpush1.bf16.msra.mxu0 0
        %6135 = vmatprep.subr.bf16.mxu0 0
        %6136 = vmatpush1.bf16.msra.mxu0 0
        %6137 = vmatprep.subr.bf16.mxu0 0
        %6138 = vmatpush1.bf16.msra.mxu0 0
        %6139 = vmatprep.mubr.bf16.mxu0 0
        %6140 = vmatmul.mubr.bf16.gmra.mrb[0].mxu0 %v6096
        %v6141 = vpop.f32.mrb[0].mxu0
        %v6142 = vadd.f32 0.0, %v6141
        %v6143 = vpop.f32.mrb[0].mxu0
        %v6144 = vpop.f32.mrb[0].mxu0
        %v6145 = vadd.f32 0.0, %v6144
        %v6146 = vpop.f32.mrb[0].mxu0
        %6147 = vmatprep.mubr.bf16.mxu0 0
        %6148 = vmatmul.mubr.bf16.gmra.mrb[0].mxu0 %v6099
        %v6149 = vpop.f32.mrb[0].mxu0
        %v6150 = vadd.f32 0.0, %v6149
        %v6151 = vpop.f32.mrb[0].mxu0
        %v6152 = vpop.f32.mrb[0].mxu0
        %v6153 = vadd.f32 0.0, %v6152
        %v6154 = vpop.f32.mrb[0].mxu0
        %6155 = vmatprep.mubr.bf16.mxu0 0
        %6156 = vmatmul.mubr.bf16.gmra.mrb[0].mxu0 %v6102
        %v6157 = vpop.f32.mrb[0].mxu0
        %v6158 = vadd.f32 0.0, %v6157
        %v6159 = vpop.f32.mrb[0].mxu0
        %v6160 = vpop.f32.mrb[0].mxu0
        %v6161 = vadd.f32 0.0, %v6160
        %v6162 = vpop.f32.mrb[0].mxu0
        %6163 = vmatprep.mubr.bf16.mxu0 0
        %6164 = vmatmul.mubr.bf16.gmra.mrb[0].mxu0 %v6105
        %v6165 = vpop.f32.mrb[0].mxu0
        %v6166 = vadd.f32 0.0, %v6165
        %v6167 = vpop.f32.mrb[0].mxu0
        %v6168 = vpop.f32.mrb[0].mxu0
        %v6169 = vadd.f32 0.0, %v6168
        %v6170 = vpop.f32.mrb[0].mxu0
        %6171 = vdwg.mxu0
        %v6172 = vpack.c.bf16 %v6145, %v6142
        %v6173 = vpack.c.bf16 %v6153, %v6150
        %v6174 = vpack.c.bf16 %v6161, %v6158
        %v6175 = vpack.c.bf16 %v6169, %v6166
        %s6176 = scalar_lea.vmem %s6, 80
        %v6177 = vld [vmem:[%s6176] sm:$0xf]
        %v6178 = vld [vmem:[%s6176 + $0x4] sm:$0xf]
        %v6179 = vld [vmem:[%s6176 + $0x8] sm:$0xf]
        %v6180 = vld [vmem:[%s6176 + $0xc] sm:$0xf]
        %v6185 = vunpack.c.l.b16 %v6177
        %v6186 = vunpack.c.l.b16 %v6178
        %v6187 = vunpack.c.l.b16 %v6179
        %v6188 = vunpack.c.l.b16 %v6180
        %v6189 = vpack.c.b16 %v6186, %v6185
        %v6190 = vpack.c.b16 %v6188, %v6187
        %v6194 = vsel %vm1066, %v6172, 0
        %v6197 = vsel %vm1066, %v6173, 0
        %v6200 = vsel %vm1066, %v6174, 0
        %v6203 = vsel %vm1066, %v6175, 0
        %6205 = vmatprep.subr.bf16.mxu0 0
        %6206 = vmatpush1.bf16.msra.mxu0 %v6189
        %6207 = vmatprep.subr.bf16.mxu0 0
        %6208 = vmatpush1.bf16.msra.mxu0 %v6190
        %6209 = vmatprep.subr.bf16.mxu0 0
        %6210 = vmatpush1.bf16.msra.mxu0 0
        %6211 = vmatprep.subr.bf16.mxu0 0
        %6212 = vmatpush1.bf16.msra.mxu0 0
        %6213 = vmatprep.subr.bf16.mxu0 0
        %6214 = vmatpush1.bf16.msra.mxu0 0
        %6215 = vmatprep.subr.bf16.mxu0 0
        %6216 = vmatpush1.bf16.msra.mxu0 0
        %6217 = vmatprep.subr.bf16.mxu0 0
        %6218 = vmatpush1.bf16.msra.mxu0 0
        %6219 = vmatprep.subr.bf16.mxu0 0
        %6220 = vmatpush1.bf16.msra.mxu0 0
        %6221 = vmatprep.subr.bf16.mxu0 0
        %6222 = vmatpush1.bf16.msra.mxu0 0
        %6223 = vmatprep.subr.bf16.mxu0 0
        %6224 = vmatpush1.bf16.msra.mxu0 0
        %6225 = vmatprep.subr.bf16.mxu0 0
        %6226 = vmatpush1.bf16.msra.mxu0 0
        %6227 = vmatprep.subr.bf16.mxu0 0
        %6228 = vmatpush1.bf16.msra.mxu0 0
        %6229 = vmatprep.subr.bf16.mxu0 0
        %6230 = vmatpush1.bf16.msra.mxu0 0
        %6231 = vmatprep.subr.bf16.mxu0 0
        %6232 = vmatpush1.bf16.msra.mxu0 0
        %6233 = vmatprep.subr.bf16.mxu0 0
        %6234 = vmatpush1.bf16.msra.mxu0 0
        %6235 = vmatprep.subr.bf16.mxu0 0
        %6236 = vmatpush1.bf16.msra.mxu0 0
        %6237 = vmatprep.mubr.bf16.mxu0 0
        %6238 = vmatmul.mubr.bf16.gmra.mrb[0].mxu0 %v6194
        %v6239 = vpop.f32.mrb[0].mxu0
        %v6240 = vadd.f32 0.0, %v6239
        %v6241 = vpop.f32.mrb[0].mxu0
        %v6242 = vpop.f32.mrb[0].mxu0
        %v6243 = vadd.f32 0.0, %v6242
        %v6244 = vpop.f32.mrb[0].mxu0
        %6245 = vmatprep.mubr.bf16.mxu0 0
        %6246 = vmatmul.mubr.bf16.gmra.mrb[0].mxu0 %v6197
        %v6247 = vpop.f32.mrb[0].mxu0
        %v6248 = vadd.f32 0.0, %v6247
        %v6249 = vpop.f32.mrb[0].mxu0
        %v6250 = vpop.f32.mrb[0].mxu0
        %v6251 = vadd.f32 0.0, %v6250
        %v6252 = vpop.f32.mrb[0].mxu0
        %6253 = vmatprep.mubr.bf16.mxu0 0
        %6254 = vmatmul.mubr.bf16.gmra.mrb[0].mxu0 %v6200
        %v6255 = vpop.f32.mrb[0].mxu0
        %v6256 = vadd.f32 0.0, %v6255
        %v6257 = vpop.f32.mrb[0].mxu0
        %v6258 = vpop.f32.mrb[0].mxu0
        %v6259 = vadd.f32 0.0, %v6258
        %v6260 = vpop.f32.mrb[0].mxu0
        %6261 = vmatprep.mubr.bf16.mxu0 0
        %6262 = vmatmul.mubr.bf16.gmra.mrb[0].mxu0 %v6203
        %v6263 = vpop.f32.mrb[0].mxu0
        %v6264 = vadd.f32 0.0, %v6263
        %v6265 = vpop.f32.mrb[0].mxu0
        %v6266 = vpop.f32.mrb[0].mxu0
        %v6267 = vadd.f32 0.0, %v6266
        %v6268 = vpop.f32.mrb[0].mxu0
        %6269 = vdwg.mxu0
        %v6274 = vunpack.c.l.b16 %v5500
        %v6275 = vunpack.c.l.b16 %v5501
        %v6276 = vunpack.c.l.b16 %v5502
        %v6277 = vunpack.c.l.b16 %v5503
        %v6278 = vpack.c.b16 %v6275, %v6274
        %v6279 = vpack.c.b16 %v6277, %v6276
        %v6283 = vsel %vm1066, %v5495, 0
        %v6286 = vsel %vm1066, %v5496, 0
        %v6289 = vsel %vm1066, %v5497, 0
        %v6292 = vsel %vm1066, %v5498, 0
        %6294 = vmatprep.subr.bf16.mxu0 0
        %6295 = vmatpush1.bf16.msra.mxu0 %v6278
        %6296 = vmatprep.subr.bf16.mxu0 0
        %6297 = vmatpush1.bf16.msra.mxu0 %v6279
        %6298 = vmatprep.subr.bf16.mxu0 0
        %6299 = vmatpush1.bf16.msra.mxu0 0
        %6300 = vmatprep.subr.bf16.mxu0 0
        %6301 = vmatpush1.bf16.msra.mxu0 0
        %6302 = vmatprep.subr.bf16.mxu0 0
        %6303 = vmatpush1.bf16.msra.mxu0 0
        %6304 = vmatprep.subr.bf16.mxu0 0
        %6305 = vmatpush1.bf16.msra.mxu0 0
        %6306 = vmatprep.subr.bf16.mxu0 0
        %6307 = vmatpush1.bf16.msra.mxu0 0
        %6308 = vmatprep.subr.bf16.mxu0 0
        %6309 = vmatpush1.bf16.msra.mxu0 0
        %6310 = vmatprep.subr.bf16.mxu0 0
        %6311 = vmatpush1.bf16.msra.mxu0 0
        %6312 = vmatprep.subr.bf16.mxu0 0
        %6313 = vmatpush1.bf16.msra.mxu0 0
        %6314 = vmatprep.subr.bf16.mxu0 0
        %6315 = vmatpush1.bf16.msra.mxu0 0
        %6316 = vmatprep.subr.bf16.mxu0 0
        %6317 = vmatpush1.bf16.msra.mxu0 0
        %6318 = vmatprep.subr.bf16.mxu0 0
        %6319 = vmatpush1.bf16.msra.mxu0 0
        %6320 = vmatprep.subr.bf16.mxu0 0
        %6321 = vmatpush1.bf16.msra.mxu0 0
        %6322 = vmatprep.subr.bf16.mxu0 0
        %6323 = vmatpush1.bf16.msra.mxu0 0
        %6324 = vmatprep.subr.bf16.mxu0 0
        %6325 = vmatpush1.bf16.msra.mxu0 0
        %6326 = vmatprep.mubr.bf16.mxu0 0
        %6327 = vmatmul.mubr.bf16.gmra.mrb[0].mxu0 %v6283
        %v6328 = vpop.f32.mrb[0].mxu0
        %v6329 = vadd.f32 %v6240, %v6328
        %v6330 = vpop.f32.mrb[0].mxu0
        %v6331 = vpop.f32.mrb[0].mxu0
        %v6332 = vadd.f32 %v6243, %v6331
        %v6333 = vpop.f32.mrb[0].mxu0
        %6334 = vmatprep.mubr.bf16.mxu0 0
        %6335 = vmatmul.mubr.bf16.gmra.mrb[0].mxu0 %v6286
        %v6336 = vpop.f32.mrb[0].mxu0
        %v6337 = vadd.f32 %v6248, %v6336
        %v6338 = vpop.f32.mrb[0].mxu0
        %v6339 = vpop.f32.mrb[0].mxu0
        %v6340 = vadd.f32 %v6251, %v6339
        %v6341 = vpop.f32.mrb[0].mxu0
        %6342 = vmatprep.mubr.bf16.mxu0 0
        %6343 = vmatmul.mubr.bf16.gmra.mrb[0].mxu0 %v6289
        %v6344 = vpop.f32.mrb[0].mxu0
        %v6345 = vadd.f32 %v6256, %v6344
        %v6346 = vpop.f32.mrb[0].mxu0
        %v6347 = vpop.f32.mrb[0].mxu0
        %v6348 = vadd.f32 %v6259, %v6347
        %v6349 = vpop.f32.mrb[0].mxu0
        %6350 = vmatprep.mubr.bf16.mxu0 0
        %6351 = vmatmul.mubr.bf16.gmra.mrb[0].mxu0 %v6292
        %v6352 = vpop.f32.mrb[0].mxu0
        %v6353 = vadd.f32 %v6264, %v6352
        %v6354 = vpop.f32.mrb[0].mxu0
        %v6355 = vpop.f32.mrb[0].mxu0
        %v6356 = vadd.f32 %v6267, %v6355
        %v6357 = vpop.f32.mrb[0].mxu0
        %6358 = vdwg.mxu0
        %s6359 = scalar_lea.vmem %s3, 384
        %v6360 = vld [vmem:[%s6359] sm:$0xf]
        %v6361 = vld [vmem:[%s6359 + $0x4] sm:$0xf]
        %v6362 = vld [vmem:[%s6359 + $0x8] sm:$0xf]
        %v6363 = vld [vmem:[%s6359 + $0xc] sm:$0xf]
        %v6364 = vld [vmem:[%s6359 + $0x10] sm:$0xf]
        %v6365 = vld [vmem:[%s6359 + $0x14] sm:$0xf]
        %v6366 = vld [vmem:[%s6359 + $0x18] sm:$0xf]
        %v6367 = vld [vmem:[%s6359 + $0x1c] sm:$0xf]
        %v6368 = vld [vmem:[%s6359 + $0x20] sm:$0xf]
        %v6369 = vld [vmem:[%s6359 + $0x24] sm:$0xf]
        %v6370 = vld [vmem:[%s6359 + $0x28] sm:$0xf]
        %v6371 = vld [vmem:[%s6359 + $0x2c] sm:$0xf]
        %v6372 = vld [vmem:[%s6359 + $0x30] sm:$0xf]
        %v6373 = vld [vmem:[%s6359 + $0x34] sm:$0xf]
        %v6374 = vld [vmem:[%s6359 + $0x38] sm:$0xf]
        %v6375 = vld [vmem:[%s6359 + $0x3c] sm:$0xf]
        %v6392 = vunpack.c.l.b16 %v6360
        %v6393 = vunpack.c.l.b16 %v6361
        %v6394 = vunpack.c.l.b16 %v6362
        %v6395 = vunpack.c.l.b16 %v6363
        %v6396 = vunpack.c.l.b16 %v6364
        %v6397 = vunpack.c.l.b16 %v6365
        %v6398 = vunpack.c.l.b16 %v6366
        %v6399 = vunpack.c.l.b16 %v6367
        %v6400 = vunpack.c.l.b16 %v6368
        %v6401 = vunpack.c.l.b16 %v6369
        %v6402 = vunpack.c.l.b16 %v6370
        %v6403 = vunpack.c.l.b16 %v6371
        %v6404 = vunpack.c.l.b16 %v6372
        %v6405 = vunpack.c.l.b16 %v6373
        %v6406 = vunpack.c.l.b16 %v6374
        %v6407 = vunpack.c.l.b16 %v6375
        %v6408 = vpack.c.b16 %v6393, %v6392
        %v6409 = vpack.c.b16 %v6395, %v6394
        %v6410 = vpack.c.b16 %v6397, %v6396
        %v6411 = vpack.c.b16 %v6399, %v6398
        %v6412 = vpack.c.b16 %v6401, %v6400
        %v6413 = vpack.c.b16 %v6403, %v6402
        %v6414 = vpack.c.b16 %v6405, %v6404
        %v6415 = vpack.c.b16 %v6407, %v6406
        %6424 = vmatprep.subr.bf16.mxu0 0
        %6425 = vmatpush1.bf16.msra.mxu0 %v6408
        %6426 = vmatprep.subr.bf16.mxu0 0
        %6427 = vmatpush1.bf16.msra.mxu0 %v6409
        %6428 = vmatprep.subr.bf16.mxu0 0
        %6429 = vmatpush1.bf16.msra.mxu0 %v6410
        %6430 = vmatprep.subr.bf16.mxu0 0
        %6431 = vmatpush1.bf16.msra.mxu0 %v6411
        %6432 = vmatprep.subr.bf16.mxu0 0
        %6433 = vmatpush1.bf16.msra.mxu0 %v6412
        %6434 = vmatprep.subr.bf16.mxu0 0
        %6435 = vmatpush1.bf16.msra.mxu0 %v6413
        %6436 = vmatprep.subr.bf16.mxu0 0
        %6437 = vmatpush1.bf16.msra.mxu0 %v6414
        %6438 = vmatprep.subr.bf16.mxu0 0
        %6439 = vmatpush1.bf16.msra.mxu0 %v6415
        %6440 = vmatprep.subr.bf16.mxu0 0
        %6441 = vmatpush1.bf16.msra.mxu0 0
        %6442 = vmatprep.subr.bf16.mxu0 0
        %6443 = vmatpush1.bf16.msra.mxu0 0
        %6444 = vmatprep.subr.bf16.mxu0 0
        %6445 = vmatpush1.bf16.msra.mxu0 0
        %6446 = vmatprep.subr.bf16.mxu0 0
        %6447 = vmatpush1.bf16.msra.mxu0 0
        %6448 = vmatprep.subr.bf16.mxu0 0
        %6449 = vmatpush1.bf16.msra.mxu0 0
        %6450 = vmatprep.subr.bf16.mxu0 0
        %6451 = vmatpush1.bf16.msra.mxu0 0
        %6452 = vmatprep.subr.bf16.mxu0 0
        %6453 = vmatpush1.bf16.msra.mxu0 0
        %6454 = vmatprep.subr.bf16.mxu0 0
        %6455 = vmatpush1.bf16.msra.mxu0 0
        %6456 = vmatprep.mubr.bf16.mxu0 0
        %6457 = vmatmul.mubr.bf16.gmra.mrb[0].mxu0 %v4823
        %v6458 = vpop.f32.mrb[0].mxu0
        %v6459 = vadd.f32 0.0, %v6458
        %v6460 = vpop.f32.mrb[0].mxu0
        %v6461 = vpop.f32.mrb[0].mxu0
        %v6462 = vadd.f32 0.0, %v6461
        %v6463 = vpop.f32.mrb[0].mxu0
        %6464 = vmatprep.mubr.bf16.mxu0 0
        %6465 = vmatmul.mubr.bf16.gmra.mrb[0].mxu0 %v4824
        %v6466 = vpop.f32.mrb[0].mxu0
        %v6467 = vadd.f32 0.0, %v6466
        %v6468 = vpop.f32.mrb[0].mxu0
        %v6469 = vpop.f32.mrb[0].mxu0
        %v6470 = vadd.f32 0.0, %v6469
        %v6471 = vpop.f32.mrb[0].mxu0
        %6472 = vmatprep.mubr.bf16.mxu0 0
        %6473 = vmatmul.mubr.bf16.gmra.mrb[0].mxu0 %v4825
        %v6474 = vpop.f32.mrb[0].mxu0
        %v6475 = vadd.f32 0.0, %v6474
        %v6476 = vpop.f32.mrb[0].mxu0
        %v6477 = vpop.f32.mrb[0].mxu0
        %v6478 = vadd.f32 0.0, %v6477
        %v6479 = vpop.f32.mrb[0].mxu0
        %6480 = vmatprep.mubr.bf16.mxu0 0
        %6481 = vmatmul.mubr.bf16.gmra.mrb[0].mxu0 %v4826
        %v6482 = vpop.f32.mrb[0].mxu0
        %v6483 = vadd.f32 0.0, %v6482
        %v6484 = vpop.f32.mrb[0].mxu0
        %v6485 = vpop.f32.mrb[0].mxu0
        %v6486 = vadd.f32 0.0, %v6485
        %v6487 = vpop.f32.mrb[0].mxu0
        %6488 = vdwg.mxu0
        %s6489 = scalar_lea.vmem %s4, 384
        %v6490 = vld [vmem:[%s6489] sm:$0xf]
        %v6491 = vld [vmem:[%s6489 + $0x4] sm:$0xf]
        %v6492 = vld [vmem:[%s6489 + $0x8] sm:$0xf]
        %v6493 = vld [vmem:[%s6489 + $0xc] sm:$0xf]
        %v6494 = vld [vmem:[%s6489 + $0x10] sm:$0xf]
        %v6495 = vld [vmem:[%s6489 + $0x14] sm:$0xf]
        %v6496 = vld [vmem:[%s6489 + $0x18] sm:$0xf]
        %v6497 = vld [vmem:[%s6489 + $0x1c] sm:$0xf]
        %v6498 = vld [vmem:[%s6489 + $0x20] sm:$0xf]
        %v6499 = vld [vmem:[%s6489 + $0x24] sm:$0xf]
        %v6500 = vld [vmem:[%s6489 + $0x28] sm:$0xf]
        %v6501 = vld [vmem:[%s6489 + $0x2c] sm:$0xf]
        %v6502 = vld [vmem:[%s6489 + $0x30] sm:$0xf]
        %v6503 = vld [vmem:[%s6489 + $0x34] sm:$0xf]
        %v6504 = vld [vmem:[%s6489 + $0x38] sm:$0xf]
        %v6505 = vld [vmem:[%s6489 + $0x3c] sm:$0xf]
        %v6522 = vunpack.c.l.b16 %v6490
        %v6523 = vunpack.c.l.b16 %v6491
        %v6524 = vunpack.c.l.b16 %v6492
        %v6525 = vunpack.c.l.b16 %v6493
        %v6526 = vunpack.c.l.b16 %v6494
        %v6527 = vunpack.c.l.b16 %v6495
        %v6528 = vunpack.c.l.b16 %v6496
        %v6529 = vunpack.c.l.b16 %v6497
        %v6530 = vunpack.c.l.b16 %v6498
        %v6531 = vunpack.c.l.b16 %v6499
        %v6532 = vunpack.c.l.b16 %v6500
        %v6533 = vunpack.c.l.b16 %v6501
        %v6534 = vunpack.c.l.b16 %v6502
        %v6535 = vunpack.c.l.b16 %v6503
        %v6536 = vunpack.c.l.b16 %v6504
        %v6537 = vunpack.c.l.b16 %v6505
        %v6538 = vpack.c.b16 %v6523, %v6522
        %v6539 = vpack.c.b16 %v6525, %v6524
        %v6540 = vpack.c.b16 %v6527, %v6526
        %v6541 = vpack.c.b16 %v6529, %v6528
        %v6542 = vpack.c.b16 %v6531, %v6530
        %v6543 = vpack.c.b16 %v6533, %v6532
        %v6544 = vpack.c.b16 %v6535, %v6534
        %v6545 = vpack.c.b16 %v6537, %v6536
        %6554 = vmatprep.subr.bf16.mxu0 0
        %6555 = vmatpush1.bf16.msra.mxu0 %v6538
        %6556 = vmatprep.subr.bf16.mxu0 0
        %6557 = vmatpush1.bf16.msra.mxu0 %v6539
        %6558 = vmatprep.subr.bf16.mxu0 0
        %6559 = vmatpush1.bf16.msra.mxu0 %v6540
        %6560 = vmatprep.subr.bf16.mxu0 0
        %6561 = vmatpush1.bf16.msra.mxu0 %v6541
        %6562 = vmatprep.subr.bf16.mxu0 0
        %6563 = vmatpush1.bf16.msra.mxu0 %v6542
        %6564 = vmatprep.subr.bf16.mxu0 0
        %6565 = vmatpush1.bf16.msra.mxu0 %v6543
        %6566 = vmatprep.subr.bf16.mxu0 0
        %6567 = vmatpush1.bf16.msra.mxu0 %v6544
        %6568 = vmatprep.subr.bf16.mxu0 0
        %6569 = vmatpush1.bf16.msra.mxu0 %v6545
        %6570 = vmatprep.subr.bf16.mxu0 0
        %6571 = vmatpush1.bf16.msra.mxu0 0
        %6572 = vmatprep.subr.bf16.mxu0 0
        %6573 = vmatpush1.bf16.msra.mxu0 0
        %6574 = vmatprep.subr.bf16.mxu0 0
        %6575 = vmatpush1.bf16.msra.mxu0 0
        %6576 = vmatprep.subr.bf16.mxu0 0
        %6577 = vmatpush1.bf16.msra.mxu0 0
        %6578 = vmatprep.subr.bf16.mxu0 0
        %6579 = vmatpush1.bf16.msra.mxu0 0
        %6580 = vmatprep.subr.bf16.mxu0 0
        %6581 = vmatpush1.bf16.msra.mxu0 0
        %6582 = vmatprep.subr.bf16.mxu0 0
        %6583 = vmatpush1.bf16.msra.mxu0 0
        %6584 = vmatprep.subr.bf16.mxu0 0
        %6585 = vmatpush1.bf16.msra.mxu0 0
        %6586 = vmatprep.mubr.bf16.mxu0 0
        %6587 = vmatmul.mubr.bf16.gmra.mrb[0].mxu0 %v4823
        %v6588 = vpop.f32.mrb[0].mxu0
        %v6589 = vadd.f32 0.0, %v6588
        %v6590 = vpop.f32.mrb[0].mxu0
        %v6591 = vpop.f32.mrb[0].mxu0
        %v6592 = vadd.f32 0.0, %v6591
        %v6593 = vpop.f32.mrb[0].mxu0
        %6594 = vmatprep.mubr.bf16.mxu0 0
        %6595 = vmatmul.mubr.bf16.gmra.mrb[0].mxu0 %v4824
        %v6596 = vpop.f32.mrb[0].mxu0
        %v6597 = vadd.f32 0.0, %v6596
        %v6598 = vpop.f32.mrb[0].mxu0
        %v6599 = vpop.f32.mrb[0].mxu0
        %v6600 = vadd.f32 0.0, %v6599
        %v6601 = vpop.f32.mrb[0].mxu0
        %6602 = vmatprep.mubr.bf16.mxu0 0
        %6603 = vmatmul.mubr.bf16.gmra.mrb[0].mxu0 %v4825
        %v6604 = vpop.f32.mrb[0].mxu0
        %v6605 = vadd.f32 0.0, %v6604
        %v6606 = vpop.f32.mrb[0].mxu0
        %v6607 = vpop.f32.mrb[0].mxu0
        %v6608 = vadd.f32 0.0, %v6607
        %v6609 = vpop.f32.mrb[0].mxu0
        %6610 = vmatprep.mubr.bf16.mxu0 0
        %6611 = vmatmul.mubr.bf16.gmra.mrb[0].mxu0 %v4826
        %v6612 = vpop.f32.mrb[0].mxu0
        %v6613 = vadd.f32 0.0, %v6612
        %v6614 = vpop.f32.mrb[0].mxu0
        %v6615 = vpop.f32.mrb[0].mxu0
        %v6616 = vadd.f32 0.0, %v6615
        %v6617 = vpop.f32.mrb[0].mxu0
        %6618 = vdwg.mxu0
        %s6619 = scalar_lea.vmem %s5, 384
        %v6620 = vld [vmem:[%s6619] sm:$0xf]
        %v6621 = vld [vmem:[%s6619 + $0x4] sm:$0xf]
        %v6622 = vld [vmem:[%s6619 + $0x8] sm:$0xf]
        %v6623 = vld [vmem:[%s6619 + $0xc] sm:$0xf]
        %v6624 = vld [vmem:[%s6619 + $0x10] sm:$0xf]
        %v6625 = vld [vmem:[%s6619 + $0x14] sm:$0xf]
        %v6626 = vld [vmem:[%s6619 + $0x18] sm:$0xf]
        %v6627 = vld [vmem:[%s6619 + $0x1c] sm:$0xf]
        %v6628 = vld [vmem:[%s6619 + $0x20] sm:$0xf]
        %v6629 = vld [vmem:[%s6619 + $0x24] sm:$0xf]
        %v6630 = vld [vmem:[%s6619 + $0x28] sm:$0xf]
        %v6631 = vld [vmem:[%s6619 + $0x2c] sm:$0xf]
        %v6632 = vld [vmem:[%s6619 + $0x30] sm:$0xf]
        %v6633 = vld [vmem:[%s6619 + $0x34] sm:$0xf]
        %v6634 = vld [vmem:[%s6619 + $0x38] sm:$0xf]
        %v6635 = vld [vmem:[%s6619 + $0x3c] sm:$0xf]
        %v6652 = vunpack.c.l.b16 %v6620
        %v6653 = vunpack.c.l.b16 %v6621
        %v6654 = vunpack.c.l.b16 %v6622
        %v6655 = vunpack.c.l.b16 %v6623
        %v6656 = vunpack.c.l.b16 %v6624
        %v6657 = vunpack.c.l.b16 %v6625
        %v6658 = vunpack.c.l.b16 %v6626
        %v6659 = vunpack.c.l.b16 %v6627
        %v6660 = vunpack.c.l.b16 %v6628
        %v6661 = vunpack.c.l.b16 %v6629
        %v6662 = vunpack.c.l.b16 %v6630
        %v6663 = vunpack.c.l.b16 %v6631
        %v6664 = vunpack.c.l.b16 %v6632
        %v6665 = vunpack.c.l.b16 %v6633
        %v6666 = vunpack.c.l.b16 %v6634
        %v6667 = vunpack.c.l.b16 %v6635
        %v6668 = vpack.c.b16 %v6653, %v6652
        %v6669 = vpack.c.b16 %v6655, %v6654
        %v6670 = vpack.c.b16 %v6657, %v6656
        %v6671 = vpack.c.b16 %v6659, %v6658
        %v6672 = vpack.c.b16 %v6661, %v6660
        %v6673 = vpack.c.b16 %v6663, %v6662
        %v6674 = vpack.c.b16 %v6665, %v6664
        %v6675 = vpack.c.b16 %v6667, %v6666
        %6684 = vmatprep.subr.bf16.mxu0 0
        %6685 = vmatpush1.bf16.msra.mxu0 %v6668
        %6686 = vmatprep.subr.bf16.mxu0 0
        %6687 = vmatpush1.bf16.msra.mxu0 %v6669
        %6688 = vmatprep.subr.bf16.mxu0 0
        %6689 = vmatpush1.bf16.msra.mxu0 %v6670
        %6690 = vmatprep.subr.bf16.mxu0 0
        %6691 = vmatpush1.bf16.msra.mxu0 %v6671
        %6692 = vmatprep.subr.bf16.mxu0 0
        %6693 = vmatpush1.bf16.msra.mxu0 %v6672
        %6694 = vmatprep.subr.bf16.mxu0 0
        %6695 = vmatpush1.bf16.msra.mxu0 %v6673
        %6696 = vmatprep.subr.bf16.mxu0 0
        %6697 = vmatpush1.bf16.msra.mxu0 %v6674
        %6698 = vmatprep.subr.bf16.mxu0 0
        %6699 = vmatpush1.bf16.msra.mxu0 %v6675
        %6700 = vmatprep.subr.bf16.mxu0 0
        %6701 = vmatpush1.bf16.msra.mxu0 0
        %6702 = vmatprep.subr.bf16.mxu0 0
        %6703 = vmatpush1.bf16.msra.mxu0 0
        %6704 = vmatprep.subr.bf16.mxu0 0
        %6705 = vmatpush1.bf16.msra.mxu0 0
        %6706 = vmatprep.subr.bf16.mxu0 0
        %6707 = vmatpush1.bf16.msra.mxu0 0
        %6708 = vmatprep.subr.bf16.mxu0 0
        %6709 = vmatpush1.bf16.msra.mxu0 0
        %6710 = vmatprep.subr.bf16.mxu0 0
        %6711 = vmatpush1.bf16.msra.mxu0 0
        %6712 = vmatprep.subr.bf16.mxu0 0
        %6713 = vmatpush1.bf16.msra.mxu0 0
        %6714 = vmatprep.subr.bf16.mxu0 0
        %6715 = vmatpush1.bf16.msra.mxu0 0
        %6716 = vmatprep.mubr.bf16.mxu0 0
        %6717 = vmatmul.mubr.bf16.gmra.mrb[0].mxu0 %v4823
        %v6718 = vpop.f32.mrb[0].mxu0
        %v6719 = vadd.f32 0.0, %v6718
        %v6720 = vpop.f32.mrb[0].mxu0
        %v6721 = vpop.f32.mrb[0].mxu0
        %v6722 = vadd.f32 0.0, %v6721
        %v6723 = vpop.f32.mrb[0].mxu0
        %6724 = vmatprep.mubr.bf16.mxu0 0
        %6725 = vmatmul.mubr.bf16.gmra.mrb[0].mxu0 %v4824
        %v6726 = vpop.f32.mrb[0].mxu0
        %v6727 = vadd.f32 0.0, %v6726
        %v6728 = vpop.f32.mrb[0].mxu0
        %v6729 = vpop.f32.mrb[0].mxu0
        %v6730 = vadd.f32 0.0, %v6729
        %v6731 = vpop.f32.mrb[0].mxu0
        %6732 = vmatprep.mubr.bf16.mxu0 0
        %6733 = vmatmul.mubr.bf16.gmra.mrb[0].mxu0 %v4825
        %v6734 = vpop.f32.mrb[0].mxu0
        %v6735 = vadd.f32 0.0, %v6734
        %v6736 = vpop.f32.mrb[0].mxu0
        %v6737 = vpop.f32.mrb[0].mxu0
        %v6738 = vadd.f32 0.0, %v6737
        %v6739 = vpop.f32.mrb[0].mxu0
        %6740 = vmatprep.mubr.bf16.mxu0 0
        %6741 = vmatmul.mubr.bf16.gmra.mrb[0].mxu0 %v4826
        %v6742 = vpop.f32.mrb[0].mxu0
        %v6743 = vadd.f32 0.0, %v6742
        %v6744 = vpop.f32.mrb[0].mxu0
        %v6745 = vpop.f32.mrb[0].mxu0
        %v6746 = vadd.f32 0.0, %v6745
        %v6747 = vpop.f32.mrb[0].mxu0
        %6748 = vdwg.mxu0
        %v6749 = vpack.c.bf16 %v6462, %v6459
        %v6750 = vpack.c.bf16 %v6470, %v6467
        %v6751 = vpack.c.bf16 %v6478, %v6475
        %v6752 = vpack.c.bf16 %v6486, %v6483
        %v6753 = vpack.c.bf16 %v6592, %v6589
        %v6754 = vpack.c.bf16 %v6600, %v6597
        %v6755 = vpack.c.bf16 %v6608, %v6605
        %v6756 = vpack.c.bf16 %v6616, %v6613
        %v6758 = vsel %vm1066, %v6749, 0
        %v6761 = vsel %vm1066, %v6750, 0
        %v6764 = vsel %vm1066, %v6751, 0
        %v6767 = vsel %vm1066, %v6752, 0
        %v6770 = vsel %vm1066, %v6753, 0
        %v6773 = vsel %vm1066, %v6754, 0
        %v6776 = vsel %vm1066, %v6755, 0
        %v6779 = vsel %vm1066, %v6756, 0
        %6781 = vmatprep.subr.bf16.mxu0 0
        %6782 = vmatpush1.bf16.xpose.msra.mxu0 %v6770
        %6783 = vmatprep.subr.bf16.mxu0 0
        %6784 = vmatpush1.bf16.xpose.msra.mxu0 %v6773
        %6785 = vmatprep.subr.bf16.mxu0 0
        %6786 = vmatpush1.bf16.xpose.msra.mxu0 %v6776
        %6787 = vmatprep.subr.bf16.mxu0 0
        %6788 = vmatpush1.bf16.xpose.msra.mxu0 %v6779
        %6789 = vmatprep.subr.bf16.mxu0 0
        %6790 = vmatpush1.bf16.xpose.msra.mxu0 0
        %6791 = vmatprep.subr.bf16.mxu0 0
        %6792 = vmatpush1.bf16.xpose.msra.mxu0 0
        %6793 = vmatprep.subr.bf16.mxu0 0
        %6794 = vmatpush1.bf16.xpose.msra.mxu0 0
        %6795 = vmatprep.subr.bf16.mxu0 0
        %6796 = vmatpush1.bf16.xpose.msra.mxu0 0
        %6797 = vmatprep.subr.bf16.mxu0 0
        %6798 = vmatpush1.bf16.xpose.msra.mxu0 0
        %6799 = vmatprep.subr.bf16.mxu0 0
        %6800 = vmatpush1.bf16.xpose.msra.mxu0 0
        %6801 = vmatprep.subr.bf16.mxu0 0
        %6802 = vmatpush1.bf16.xpose.msra.mxu0 0
        %6803 = vmatprep.subr.bf16.mxu0 0
        %6804 = vmatpush1.bf16.xpose.msra.mxu0 0
        %6805 = vmatprep.subr.bf16.mxu0 0
        %6806 = vmatpush1.bf16.xpose.msra.mxu0 0
        %6807 = vmatprep.subr.bf16.mxu0 0
        %6808 = vmatpush1.bf16.xpose.msra.mxu0 0
        %6809 = vmatprep.subr.bf16.mxu0 0
        %6810 = vmatpush1.bf16.xpose.msra.mxu0 0
        %6811 = vmatprep.subr.bf16.mxu0 0
        %6812 = vmatpush1.bf16.xpose.msra.mxu0 0
        %6813 = vmatprep.mubr.bf16.mxu0 0
        %6814 = vmatmul.mubr.bf16.gmra.mrb[0].mxu0 %v6758
        %v6815 = vpop.f32.mrb[0].mxu0
        %v6816 = vadd.f32 0.0, %v6815
        %v6817 = vpop.f32.mrb[0].mxu0
        %v6818 = vpop.f32.mrb[0].mxu0
        %v6819 = vadd.f32 0.0, %v6818
        %v6820 = vpop.f32.mrb[0].mxu0
        %6821 = vmatprep.mubr.bf16.mxu0 0
        %6822 = vmatmul.mubr.bf16.gmra.mrb[0].mxu0 %v6761
        %v6823 = vpop.f32.mrb[0].mxu0
        %v6824 = vadd.f32 0.0, %v6823
        %v6825 = vpop.f32.mrb[0].mxu0
        %v6826 = vpop.f32.mrb[0].mxu0
        %v6827 = vadd.f32 0.0, %v6826
        %v6828 = vpop.f32.mrb[0].mxu0
        %6829 = vmatprep.mubr.bf16.mxu0 0
        %6830 = vmatmul.mubr.bf16.gmra.mrb[0].mxu0 %v6764
        %v6831 = vpop.f32.mrb[0].mxu0
        %v6832 = vadd.f32 0.0, %v6831
        %v6833 = vpop.f32.mrb[0].mxu0
        %v6834 = vpop.f32.mrb[0].mxu0
        %v6835 = vadd.f32 0.0, %v6834
        %v6836 = vpop.f32.mrb[0].mxu0
        %6837 = vmatprep.mubr.bf16.mxu0 0
        %6838 = vmatmul.mubr.bf16.gmra.mrb[0].mxu0 %v6767
        %v6839 = vpop.f32.mrb[0].mxu0
        %v6840 = vadd.f32 0.0, %v6839
        %v6841 = vpop.f32.mrb[0].mxu0
        %v6842 = vpop.f32.mrb[0].mxu0
        %v6843 = vadd.f32 0.0, %v6842
        %v6844 = vpop.f32.mrb[0].mxu0
        %6845 = vdwg.mxu0
        %v6846 = vsel %vm540, %v6816, -1e+30
        %v6847 = vsel %vm541, %v6819, -1e+30
        %v6848 = vsel %vm542, %v6824, -1e+30
        %v6849 = vsel %vm543, %v6827, -1e+30
        %v6850 = vsel %vm544, %v6832, -1e+30
        %v6851 = vsel %vm545, %v6835, -1e+30
        %v6852 = vsel %vm546, %v6840, -1e+30
        %v6853 = vsel %vm547, %v6843, -1e+30
        %v6854 = vsel %vm1164, %v6846, -inf
        %6855 = vmax.xlane.f32.xlu0 %v6854
        %v6856 = vpop.xlane.xlu0 %6855
        %v6857 = vsel %vm1164, %v6847, -inf
        %6858 = vmax.xlane.f32.xlu0 %v6857
        %v6859 = vpop.xlane.xlu0 %6858
        %v6860 = vsel %vm1164, %v6848, -inf
        %6861 = vmax.xlane.f32.xlu0 %v6860
        %v6862 = vpop.xlane.xlu0 %6861
        %v6863 = vsel %vm1164, %v6849, -inf
        %6864 = vmax.xlane.f32.xlu0 %v6863
        %v6865 = vpop.xlane.xlu0 %6864
        %v6866 = vsel %vm1164, %v6850, -inf
        %6867 = vmax.xlane.f32.xlu0 %v6866
        %v6868 = vpop.xlane.xlu0 %6867
        %v6869 = vsel %vm1164, %v6851, -inf
        %6870 = vmax.xlane.f32.xlu0 %v6869
        %v6871 = vpop.xlane.xlu0 %6870
        %v6872 = vsel %vm1164, %v6852, -inf
        %6873 = vmax.xlane.f32.xlu0 %v6872
        %v6874 = vpop.xlane.xlu0 %6873
        %v6875 = vsel %vm1164, %v6853, -inf
        %6876 = vmax.xlane.f32.xlu0 %v6875
        %v6877 = vpop.xlane.xlu0 %6876
        %v6878 = vsub.f32 %v6846, %v6856
        %v6879 = vsub.f32 %v6847, %v6859
        %v6880 = vsub.f32 %v6848, %v6862
        %v6881 = vsub.f32 %v6849, %v6865
        %v6882 = vsub.f32 %v6850, %v6868
        %v6883 = vsub.f32 %v6851, %v6871
        %v6884 = vsub.f32 %v6852, %v6874
        %v6885 = vsub.f32 %v6853, %v6877
        %v6886 = vmul.f32 %v6878, 1.442695
        %v6887 = vpow.pop %v6886
        %v6888 = vmul.f32 %v6879, 1.442695
        %v6889 = vpow.pop %v6888
        %v6890 = vmul.f32 %v6880, 1.442695
        %v6891 = vpow.pop %v6890
        %v6892 = vmul.f32 %v6881, 1.442695
        %v6893 = vpow.pop %v6892
        %v6894 = vmul.f32 %v6882, 1.442695
        %v6895 = vpow.pop %v6894
        %v6896 = vmul.f32 %v6883, 1.442695
        %v6897 = vpow.pop %v6896
        %v6898 = vmul.f32 %v6884, 1.442695
        %v6899 = vpow.pop %v6898
        %v6900 = vmul.f32 %v6885, 1.442695
        %v6901 = vpow.pop %v6900
        %v6902 = vsel %vm1164, %v6887, 0.0
        %6903 = vadd.xlane.f32.xlu0 %v6902
        %v6904 = vpop.xlane.xlu0 %6903
        %v6905 = vsel %vm1164, %v6889, 0.0
        %6906 = vadd.xlane.f32.xlu0 %v6905
        %v6907 = vpop.xlane.xlu0 %6906
        %v6908 = vsel %vm1164, %v6891, 0.0
        %6909 = vadd.xlane.f32.xlu0 %v6908
        %v6910 = vpop.xlane.xlu0 %6909
        %v6911 = vsel %vm1164, %v6893, 0.0
        %6912 = vadd.xlane.f32.xlu0 %v6911
        %v6913 = vpop.xlane.xlu0 %6912
        %v6914 = vsel %vm1164, %v6895, 0.0
        %6915 = vadd.xlane.f32.xlu0 %v6914
        %v6916 = vpop.xlane.xlu0 %6915
        %v6917 = vsel %vm1164, %v6897, 0.0
        %6918 = vadd.xlane.f32.xlu0 %v6917
        %v6919 = vpop.xlane.xlu0 %6918
        %v6920 = vsel %vm1164, %v6899, 0.0
        %6921 = vadd.xlane.f32.xlu0 %v6920
        %v6922 = vpop.xlane.xlu0 %6921
        %v6923 = vsel %vm1164, %v6901, 0.0
        %6924 = vadd.xlane.f32.xlu0 %v6923
        %v6925 = vpop.xlane.xlu0 %6924
        %v6926 = vrcp.pop %v6904
        %v6927 = vrcp.pop %v6907
        %v6928 = vrcp.pop %v6910
        %v6929 = vrcp.pop %v6913
        %v6930 = vrcp.pop %v6916
        %v6931 = vrcp.pop %v6919
        %v6932 = vrcp.pop %v6922
        %v6933 = vrcp.pop %v6925
        %v6934 = vmul.f32 %v6887, %v6926
        %v6935 = vmul.f32 %v6889, %v6927
        %v6936 = vmul.f32 %v6891, %v6928
        %v6937 = vmul.f32 %v6893, %v6929
        %v6938 = vmul.f32 %v6895, %v6930
        %v6939 = vmul.f32 %v6897, %v6931
        %v6940 = vmul.f32 %v6899, %v6932
        %v6941 = vmul.f32 %v6901, %v6933
        %v6942 = vpack.c.bf16 %v6935, %v6934
        %v6943 = vpack.c.bf16 %v6937, %v6936
        %v6944 = vpack.c.bf16 %v6939, %v6938
        %v6945 = vpack.c.bf16 %v6941, %v6940
        %v6946 = vpack.c.bf16 %v6722, %v6719
        %v6947 = vpack.c.bf16 %v6730, %v6727
        %v6948 = vpack.c.bf16 %v6738, %v6735
        %v6949 = vpack.c.bf16 %v6746, %v6743
        %v6951 = vsel %vm1164, %v6942, 0
        %v6954 = vsel %vm1164, %v6943, 0
        %v6957 = vsel %vm1164, %v6944, 0
        %v6960 = vsel %vm1164, %v6945, 0
        %6962 = vmatprep.subr.bf16.mxu0 0
        %6963 = vmatpush1.bf16.msra.mxu0 %v6946
        %6964 = vmatprep.subr.bf16.mxu0 0
        %6965 = vmatpush1.bf16.msra.mxu0 %v6947
        %6966 = vmatprep.subr.bf16.mxu0 0
        %6967 = vmatpush1.bf16.msra.mxu0 %v6948
        %6968 = vmatprep.subr.bf16.mxu0 0
        %6969 = vmatpush1.bf16.msra.mxu0 %v6949
        %6970 = vmatprep.subr.bf16.mxu0 0
        %6971 = vmatpush1.bf16.msra.mxu0 0
        %6972 = vmatprep.subr.bf16.mxu0 0
        %6973 = vmatpush1.bf16.msra.mxu0 0
        %6974 = vmatprep.subr.bf16.mxu0 0
        %6975 = vmatpush1.bf16.msra.mxu0 0
        %6976 = vmatprep.subr.bf16.mxu0 0
        %6977 = vmatpush1.bf16.msra.mxu0 0
        %6978 = vmatprep.subr.bf16.mxu0 0
        %6979 = vmatpush1.bf16.msra.mxu0 0
        %6980 = vmatprep.subr.bf16.mxu0 0
        %6981 = vmatpush1.bf16.msra.mxu0 0
        %6982 = vmatprep.subr.bf16.mxu0 0
        %6983 = vmatpush1.bf16.msra.mxu0 0
        %6984 = vmatprep.subr.bf16.mxu0 0
        %6985 = vmatpush1.bf16.msra.mxu0 0
        %6986 = vmatprep.subr.bf16.mxu0 0
        %6987 = vmatpush1.bf16.msra.mxu0 0
        %6988 = vmatprep.subr.bf16.mxu0 0
        %6989 = vmatpush1.bf16.msra.mxu0 0
        %6990 = vmatprep.subr.bf16.mxu0 0
        %6991 = vmatpush1.bf16.msra.mxu0 0
        %6992 = vmatprep.subr.bf16.mxu0 0
        %6993 = vmatpush1.bf16.msra.mxu0 0
        %6994 = vmatprep.mubr.bf16.mxu0 0
        %6995 = vmatmul.mubr.bf16.gmra.mrb[0].mxu0 %v6951
        %v6996 = vpop.f32.mrb[0].mxu0
        %v6997 = vadd.f32 0.0, %v6996
        %v6998 = vpop.f32.mrb[0].mxu0
        %v6999 = vpop.f32.mrb[0].mxu0
        %v7000 = vadd.f32 0.0, %v6999
        %v7001 = vpop.f32.mrb[0].mxu0
        %7002 = vmatprep.mubr.bf16.mxu0 0
        %7003 = vmatmul.mubr.bf16.gmra.mrb[0].mxu0 %v6954
        %v7004 = vpop.f32.mrb[0].mxu0
        %v7005 = vadd.f32 0.0, %v7004
        %v7006 = vpop.f32.mrb[0].mxu0
        %v7007 = vpop.f32.mrb[0].mxu0
        %v7008 = vadd.f32 0.0, %v7007
        %v7009 = vpop.f32.mrb[0].mxu0
        %7010 = vmatprep.mubr.bf16.mxu0 0
        %7011 = vmatmul.mubr.bf16.gmra.mrb[0].mxu0 %v6957
        %v7012 = vpop.f32.mrb[0].mxu0
        %v7013 = vadd.f32 0.0, %v7012
        %v7014 = vpop.f32.mrb[0].mxu0
        %v7015 = vpop.f32.mrb[0].mxu0
        %v7016 = vadd.f32 0.0, %v7015
        %v7017 = vpop.f32.mrb[0].mxu0
        %7018 = vmatprep.mubr.bf16.mxu0 0
        %7019 = vmatmul.mubr.bf16.gmra.mrb[0].mxu0 %v6960
        %v7020 = vpop.f32.mrb[0].mxu0
        %v7021 = vadd.f32 0.0, %v7020
        %v7022 = vpop.f32.mrb[0].mxu0
        %v7023 = vpop.f32.mrb[0].mxu0
        %v7024 = vadd.f32 0.0, %v7023
        %v7025 = vpop.f32.mrb[0].mxu0
        %7026 = vdwg.mxu0
        %v7027 = vpack.c.bf16 %v7000, %v6997
        %v7028 = vpack.c.bf16 %v7008, %v7005
        %v7029 = vpack.c.bf16 %v7016, %v7013
        %v7030 = vpack.c.bf16 %v7024, %v7021
        %s7031 = scalar_lea.vmem %s6, 96
        %v7032 = vld [vmem:[%s7031] sm:$0xf]
        %v7033 = vld [vmem:[%s7031 + $0x4] sm:$0xf]
        %v7034 = vld [vmem:[%s7031 + $0x8] sm:$0xf]
        %v7035 = vld [vmem:[%s7031 + $0xc] sm:$0xf]
        %v7040 = vunpack.c.l.b16 %v7032
        %v7041 = vunpack.c.l.b16 %v7033
        %v7042 = vunpack.c.l.b16 %v7034
        %v7043 = vunpack.c.l.b16 %v7035
        %v7044 = vpack.c.b16 %v7041, %v7040
        %v7045 = vpack.c.b16 %v7043, %v7042
        %v7049 = vsel %vm1066, %v7027, 0
        %v7052 = vsel %vm1066, %v7028, 0
        %v7055 = vsel %vm1066, %v7029, 0
        %v7058 = vsel %vm1066, %v7030, 0
        %7060 = vmatprep.subr.bf16.mxu0 0
        %7061 = vmatpush1.bf16.msra.mxu0 %v7044
        %7062 = vmatprep.subr.bf16.mxu0 0
        %7063 = vmatpush1.bf16.msra.mxu0 %v7045
        %7064 = vmatprep.subr.bf16.mxu0 0
        %7065 = vmatpush1.bf16.msra.mxu0 0
        %7066 = vmatprep.subr.bf16.mxu0 0
        %7067 = vmatpush1.bf16.msra.mxu0 0
        %7068 = vmatprep.subr.bf16.mxu0 0
        %7069 = vmatpush1.bf16.msra.mxu0 0
        %7070 = vmatprep.subr.bf16.mxu0 0
        %7071 = vmatpush1.bf16.msra.mxu0 0
        %7072 = vmatprep.subr.bf16.mxu0 0
        %7073 = vmatpush1.bf16.msra.mxu0 0
        %7074 = vmatprep.subr.bf16.mxu0 0
        %7075 = vmatpush1.bf16.msra.mxu0 0
        %7076 = vmatprep.subr.bf16.mxu0 0
        %7077 = vmatpush1.bf16.msra.mxu0 0
        %7078 = vmatprep.subr.bf16.mxu0 0
        %7079 = vmatpush1.bf16.msra.mxu0 0
        %7080 = vmatprep.subr.bf16.mxu0 0
        %7081 = vmatpush1.bf16.msra.mxu0 0
        %7082 = vmatprep.subr.bf16.mxu0 0
        %7083 = vmatpush1.bf16.msra.mxu0 0
        %7084 = vmatprep.subr.bf16.mxu0 0
        %7085 = vmatpush1.bf16.msra.mxu0 0
        %7086 = vmatprep.subr.bf16.mxu0 0
        %7087 = vmatpush1.bf16.msra.mxu0 0
        %7088 = vmatprep.subr.bf16.mxu0 0
        %7089 = vmatpush1.bf16.msra.mxu0 0
        %7090 = vmatprep.subr.bf16.mxu0 0
        %7091 = vmatpush1.bf16.msra.mxu0 0
        %7092 = vmatprep.mubr.bf16.mxu0 0
        %7093 = vmatmul.mubr.bf16.gmra.mrb[0].mxu0 %v7049
        %v7094 = vpop.f32.mrb[0].mxu0
        %v7095 = vadd.f32 0.0, %v7094
        %v7096 = vpop.f32.mrb[0].mxu0
        %v7097 = vpop.f32.mrb[0].mxu0
        %v7098 = vadd.f32 0.0, %v7097
        %v7099 = vpop.f32.mrb[0].mxu0
        %7100 = vmatprep.mubr.bf16.mxu0 0
        %7101 = vmatmul.mubr.bf16.gmra.mrb[0].mxu0 %v7052
        %v7102 = vpop.f32.mrb[0].mxu0
        %v7103 = vadd.f32 0.0, %v7102
        %v7104 = vpop.f32.mrb[0].mxu0
        %v7105 = vpop.f32.mrb[0].mxu0
        %v7106 = vadd.f32 0.0, %v7105
        %v7107 = vpop.f32.mrb[0].mxu0
        %7108 = vmatprep.mubr.bf16.mxu0 0
        %7109 = vmatmul.mubr.bf16.gmra.mrb[0].mxu0 %v7055
        %v7110 = vpop.f32.mrb[0].mxu0
        %v7111 = vadd.f32 0.0, %v7110
        %v7112 = vpop.f32.mrb[0].mxu0
        %v7113 = vpop.f32.mrb[0].mxu0
        %v7114 = vadd.f32 0.0, %v7113
        %v7115 = vpop.f32.mrb[0].mxu0
        %7116 = vmatprep.mubr.bf16.mxu0 0
        %7117 = vmatmul.mubr.bf16.gmra.mrb[0].mxu0 %v7058
        %v7118 = vpop.f32.mrb[0].mxu0
        %v7119 = vadd.f32 0.0, %v7118
        %v7120 = vpop.f32.mrb[0].mxu0
        %v7121 = vpop.f32.mrb[0].mxu0
        %v7122 = vadd.f32 0.0, %v7121
        %v7123 = vpop.f32.mrb[0].mxu0
        %7124 = vdwg.mxu0
        %v7125 = vadd.f32 %v6329, %v7095
        %v7126 = vadd.f32 %v6332, %v7098
        %v7127 = vadd.f32 %v6337, %v7103
        %v7128 = vadd.f32 %v6340, %v7106
        %v7129 = vadd.f32 %v6345, %v7111
        %v7130 = vadd.f32 %v6348, %v7114
        %v7131 = vadd.f32 %v6353, %v7119
        %v7132 = vadd.f32 %v6356, %v7122
        %s7133 = scalar_lea.vmem %s3, 448
        %v7134 = vld [vmem:[%s7133] sm:$0xf]
        %v7135 = vld [vmem:[%s7133 + $0x4] sm:$0xf]
        %v7136 = vld [vmem:[%s7133 + $0x8] sm:$0xf]
        %v7137 = vld [vmem:[%s7133 + $0xc] sm:$0xf]
        %v7138 = vld [vmem:[%s7133 + $0x10] sm:$0xf]
        %v7139 = vld [vmem:[%s7133 + $0x14] sm:$0xf]
        %v7140 = vld [vmem:[%s7133 + $0x18] sm:$0xf]
        %v7141 = vld [vmem:[%s7133 + $0x1c] sm:$0xf]
        %v7142 = vld [vmem:[%s7133 + $0x20] sm:$0xf]
        %v7143 = vld [vmem:[%s7133 + $0x24] sm:$0xf]
        %v7144 = vld [vmem:[%s7133 + $0x28] sm:$0xf]
        %v7145 = vld [vmem:[%s7133 + $0x2c] sm:$0xf]
        %v7146 = vld [vmem:[%s7133 + $0x30] sm:$0xf]
        %v7147 = vld [vmem:[%s7133 + $0x34] sm:$0xf]
        %v7148 = vld [vmem:[%s7133 + $0x38] sm:$0xf]
        %v7149 = vld [vmem:[%s7133 + $0x3c] sm:$0xf]
        %v7166 = vunpack.c.l.b16 %v7134
        %v7167 = vunpack.c.l.b16 %v7135
        %v7168 = vunpack.c.l.b16 %v7136
        %v7169 = vunpack.c.l.b16 %v7137
        %v7170 = vunpack.c.l.b16 %v7138
        %v7171 = vunpack.c.l.b16 %v7139
        %v7172 = vunpack.c.l.b16 %v7140
        %v7173 = vunpack.c.l.b16 %v7141
        %v7174 = vunpack.c.l.b16 %v7142
        %v7175 = vunpack.c.l.b16 %v7143
        %v7176 = vunpack.c.l.b16 %v7144
        %v7177 = vunpack.c.l.b16 %v7145
        %v7178 = vunpack.c.l.b16 %v7146
        %v7179 = vunpack.c.l.b16 %v7147
        %v7180 = vunpack.c.l.b16 %v7148
        %v7181 = vunpack.c.l.b16 %v7149
        %v7182 = vpack.c.b16 %v7167, %v7166
        %v7183 = vpack.c.b16 %v7169, %v7168
        %v7184 = vpack.c.b16 %v7171, %v7170
        %v7185 = vpack.c.b16 %v7173, %v7172
        %v7186 = vpack.c.b16 %v7175, %v7174
        %v7187 = vpack.c.b16 %v7177, %v7176
        %v7188 = vpack.c.b16 %v7179, %v7178
        %v7189 = vpack.c.b16 %v7181, %v7180
        %7198 = vmatprep.subr.bf16.mxu0 0
        %7199 = vmatpush1.bf16.msra.mxu0 %v7182
        %7200 = vmatprep.subr.bf16.mxu0 0
        %7201 = vmatpush1.bf16.msra.mxu0 %v7183
        %7202 = vmatprep.subr.bf16.mxu0 0
        %7203 = vmatpush1.bf16.msra.mxu0 %v7184
        %7204 = vmatprep.subr.bf16.mxu0 0
        %7205 = vmatpush1.bf16.msra.mxu0 %v7185
        %7206 = vmatprep.subr.bf16.mxu0 0
        %7207 = vmatpush1.bf16.msra.mxu0 %v7186
        %7208 = vmatprep.subr.bf16.mxu0 0
        %7209 = vmatpush1.bf16.msra.mxu0 %v7187
        %7210 = vmatprep.subr.bf16.mxu0 0
        %7211 = vmatpush1.bf16.msra.mxu0 %v7188
        %7212 = vmatprep.subr.bf16.mxu0 0
        %7213 = vmatpush1.bf16.msra.mxu0 %v7189
        %7214 = vmatprep.subr.bf16.mxu0 0
        %7215 = vmatpush1.bf16.msra.mxu0 0
        %7216 = vmatprep.subr.bf16.mxu0 0
        %7217 = vmatpush1.bf16.msra.mxu0 0
        %7218 = vmatprep.subr.bf16.mxu0 0
        %7219 = vmatpush1.bf16.msra.mxu0 0
        %7220 = vmatprep.subr.bf16.mxu0 0
        %7221 = vmatpush1.bf16.msra.mxu0 0
        %7222 = vmatprep.subr.bf16.mxu0 0
        %7223 = vmatpush1.bf16.msra.mxu0 0
        %7224 = vmatprep.subr.bf16.mxu0 0
        %7225 = vmatpush1.bf16.msra.mxu0 0
        %7226 = vmatprep.subr.bf16.mxu0 0
        %7227 = vmatpush1.bf16.msra.mxu0 0
        %7228 = vmatprep.subr.bf16.mxu0 0
        %7229 = vmatpush1.bf16.msra.mxu0 0
        %7230 = vmatprep.mubr.bf16.mxu0 0
        %7231 = vmatmul.mubr.bf16.gmra.mrb[0].mxu0 %v4823
        %v7232 = vpop.f32.mrb[0].mxu0
        %v7233 = vadd.f32 0.0, %v7232
        %v7234 = vpop.f32.mrb[0].mxu0
        %v7235 = vpop.f32.mrb[0].mxu0
        %v7236 = vadd.f32 0.0, %v7235
        %v7237 = vpop.f32.mrb[0].mxu0
        %7238 = vmatprep.mubr.bf16.mxu0 0
        %7239 = vmatmul.mubr.bf16.gmra.mrb[0].mxu0 %v4824
        %v7240 = vpop.f32.mrb[0].mxu0
        %v7241 = vadd.f32 0.0, %v7240
        %v7242 = vpop.f32.mrb[0].mxu0
        %v7243 = vpop.f32.mrb[0].mxu0
        %v7244 = vadd.f32 0.0, %v7243
        %v7245 = vpop.f32.mrb[0].mxu0
        %7246 = vmatprep.mubr.bf16.mxu0 0
        %7247 = vmatmul.mubr.bf16.gmra.mrb[0].mxu0 %v4825
        %v7248 = vpop.f32.mrb[0].mxu0
        %v7249 = vadd.f32 0.0, %v7248
        %v7250 = vpop.f32.mrb[0].mxu0
        %v7251 = vpop.f32.mrb[0].mxu0
        %v7252 = vadd.f32 0.0, %v7251
        %v7253 = vpop.f32.mrb[0].mxu0
        %7254 = vmatprep.mubr.bf16.mxu0 0
        %7255 = vmatmul.mubr.bf16.gmra.mrb[0].mxu0 %v4826
        %v7256 = vpop.f32.mrb[0].mxu0
        %v7257 = vadd.f32 0.0, %v7256
        %v7258 = vpop.f32.mrb[0].mxu0
        %v7259 = vpop.f32.mrb[0].mxu0
        %v7260 = vadd.f32 0.0, %v7259
        %v7261 = vpop.f32.mrb[0].mxu0
        %7262 = vdwg.mxu0
        %s7263 = scalar_lea.vmem %s4, 448
        %v7264 = vld [vmem:[%s7263] sm:$0xf]
        %v7265 = vld [vmem:[%s7263 + $0x4] sm:$0xf]
        %v7266 = vld [vmem:[%s7263 + $0x8] sm:$0xf]
        %v7267 = vld [vmem:[%s7263 + $0xc] sm:$0xf]
        %v7268 = vld [vmem:[%s7263 + $0x10] sm:$0xf]
        %v7269 = vld [vmem:[%s7263 + $0x14] sm:$0xf]
        %v7270 = vld [vmem:[%s7263 + $0x18] sm:$0xf]
        %v7271 = vld [vmem:[%s7263 + $0x1c] sm:$0xf]
        %v7272 = vld [vmem:[%s7263 + $0x20] sm:$0xf]
        %v7273 = vld [vmem:[%s7263 + $0x24] sm:$0xf]
        %v7274 = vld [vmem:[%s7263 + $0x28] sm:$0xf]
        %v7275 = vld [vmem:[%s7263 + $0x2c] sm:$0xf]
        %v7276 = vld [vmem:[%s7263 + $0x30] sm:$0xf]
        %v7277 = vld [vmem:[%s7263 + $0x34] sm:$0xf]
        %v7278 = vld [vmem:[%s7263 + $0x38] sm:$0xf]
        %v7279 = vld [vmem:[%s7263 + $0x3c] sm:$0xf]
        %v7296 = vunpack.c.l.b16 %v7264
        %v7297 = vunpack.c.l.b16 %v7265
        %v7298 = vunpack.c.l.b16 %v7266
        %v7299 = vunpack.c.l.b16 %v7267
        %v7300 = vunpack.c.l.b16 %v7268
        %v7301 = vunpack.c.l.b16 %v7269
        %v7302 = vunpack.c.l.b16 %v7270
        %v7303 = vunpack.c.l.b16 %v7271
        %v7304 = vunpack.c.l.b16 %v7272
        %v7305 = vunpack.c.l.b16 %v7273
        %v7306 = vunpack.c.l.b16 %v7274
        %v7307 = vunpack.c.l.b16 %v7275
        %v7308 = vunpack.c.l.b16 %v7276
        %v7309 = vunpack.c.l.b16 %v7277
        %v7310 = vunpack.c.l.b16 %v7278
        %v7311 = vunpack.c.l.b16 %v7279
        %v7312 = vpack.c.b16 %v7297, %v7296
        %v7313 = vpack.c.b16 %v7299, %v7298
        %v7314 = vpack.c.b16 %v7301, %v7300
        %v7315 = vpack.c.b16 %v7303, %v7302
        %v7316 = vpack.c.b16 %v7305, %v7304
        %v7317 = vpack.c.b16 %v7307, %v7306
        %v7318 = vpack.c.b16 %v7309, %v7308
        %v7319 = vpack.c.b16 %v7311, %v7310
        %7328 = vmatprep.subr.bf16.mxu0 0
        %7329 = vmatpush1.bf16.msra.mxu0 %v7312
        %7330 = vmatprep.subr.bf16.mxu0 0
        %7331 = vmatpush1.bf16.msra.mxu0 %v7313
        %7332 = vmatprep.subr.bf16.mxu0 0
        %7333 = vmatpush1.bf16.msra.mxu0 %v7314
        %7334 = vmatprep.subr.bf16.mxu0 0
        %7335 = vmatpush1.bf16.msra.mxu0 %v7315
        %7336 = vmatprep.subr.bf16.mxu0 0
        %7337 = vmatpush1.bf16.msra.mxu0 %v7316
        %7338 = vmatprep.subr.bf16.mxu0 0
        %7339 = vmatpush1.bf16.msra.mxu0 %v7317
        %7340 = vmatprep.subr.bf16.mxu0 0
        %7341 = vmatpush1.bf16.msra.mxu0 %v7318
        %7342 = vmatprep.subr.bf16.mxu0 0
        %7343 = vmatpush1.bf16.msra.mxu0 %v7319
        %7344 = vmatprep.subr.bf16.mxu0 0
        %7345 = vmatpush1.bf16.msra.mxu0 0
        %7346 = vmatprep.subr.bf16.mxu0 0
        %7347 = vmatpush1.bf16.msra.mxu0 0
        %7348 = vmatprep.subr.bf16.mxu0 0
        %7349 = vmatpush1.bf16.msra.mxu0 0
        %7350 = vmatprep.subr.bf16.mxu0 0
        %7351 = vmatpush1.bf16.msra.mxu0 0
        %7352 = vmatprep.subr.bf16.mxu0 0
        %7353 = vmatpush1.bf16.msra.mxu0 0
        %7354 = vmatprep.subr.bf16.mxu0 0
        %7355 = vmatpush1.bf16.msra.mxu0 0
        %7356 = vmatprep.subr.bf16.mxu0 0
        %7357 = vmatpush1.bf16.msra.mxu0 0
        %7358 = vmatprep.subr.bf16.mxu0 0
        %7359 = vmatpush1.bf16.msra.mxu0 0
        %7360 = vmatprep.mubr.bf16.mxu0 0
        %7361 = vmatmul.mubr.bf16.gmra.mrb[0].mxu0 %v4823
        %v7362 = vpop.f32.mrb[0].mxu0
        %v7363 = vadd.f32 0.0, %v7362
        %v7364 = vpop.f32.mrb[0].mxu0
        %v7365 = vpop.f32.mrb[0].mxu0
        %v7366 = vadd.f32 0.0, %v7365
        %v7367 = vpop.f32.mrb[0].mxu0
        %7368 = vmatprep.mubr.bf16.mxu0 0
        %7369 = vmatmul.mubr.bf16.gmra.mrb[0].mxu0 %v4824
        %v7370 = vpop.f32.mrb[0].mxu0
        %v7371 = vadd.f32 0.0, %v7370
        %v7372 = vpop.f32.mrb[0].mxu0
        %v7373 = vpop.f32.mrb[0].mxu0
        %v7374 = vadd.f32 0.0, %v7373
        %v7375 = vpop.f32.mrb[0].mxu0
        %7376 = vmatprep.mubr.bf16.mxu0 0
        %7377 = vmatmul.mubr.bf16.gmra.mrb[0].mxu0 %v4825
        %v7378 = vpop.f32.mrb[0].mxu0
        %v7379 = vadd.f32 0.0, %v7378
        %v7380 = vpop.f32.mrb[0].mxu0
        %v7381 = vpop.f32.mrb[0].mxu0
        %v7382 = vadd.f32 0.0, %v7381
        %v7383 = vpop.f32.mrb[0].mxu0
        %7384 = vmatprep.mubr.bf16.mxu0 0
        %7385 = vmatmul.mubr.bf16.gmra.mrb[0].mxu0 %v4826
        %v7386 = vpop.f32.mrb[0].mxu0
        %v7387 = vadd.f32 0.0, %v7386
        %v7388 = vpop.f32.mrb[0].mxu0
        %v7389 = vpop.f32.mrb[0].mxu0
        %v7390 = vadd.f32 0.0, %v7389
        %v7391 = vpop.f32.mrb[0].mxu0
        %7392 = vdwg.mxu0
        %s7393 = scalar_lea.vmem %s5, 448
        %v7394 = vld [vmem:[%s7393] sm:$0xf]
        %v7395 = vld [vmem:[%s7393 + $0x4] sm:$0xf]
        %v7396 = vld [vmem:[%s7393 + $0x8] sm:$0xf]
        %v7397 = vld [vmem:[%s7393 + $0xc] sm:$0xf]
        %v7398 = vld [vmem:[%s7393 + $0x10] sm:$0xf]
        %v7399 = vld [vmem:[%s7393 + $0x14] sm:$0xf]
        %v7400 = vld [vmem:[%s7393 + $0x18] sm:$0xf]
        %v7401 = vld [vmem:[%s7393 + $0x1c] sm:$0xf]
        %v7402 = vld [vmem:[%s7393 + $0x20] sm:$0xf]
        %v7403 = vld [vmem:[%s7393 + $0x24] sm:$0xf]
        %v7404 = vld [vmem:[%s7393 + $0x28] sm:$0xf]
        %v7405 = vld [vmem:[%s7393 + $0x2c] sm:$0xf]
        %v7406 = vld [vmem:[%s7393 + $0x30] sm:$0xf]
        %v7407 = vld [vmem:[%s7393 + $0x34] sm:$0xf]
        %v7408 = vld [vmem:[%s7393 + $0x38] sm:$0xf]
        %v7409 = vld [vmem:[%s7393 + $0x3c] sm:$0xf]
        %v7426 = vunpack.c.l.b16 %v7394
        %v7427 = vunpack.c.l.b16 %v7395
        %v7428 = vunpack.c.l.b16 %v7396
        %v7429 = vunpack.c.l.b16 %v7397
        %v7430 = vunpack.c.l.b16 %v7398
        %v7431 = vunpack.c.l.b16 %v7399
        %v7432 = vunpack.c.l.b16 %v7400
        %v7433 = vunpack.c.l.b16 %v7401
        %v7434 = vunpack.c.l.b16 %v7402
        %v7435 = vunpack.c.l.b16 %v7403
        %v7436 = vunpack.c.l.b16 %v7404
        %v7437 = vunpack.c.l.b16 %v7405
        %v7438 = vunpack.c.l.b16 %v7406
        %v7439 = vunpack.c.l.b16 %v7407
        %v7440 = vunpack.c.l.b16 %v7408
        %v7441 = vunpack.c.l.b16 %v7409
        %v7442 = vpack.c.b16 %v7427, %v7426
        %v7443 = vpack.c.b16 %v7429, %v7428
        %v7444 = vpack.c.b16 %v7431, %v7430
        %v7445 = vpack.c.b16 %v7433, %v7432
        %v7446 = vpack.c.b16 %v7435, %v7434
        %v7447 = vpack.c.b16 %v7437, %v7436
        %v7448 = vpack.c.b16 %v7439, %v7438
        %v7449 = vpack.c.b16 %v7441, %v7440
        %7458 = vmatprep.subr.bf16.mxu0 0
        %7459 = vmatpush1.bf16.msra.mxu0 %v7442
        %7460 = vmatprep.subr.bf16.mxu0 0
        %7461 = vmatpush1.bf16.msra.mxu0 %v7443
        %7462 = vmatprep.subr.bf16.mxu0 0
        %7463 = vmatpush1.bf16.msra.mxu0 %v7444
        %7464 = vmatprep.subr.bf16.mxu0 0
        %7465 = vmatpush1.bf16.msra.mxu0 %v7445
        %7466 = vmatprep.subr.bf16.mxu0 0
        %7467 = vmatpush1.bf16.msra.mxu0 %v7446
        %7468 = vmatprep.subr.bf16.mxu0 0
        %7469 = vmatpush1.bf16.msra.mxu0 %v7447
        %7470 = vmatprep.subr.bf16.mxu0 0
        %7471 = vmatpush1.bf16.msra.mxu0 %v7448
        %7472 = vmatprep.subr.bf16.mxu0 0
        %7473 = vmatpush1.bf16.msra.mxu0 %v7449
        %7474 = vmatprep.subr.bf16.mxu0 0
        %7475 = vmatpush1.bf16.msra.mxu0 0
        %7476 = vmatprep.subr.bf16.mxu0 0
        %7477 = vmatpush1.bf16.msra.mxu0 0
        %7478 = vmatprep.subr.bf16.mxu0 0
        %7479 = vmatpush1.bf16.msra.mxu0 0
        %7480 = vmatprep.subr.bf16.mxu0 0
        %7481 = vmatpush1.bf16.msra.mxu0 0
        %7482 = vmatprep.subr.bf16.mxu0 0
        %7483 = vmatpush1.bf16.msra.mxu0 0
        %7484 = vmatprep.subr.bf16.mxu0 0
        %7485 = vmatpush1.bf16.msra.mxu0 0
        %7486 = vmatprep.subr.bf16.mxu0 0
        %7487 = vmatpush1.bf16.msra.mxu0 0
        %7488 = vmatprep.subr.bf16.mxu0 0
        %7489 = vmatpush1.bf16.msra.mxu0 0
        %7490 = vmatprep.mubr.bf16.mxu0 0
        %7491 = vmatmul.mubr.bf16.gmra.mrb[0].mxu0 %v4823
        %v7492 = vpop.f32.mrb[0].mxu0
        %v7493 = vadd.f32 0.0, %v7492
        %v7494 = vpop.f32.mrb[0].mxu0
        %v7495 = vpop.f32.mrb[0].mxu0
        %v7496 = vadd.f32 0.0, %v7495
        %v7497 = vpop.f32.mrb[0].mxu0
        %7498 = vmatprep.mubr.bf16.mxu0 0
        %7499 = vmatmul.mubr.bf16.gmra.mrb[0].mxu0 %v4824
        %v7500 = vpop.f32.mrb[0].mxu0
        %v7501 = vadd.f32 0.0, %v7500
        %v7502 = vpop.f32.mrb[0].mxu0
        %v7503 = vpop.f32.mrb[0].mxu0
        %v7504 = vadd.f32 0.0, %v7503
        %v7505 = vpop.f32.mrb[0].mxu0
        %7506 = vmatprep.mubr.bf16.mxu0 0
        %7507 = vmatmul.mubr.bf16.gmra.mrb[0].mxu0 %v4825
        %v7508 = vpop.f32.mrb[0].mxu0
        %v7509 = vadd.f32 0.0, %v7508
        %v7510 = vpop.f32.mrb[0].mxu0
        %v7511 = vpop.f32.mrb[0].mxu0
        %v7512 = vadd.f32 0.0, %v7511
        %v7513 = vpop.f32.mrb[0].mxu0
        %7514 = vmatprep.mubr.bf16.mxu0 0
        %7515 = vmatmul.mubr.bf16.gmra.mrb[0].mxu0 %v4826
        %v7516 = vpop.f32.mrb[0].mxu0
        %v7517 = vadd.f32 0.0, %v7516
        %v7518 = vpop.f32.mrb[0].mxu0
        %v7519 = vpop.f32.mrb[0].mxu0
        %v7520 = vadd.f32 0.0, %v7519
        %v7521 = vpop.f32.mrb[0].mxu0
        %7522 = vdwg.mxu0
        %v7523 = vpack.c.bf16 %v7236, %v7233
        %v7524 = vpack.c.bf16 %v7244, %v7241
        %v7525 = vpack.c.bf16 %v7252, %v7249
        %v7526 = vpack.c.bf16 %v7260, %v7257
        %v7527 = vpack.c.bf16 %v7366, %v7363
        %v7528 = vpack.c.bf16 %v7374, %v7371
        %v7529 = vpack.c.bf16 %v7382, %v7379
        %v7530 = vpack.c.bf16 %v7390, %v7387
        %v7532 = vsel %vm1066, %v7523, 0
        %v7535 = vsel %vm1066, %v7524, 0
        %v7538 = vsel %vm1066, %v7525, 0
        %v7541 = vsel %vm1066, %v7526, 0
        %v7544 = vsel %vm1066, %v7527, 0
        %v7547 = vsel %vm1066, %v7528, 0
        %v7550 = vsel %vm1066, %v7529, 0
        %v7553 = vsel %vm1066, %v7530, 0
        %7555 = vmatprep.subr.bf16.mxu0 0
        %7556 = vmatpush1.bf16.xpose.msra.mxu0 %v7544
        %7557 = vmatprep.subr.bf16.mxu0 0
        %7558 = vmatpush1.bf16.xpose.msra.mxu0 %v7547
        %7559 = vmatprep.subr.bf16.mxu0 0
        %7560 = vmatpush1.bf16.xpose.msra.mxu0 %v7550
        %7561 = vmatprep.subr.bf16.mxu0 0
        %7562 = vmatpush1.bf16.xpose.msra.mxu0 %v7553
        %7563 = vmatprep.subr.bf16.mxu0 0
        %7564 = vmatpush1.bf16.xpose.msra.mxu0 0
        %7565 = vmatprep.subr.bf16.mxu0 0
        %7566 = vmatpush1.bf16.xpose.msra.mxu0 0
        %7567 = vmatprep.subr.bf16.mxu0 0
        %7568 = vmatpush1.bf16.xpose.msra.mxu0 0
        %7569 = vmatprep.subr.bf16.mxu0 0
        %7570 = vmatpush1.bf16.xpose.msra.mxu0 0
        %7571 = vmatprep.subr.bf16.mxu0 0
        %7572 = vmatpush1.bf16.xpose.msra.mxu0 0
        %7573 = vmatprep.subr.bf16.mxu0 0
        %7574 = vmatpush1.bf16.xpose.msra.mxu0 0
        %7575 = vmatprep.subr.bf16.mxu0 0
        %7576 = vmatpush1.bf16.xpose.msra.mxu0 0
        %7577 = vmatprep.subr.bf16.mxu0 0
        %7578 = vmatpush1.bf16.xpose.msra.mxu0 0
        %7579 = vmatprep.subr.bf16.mxu0 0
        %7580 = vmatpush1.bf16.xpose.msra.mxu0 0
        %7581 = vmatprep.subr.bf16.mxu0 0
        %7582 = vmatpush1.bf16.xpose.msra.mxu0 0
        %7583 = vmatprep.subr.bf16.mxu0 0
        %7584 = vmatpush1.bf16.xpose.msra.mxu0 0
        %7585 = vmatprep.subr.bf16.mxu0 0
        %7586 = vmatpush1.bf16.xpose.msra.mxu0 0
        %7587 = vmatprep.mubr.bf16.mxu0 0
        %7588 = vmatmul.mubr.bf16.gmra.mrb[0].mxu0 %v7532
        %v7589 = vpop.f32.mrb[0].mxu0
        %v7590 = vadd.f32 0.0, %v7589
        %v7591 = vpop.f32.mrb[0].mxu0
        %v7592 = vpop.f32.mrb[0].mxu0
        %v7593 = vadd.f32 0.0, %v7592
        %v7594 = vpop.f32.mrb[0].mxu0
        %7595 = vmatprep.mubr.bf16.mxu0 0
        %7596 = vmatmul.mubr.bf16.gmra.mrb[0].mxu0 %v7535
        %v7597 = vpop.f32.mrb[0].mxu0
        %v7598 = vadd.f32 0.0, %v7597
        %v7599 = vpop.f32.mrb[0].mxu0
        %v7600 = vpop.f32.mrb[0].mxu0
        %v7601 = vadd.f32 0.0, %v7600
        %v7602 = vpop.f32.mrb[0].mxu0
        %7603 = vmatprep.mubr.bf16.mxu0 0
        %7604 = vmatmul.mubr.bf16.gmra.mrb[0].mxu0 %v7538
        %v7605 = vpop.f32.mrb[0].mxu0
        %v7606 = vadd.f32 0.0, %v7605
        %v7607 = vpop.f32.mrb[0].mxu0
        %v7608 = vpop.f32.mrb[0].mxu0
        %v7609 = vadd.f32 0.0, %v7608
        %v7610 = vpop.f32.mrb[0].mxu0
        %7611 = vmatprep.mubr.bf16.mxu0 0
        %7612 = vmatmul.mubr.bf16.gmra.mrb[0].mxu0 %v7541
        %v7613 = vpop.f32.mrb[0].mxu0
        %v7614 = vadd.f32 0.0, %v7613
        %v7615 = vpop.f32.mrb[0].mxu0
        %v7616 = vpop.f32.mrb[0].mxu0
        %v7617 = vadd.f32 0.0, %v7616
        %v7618 = vpop.f32.mrb[0].mxu0
        %7619 = vdwg.mxu0
        %v7620 = vsel %vm540, %v7590, -1e+30
        %v7621 = vsel %vm541, %v7593, -1e+30
        %v7622 = vsel %vm542, %v7598, -1e+30
        %v7623 = vsel %vm543, %v7601, -1e+30
        %v7624 = vsel %vm544, %v7606, -1e+30
        %v7625 = vsel %vm545, %v7609, -1e+30
        %v7626 = vsel %vm546, %v7614, -1e+30
        %v7627 = vsel %vm547, %v7617, -1e+30
        %v7628 = vsel %vm1164, %v7620, -inf
        %7629 = vmax.xlane.f32.xlu0 %v7628
        %v7630 = vpop.xlane.xlu0 %7629
        %v7631 = vsel %vm1164, %v7621, -inf
        %7632 = vmax.xlane.f32.xlu0 %v7631
        %v7633 = vpop.xlane.xlu0 %7632
        %v7634 = vsel %vm1164, %v7622, -inf
        %7635 = vmax.xlane.f32.xlu0 %v7634
        %v7636 = vpop.xlane.xlu0 %7635
        %v7637 = vsel %vm1164, %v7623, -inf
        %7638 = vmax.xlane.f32.xlu0 %v7637
        %v7639 = vpop.xlane.xlu0 %7638
        %v7640 = vsel %vm1164, %v7624, -inf
        %7641 = vmax.xlane.f32.xlu0 %v7640
        %v7642 = vpop.xlane.xlu0 %7641
        %v7643 = vsel %vm1164, %v7625, -inf
        %7644 = vmax.xlane.f32.xlu0 %v7643
        %v7645 = vpop.xlane.xlu0 %7644
        %v7646 = vsel %vm1164, %v7626, -inf
        %7647 = vmax.xlane.f32.xlu0 %v7646
        %v7648 = vpop.xlane.xlu0 %7647
        %v7649 = vsel %vm1164, %v7627, -inf
        %7650 = vmax.xlane.f32.xlu0 %v7649
        %v7651 = vpop.xlane.xlu0 %7650
        %v7652 = vsub.f32 %v7620, %v7630
        %v7653 = vsub.f32 %v7621, %v7633
        %v7654 = vsub.f32 %v7622, %v7636
        %v7655 = vsub.f32 %v7623, %v7639
        %v7656 = vsub.f32 %v7624, %v7642
        %v7657 = vsub.f32 %v7625, %v7645
        %v7658 = vsub.f32 %v7626, %v7648
        %v7659 = vsub.f32 %v7627, %v7651
        %v7660 = vmul.f32 %v7652, 1.442695
        %v7661 = vpow.pop %v7660
        %v7662 = vmul.f32 %v7653, 1.442695
        %v7663 = vpow.pop %v7662
        %v7664 = vmul.f32 %v7654, 1.442695
        %v7665 = vpow.pop %v7664
        %v7666 = vmul.f32 %v7655, 1.442695
        %v7667 = vpow.pop %v7666
        %v7668 = vmul.f32 %v7656, 1.442695
        %v7669 = vpow.pop %v7668
        %v7670 = vmul.f32 %v7657, 1.442695
        %v7671 = vpow.pop %v7670
        %v7672 = vmul.f32 %v7658, 1.442695
        %v7673 = vpow.pop %v7672
        %v7674 = vmul.f32 %v7659, 1.442695
        %v7675 = vpow.pop %v7674
        %v7676 = vsel %vm1164, %v7661, 0.0
        %7677 = vadd.xlane.f32.xlu0 %v7676
        %v7678 = vpop.xlane.xlu0 %7677
        %v7679 = vsel %vm1164, %v7663, 0.0
        %7680 = vadd.xlane.f32.xlu0 %v7679
        %v7681 = vpop.xlane.xlu0 %7680
        %v7682 = vsel %vm1164, %v7665, 0.0
        %7683 = vadd.xlane.f32.xlu0 %v7682
        %v7684 = vpop.xlane.xlu0 %7683
        %v7685 = vsel %vm1164, %v7667, 0.0
        %7686 = vadd.xlane.f32.xlu0 %v7685
        %v7687 = vpop.xlane.xlu0 %7686
        %v7688 = vsel %vm1164, %v7669, 0.0
        %7689 = vadd.xlane.f32.xlu0 %v7688
        %v7690 = vpop.xlane.xlu0 %7689
        %v7691 = vsel %vm1164, %v7671, 0.0
        %7692 = vadd.xlane.f32.xlu0 %v7691
        %v7693 = vpop.xlane.xlu0 %7692
        %v7694 = vsel %vm1164, %v7673, 0.0
        %7695 = vadd.xlane.f32.xlu0 %v7694
        %v7696 = vpop.xlane.xlu0 %7695
        %v7697 = vsel %vm1164, %v7675, 0.0
        %7698 = vadd.xlane.f32.xlu0 %v7697
        %v7699 = vpop.xlane.xlu0 %7698
        %v7700 = vrcp.pop %v7678
        %v7701 = vrcp.pop %v7681
        %v7702 = vrcp.pop %v7684
        %v7703 = vrcp.pop %v7687
        %v7704 = vrcp.pop %v7690
        %v7705 = vrcp.pop %v7693
        %v7706 = vrcp.pop %v7696
        %v7707 = vrcp.pop %v7699
        %v7708 = vmul.f32 %v7661, %v7700
        %v7709 = vmul.f32 %v7663, %v7701
        %v7710 = vmul.f32 %v7665, %v7702
        %v7711 = vmul.f32 %v7667, %v7703
        %v7712 = vmul.f32 %v7669, %v7704
        %v7713 = vmul.f32 %v7671, %v7705
        %v7714 = vmul.f32 %v7673, %v7706
        %v7715 = vmul.f32 %v7675, %v7707
        %v7716 = vpack.c.bf16 %v7709, %v7708
        %v7717 = vpack.c.bf16 %v7711, %v7710
        %v7718 = vpack.c.bf16 %v7713, %v7712
        %v7719 = vpack.c.bf16 %v7715, %v7714
        %v7720 = vpack.c.bf16 %v7496, %v7493
        %v7721 = vpack.c.bf16 %v7504, %v7501
        %v7722 = vpack.c.bf16 %v7512, %v7509
        %v7723 = vpack.c.bf16 %v7520, %v7517
        %v7725 = vsel %vm1164, %v7716, 0
        %v7728 = vsel %vm1164, %v7717, 0
        %v7731 = vsel %vm1164, %v7718, 0
        %v7734 = vsel %vm1164, %v7719, 0
        %7736 = vmatprep.subr.bf16.mxu0 0
        %7737 = vmatpush1.bf16.msra.mxu0 %v7720
        %7738 = vmatprep.subr.bf16.mxu0 0
        %7739 = vmatpush1.bf16.msra.mxu0 %v7721
        %7740 = vmatprep.subr.bf16.mxu0 0
        %7741 = vmatpush1.bf16.msra.mxu0 %v7722
        %7742 = vmatprep.subr.bf16.mxu0 0
        %7743 = vmatpush1.bf16.msra.mxu0 %v7723
        %7744 = vmatprep.subr.bf16.mxu0 0
        %7745 = vmatpush1.bf16.msra.mxu0 0
        %7746 = vmatprep.subr.bf16.mxu0 0
        %7747 = vmatpush1.bf16.msra.mxu0 0
        %7748 = vmatprep.subr.bf16.mxu0 0
        %7749 = vmatpush1.bf16.msra.mxu0 0
        %7750 = vmatprep.subr.bf16.mxu0 0
        %7751 = vmatpush1.bf16.msra.mxu0 0
        %7752 = vmatprep.subr.bf16.mxu0 0
        %7753 = vmatpush1.bf16.msra.mxu0 0
        %7754 = vmatprep.subr.bf16.mxu0 0
        %7755 = vmatpush1.bf16.msra.mxu0 0
        %7756 = vmatprep.subr.bf16.mxu0 0
        %7757 = vmatpush1.bf16.msra.mxu0 0
        %7758 = vmatprep.subr.bf16.mxu0 0
        %7759 = vmatpush1.bf16.msra.mxu0 0
        %7760 = vmatprep.subr.bf16.mxu0 0
        %7761 = vmatpush1.bf16.msra.mxu0 0
        %7762 = vmatprep.subr.bf16.mxu0 0
        %7763 = vmatpush1.bf16.msra.mxu0 0
        %7764 = vmatprep.subr.bf16.mxu0 0
        %7765 = vmatpush1.bf16.msra.mxu0 0
        %7766 = vmatprep.subr.bf16.mxu0 0
        %7767 = vmatpush1.bf16.msra.mxu0 0
        %7768 = vmatprep.mubr.bf16.mxu0 0
        %7769 = vmatmul.mubr.bf16.gmra.mrb[0].mxu0 %v7725
        %v7770 = vpop.f32.mrb[0].mxu0
        %v7771 = vadd.f32 0.0, %v7770
        %v7772 = vpop.f32.mrb[0].mxu0
        %v7773 = vpop.f32.mrb[0].mxu0
        %v7774 = vadd.f32 0.0, %v7773
        %v7775 = vpop.f32.mrb[0].mxu0
        %7776 = vmatprep.mubr.bf16.mxu0 0
        %7777 = vmatmul.mubr.bf16.gmra.mrb[0].mxu0 %v7728
        %v7778 = vpop.f32.mrb[0].mxu0
        %v7779 = vadd.f32 0.0, %v7778
        %v7780 = vpop.f32.mrb[0].mxu0
        %v7781 = vpop.f32.mrb[0].mxu0
        %v7782 = vadd.f32 0.0, %v7781
        %v7783 = vpop.f32.mrb[0].mxu0
        %7784 = vmatprep.mubr.bf16.mxu0 0
        %7785 = vmatmul.mubr.bf16.gmra.mrb[0].mxu0 %v7731
        %v7786 = vpop.f32.mrb[0].mxu0
        %v7787 = vadd.f32 0.0, %v7786
        %v7788 = vpop.f32.mrb[0].mxu0
        %v7789 = vpop.f32.mrb[0].mxu0
        %v7790 = vadd.f32 0.0, %v7789
        %v7791 = vpop.f32.mrb[0].mxu0
        %7792 = vmatprep.mubr.bf16.mxu0 0
        %7793 = vmatmul.mubr.bf16.gmra.mrb[0].mxu0 %v7734
        %v7794 = vpop.f32.mrb[0].mxu0
        %v7795 = vadd.f32 0.0, %v7794
        %v7796 = vpop.f32.mrb[0].mxu0
        %v7797 = vpop.f32.mrb[0].mxu0
        %v7798 = vadd.f32 0.0, %v7797
        %v7799 = vpop.f32.mrb[0].mxu0
        %7800 = vdwg.mxu0
        %v7801 = vpack.c.bf16 %v7774, %v7771
        %v7802 = vpack.c.bf16 %v7782, %v7779
        %v7803 = vpack.c.bf16 %v7790, %v7787
        %v7804 = vpack.c.bf16 %v7798, %v7795
        %s7805 = scalar_lea.vmem %s6, 112
        %v7806 = vld [vmem:[%s7805] sm:$0xf]
        %v7807 = vld [vmem:[%s7805 + $0x4] sm:$0xf]
        %v7808 = vld [vmem:[%s7805 + $0x8] sm:$0xf]
        %v7809 = vld [vmem:[%s7805 + $0xc] sm:$0xf]
        %v7814 = vunpack.c.l.b16 %v7806
        %v7815 = vunpack.c.l.b16 %v7807
        %v7816 = vunpack.c.l.b16 %v7808
        %v7817 = vunpack.c.l.b16 %v7809
        %v7818 = vpack.c.b16 %v7815, %v7814
        %v7819 = vpack.c.b16 %v7817, %v7816
        %v7823 = vsel %vm1066, %v7801, 0
        %v7826 = vsel %vm1066, %v7802, 0
        %v7829 = vsel %vm1066, %v7803, 0
        %v7832 = vsel %vm1066, %v7804, 0
        %7834 = vmatprep.subr.bf16.mxu0 0
        %7835 = vmatpush1.bf16.msra.mxu0 %v7818
        %7836 = vmatprep.subr.bf16.mxu0 0
        %7837 = vmatpush1.bf16.msra.mxu0 %v7819
        %7838 = vmatprep.subr.bf16.mxu0 0
        %7839 = vmatpush1.bf16.msra.mxu0 0
        %7840 = vmatprep.subr.bf16.mxu0 0
        %7841 = vmatpush1.bf16.msra.mxu0 0
        %7842 = vmatprep.subr.bf16.mxu0 0
        %7843 = vmatpush1.bf16.msra.mxu0 0
        %7844 = vmatprep.subr.bf16.mxu0 0
        %7845 = vmatpush1.bf16.msra.mxu0 0
        %7846 = vmatprep.subr.bf16.mxu0 0
        %7847 = vmatpush1.bf16.msra.mxu0 0
        %7848 = vmatprep.subr.bf16.mxu0 0
        %7849 = vmatpush1.bf16.msra.mxu0 0
        %7850 = vmatprep.subr.bf16.mxu0 0
        %7851 = vmatpush1.bf16.msra.mxu0 0
        %7852 = vmatprep.subr.bf16.mxu0 0
        %7853 = vmatpush1.bf16.msra.mxu0 0
        %7854 = vmatprep.subr.bf16.mxu0 0
        %7855 = vmatpush1.bf16.msra.mxu0 0
        %7856 = vmatprep.subr.bf16.mxu0 0
        %7857 = vmatpush1.bf16.msra.mxu0 0
        %7858 = vmatprep.subr.bf16.mxu0 0
        %7859 = vmatpush1.bf16.msra.mxu0 0
        %7860 = vmatprep.subr.bf16.mxu0 0
        %7861 = vmatpush1.bf16.msra.mxu0 0
        %7862 = vmatprep.subr.bf16.mxu0 0
        %7863 = vmatpush1.bf16.msra.mxu0 0
        %7864 = vmatprep.subr.bf16.mxu0 0
        %7865 = vmatpush1.bf16.msra.mxu0 0
        %7866 = vmatprep.mubr.bf16.mxu0 0
        %7867 = vmatmul.mubr.bf16.gmra.mrb[0].mxu0 %v7823
        %v7868 = vpop.f32.mrb[0].mxu0
        %v7869 = vadd.f32 0.0, %v7868
        %v7870 = vpop.f32.mrb[0].mxu0
        %v7871 = vpop.f32.mrb[0].mxu0
        %v7872 = vadd.f32 0.0, %v7871
        %v7873 = vpop.f32.mrb[0].mxu0
        %7874 = vmatprep.mubr.bf16.mxu0 0
        %7875 = vmatmul.mubr.bf16.gmra.mrb[0].mxu0 %v7826
        %v7876 = vpop.f32.mrb[0].mxu0
        %v7877 = vadd.f32 0.0, %v7876
        %v7878 = vpop.f32.mrb[0].mxu0
        %v7879 = vpop.f32.mrb[0].mxu0
        %v7880 = vadd.f32 0.0, %v7879
        %v7881 = vpop.f32.mrb[0].mxu0
        %7882 = vmatprep.mubr.bf16.mxu0 0
        %7883 = vmatmul.mubr.bf16.gmra.mrb[0].mxu0 %v7829
        %v7884 = vpop.f32.mrb[0].mxu0
        %v7885 = vadd.f32 0.0, %v7884
        %v7886 = vpop.f32.mrb[0].mxu0
        %v7887 = vpop.f32.mrb[0].mxu0
        %v7888 = vadd.f32 0.0, %v7887
        %v7889 = vpop.f32.mrb[0].mxu0
        %7890 = vmatprep.mubr.bf16.mxu0 0
        %7891 = vmatmul.mubr.bf16.gmra.mrb[0].mxu0 %v7832
        %v7892 = vpop.f32.mrb[0].mxu0
        %v7893 = vadd.f32 0.0, %v7892
        %v7894 = vpop.f32.mrb[0].mxu0
        %v7895 = vpop.f32.mrb[0].mxu0
        %v7896 = vadd.f32 0.0, %v7895
        %v7897 = vpop.f32.mrb[0].mxu0
        %7898 = vdwg.mxu0
        %v7899 = vadd.f32 %v7125, %v7869
        %v7900 = vadd.f32 %v7126, %v7872
        %v7901 = vadd.f32 %v7127, %v7877
        %v7902 = vadd.f32 %v7128, %v7880
        %v7903 = vadd.f32 %v7129, %v7885
        %v7904 = vadd.f32 %v7130, %v7888
        %v7905 = vadd.f32 %v7131, %v7893
        %v7906 = vadd.f32 %v7132, %v7896
        %v7907 = vadd.f32 %v4695, %v7899
        %v7908 = vadd.f32 %v4696, %v7900
        %v7909 = vadd.f32 %v4697, %v7901
        %v7910 = vadd.f32 %v4698, %v7902
        %v7911 = vadd.f32 %v4699, %v7903
        %v7912 = vadd.f32 %v4700, %v7904
        %v7913 = vadd.f32 %v4701, %v7905
        %v7914 = vadd.f32 %v4702, %v7906
        %s7915 = scalar_lea.vmem %s7, 1
        %v7916 = vld [vmem:[%s7915] sm:$0x1]
        %v7918 = vlaneseq
        %v7919 = vshrl.u32 %v7918, 7
        %v7920 = vsub.s32 0, %v7919
        %v7921 = vrot.slane %v7916, %v7920
        %v7923 = vadd.f32 %v7907, %v7921
        %v7924 = vadd.f32 %v7908, %v7921
        %v7925 = vadd.f32 %v7909, %v7921
        %v7926 = vadd.f32 %v7910, %v7921
        %v7927 = vadd.f32 %v7911, %v7921
        %v7928 = vadd.f32 %v7912, %v7921
        %v7929 = vadd.f32 %v7913, %v7921
        %v7930 = vadd.f32 %v7914, %v7921
        %s7931 = scalar_lea.vmem %s8, 1
        %v7932 = vld [vmem:[%s7931] sm:$0x1]
        %s7933 = scalar_lea.vmem %s9, 1
        %v7934 = vld [vmem:[%s7933] sm:$0x1]
        %7935 = vadd.xlane.f32.xlu0 %v7923
        %v7936 = vpop.xlane.xlu0 %7935
        %7937 = vadd.xlane.f32.xlu0 %v7924
        %v7938 = vpop.xlane.xlu0 %7937
        %7939 = vadd.xlane.f32.xlu0 %v7925
        %v7940 = vpop.xlane.xlu0 %7939
        %7941 = vadd.xlane.f32.xlu0 %v7926
        %v7942 = vpop.xlane.xlu0 %7941
        %7943 = vadd.xlane.f32.xlu0 %v7927
        %v7944 = vpop.xlane.xlu0 %7943
        %7945 = vadd.xlane.f32.xlu0 %v7928
        %v7946 = vpop.xlane.xlu0 %7945
        %7947 = vadd.xlane.f32.xlu0 %v7929
        %v7948 = vpop.xlane.xlu0 %7947
        %7949 = vadd.xlane.f32.xlu0 %v7930
        %v7950 = vpop.xlane.xlu0 %7949
        %v7951 = vmul.f32 %v7936, %v566
        %v7952 = vmul.f32 %v7938, %v566
        %v7953 = vmul.f32 %v7940, %v566
        %v7954 = vmul.f32 %v7942, %v566
        %v7955 = vmul.f32 %v7944, %v566
        %v7956 = vmul.f32 %v7946, %v566
        %v7957 = vmul.f32 %v7948, %v566
        %v7958 = vmul.f32 %v7950, %v566
        %v7959 = vsub.f32 %v7923, %v7951
        %v7960 = vsub.f32 %v7924, %v7952
        %v7961 = vsub.f32 %v7925, %v7953
        %v7962 = vsub.f32 %v7926, %v7954
        %v7963 = vsub.f32 %v7927, %v7955
        %v7964 = vsub.f32 %v7928, %v7956
        %v7965 = vsub.f32 %v7929, %v7957
        %v7966 = vsub.f32 %v7930, %v7958
        %v7967 = vmul.f32 %v7959, %v7959
        %v7968 = vmul.f32 %v7960, %v7960
        %v7969 = vmul.f32 %v7961, %v7961
        %v7970 = vmul.f32 %v7962, %v7962
        %v7971 = vmul.f32 %v7963, %v7963
        %v7972 = vmul.f32 %v7964, %v7964
        %v7973 = vmul.f32 %v7965, %v7965
        %v7974 = vmul.f32 %v7966, %v7966
        %7975 = vadd.xlane.f32.xlu0 %v7967
        %v7976 = vpop.xlane.xlu0 %7975
        %7977 = vadd.xlane.f32.xlu0 %v7968
        %v7978 = vpop.xlane.xlu0 %7977
        %7979 = vadd.xlane.f32.xlu0 %v7969
        %v7980 = vpop.xlane.xlu0 %7979
        %7981 = vadd.xlane.f32.xlu0 %v7970
        %v7982 = vpop.xlane.xlu0 %7981
        %7983 = vadd.xlane.f32.xlu0 %v7971
        %v7984 = vpop.xlane.xlu0 %7983
        %7985 = vadd.xlane.f32.xlu0 %v7972
        %v7986 = vpop.xlane.xlu0 %7985
        %7987 = vadd.xlane.f32.xlu0 %v7973
        %v7988 = vpop.xlane.xlu0 %7987
        %7989 = vadd.xlane.f32.xlu0 %v7974
        %v7990 = vpop.xlane.xlu0 %7989
        %v7991 = vmul.f32 %v7976, %v566
        %v7992 = vmul.f32 %v7978, %v566
        %v7993 = vmul.f32 %v7980, %v566
        %v7994 = vmul.f32 %v7982, %v566
        %v7995 = vmul.f32 %v7984, %v566
        %v7996 = vmul.f32 %v7986, %v566
        %v7997 = vmul.f32 %v7988, %v566
        %v7998 = vmul.f32 %v7990, %v566
        %v7999 = vadd.f32 %v7991, 1e-05
        %v8000 = vadd.f32 %v7992, 1e-05
        %v8001 = vadd.f32 %v7993, 1e-05
        %v8002 = vadd.f32 %v7994, 1e-05
        %v8003 = vadd.f32 %v7995, 1e-05
        %v8004 = vadd.f32 %v7996, 1e-05
        %v8005 = vadd.f32 %v7997, 1e-05
        %v8006 = vadd.f32 %v7998, 1e-05
        %v8007 = vrsqrt.pop %v7999
        %v8008 = vrsqrt.pop %v8000
        %v8009 = vrsqrt.pop %v8001
        %v8010 = vrsqrt.pop %v8002
        %v8011 = vrsqrt.pop %v8003
        %v8012 = vrsqrt.pop %v8004
        %v8013 = vrsqrt.pop %v8005
        %v8014 = vrsqrt.pop %v8006
        %v8015 = vmul.f32 %v7959, %v8007
        %v8016 = vmul.f32 %v7960, %v8008
        %v8017 = vmul.f32 %v7961, %v8009
        %v8018 = vmul.f32 %v7962, %v8010
        %v8019 = vmul.f32 %v7963, %v8011
        %v8020 = vmul.f32 %v7964, %v8012
        %v8021 = vmul.f32 %v7965, %v8013
        %v8022 = vmul.f32 %v7966, %v8014
        %v8024 = vlaneseq
        %v8025 = vshrl.u32 %v8024, 7
        %v8026 = vsub.s32 0, %v8025
        %v8027 = vrot.slane %v7932, %v8026
        %v8029 = vmul.f32 %v8015, %v8027
        %v8030 = vmul.f32 %v8016, %v8027
        %v8031 = vmul.f32 %v8017, %v8027
        %v8032 = vmul.f32 %v8018, %v8027
        %v8033 = vmul.f32 %v8019, %v8027
        %v8034 = vmul.f32 %v8020, %v8027
        %v8035 = vmul.f32 %v8021, %v8027
        %v8036 = vmul.f32 %v8022, %v8027
        %v8038 = vlaneseq
        %v8039 = vshrl.u32 %v8038, 7
        %v8040 = vsub.s32 0, %v8039
        %v8041 = vrot.slane %v7934, %v8040
        %v8043 = vadd.f32 %v8029, %v8041
        %v8044 = vadd.f32 %v8030, %v8041
        %v8045 = vadd.f32 %v8031, %v8041
        %v8046 = vadd.f32 %v8032, %v8041
        %v8047 = vadd.f32 %v8033, %v8041
        %v8048 = vadd.f32 %v8034, %v8041
        %v8049 = vadd.f32 %v8035, %v8041
        %v8050 = vadd.f32 %v8036, %v8041
        %v8051 = vpack.c.bf16 %v8044, %v8043
        %v8052 = vpack.c.bf16 %v8046, %v8045
        %v8053 = vpack.c.bf16 %v8048, %v8047
        %v8054 = vpack.c.bf16 %v8050, %v8049
        %s8055 = scalar_lea.vmem %s10, 256
        %v8056 = vld [vmem:[%s8055] sm:$0xff]
        %v8057 = vld [vmem:[%s8055 + $0x8] sm:$0xff]
        %v8058 = vld [vmem:[%s8055 + $0x10] sm:$0xff]
        %v8059 = vld [vmem:[%s8055 + $0x18] sm:$0xff]
        %v8060 = vld [vmem:[%s8055 + $0x20] sm:$0xff]
        %v8061 = vld [vmem:[%s8055 + $0x28] sm:$0xff]
        %v8062 = vld [vmem:[%s8055 + $0x30] sm:$0xff]
        %v8063 = vld [vmem:[%s8055 + $0x38] sm:$0xff]
        %v8064 = vld [vmem:[%s8055 + $0x40] sm:$0xff]
        %v8065 = vld [vmem:[%s8055 + $0x48] sm:$0xff]
        %v8066 = vld [vmem:[%s8055 + $0x50] sm:$0xff]
        %v8067 = vld [vmem:[%s8055 + $0x58] sm:$0xff]
        %v8068 = vld [vmem:[%s8055 + $0x60] sm:$0xff]
        %v8069 = vld [vmem:[%s8055 + $0x68] sm:$0xff]
        %v8070 = vld [vmem:[%s8055 + $0x70] sm:$0xff]
        %v8071 = vld [vmem:[%s8055 + $0x78] sm:$0xff]
        %v8072 = vld [vmem:[%s8055 + $0x80] sm:$0xff]
        %v8073 = vld [vmem:[%s8055 + $0x88] sm:$0xff]
        %v8074 = vld [vmem:[%s8055 + $0x90] sm:$0xff]
        %v8075 = vld [vmem:[%s8055 + $0x98] sm:$0xff]
        %v8076 = vld [vmem:[%s8055 + $0xa0] sm:$0xff]
        %v8077 = vld [vmem:[%s8055 + $0xa8] sm:$0xff]
        %v8078 = vld [vmem:[%s8055 + $0xb0] sm:$0xff]
        %v8079 = vld [vmem:[%s8055 + $0xb8] sm:$0xff]
        %v8080 = vld [vmem:[%s8055 + $0xc0] sm:$0xff]
        %v8081 = vld [vmem:[%s8055 + $0xc8] sm:$0xff]
        %v8082 = vld [vmem:[%s8055 + $0xd0] sm:$0xff]
        %v8083 = vld [vmem:[%s8055 + $0xd8] sm:$0xff]
        %v8084 = vld [vmem:[%s8055 + $0xe0] sm:$0xff]
        %v8085 = vld [vmem:[%s8055 + $0xe8] sm:$0xff]
        %v8086 = vld [vmem:[%s8055 + $0xf0] sm:$0xff]
        %v8087 = vld [vmem:[%s8055 + $0xf8] sm:$0xff]
        %s8088 = scalar_lea.vmem %s11, 4
        %v8089 = vld [vmem:[%s8088] sm:$0xf]
        %v8091 = vlaneseq
        %v8092 = vshrl.u32 %v8091, 7
        %v8093 = vsub.s32 0, %v8092
        %v8094 = vrot.slane %v8089, %v8093
        %v8095 = vlaneseq
        %v8096 = vshrl.u32 %v8095, 7
        %v8097 = vsub.s32 1, %v8096
        %v8098 = vrot.slane %v8089, %v8097
        %v8099 = vlaneseq
        %v8100 = vshrl.u32 %v8099, 7
        %v8101 = vsub.s32 2, %v8100
        %v8102 = vrot.slane %v8089, %v8101
        %v8103 = vlaneseq
        %v8104 = vshrl.u32 %v8103, 7
        %v8105 = vsub.s32 3, %v8104
        %v8106 = vrot.slane %v8089, %v8105
        %v8143 = vunpack.c.l.b16 %v8056
        %v8144 = vunpack.c.h.b16 %v8056
        %v8145 = vunpack.c.l.b16 %v8057
        %v8146 = vunpack.c.h.b16 %v8057
        %v8147 = vunpack.c.l.b16 %v8058
        %v8148 = vunpack.c.h.b16 %v8058
        %v8149 = vunpack.c.l.b16 %v8059
        %v8150 = vunpack.c.h.b16 %v8059
        %v8151 = vunpack.c.l.b16 %v8060
        %v8152 = vunpack.c.h.b16 %v8060
        %v8153 = vunpack.c.l.b16 %v8061
        %v8154 = vunpack.c.h.b16 %v8061
        %v8155 = vunpack.c.l.b16 %v8062
        %v8156 = vunpack.c.h.b16 %v8062
        %v8157 = vunpack.c.l.b16 %v8063
        %v8158 = vunpack.c.h.b16 %v8063
        %v8159 = vunpack.c.l.b16 %v8064
        %v8160 = vunpack.c.h.b16 %v8064
        %v8161 = vunpack.c.l.b16 %v8065
        %v8162 = vunpack.c.h.b16 %v8065
        %v8163 = vunpack.c.l.b16 %v8066
        %v8164 = vunpack.c.h.b16 %v8066
        %v8165 = vunpack.c.l.b16 %v8067
        %v8166 = vunpack.c.h.b16 %v8067
        %v8167 = vunpack.c.l.b16 %v8068
        %v8168 = vunpack.c.h.b16 %v8068
        %v8169 = vunpack.c.l.b16 %v8069
        %v8170 = vunpack.c.h.b16 %v8069
        %v8171 = vunpack.c.l.b16 %v8070
        %v8172 = vunpack.c.h.b16 %v8070
        %v8173 = vunpack.c.l.b16 %v8071
        %v8174 = vunpack.c.h.b16 %v8071
        %v8175 = vunpack.c.l.b16 %v8072
        %v8176 = vunpack.c.h.b16 %v8072
        %v8177 = vunpack.c.l.b16 %v8073
        %v8178 = vunpack.c.h.b16 %v8073
        %v8179 = vunpack.c.l.b16 %v8074
        %v8180 = vunpack.c.h.b16 %v8074
        %v8181 = vunpack.c.l.b16 %v8075
        %v8182 = vunpack.c.h.b16 %v8075
        %v8183 = vunpack.c.l.b16 %v8076
        %v8184 = vunpack.c.h.b16 %v8076
        %v8185 = vunpack.c.l.b16 %v8077
        %v8186 = vunpack.c.h.b16 %v8077
        %v8187 = vunpack.c.l.b16 %v8078
        %v8188 = vunpack.c.h.b16 %v8078
        %v8189 = vunpack.c.l.b16 %v8079
        %v8190 = vunpack.c.h.b16 %v8079
        %v8191 = vunpack.c.l.b16 %v8080
        %v8192 = vunpack.c.h.b16 %v8080
        %v8193 = vunpack.c.l.b16 %v8081
        %v8194 = vunpack.c.h.b16 %v8081
        %v8195 = vunpack.c.l.b16 %v8082
        %v8196 = vunpack.c.h.b16 %v8082
        %v8197 = vunpack.c.l.b16 %v8083
        %v8198 = vunpack.c.h.b16 %v8083
        %v8199 = vunpack.c.l.b16 %v8084
        %v8200 = vunpack.c.h.b16 %v8084
        %v8201 = vunpack.c.l.b16 %v8085
        %v8202 = vunpack.c.h.b16 %v8085
        %v8203 = vunpack.c.l.b16 %v8086
        %v8204 = vunpack.c.h.b16 %v8086
        %v8205 = vunpack.c.l.b16 %v8087
        %v8206 = vunpack.c.h.b16 %v8087
        %v8207 = vpack.c.b16 %v8147, %v8143
        %v8208 = vpack.c.b16 %v8148, %v8144
        %v8209 = vpack.c.b16 %v8149, %v8145
        %v8210 = vpack.c.b16 %v8150, %v8146
        %v8211 = vpack.c.b16 %v8155, %v8151
        %v8212 = vpack.c.b16 %v8156, %v8152
        %v8213 = vpack.c.b16 %v8157, %v8153
        %v8214 = vpack.c.b16 %v8158, %v8154
        %v8215 = vpack.c.b16 %v8163, %v8159
        %v8216 = vpack.c.b16 %v8164, %v8160
        %v8217 = vpack.c.b16 %v8165, %v8161
        %v8218 = vpack.c.b16 %v8166, %v8162
        %v8219 = vpack.c.b16 %v8171, %v8167
        %v8220 = vpack.c.b16 %v8172, %v8168
        %v8221 = vpack.c.b16 %v8173, %v8169
        %v8222 = vpack.c.b16 %v8174, %v8170
        %v8223 = vpack.c.b16 %v8179, %v8175
        %v8224 = vpack.c.b16 %v8180, %v8176
        %v8225 = vpack.c.b16 %v8181, %v8177
        %v8226 = vpack.c.b16 %v8182, %v8178
        %v8227 = vpack.c.b16 %v8187, %v8183
        %v8228 = vpack.c.b16 %v8188, %v8184
        %v8229 = vpack.c.b16 %v8189, %v8185
        %v8230 = vpack.c.b16 %v8190, %v8186
        %v8231 = vpack.c.b16 %v8195, %v8191
        %v8232 = vpack.c.b16 %v8196, %v8192
        %v8233 = vpack.c.b16 %v8197, %v8193
        %v8234 = vpack.c.b16 %v8198, %v8194
        %v8235 = vpack.c.b16 %v8203, %v8199
        %v8236 = vpack.c.b16 %v8204, %v8200
        %v8237 = vpack.c.b16 %v8205, %v8201
        %v8238 = vpack.c.b16 %v8206, %v8202
        %8271 = vmatprep.subr.bf16.mxu0 %v8208
        %8272 = vmatpush1.bf16.msra.mxu0 %v8207
        %8273 = vmatprep.subr.bf16.mxu0 %v8212
        %8274 = vmatpush1.bf16.msra.mxu0 %v8211
        %8275 = vmatprep.subr.bf16.mxu0 %v8216
        %8276 = vmatpush1.bf16.msra.mxu0 %v8215
        %8277 = vmatprep.subr.bf16.mxu0 %v8220
        %8278 = vmatpush1.bf16.msra.mxu0 %v8219
        %8279 = vmatprep.subr.bf16.mxu0 %v8224
        %8280 = vmatpush1.bf16.msra.mxu0 %v8223
        %8281 = vmatprep.subr.bf16.mxu0 %v8228
        %8282 = vmatpush1.bf16.msra.mxu0 %v8227
        %8283 = vmatprep.subr.bf16.mxu0 %v8232
        %8284 = vmatpush1.bf16.msra.mxu0 %v8231
        %8285 = vmatprep.subr.bf16.mxu0 %v8236
        %8286 = vmatpush1.bf16.msra.mxu0 %v8235
        %8287 = vmatprep.subr.bf16.mxu0 0
        %8288 = vmatpush1.bf16.msra.mxu0 0
        %8289 = vmatprep.subr.bf16.mxu0 0
        %8290 = vmatpush1.bf16.msra.mxu0 0
        %8291 = vmatprep.subr.bf16.mxu0 0
        %8292 = vmatpush1.bf16.msra.mxu0 0
        %8293 = vmatprep.subr.bf16.mxu0 0
        %8294 = vmatpush1.bf16.msra.mxu0 0
        %8295 = vmatprep.subr.bf16.mxu0 0
        %8296 = vmatpush1.bf16.msra.mxu0 0
        %8297 = vmatprep.subr.bf16.mxu0 0
        %8298 = vmatpush1.bf16.msra.mxu0 0
        %8299 = vmatprep.subr.bf16.mxu0 0
        %8300 = vmatpush1.bf16.msra.mxu0 0
        %8301 = vmatprep.subr.bf16.mxu0 0
        %8302 = vmatpush1.bf16.msra.mxu0 0
        %8303 = vmatprep.mubr.bf16.mxu0 0
        %8304 = vmatmul.mubr.bf16.gmra.mrb[0].mxu0 %v8051
        %v8305 = vpop.f32.mrb[0].mxu0
        %v8306 = vadd.f32 %v8094, %v8305
        %v8307 = vpop.f32.mrb[0].mxu0
        %v8308 = vadd.f32 %v8098, %v8307
        %v8309 = vpop.f32.mrb[0].mxu0
        %v8310 = vadd.f32 %v8094, %v8309
        %v8311 = vpop.f32.mrb[0].mxu0
        %v8312 = vadd.f32 %v8098, %v8311
        %8313 = vmatprep.mubr.bf16.mxu0 0
        %8314 = vmatmul.mubr.bf16.gmra.mrb[0].mxu0 %v8052
        %v8315 = vpop.f32.mrb[0].mxu0
        %v8316 = vadd.f32 %v8094, %v8315
        %v8317 = vpop.f32.mrb[0].mxu0
        %v8318 = vadd.f32 %v8098, %v8317
        %v8319 = vpop.f32.mrb[0].mxu0
        %v8320 = vadd.f32 %v8094, %v8319
        %v8321 = vpop.f32.mrb[0].mxu0
        %v8322 = vadd.f32 %v8098, %v8321
        %8323 = vmatprep.mubr.bf16.mxu0 0
        %8324 = vmatmul.mubr.bf16.gmra.mrb[0].mxu0 %v8053
        %v8325 = vpop.f32.mrb[0].mxu0
        %v8326 = vadd.f32 %v8094, %v8325
        %v8327 = vpop.f32.mrb[0].mxu0
        %v8328 = vadd.f32 %v8098, %v8327
        %v8329 = vpop.f32.mrb[0].mxu0
        %v8330 = vadd.f32 %v8094, %v8329
        %v8331 = vpop.f32.mrb[0].mxu0
        %v8332 = vadd.f32 %v8098, %v8331
        %8333 = vmatprep.mubr.bf16.mxu0 0
        %8334 = vmatmul.mubr.bf16.gmra.mrb[0].mxu0 %v8054
        %v8335 = vpop.f32.mrb[0].mxu0
        %v8336 = vadd.f32 %v8094, %v8335
        %v8337 = vpop.f32.mrb[0].mxu0
        %v8338 = vadd.f32 %v8098, %v8337
        %v8339 = vpop.f32.mrb[0].mxu0
        %v8340 = vadd.f32 %v8094, %v8339
        %v8341 = vpop.f32.mrb[0].mxu0
        %v8342 = vadd.f32 %v8098, %v8341
        %8343 = vdwg.mxu0
        %8344 = vmatprep.subr.bf16.mxu0 %v8210
        %8345 = vmatpush1.bf16.msra.mxu0 %v8209
        %8346 = vmatprep.subr.bf16.mxu0 %v8214
        %8347 = vmatpush1.bf16.msra.mxu0 %v8213
        %8348 = vmatprep.subr.bf16.mxu0 %v8218
        %8349 = vmatpush1.bf16.msra.mxu0 %v8217
        %8350 = vmatprep.subr.bf16.mxu0 %v8222
        %8351 = vmatpush1.bf16.msra.mxu0 %v8221
        %8352 = vmatprep.subr.bf16.mxu0 %v8226
        %8353 = vmatpush1.bf16.msra.mxu0 %v8225
        %8354 = vmatprep.subr.bf16.mxu0 %v8230
        %8355 = vmatpush1.bf16.msra.mxu0 %v8229
        %8356 = vmatprep.subr.bf16.mxu0 %v8234
        %8357 = vmatpush1.bf16.msra.mxu0 %v8233
        %8358 = vmatprep.subr.bf16.mxu0 %v8238
        %8359 = vmatpush1.bf16.msra.mxu0 %v8237
        %8360 = vmatprep.subr.bf16.mxu0 0
        %8361 = vmatpush1.bf16.msra.mxu0 0
        %8362 = vmatprep.subr.bf16.mxu0 0
        %8363 = vmatpush1.bf16.msra.mxu0 0
        %8364 = vmatprep.subr.bf16.mxu0 0
        %8365 = vmatpush1.bf16.msra.mxu0 0
        %8366 = vmatprep.subr.bf16.mxu0 0
        %8367 = vmatpush1.bf16.msra.mxu0 0
        %8368 = vmatprep.subr.bf16.mxu0 0
        %8369 = vmatpush1.bf16.msra.mxu0 0
        %8370 = vmatprep.subr.bf16.mxu0 0
        %8371 = vmatpush1.bf16.msra.mxu0 0
        %8372 = vmatprep.subr.bf16.mxu0 0
        %8373 = vmatpush1.bf16.msra.mxu0 0
        %8374 = vmatprep.subr.bf16.mxu0 0
        %8375 = vmatpush1.bf16.msra.mxu0 0
        %8376 = vmatprep.mubr.bf16.mxu0 0
        %8377 = vmatmul.mubr.bf16.gmra.mrb[0].mxu0 %v8051
        %v8378 = vpop.f32.mrb[0].mxu0
        %v8379 = vadd.f32 %v8102, %v8378
        %v8380 = vpop.f32.mrb[0].mxu0
        %v8381 = vadd.f32 %v8106, %v8380
        %v8382 = vpop.f32.mrb[0].mxu0
        %v8383 = vadd.f32 %v8102, %v8382
        %v8384 = vpop.f32.mrb[0].mxu0
        %v8385 = vadd.f32 %v8106, %v8384
        %8386 = vmatprep.mubr.bf16.mxu0 0
        %8387 = vmatmul.mubr.bf16.gmra.mrb[0].mxu0 %v8052
        %v8388 = vpop.f32.mrb[0].mxu0
        %v8389 = vadd.f32 %v8102, %v8388
        %v8390 = vpop.f32.mrb[0].mxu0
        %v8391 = vadd.f32 %v8106, %v8390
        %v8392 = vpop.f32.mrb[0].mxu0
        %v8393 = vadd.f32 %v8102, %v8392
        %v8394 = vpop.f32.mrb[0].mxu0
        %v8395 = vadd.f32 %v8106, %v8394
        %8396 = vmatprep.mubr.bf16.mxu0 0
        %8397 = vmatmul.mubr.bf16.gmra.mrb[0].mxu0 %v8053
        %v8398 = vpop.f32.mrb[0].mxu0
        %v8399 = vadd.f32 %v8102, %v8398
        %v8400 = vpop.f32.mrb[0].mxu0
        %v8401 = vadd.f32 %v8106, %v8400
        %v8402 = vpop.f32.mrb[0].mxu0
        %v8403 = vadd.f32 %v8102, %v8402
        %v8404 = vpop.f32.mrb[0].mxu0
        %v8405 = vadd.f32 %v8106, %v8404
        %8406 = vmatprep.mubr.bf16.mxu0 0
        %8407 = vmatmul.mubr.bf16.gmra.mrb[0].mxu0 %v8054
        %v8408 = vpop.f32.mrb[0].mxu0
        %v8409 = vadd.f32 %v8102, %v8408
        %v8410 = vpop.f32.mrb[0].mxu0
        %v8411 = vadd.f32 %v8106, %v8410
        %v8412 = vpop.f32.mrb[0].mxu0
        %v8413 = vadd.f32 %v8102, %v8412
        %v8414 = vpop.f32.mrb[0].mxu0
        %v8415 = vadd.f32 %v8106, %v8414
        %8416 = vdwg.mxu0
        %v8417 = vmax.f32 %v8306, 0.0
        %v8418 = vmax.f32 %v8308, 0.0
        %v8419 = vmax.f32 %v8379, 0.0
        %v8420 = vmax.f32 %v8381, 0.0
        %v8421 = vmax.f32 %v8310, 0.0
        %v8422 = vmax.f32 %v8312, 0.0
        %v8423 = vmax.f32 %v8383, 0.0
        %v8424 = vmax.f32 %v8385, 0.0
        %v8425 = vmax.f32 %v8316, 0.0
        %v8426 = vmax.f32 %v8318, 0.0
        %v8427 = vmax.f32 %v8389, 0.0
        %v8428 = vmax.f32 %v8391, 0.0
        %v8429 = vmax.f32 %v8320, 0.0
        %v8430 = vmax.f32 %v8322, 0.0
        %v8431 = vmax.f32 %v8393, 0.0
        %v8432 = vmax.f32 %v8395, 0.0
        %v8433 = vmax.f32 %v8326, 0.0
        %v8434 = vmax.f32 %v8328, 0.0
        %v8435 = vmax.f32 %v8399, 0.0
        %v8436 = vmax.f32 %v8401, 0.0
        %v8437 = vmax.f32 %v8330, 0.0
        %v8438 = vmax.f32 %v8332, 0.0
        %v8439 = vmax.f32 %v8403, 0.0
        %v8440 = vmax.f32 %v8405, 0.0
        %v8441 = vmax.f32 %v8336, 0.0
        %v8442 = vmax.f32 %v8338, 0.0
        %v8443 = vmax.f32 %v8409, 0.0
        %v8444 = vmax.f32 %v8411, 0.0
        %v8445 = vmax.f32 %v8340, 0.0
        %v8446 = vmax.f32 %v8342, 0.0
        %v8447 = vmax.f32 %v8413, 0.0
        %v8448 = vmax.f32 %v8415, 0.0
        %v8449 = vpack.c.bf16 %v8421, %v8417
        %v8450 = vpack.c.bf16 %v8422, %v8418
        %v8451 = vpack.c.bf16 %v8423, %v8419
        %v8452 = vpack.c.bf16 %v8424, %v8420
        %v8453 = vpack.c.bf16 %v8429, %v8425
        %v8454 = vpack.c.bf16 %v8430, %v8426
        %v8455 = vpack.c.bf16 %v8431, %v8427
        %v8456 = vpack.c.bf16 %v8432, %v8428
        %v8457 = vpack.c.bf16 %v8437, %v8433
        %v8458 = vpack.c.bf16 %v8438, %v8434
        %v8459 = vpack.c.bf16 %v8439, %v8435
        %v8460 = vpack.c.bf16 %v8440, %v8436
        %v8461 = vpack.c.bf16 %v8445, %v8441
        %v8462 = vpack.c.bf16 %v8446, %v8442
        %v8463 = vpack.c.bf16 %v8447, %v8443
        %v8464 = vpack.c.bf16 %v8448, %v8444
        %s8465 = scalar_lea.vmem %s12, 256
        %v8466 = vld [vmem:[%s8465] sm:$0xf]
        %v8467 = vld [vmem:[%s8465 + $0x4] sm:$0xf]
        %v8468 = vld [vmem:[%s8465 + $0x8] sm:$0xf]
        %v8469 = vld [vmem:[%s8465 + $0xc] sm:$0xf]
        %v8470 = vld [vmem:[%s8465 + $0x10] sm:$0xf]
        %v8471 = vld [vmem:[%s8465 + $0x14] sm:$0xf]
        %v8472 = vld [vmem:[%s8465 + $0x18] sm:$0xf]
        %v8473 = vld [vmem:[%s8465 + $0x1c] sm:$0xf]
        %v8474 = vld [vmem:[%s8465 + $0x20] sm:$0xf]
        %v8475 = vld [vmem:[%s8465 + $0x24] sm:$0xf]
        %v8476 = vld [vmem:[%s8465 + $0x28] sm:$0xf]
        %v8477 = vld [vmem:[%s8465 + $0x2c] sm:$0xf]
        %v8478 = vld [vmem:[%s8465 + $0x30] sm:$0xf]
        %v8479 = vld [vmem:[%s8465 + $0x34] sm:$0xf]
        %v8480 = vld [vmem:[%s8465 + $0x38] sm:$0xf]
        %v8481 = vld [vmem:[%s8465 + $0x3c] sm:$0xf]
        %v8482 = vld [vmem:[%s8465 + $0x40] sm:$0xf]
        %v8483 = vld [vmem:[%s8465 + $0x44] sm:$0xf]
        %v8484 = vld [vmem:[%s8465 + $0x48] sm:$0xf]
        %v8485 = vld [vmem:[%s8465 + $0x4c] sm:$0xf]
        %v8486 = vld [vmem:[%s8465 + $0x50] sm:$0xf]
        %v8487 = vld [vmem:[%s8465 + $0x54] sm:$0xf]
        %v8488 = vld [vmem:[%s8465 + $0x58] sm:$0xf]
        %v8489 = vld [vmem:[%s8465 + $0x5c] sm:$0xf]
        %v8490 = vld [vmem:[%s8465 + $0x60] sm:$0xf]
        %v8491 = vld [vmem:[%s8465 + $0x64] sm:$0xf]
        %v8492 = vld [vmem:[%s8465 + $0x68] sm:$0xf]
        %v8493 = vld [vmem:[%s8465 + $0x6c] sm:$0xf]
        %v8494 = vld [vmem:[%s8465 + $0x70] sm:$0xf]
        %v8495 = vld [vmem:[%s8465 + $0x74] sm:$0xf]
        %v8496 = vld [vmem:[%s8465 + $0x78] sm:$0xf]
        %v8497 = vld [vmem:[%s8465 + $0x7c] sm:$0xf]
        %v8498 = vld [vmem:[%s8465 + $0x80] sm:$0xf]
        %v8499 = vld [vmem:[%s8465 + $0x84] sm:$0xf]
        %v8500 = vld [vmem:[%s8465 + $0x88] sm:$0xf]
        %v8501 = vld [vmem:[%s8465 + $0x8c] sm:$0xf]
        %v8502 = vld [vmem:[%s8465 + $0x90] sm:$0xf]
        %v8503 = vld [vmem:[%s8465 + $0x94] sm:$0xf]
        %v8504 = vld [vmem:[%s8465 + $0x98] sm:$0xf]
        %v8505 = vld [vmem:[%s8465 + $0x9c] sm:$0xf]
        %v8506 = vld [vmem:[%s8465 + $0xa0] sm:$0xf]
        %v8507 = vld [vmem:[%s8465 + $0xa4] sm:$0xf]
        %v8508 = vld [vmem:[%s8465 + $0xa8] sm:$0xf]
        %v8509 = vld [vmem:[%s8465 + $0xac] sm:$0xf]
        %v8510 = vld [vmem:[%s8465 + $0xb0] sm:$0xf]
        %v8511 = vld [vmem:[%s8465 + $0xb4] sm:$0xf]
        %v8512 = vld [vmem:[%s8465 + $0xb8] sm:$0xf]
        %v8513 = vld [vmem:[%s8465 + $0xbc] sm:$0xf]
        %v8514 = vld [vmem:[%s8465 + $0xc0] sm:$0xf]
        %v8515 = vld [vmem:[%s8465 + $0xc4] sm:$0xf]
        %v8516 = vld [vmem:[%s8465 + $0xc8] sm:$0xf]
        %v8517 = vld [vmem:[%s8465 + $0xcc] sm:$0xf]
        %v8518 = vld [vmem:[%s8465 + $0xd0] sm:$0xf]
        %v8519 = vld [vmem:[%s8465 + $0xd4] sm:$0xf]
        %v8520 = vld [vmem:[%s8465 + $0xd8] sm:$0xf]
        %v8521 = vld [vmem:[%s8465 + $0xdc] sm:$0xf]
        %v8522 = vld [vmem:[%s8465 + $0xe0] sm:$0xf]
        %v8523 = vld [vmem:[%s8465 + $0xe4] sm:$0xf]
        %v8524 = vld [vmem:[%s8465 + $0xe8] sm:$0xf]
        %v8525 = vld [vmem:[%s8465 + $0xec] sm:$0xf]
        %v8526 = vld [vmem:[%s8465 + $0xf0] sm:$0xf]
        %v8527 = vld [vmem:[%s8465 + $0xf4] sm:$0xf]
        %v8528 = vld [vmem:[%s8465 + $0xf8] sm:$0xf]
        %v8529 = vld [vmem:[%s8465 + $0xfc] sm:$0xf]
        %s8530 = scalar_lea.vmem %s13, 1
        %v8531 = vld [vmem:[%s8530] sm:$0x1]
        %v8533 = vlaneseq
        %v8534 = vshrl.u32 %v8533, 7
        %v8535 = vsub.s32 0, %v8534
        %v8536 = vrot.slane %v8531, %v8535
        %v8602 = vunpack.c.l.b16 %v8466
        %v8603 = vunpack.c.l.b16 %v8467
        %v8604 = vunpack.c.l.b16 %v8468
        %v8605 = vunpack.c.l.b16 %v8469
        %v8606 = vunpack.c.l.b16 %v8470
        %v8607 = vunpack.c.l.b16 %v8471
        %v8608 = vunpack.c.l.b16 %v8472
        %v8609 = vunpack.c.l.b16 %v8473
        %v8610 = vunpack.c.l.b16 %v8474
        %v8611 = vunpack.c.l.b16 %v8475
        %v8612 = vunpack.c.l.b16 %v8476
        %v8613 = vunpack.c.l.b16 %v8477
        %v8614 = vunpack.c.l.b16 %v8478
        %v8615 = vunpack.c.l.b16 %v8479
        %v8616 = vunpack.c.l.b16 %v8480
        %v8617 = vunpack.c.l.b16 %v8481
        %v8618 = vunpack.c.l.b16 %v8482
        %v8619 = vunpack.c.l.b16 %v8483
        %v8620 = vunpack.c.l.b16 %v8484
        %v8621 = vunpack.c.l.b16 %v8485
        %v8622 = vunpack.c.l.b16 %v8486
        %v8623 = vunpack.c.l.b16 %v8487
        %v8624 = vunpack.c.l.b16 %v8488
        %v8625 = vunpack.c.l.b16 %v8489
        %v8626 = vunpack.c.l.b16 %v8490
        %v8627 = vunpack.c.l.b16 %v8491
        %v8628 = vunpack.c.l.b16 %v8492
        %v8629 = vunpack.c.l.b16 %v8493
        %v8630 = vunpack.c.l.b16 %v8494
        %v8631 = vunpack.c.l.b16 %v8495
        %v8632 = vunpack.c.l.b16 %v8496
        %v8633 = vunpack.c.l.b16 %v8497
        %v8634 = vunpack.c.l.b16 %v8498
        %v8635 = vunpack.c.l.b16 %v8499
        %v8636 = vunpack.c.l.b16 %v8500
        %v8637 = vunpack.c.l.b16 %v8501
        %v8638 = vunpack.c.l.b16 %v8502
        %v8639 = vunpack.c.l.b16 %v8503
        %v8640 = vunpack.c.l.b16 %v8504
        %v8641 = vunpack.c.l.b16 %v8505
        %v8642 = vunpack.c.l.b16 %v8506
        %v8643 = vunpack.c.l.b16 %v8507
        %v8644 = vunpack.c.l.b16 %v8508
        %v8645 = vunpack.c.l.b16 %v8509
        %v8646 = vunpack.c.l.b16 %v8510
        %v8647 = vunpack.c.l.b16 %v8511
        %v8648 = vunpack.c.l.b16 %v8512
        %v8649 = vunpack.c.l.b16 %v8513
        %v8650 = vunpack.c.l.b16 %v8514
        %v8651 = vunpack.c.l.b16 %v8515
        %v8652 = vunpack.c.l.b16 %v8516
        %v8653 = vunpack.c.l.b16 %v8517
        %v8654 = vunpack.c.l.b16 %v8518
        %v8655 = vunpack.c.l.b16 %v8519
        %v8656 = vunpack.c.l.b16 %v8520
        %v8657 = vunpack.c.l.b16 %v8521
        %v8658 = vunpack.c.l.b16 %v8522
        %v8659 = vunpack.c.l.b16 %v8523
        %v8660 = vunpack.c.l.b16 %v8524
        %v8661 = vunpack.c.l.b16 %v8525
        %v8662 = vunpack.c.l.b16 %v8526
        %v8663 = vunpack.c.l.b16 %v8527
        %v8664 = vunpack.c.l.b16 %v8528
        %v8665 = vunpack.c.l.b16 %v8529
        %v8666 = vpack.c.b16 %v8603, %v8602
        %v8667 = vpack.c.b16 %v8605, %v8604
        %v8668 = vpack.c.b16 %v8607, %v8606
        %v8669 = vpack.c.b16 %v8609, %v8608
        %v8670 = vpack.c.b16 %v8611, %v8610
        %v8671 = vpack.c.b16 %v8613, %v8612
        %v8672 = vpack.c.b16 %v8615, %v8614
        %v8673 = vpack.c.b16 %v8617, %v8616
        %v8674 = vpack.c.b16 %v8619, %v8618
        %v8675 = vpack.c.b16 %v8621, %v8620
        %v8676 = vpack.c.b16 %v8623, %v8622
        %v8677 = vpack.c.b16 %v8625, %v8624
        %v8678 = vpack.c.b16 %v8627, %v8626
        %v8679 = vpack.c.b16 %v8629, %v8628
        %v8680 = vpack.c.b16 %v8631, %v8630
        %v8681 = vpack.c.b16 %v8633, %v8632
        %v8682 = vpack.c.b16 %v8635, %v8634
        %v8683 = vpack.c.b16 %v8637, %v8636
        %v8684 = vpack.c.b16 %v8639, %v8638
        %v8685 = vpack.c.b16 %v8641, %v8640
        %v8686 = vpack.c.b16 %v8643, %v8642
        %v8687 = vpack.c.b16 %v8645, %v8644
        %v8688 = vpack.c.b16 %v8647, %v8646
        %v8689 = vpack.c.b16 %v8649, %v8648
        %v8690 = vpack.c.b16 %v8651, %v8650
        %v8691 = vpack.c.b16 %v8653, %v8652
        %v8692 = vpack.c.b16 %v8655, %v8654
        %v8693 = vpack.c.b16 %v8657, %v8656
        %v8694 = vpack.c.b16 %v8659, %v8658
        %v8695 = vpack.c.b16 %v8661, %v8660
        %v8696 = vpack.c.b16 %v8663, %v8662
        %v8697 = vpack.c.b16 %v8665, %v8664
        %8730 = vmatprep.subr.bf16.mxu0 0
        %8731 = vmatpush1.bf16.msra.mxu0 %v8666
        %8732 = vmatprep.subr.bf16.mxu0 0
        %8733 = vmatpush1.bf16.msra.mxu0 %v8667
        %8734 = vmatprep.subr.bf16.mxu0 0
        %8735 = vmatpush1.bf16.msra.mxu0 %v8668
        %8736 = vmatprep.subr.bf16.mxu0 0
        %8737 = vmatpush1.bf16.msra.mxu0 %v8669
        %8738 = vmatprep.subr.bf16.mxu0 0
        %8739 = vmatpush1.bf16.msra.mxu0 %v8670
        %8740 = vmatprep.subr.bf16.mxu0 0
        %8741 = vmatpush1.bf16.msra.mxu0 %v8671
        %8742 = vmatprep.subr.bf16.mxu0 0
        %8743 = vmatpush1.bf16.msra.mxu0 %v8672
        %8744 = vmatprep.subr.bf16.mxu0 0
        %8745 = vmatpush1.bf16.msra.mxu0 %v8673
        %8746 = vmatprep.subr.bf16.mxu0 0
        %8747 = vmatpush1.bf16.msra.mxu0 %v8674
        %8748 = vmatprep.subr.bf16.mxu0 0
        %8749 = vmatpush1.bf16.msra.mxu0 %v8675
        %8750 = vmatprep.subr.bf16.mxu0 0
        %8751 = vmatpush1.bf16.msra.mxu0 %v8676
        %8752 = vmatprep.subr.bf16.mxu0 0
        %8753 = vmatpush1.bf16.msra.mxu0 %v8677
        %8754 = vmatprep.subr.bf16.mxu0 0
        %8755 = vmatpush1.bf16.msra.mxu0 %v8678
        %8756 = vmatprep.subr.bf16.mxu0 0
        %8757 = vmatpush1.bf16.msra.mxu0 %v8679
        %8758 = vmatprep.subr.bf16.mxu0 0
        %8759 = vmatpush1.bf16.msra.mxu0 %v8680
        %8760 = vmatprep.subr.bf16.mxu0 0
        %8761 = vmatpush1.bf16.msra.mxu0 %v8681
        %8762 = vmatprep.mubr.bf16.mxu0 %v8450
        %8763 = vmatmul.mubr.bf16.gmra.mrb[0].mxu0 %v8449
        %v8764 = vpop.f32.mrb[0].mxu0
        %v8765 = vadd.f32 %v8536, %v8764
        %v8766 = vpop.f32.mrb[0].mxu0
        %v8767 = vpop.f32.mrb[0].mxu0
        %v8768 = vadd.f32 %v8536, %v8767
        %v8769 = vpop.f32.mrb[0].mxu0
        %8770 = vmatprep.mubr.bf16.mxu0 %v8454
        %8771 = vmatmul.mubr.bf16.gmra.mrb[0].mxu0 %v8453
        %v8772 = vpop.f32.mrb[0].mxu0
        %v8773 = vadd.f32 %v8536, %v8772
        %v8774 = vpop.f32.mrb[0].mxu0
        %v8775 = vpop.f32.mrb[0].mxu0
        %v8776 = vadd.f32 %v8536, %v8775
        %v8777 = vpop.f32.mrb[0].mxu0
        %8778 = vmatprep.mubr.bf16.mxu0 %v8458
        %8779 = vmatmul.mubr.bf16.gmra.mrb[0].mxu0 %v8457
        %v8780 = vpop.f32.mrb[0].mxu0
        %v8781 = vadd.f32 %v8536, %v8780
        %v8782 = vpop.f32.mrb[0].mxu0
        %v8783 = vpop.f32.mrb[0].mxu0
        %v8784 = vadd.f32 %v8536, %v8783
        %v8785 = vpop.f32.mrb[0].mxu0
        %8786 = vmatprep.mubr.bf16.mxu0 %v8462
        %8787 = vmatmul.mubr.bf16.gmra.mrb[0].mxu0 %v8461
        %v8788 = vpop.f32.mrb[0].mxu0
        %v8789 = vadd.f32 %v8536, %v8788
        %v8790 = vpop.f32.mrb[0].mxu0
        %v8791 = vpop.f32.mrb[0].mxu0
        %v8792 = vadd.f32 %v8536, %v8791
        %v8793 = vpop.f32.mrb[0].mxu0
        %8794 = vdwg.mxu0
        %8795 = vmatprep.subr.bf16.mxu0 0
        %8796 = vmatpush1.bf16.msra.mxu0 %v8682
        %8797 = vmatprep.subr.bf16.mxu0 0
        %8798 = vmatpush1.bf16.msra.mxu0 %v8683
        %8799 = vmatprep.subr.bf16.mxu0 0
        %8800 = vmatpush1.bf16.msra.mxu0 %v8684
        %8801 = vmatprep.subr.bf16.mxu0 0
        %8802 = vmatpush1.bf16.msra.mxu0 %v8685
        %8803 = vmatprep.subr.bf16.mxu0 0
        %8804 = vmatpush1.bf16.msra.mxu0 %v8686
        %8805 = vmatprep.subr.bf16.mxu0 0
        %8806 = vmatpush1.bf16.msra.mxu0 %v8687
        %8807 = vmatprep.subr.bf16.mxu0 0
        %8808 = vmatpush1.bf16.msra.mxu0 %v8688
        %8809 = vmatprep.subr.bf16.mxu0 0
        %8810 = vmatpush1.bf16.msra.mxu0 %v8689
        %8811 = vmatprep.subr.bf16.mxu0 0
        %8812 = vmatpush1.bf16.msra.mxu0 %v8690
        %8813 = vmatprep.subr.bf16.mxu0 0
        %8814 = vmatpush1.bf16.msra.mxu0 %v8691
        %8815 = vmatprep.subr.bf16.mxu0 0
        %8816 = vmatpush1.bf16.msra.mxu0 %v8692
        %8817 = vmatprep.subr.bf16.mxu0 0
        %8818 = vmatpush1.bf16.msra.mxu0 %v8693
        %8819 = vmatprep.subr.bf16.mxu0 0
        %8820 = vmatpush1.bf16.msra.mxu0 %v8694
        %8821 = vmatprep.subr.bf16.mxu0 0
        %8822 = vmatpush1.bf16.msra.mxu0 %v8695
        %8823 = vmatprep.subr.bf16.mxu0 0
        %8824 = vmatpush1.bf16.msra.mxu0 %v8696
        %8825 = vmatprep.subr.bf16.mxu0 0
        %8826 = vmatpush1.bf16.msra.mxu0 %v8697
        %8827 = vmatprep.mubr.bf16.mxu0 %v8452
        %8828 = vmatmul.mubr.bf16.gmra.mrb[0].mxu0 %v8451
        %v8829 = vpop.f32.mrb[0].mxu0
        %v8830 = vadd.f32 %v8765, %v8829
        %v8831 = vpop.f32.mrb[0].mxu0
        %v8832 = vpop.f32.mrb[0].mxu0
        %v8833 = vadd.f32 %v8768, %v8832
        %v8834 = vpop.f32.mrb[0].mxu0
        %8835 = vmatprep.mubr.bf16.mxu0 %v8456
        %8836 = vmatmul.mubr.bf16.gmra.mrb[0].mxu0 %v8455
        %v8837 = vpop.f32.mrb[0].mxu0
        %v8838 = vadd.f32 %v8773, %v8837
        %v8839 = vpop.f32.mrb[0].mxu0
        %v8840 = vpop.f32.mrb[0].mxu0
        %v8841 = vadd.f32 %v8776, %v8840
        %v8842 = vpop.f32.mrb[0].mxu0
        %8843 = vmatprep.mubr.bf16.mxu0 %v8460
        %8844 = vmatmul.mubr.bf16.gmra.mrb[0].mxu0 %v8459
        %v8845 = vpop.f32.mrb[0].mxu0
        %v8846 = vadd.f32 %v8781, %v8845
        %v8847 = vpop.f32.mrb[0].mxu0
        %v8848 = vpop.f32.mrb[0].mxu0
        %v8849 = vadd.f32 %v8784, %v8848
        %v8850 = vpop.f32.mrb[0].mxu0
        %8851 = vmatprep.mubr.bf16.mxu0 %v8464
        %8852 = vmatmul.mubr.bf16.gmra.mrb[0].mxu0 %v8463
        %v8853 = vpop.f32.mrb[0].mxu0
        %v8854 = vadd.f32 %v8789, %v8853
        %v8855 = vpop.f32.mrb[0].mxu0
        %v8856 = vpop.f32.mrb[0].mxu0
        %v8857 = vadd.f32 %v8792, %v8856
        %v8858 = vpop.f32.mrb[0].mxu0
        %8859 = vdwg.mxu0
        %v8860 = vadd.f32 %v7923, %v8830
        %v8861 = vadd.f32 %v7924, %v8833
        %v8862 = vadd.f32 %v7925, %v8838
        %v8863 = vadd.f32 %v7926, %v8841
        %v8864 = vadd.f32 %v7927, %v8846
        %v8865 = vadd.f32 %v7928, %v8849
        %v8866 = vadd.f32 %v7929, %v8854
        %v8867 = vadd.f32 %v7930, %v8857
        %v8868 = vpack.c.bf16 %v8861, %v8860
        %v8869 = vpack.c.bf16 %v8863, %v8862
        %v8870 = vpack.c.bf16 %v8865, %v8864
        %v8871 = vpack.c.bf16 %v8867, %v8866
        %v8872 = vld [vmem:[%s14] sm:$0xf]
        %v8873 = vld [vmem:[%s14 + $0x4] sm:$0xf]
        %v8874 = vld [vmem:[%s14 + $0x8] sm:$0xf]
        %v8875 = vld [vmem:[%s14 + $0xc] sm:$0xf]
        %v8876 = vld [vmem:[%s14 + $0x10] sm:$0xf]
        %v8877 = vld [vmem:[%s14 + $0x14] sm:$0xf]
        %v8878 = vld [vmem:[%s14 + $0x18] sm:$0xf]
        %v8879 = vld [vmem:[%s14 + $0x1c] sm:$0xf]
        %v8880 = vld [vmem:[%s14 + $0x20] sm:$0xf]
        %v8881 = vld [vmem:[%s14 + $0x24] sm:$0xf]
        %v8882 = vld [vmem:[%s14 + $0x28] sm:$0xf]
        %v8883 = vld [vmem:[%s14 + $0x2c] sm:$0xf]
        %v8884 = vld [vmem:[%s14 + $0x30] sm:$0xf]
        %v8885 = vld [vmem:[%s14 + $0x34] sm:$0xf]
        %v8886 = vld [vmem:[%s14 + $0x38] sm:$0xf]
        %v8887 = vld [vmem:[%s14 + $0x3c] sm:$0xf]
        %v8888 = vld [vmem:[%s15] sm:$0x1]
        %v8890 = vlaneseq
        %v8891 = vshrl.u32 %v8890, 7
        %v8892 = vsub.s32 0, %v8891
        %v8893 = vrot.slane %v8888, %v8892
        %v8911 = vunpack.c.l.b16 %v8872
        %v8912 = vunpack.c.l.b16 %v8873
        %v8913 = vunpack.c.l.b16 %v8874
        %v8914 = vunpack.c.l.b16 %v8875
        %v8915 = vunpack.c.l.b16 %v8876
        %v8916 = vunpack.c.l.b16 %v8877
        %v8917 = vunpack.c.l.b16 %v8878
        %v8918 = vunpack.c.l.b16 %v8879
        %v8919 = vunpack.c.l.b16 %v8880
        %v8920 = vunpack.c.l.b16 %v8881
        %v8921 = vunpack.c.l.b16 %v8882
        %v8922 = vunpack.c.l.b16 %v8883
        %v8923 = vunpack.c.l.b16 %v8884
        %v8924 = vunpack.c.l.b16 %v8885
        %v8925 = vunpack.c.l.b16 %v8886
        %v8926 = vunpack.c.l.b16 %v8887
        %v8927 = vpack.c.b16 %v8912, %v8911
        %v8928 = vpack.c.b16 %v8914, %v8913
        %v8929 = vpack.c.b16 %v8916, %v8915
        %v8930 = vpack.c.b16 %v8918, %v8917
        %v8931 = vpack.c.b16 %v8920, %v8919
        %v8932 = vpack.c.b16 %v8922, %v8921
        %v8933 = vpack.c.b16 %v8924, %v8923
        %v8934 = vpack.c.b16 %v8926, %v8925
        %8943 = vmatprep.subr.bf16.mxu0 0
        %8944 = vmatpush1.bf16.msra.mxu0 %v8927
        %8945 = vmatprep.subr.bf16.mxu0 0
        %8946 = vmatpush1.bf16.msra.mxu0 %v8928
        %8947 = vmatprep.subr.bf16.mxu0 0
        %8948 = vmatpush1.bf16.msra.mxu0 %v8929
        %8949 = vmatprep.subr.bf16.mxu0 0
        %8950 = vmatpush1.bf16.msra.mxu0 %v8930
        %8951 = vmatprep.subr.bf16.mxu0 0
        %8952 = vmatpush1.bf16.msra.mxu0 %v8931
        %8953 = vmatprep.subr.bf16.mxu0 0
        %8954 = vmatpush1.bf16.msra.mxu0 %v8932
        %8955 = vmatprep.subr.bf16.mxu0 0
        %8956 = vmatpush1.bf16.msra.mxu0 %v8933
        %8957 = vmatprep.subr.bf16.mxu0 0
        %8958 = vmatpush1.bf16.msra.mxu0 %v8934
        %8959 = vmatprep.subr.bf16.mxu0 0
        %8960 = vmatpush1.bf16.msra.mxu0 0
        %8961 = vmatprep.subr.bf16.mxu0 0
        %8962 = vmatpush1.bf16.msra.mxu0 0
        %8963 = vmatprep.subr.bf16.mxu0 0
        %8964 = vmatpush1.bf16.msra.mxu0 0
        %8965 = vmatprep.subr.bf16.mxu0 0
        %8966 = vmatpush1.bf16.msra.mxu0 0
        %8967 = vmatprep.subr.bf16.mxu0 0
        %8968 = vmatpush1.bf16.msra.mxu0 0
        %8969 = vmatprep.subr.bf16.mxu0 0
        %8970 = vmatpush1.bf16.msra.mxu0 0
        %8971 = vmatprep.subr.bf16.mxu0 0
        %8972 = vmatpush1.bf16.msra.mxu0 0
        %8973 = vmatprep.subr.bf16.mxu0 0
        %8974 = vmatpush1.bf16.msra.mxu0 0
        %8975 = vmatprep.mubr.bf16.mxu0 0
        %8976 = vmatmul.mubr.bf16.gmra.mrb[0].mxu0 %v8868
        %v8977 = vpop.f32.mrb[0].mxu0
        %v8978 = vadd.f32 %v8893, %v8977
        %v8979 = vpop.f32.mrb[0].mxu0
        %v8980 = vpop.f32.mrb[0].mxu0
        %v8981 = vadd.f32 %v8893, %v8980
        %v8982 = vpop.f32.mrb[0].mxu0
        %8983 = vmatprep.mubr.bf16.mxu0 0
        %8984 = vmatmul.mubr.bf16.gmra.mrb[0].mxu0 %v8869
        %v8985 = vpop.f32.mrb[0].mxu0
        %v8986 = vadd.f32 %v8893, %v8985
        %v8987 = vpop.f32.mrb[0].mxu0
        %v8988 = vpop.f32.mrb[0].mxu0
        %v8989 = vadd.f32 %v8893, %v8988
        %v8990 = vpop.f32.mrb[0].mxu0
        %8991 = vmatprep.mubr.bf16.mxu0 0
        %8992 = vmatmul.mubr.bf16.gmra.mrb[0].mxu0 %v8870
        %v8993 = vpop.f32.mrb[0].mxu0
        %v8994 = vadd.f32 %v8893, %v8993
        %v8995 = vpop.f32.mrb[0].mxu0
        %v8996 = vpop.f32.mrb[0].mxu0
        %v8997 = vadd.f32 %v8893, %v8996
        %v8998 = vpop.f32.mrb[0].mxu0
        %8999 = vmatprep.mubr.bf16.mxu0 0
        %9000 = vmatmul.mubr.bf16.gmra.mrb[0].mxu0 %v8871
        %v9001 = vpop.f32.mrb[0].mxu0
        %v9002 = vadd.f32 %v8893, %v9001
        %v9003 = vpop.f32.mrb[0].mxu0
        %v9004 = vpop.f32.mrb[0].mxu0
        %v9005 = vadd.f32 %v8893, %v9004
        %v9006 = vpop.f32.mrb[0].mxu0
        %9007 = vdwg.mxu0
        %9008 = vst [vmem:[%s514] sm:$0xff] %v8978
        %9009 = vst [vmem:[%s514 + $0x8] sm:$0xff] %v8981
        %9010 = vst [vmem:[%s514 + $0x10] sm:$0xff] %v8986
        %9011 = vst [vmem:[%s514 + $0x18] sm:$0xff] %v8989
        %9012 = vst [vmem:[%s514 + $0x20] sm:$0xff] %v8994
        %9013 = vst [vmem:[%s514 + $0x28] sm:$0xff] %v8997
        %9014 = vst [vmem:[%s514 + $0x30] sm:$0xff] %v9002
        %9015 = vst [vmem:[%s514 + $0x38] sm:$0xff] %v9005
        %s9016 = sand.u32 %s379, 1
        %s9017 = scalar_lea.sflag [#allocation3], %s9016
        %s9018 = sand.u32 %s379, 1
        %s9019 = smul.addr %s9018, 64
        %s9020 = scalar_lea.vmem [#allocation2], %s9019
        // Predicated region
        $region85: #{tpu_custom_call.1} parent=83 // pred_check
          %p9021 = pneg %p389
        $region86: #{tpu_custom_call.1} parent=83 // pred_check_branch
          %9023 = sbr.rel (%p9021) target = $region88
        $region87: #{tpu_custom_call.1} parent=83 // pred_region
          %s9025 = ssub.s32 1024, 1024
          %9026 = vsyncadd %s9017, %s9025
          %s9027 = smul.addr %s30, 8
          %s9028 = smul.addr %s9027, 128
          %s9029 = scalar_lea.hbm %s16, %s9028
          %s9030 = sshll.u32 %s9020, 4
          %s9031 = int_to_ptr.vmem [resolvable:$true] %s9030
          %9036 = dma.vmem_to_hbm [thread:$0]  %s9031, 1024, %s9029, %s9017, 128, 128, 8
        $region88: #{tpu_custom_call.1} parent=83 // pred_fallthru
          _
      $region84: #{tpu_custom_call.1} parent=5 // pred_fallthru
        _
      %p9037 = scmp.le.s32.totalorder 2, %s25
      // Predicated region
      $region89: #{tpu_custom_call.1} parent=5 // pred_check
        %p9038 = pneg %p9037
      $region90: #{tpu_custom_call.1} parent=5 // pred_check_branch
        %9040 = sbr.rel (%p9038) target = $region92
      $region91: #{tpu_custom_call.1} parent=5 // pred_region
        %s9041 = ssub.s32 %s25, 2
        // Predicated region
        $region93: #{tpu_custom_call.1} parent=91 // pred_check
          %p9042 = pneg %p395
        $region94: #{tpu_custom_call.1} parent=91 // pred_check_branch
          %9044 = sbr.rel (%p9042) target = $region96
        $region95: #{tpu_custom_call.1} parent=91 // pred_region
          %s9045 = sand.u32 %s380, 1
          %s9046 = scalar_lea.sflag [#allocation3], %s9045
          %s9047 = sand.u32 %s380, 1
          %s9048 = smul.addr %s9047, 64
          %s9049 = scalar_lea.vmem [#allocation2], %s9048
          %9050 = dma.done %s9046, 1024
        $region96: #{tpu_custom_call.1} parent=91 // pred_fallthru
          _
      $region92: #{tpu_custom_call.1} parent=5 // pred_fallthru
        _
    $region6: #{tpu_custom_call.1} parent=1 // loop_footer
      %s29 = sadd.s32 1, %s25
    $region7: #{tpu_custom_call.1} parent=1 // loop_footer_branch
      %24 = sbr.rel target = $region3
    $region8: #{tpu_custom_call.1} parent=1 // loop_exit
      _
    %9051 = vsyncpa [#allocation3], 1
    %s9052 = scalar_lea.sflag [#allocation3], 1
    %9053 = vsyncpa %s9052, 1

</llo_original>
